<compile_context>
chip_gen: v6e
topology: v6e:2x2x1
jax: 0.10.0
libtpu: 0.0.40
codegen_flags: <defaults>
</compile_context>

<pallas_src>
import functools

import jax
import jax.numpy as jnp
from jax import lax
from jax.experimental import pallas as pl
from jax.experimental.pallas import tpu as pltpu


# ----------------------------------------------------------------------------
# In-kernel helpers
# ----------------------------------------------------------------------------
def _col_ids(Wl, HWl):
    """Column index (w = i mod W) of every flattened spatial position."""
    i = lax.broadcasted_iota(jnp.int32, (1, HWl), 1)
    if (Wl & (Wl - 1)) == 0:          # power of two -> cheap bitwise AND
        return i & (Wl - 1)
    return i % Wl


def _conv3x3_from_pad(pad_ref, w_ref, b_ref, *, Wl, HWl, lpad, masks, relu=True):
    """Same-padded 3x3 conv in the lane-dense (C, H*W) layout.

    pad_ref : (Cmax, lpad + HWl + Wl + 1) VMEM scratch.  Rows [0:cin) of lanes
              [lpad, lpad+HWl) hold the input; all other lanes are zero and
              supply the conv zero padding (top/bottom halo).
    w_ref   : (9, Cout, Cin) weights, tap-major (t = ky*3 + kx, PyTorch
              weight[o, c, ky, kx] == w_ref[t, o, c]).
    b_ref   : (Cout, 1) bias.
    Returns : (Cout, HWl) f32.
    Each tap is one MXU matmul (Cout,Cin)@(Cin,HWl) on a statically shifted
    view of the padded buffer; left/right column overflow is masked.
    """
    cin = w_ref.shape[2]
    mask_l, mask_r = masks
    acc = None
    t = 0
    for dy in (-1, 0, 1):              # static unroll: straight-line code
        for dx in (-1, 0, 1):
            slab = pad_ref[pl.ds(0, cin), pl.ds(lpad + dy * Wl + dx, HWl)]
            if dx == -1:
                slab = slab * mask_l   # w-1 < 0 positions
            elif dx == 1:
                slab = slab * mask_r   # w+1 >= W positions
            tap = jnp.dot(w_ref[t], slab, preferred_element_type=jnp.float32)
            acc = tap if acc is None else acc + tap
            t += 1
    acc = acc + b_ref[...]             # (Cout,1) broadcasts over lanes
    return jnp.maximum(acc, 0.0) if relu else acc


# ----------------------------------------------------------------------------
# Fused DIP-UNet kernel (single pallas_call, everything VMEM-resident)
# ----------------------------------------------------------------------------
def _dip_unet_kernel(
    x_ref,
    w_e1a, b_e1a, w_e1b, b_e1b,
    w_b1a, b_b1a, w_b1b, b_b1b,
    w_d1a, b_d1a, w_d1b, b_d1b,
    w_out, b_out,
    pool_ref, up_ref,
    o_ref,
    pad0, pad1,
    *, H, W, lp, skip,
):
    HW0 = H * W
    H1, W1 = H // 2, W // 2
    HW1 = H1 * W1

    # Zero the padded scratch once; the interior lanes are always overwritten
    # before being read, the halo lanes stay zero and act as conv padding.
    pad0[...] = jnp.zeros_like(pad0)
    pad1[...] = jnp.zeros_like(pad1)

    # Column-validity masks for the +/-1 lane shifts — hoisted once per level.
    c0 = _col_ids(W, HW0)
    masks0 = ((c0 >= 1).astype(jnp.float32), (c0 <= W - 2).astype(jnp.float32))
    c1 = _col_ids(W1, HW1)
    masks1 = ((c1 >= 1).astype(jnp.float32), (c1 <= W1 - 2).astype(jnp.float32))

    def put(pad, row, hw, val):
        # lane-aligned interior write (lp is a multiple of 128)
        pad[pl.ds(row, val.shape[0]), pl.ds(lp, hw)] = val

    conv0 = functools.partial(_conv3x3_from_pad, pad0, Wl=W, HWl=HW0,
                              lpad=lp, masks=masks0)
    conv1 = functools.partial(_conv3x3_from_pad, pad1, Wl=W1, HWl=HW1,
                              lpad=lp, masks=masks1)

    # ------------------------- encoder (H, W) -------------------------
    put(pad0, 0, HW0, x_ref[...])
    e1 = conv0(w_e1a, b_e1a)
    put(pad0, 0, HW0, e1)
    e1 = conv0(w_e1b, b_e1b)                        # (base, HW0)

    # ------------------- 2x2 max-pool (lane dense) ---------------------
    ce = e1.shape[0]
    put(pad0, 0, HW0, e1)
    s01 = pad0[pl.ds(0, ce), pl.ds(lp + 1, HW0)]
    s10 = pad0[pl.ds(0, ce), pl.ds(lp + W, HW0)]
    s11 = pad0[pl.ds(0, ce), pl.ds(lp + W + 1, HW0)]
    blockmax = jnp.maximum(jnp.maximum(e1, s01), jnp.maximum(s10, s11))
    # one selection matmul picks the even-row/even-col block maxima
    p1 = jnp.dot(blockmax, pool_ref[...], preferred_element_type=jnp.float32)

    # ---------------------- bottleneck (H/2, W/2) ----------------------
    put(pad1, 0, HW1, p1)
    bk = conv1(w_b1a, b_b1a)
    put(pad1, 0, HW1, bk)
    bk = conv1(w_b1b, b_b1b)                        # (2*base, HW1)

    # -------------------------- decoder --------------------------------
    # nearest 2x upsample as one selection matmul
    u1 = jnp.dot(bk, up_ref[...], preferred_element_type=jnp.float32)
    # skip-connection "concat" = write [upsampled ; encoder] into adjacent
    # scratch rows (no jnp.concatenate needed)
    put(pad0, 0, HW0, u1)
    put(pad0, u1.shape[0], HW0, e1 if skip else jnp.zeros_like(e1))
    d1 = conv0(w_d1a, b_d1a)                        # Cin = 3*base
    put(pad0, 0, HW0, d1)
    d1 = conv0(w_d1b, b_d1b)

    # ------------------------ 1x1 linear head --------------------------
    out = jnp.dot(w_out[...], d1, preferred_element_type=jnp.float32) + b_out[...]
    o_ref[...] = out.astype(o_ref.dtype)            # lane-dense (Cout, H*W)


# ----------------------------------------------------------------------------
# Host-side selection matrices for pool / upsample (exact 0/1 matrices)
# ----------------------------------------------------------------------------
def _pool_select_matrix(H, W):
    """S (H*W, H*W/4): pooled = blockmax @ S (selects even rows / even cols)."""
    HW, W1 = H * W, W // 2
    HW1 = (H // 2) * W1
    j = jnp.arange(HW1)
    src = 2 * (j // W1) * W + 2 * (j % W1)
    return (jnp.arange(HW)[:, None] == src[None, :]).astype(jnp.float32)


def _upsample_matrix(H1, W1):
    """U (H1*W1, 4*H1*W1): nearest-neighbour 2x upsample as up = x @ U."""
    H, W = 2 * H1, 2 * W1
    HW, HW1 = H * W, H1 * W1
    i = jnp.arange(HW)
    src = (i // W // 2) * W1 + (i % W) // 2
    return (jnp.arange(HW1)[:, None] == src[None, :]).astype(jnp.float32)


# ----------------------------------------------------------------------------
# DIP-UNet parameters (PyTorch Conv2d-style uniform init)
# weight layout: (9, Cout, Cin) with w[ky*3+kx, o, c] == torch weight[o,c,ky,kx]
# ----------------------------------------------------------------------------
def _conv3_init(key, cin, cout):
    wk, bk = jax.random.split(key)
    bound = float(cin * 9) ** -0.5
    w = jax.random.uniform(wk, (9, cout, cin), jnp.float32, -bound, bound)
    b = jax.random.uniform(bk, (cout, 1), jnp.float32, -bound, bound)
    return w, b


def _conv1_init(key, cin, cout):
    wk, bk = jax.random.split(key)
    bound = float(cin) ** -0.5
    w = jax.random.uniform(wk, (cout, cin), jnp.float32, -bound, bound)
    b = jax.random.uniform(bk, (cout, 1), jnp.float32, -bound, bound)
    return w, b


def init_dip_unet_params(key, in_ch, out_ch, base=8):
    k = jax.random.split(key, 7)
    return {
        "e1a": _conv3_init(k[0], in_ch, base),
        "e1b": _conv3_init(k[1], base, base),
        "b1a": _conv3_init(k[2], base, 2 * base),
        "b1b": _conv3_init(k[3], 2 * base, 2 * base),
        "d1a": _conv3_init(k[4], 3 * base, base),
        "d1b": _conv3_init(k[5], base, base),
        "out": _conv1_init(k[6], base, out_ch),
    }


# ----------------------------------------------------------------------------
# Fused forward wrapper (one pallas_call for the whole network)
# ----------------------------------------------------------------------------
def dip_unet_forward(params, x_nchw, skip_connections=True):
    """x_nchw: (1, Cin, H, W) f32 -> (1, Cout, H, W) f32."""
    _, cin, H, W = x_nchw.shape
    HW = H * W
    H1, W1 = H // 2, W // 2
    HW1 = H1 * W1
    # lane-aligned start of the interior region (>= W+1 halo lanes before it)
    lp = ((W + 1 + 127) // 128) * 128

    x_flat = x_nchw[0].reshape(cin, HW).astype(jnp.float32)
    pool = _pool_select_matrix(H, W)        # (HW,  HW1)
    up = _upsample_matrix(H1, W1)           # (HW1, HW)

    names3 = ("e1a", "e1b", "b1a", "b1b", "d1a", "d1b")
    inputs = [x_flat]
    in_specs = [pl.BlockSpec(x_flat.shape, lambda i: (0, 0))]
    for name in names3:
        w, b = params[name]
        inputs += [w, b]
        in_specs += [pl.BlockSpec(w.shape, lambda i: (0, 0, 0)),
                     pl.BlockSpec(b.shape, lambda i: (0, 0))]
    w_o, b_o = params["out"]
    inputs += [w_o, b_o, pool, up]
    in_specs += [pl.BlockSpec(w_o.shape, lambda i: (0, 0)),
                 pl.BlockSpec(b_o.shape, lambda i: (0, 0)),
                 pl.BlockSpec(pool.shape, lambda i: (0, 0)),
                 pl.BlockSpec(up.shape, lambda i: (0, 0))]

    base = params["e1a"][0].shape[1]
    out_ch = w_o.shape[0]

    kern = functools.partial(_dip_unet_kernel, H=H, W=W, lp=lp,
                             skip=skip_connections)
    out_flat = pl.pallas_call(
        kern,
        grid=(1,),
        out_shape=jax.ShapeDtypeStruct((out_ch, HW), jnp.float32),
        in_specs=in_specs,
        out_specs=pl.BlockSpec((out_ch, HW), lambda i: (0, 0)),
        scratch_shapes=[
            pltpu.VMEM((3 * base, lp + HW + W + 1), jnp.float32),    # level 0
            pltpu.VMEM((2 * base, lp + HW1 + W1 + 1), jnp.float32),  # level 1
        ],
        compiler_params=pltpu.CompilerParams(
            dimension_semantics=("arbitrary",)),
    )(*inputs)
    return out_flat.reshape(out_ch, H, W)[None]


def noncartesian_scampi_inference(params, x_nchw, skip_connections=True):
    """NonCartesianScampi.inference(): z = model(x); toComplex(z,1).squeeze(0)."""
    z = dip_unet_forward(params, x_nchw, skip_connections)
    return (z[:, 0] + 1j * z[:, 1]).astype(jnp.complex64)[0]   # (H, W) complex64


# ----------------------------------------------------------------------------
# Pure-JAX reference (for in-script validation of the fused kernel)
# ----------------------------------------------------------------------------
def _conv3x3_ref(x_chw, w_taps, b, relu=True):
    cin, Hh, Ww = x_chw.shape
    xp = jnp.pad(x_chw, ((0, 0), (1, 1), (1, 1)))
    acc = None
    t = 0
    for dy in (-1, 0, 1):
        for dx in (-1, 0, 1):
            sh = lax.dynamic_slice(xp, (0, 1 + dy, 1 + dx), (cin, Hh, Ww))
            tap = jnp.einsum("oc,chw->ohw", w_taps[t], sh,
                             precision=lax.Precision.HIGHEST)
            acc = tap if acc is None else acc + tap
            t += 1
    acc = acc + b.reshape(-1, 1, 1)
    return jnp.maximum(acc, 0.0) if relu else acc


def _reference_inference(params, x_nchw, skip_connections=True):
    x = x_nchw[0].astype(jnp.float32)
    e1 = _conv3x3_ref(x, *params["e1a"])
    e1 = _conv3x3_ref(e1, *params["e1b"])
    c, Hh, Ww = e1.shape
    p1 = e1.reshape(c, Hh // 2, 2, Ww // 2, 2).max(axis=(2, 4))
    bk = _conv3x3_ref(p1, *params["b1a"])
    bk = _conv3x3_ref(bk, *params["b1b"])
    u1 = jnp.repeat(jnp.repeat(bk, 2, axis=1), 2, axis=2)
    sk = e1 if skip_connections else jnp.zeros_like(e1)
    d1 = _conv3x3_ref(jnp.concatenate([u1, sk], axis=0), *params["d1a"])
    d1 = _conv3x3_ref(d1, *params["d1b"])
    w_o, b_o = params["out"]
    z = jnp.einsum("oc,chw->ohw", w_o, d1,
                   precision=lax.Precision.HIGHEST) + b_o.reshape(-1, 1, 1)
    return (z[0] + 1j * z[1]).astype(jnp.complex64)


# ----------------------------------------------------------------------------
if __name__ == "__main__":
    H = W = 16            # im_size
    n_channels = 2        # real/imag channels (UcnnReco.n_channels)

    key = jax.random.PRNGKey(0)
    kx, kp = jax.random.split(key)

    # self.x = torch.rand((n_channels, H, W)).unsqueeze(0) -> (1, 2, H, W) f32
    x = jax.random.uniform(kx, (1, n_channels, H, W), dtype=jnp.float32)
    params = init_dip_unet_params(kp, n_channels, n_channels, base=8)

    fwd = jax.jit(lambda p, xx: noncartesian_scampi_inference(p, xx, True))
    res = jax.block_until_ready(fwd(params, x))

    assert res.shape == (H, W), res.shape
    assert res.dtype == jnp.complex64, res.dtype
    assert bool(jnp.all(jnp.isfinite(jnp.abs(res))))

    # validate the fused Pallas network against a pure-JAX reference
    res_ref = _reference_inference(params, x, True)
    scale = float(jnp.max(jnp.abs(res_ref))) + 1e-6
    err = float(jnp.max(jnp.abs(res - res_ref)))
    assert err <= 5e-2 * scale + 1e-5, (err, scale)

    print("KERNEL_OK")
</pallas_src>

<mosaic_0001>
module attributes {stable_mosaic.version = 11 : i64} {
  func.func @_dip_unet_kernel(%arg0: i32, %arg1: memref<2x256xf32, #tpu.memory_space<vmem>>, %arg2: memref<9x8x2xf32, #tpu.memory_space<vmem>>, %arg3: memref<8x1xf32, #tpu.memory_space<vmem>>, %arg4: memref<9x8x8xf32, #tpu.memory_space<vmem>>, %arg5: memref<8x1xf32, #tpu.memory_space<vmem>>, %arg6: memref<9x16x8xf32, #tpu.memory_space<vmem>>, %arg7: memref<16x1xf32, #tpu.memory_space<vmem>>, %arg8: memref<9x16x16xf32, #tpu.memory_space<vmem>>, %arg9: memref<16x1xf32, #tpu.memory_space<vmem>>, %arg10: memref<9x8x24xf32, #tpu.memory_space<vmem>>, %arg11: memref<8x1xf32, #tpu.memory_space<vmem>>, %arg12: memref<9x8x8xf32, #tpu.memory_space<vmem>>, %arg13: memref<8x1xf32, #tpu.memory_space<vmem>>, %arg14: memref<2x8xf32, #tpu.memory_space<vmem>>, %arg15: memref<2x1xf32, #tpu.memory_space<vmem>>, %arg16: memref<256x64xf32, #tpu.memory_space<vmem>>, %arg17: memref<64x256xf32, #tpu.memory_space<vmem>>, %arg18: memref<2x256xf32, #tpu.memory_space<vmem>>, %arg19: memref<24x401xf32, #tpu.memory_space<vmem>>, %arg20: memref<16x201xf32, #tpu.memory_space<vmem>>) attributes {dimension_semantics = [#tpu.dimension_semantics<arbitrary>], iteration_bounds = array<i64: 1>, scalar_prefetch = 0 : i64, scratch_operands = 2 : i64, tpu.core_type = #tpu.core_type<tc>, window_params = [{pipeline_mode = #tpu.pipeline_mode<synchronous>, transform_indices = @transform_0, window_bounds = array<i64: 2, 256>}, {pipeline_mode = #tpu.pipeline_mode<synchronous>, transform_indices = @transform_1, window_bounds = array<i64: 9, 8, 2>}, {pipeline_mode = #tpu.pipeline_mode<synchronous>, transform_indices = @transform_2, window_bounds = array<i64: 8, 1>}, {pipeline_mode = #tpu.pipeline_mode<synchronous>, transform_indices = @transform_3, window_bounds = array<i64: 9, 8, 8>}, {pipeline_mode = #tpu.pipeline_mode<synchronous>, transform_indices = @transform_4, window_bounds = array<i64: 8, 1>}, {pipeline_mode = #tpu.pipeline_mode<synchronous>, transform_indices = @transform_5, window_bounds = array<i64: 9, 16, 8>}, {pipeline_mode = #tpu.pipeline_mode<synchronous>, transform_indices = @transform_6, window_bounds = array<i64: 16, 1>}, {pipeline_mode = #tpu.pipeline_mode<synchronous>, transform_indices = @transform_7, window_bounds = array<i64: 9, 16, 16>}, {pipeline_mode = #tpu.pipeline_mode<synchronous>, transform_indices = @transform_8, window_bounds = array<i64: 16, 1>}, {pipeline_mode = #tpu.pipeline_mode<synchronous>, transform_indices = @transform_9, window_bounds = array<i64: 9, 8, 24>}, {pipeline_mode = #tpu.pipeline_mode<synchronous>, transform_indices = @transform_10, window_bounds = array<i64: 8, 1>}, {pipeline_mode = #tpu.pipeline_mode<synchronous>, transform_indices = @transform_11, window_bounds = array<i64: 9, 8, 8>}, {pipeline_mode = #tpu.pipeline_mode<synchronous>, transform_indices = @transform_12, window_bounds = array<i64: 8, 1>}, {pipeline_mode = #tpu.pipeline_mode<synchronous>, transform_indices = @transform_13, window_bounds = array<i64: 2, 8>}, {pipeline_mode = #tpu.pipeline_mode<synchronous>, transform_indices = @transform_14, window_bounds = array<i64: 2, 1>}, {pipeline_mode = #tpu.pipeline_mode<synchronous>, transform_indices = @transform_15, window_bounds = array<i64: 256, 64>}, {pipeline_mode = #tpu.pipeline_mode<synchronous>, transform_indices = @transform_16, window_bounds = array<i64: 64, 256>}, {pipeline_mode = #tpu.pipeline_mode<synchronous>, transform_indices = @transform_17, window_bounds = array<i64: 2, 256>}]} {
    %cst = arith.constant 0.000000e+00 : f32
    %0 = vector.broadcast %cst : f32 to vector<24x401xf32>
    %c0 = arith.constant 0 : index
    %c0_0 = arith.constant 0 : index
    %1 = vector.load %arg19[%c0, %c0_0] : memref<24x401xf32, #tpu.memory_space<vmem>>, vector<24x401xf32>
    tpu.vector_store %arg19[%c0, %c0_0], %0 {strides = array<i32>} : memref<24x401xf32, #tpu.memory_space<vmem>>, vector<24x401xf32>,
    %cst_1 = arith.constant 0.000000e+00 : f32
    %2 = vector.broadcast %cst_1 : f32 to vector<16x201xf32>
    %c0_2 = arith.constant 0 : index
    %c0_3 = arith.constant 0 : index
    %3 = vector.load %arg20[%c0_2, %c0_3] : memref<16x201xf32, #tpu.memory_space<vmem>>, vector<16x201xf32>
    tpu.vector_store %arg20[%c0_2, %c0_3], %2 {strides = array<i32>} : memref<16x201xf32, #tpu.memory_space<vmem>>, vector<16x201xf32>,
    %4 = tpu.iota {dimensions = array<i32: 1>} : vector<1x256xi32>
    %c15_i32 = arith.constant 15 : i32
    %5 = vector.broadcast %c15_i32 : i32 to vector<1x256xi32>
    %6 = arith.andi %4, %5 : vector<1x256xi32>
    %c1_i32 = arith.constant 1 : i32
    %7 = vector.broadcast %c1_i32 : i32 to vector<1x256xi32>
    %8 = arith.cmpi sge, %6, %7 : vector<1x256xi32>
    %9 = arith.extui %8 : vector<1x256xi1> to vector<1x256xi32>
    %10 = arith.sitofp %9 : vector<1x256xi32> to vector<1x256xf32>
    %c14_i32 = arith.constant 14 : i32
    %11 = vector.broadcast %c14_i32 : i32 to vector<1x256xi32>
    %12 = arith.cmpi sle, %6, %11 : vector<1x256xi32>
    %13 = arith.extui %12 : vector<1x256xi1> to vector<1x256xi32>
    %14 = arith.sitofp %13 : vector<1x256xi32> to vector<1x256xf32>
    %15 = tpu.iota {dimensions = array<i32: 1>} : vector<1x64xi32>
    %c7_i32 = arith.constant 7 : i32
    %16 = vector.broadcast %c7_i32 : i32 to vector<1x64xi32>
    %17 = arith.andi %15, %16 : vector<1x64xi32>
    %c1_i32_4 = arith.constant 1 : i32
    %18 = vector.broadcast %c1_i32_4 : i32 to vector<1x64xi32>
    %19 = arith.cmpi sge, %17, %18 : vector<1x64xi32>
    %20 = arith.extui %19 : vector<1x64xi1> to vector<1x64xi32>
    %21 = arith.sitofp %20 : vector<1x64xi32> to vector<1x64xf32>
    %c6_i32 = arith.constant 6 : i32
    %22 = vector.broadcast %c6_i32 : i32 to vector<1x64xi32>
    %23 = arith.cmpi sle, %17, %22 : vector<1x64xi32>
    %24 = arith.extui %23 : vector<1x64xi1> to vector<1x64xi32>
    %25 = arith.sitofp %24 : vector<1x64xi32> to vector<1x64xf32>
    %c0_5 = arith.constant 0 : index
    %c0_6 = arith.constant 0 : index
    %26 = vector.load %arg1[%c0_5, %c0_6] : memref<2x256xf32, #tpu.memory_space<vmem>>, vector<2x256xf32>
    %c0_7 = arith.constant 0 : index
    %c128 = arith.constant 128 : index
    %27 = vector.load %arg19[%c0_7, %c128] : memref<24x401xf32, #tpu.memory_space<vmem>>, vector<2x256xf32>
    tpu.vector_store %arg19[%c0_7, %c128], %26 {strides = array<i32>} : memref<24x401xf32, #tpu.memory_space<vmem>>, vector<2x256xf32>,
    %c0_8 = arith.constant 0 : index
    %c111 = arith.constant 111 : index
    %28 = vector.load %arg19[%c0_8, %c111] : memref<24x401xf32, #tpu.memory_space<vmem>>, vector<2x256xf32>
    %29 = vector.broadcast %10 : vector<1x256xf32> to vector<2x256xf32>
    %30 = arith.mulf %28, %29 : vector<2x256xf32>
    %c0_9 = arith.constant 0 : index
    %c0_10 = arith.constant 0 : index
    %c0_11 = arith.constant 0 : index
    %31 = vector.load %arg2[%c0_9, %c0_10, %c0_11] : memref<9x8x2xf32, #tpu.memory_space<vmem>>, vector<1x8x2xf32>
    %32 = vector.shape_cast %31 : vector<1x8x2xf32> to vector<8x2xf32>
    %cst_12 = arith.constant dense<0.000000e+00> : vector<8x256xf32>
    %33 = tpu.matmul %32, %30, %cst_12 {dimension_numbers = #tpu.dot_dimension_numbers<[1], [0], [0], [1], [0, 0, 1, 1], [], []>} : vector<8x2xf32>, vector<2x256xf32>, vector<8x256xf32> -> vector<8x256xf32>
    %c0_13 = arith.constant 0 : index
    %c112 = arith.constant 112 : index
    %34 = vector.load %arg19[%c0_13, %c112] : memref<24x401xf32, #tpu.memory_space<vmem>>, vector<2x256xf32>
    %c1 = arith.constant 1 : index
    %c0_14 = arith.constant 0 : index
    %c0_15 = arith.constant 0 : index
    %35 = vector.load %arg2[%c1, %c0_14, %c0_15] : memref<9x8x2xf32, #tpu.memory_space<vmem>>, vector<1x8x2xf32>
    %36 = vector.shape_cast %35 : vector<1x8x2xf32> to vector<8x2xf32>
    %cst_16 = arith.constant dense<0.000000e+00> : vector<8x256xf32>
    %37 = tpu.matmul %36, %34, %cst_16 {dimension_numbers = #tpu.dot_dimension_numbers<[1], [0], [0], [1], [0, 0, 1, 1], [], []>} : vector<8x2xf32>, vector<2x256xf32>, vector<8x256xf32> -> vector<8x256xf32>
    %38 = arith.addf %33, %37 : vector<8x256xf32>
    %c0_17 = arith.constant 0 : index
    %c113 = arith.constant 113 : index
    %39 = vector.load %arg19[%c0_17, %c113] : memref<24x401xf32, #tpu.memory_space<vmem>>, vector<2x256xf32>
    %40 = vector.broadcast %14 : vector<1x256xf32> to vector<2x256xf32>
    %41 = arith.mulf %39, %40 : vector<2x256xf32>
    %c2 = arith.constant 2 : index
    %c0_18 = arith.constant 0 : index
    %c0_19 = arith.constant 0 : index
    %42 = vector.load %arg2[%c2, %c0_18, %c0_19] : memref<9x8x2xf32, #tpu.memory_space<vmem>>, vector<1x8x2xf32>
    %43 = vector.shape_cast %42 : vector<1x8x2xf32> to vector<8x2xf32>
    %cst_20 = arith.constant dense<0.000000e+00> : vector<8x256xf32>
    %44 = tpu.matmul %43, %41, %cst_20 {dimension_numbers = #tpu.dot_dimension_numbers<[1], [0], [0], [1], [0, 0, 1, 1], [], []>} : vector<8x2xf32>, vector<2x256xf32>, vector<8x256xf32> -> vector<8x256xf32>
    %45 = arith.addf %38, %44 : vector<8x256xf32>
    %c0_21 = arith.constant 0 : index
    %c127 = arith.constant 127 : index
    %46 = vector.load %arg19[%c0_21, %c127] : memref<24x401xf32, #tpu.memory_space<vmem>>, vector<2x256xf32>
    %47 = vector.broadcast %10 : vector<1x256xf32> to vector<2x256xf32>
    %48 = arith.mulf %46, %47 : vector<2x256xf32>
    %c3 = arith.constant 3 : index
    %c0_22 = arith.constant 0 : index
    %c0_23 = arith.constant 0 : index
    %49 = vector.load %arg2[%c3, %c0_22, %c0_23] : memref<9x8x2xf32, #tpu.memory_space<vmem>>, vector<1x8x2xf32>
    %50 = vector.shape_cast %49 : vector<1x8x2xf32> to vector<8x2xf32>
    %cst_24 = arith.constant dense<0.000000e+00> : vector<8x256xf32>
    %51 = tpu.matmul %50, %48, %cst_24 {dimension_numbers = #tpu.dot_dimension_numbers<[1], [0], [0], [1], [0, 0, 1, 1], [], []>} : vector<8x2xf32>, vector<2x256xf32>, vector<8x256xf32> -> vector<8x256xf32>
    %52 = arith.addf %45, %51 : vector<8x256xf32>
    %c0_25 = arith.constant 0 : index
    %c128_26 = arith.constant 128 : index
    %53 = vector.load %arg19[%c0_25, %c128_26] : memref<24x401xf32, #tpu.memory_space<vmem>>, vector<2x256xf32>
    %c4 = arith.constant 4 : index
    %c0_27 = arith.constant 0 : index
    %c0_28 = arith.constant 0 : index
    %54 = vector.load %arg2[%c4, %c0_27, %c0_28] : memref<9x8x2xf32, #tpu.memory_space<vmem>>, vector<1x8x2xf32>
    %55 = vector.shape_cast %54 : vector<1x8x2xf32> to vector<8x2xf32>
    %cst_29 = arith.constant dense<0.000000e+00> : vector<8x256xf32>
    %56 = tpu.matmul %55, %53, %cst_29 {dimension_numbers = #tpu.dot_dimension_numbers<[1], [0], [0], [1], [0, 0, 1, 1], [], []>} : vector<8x2xf32>, vector<2x256xf32>, vector<8x256xf32> -> vector<8x256xf32>
    %57 = arith.addf %52, %56 : vector<8x256xf32>
    %c0_30 = arith.constant 0 : index
    %c129 = arith.constant 129 : index
    %58 = vector.load %arg19[%c0_30, %c129] : memref<24x401xf32, #tpu.memory_space<vmem>>, vector<2x256xf32>
    %59 = vector.broadcast %14 : vector<1x256xf32> to vector<2x256xf32>
    %60 = arith.mulf %58, %59 : vector<2x256xf32>
    %c5 = arith.constant 5 : index
    %c0_31 = arith.constant 0 : index
    %c0_32 = arith.constant 0 : index
    %61 = vector.load %arg2[%c5, %c0_31, %c0_32] : memref<9x8x2xf32, #tpu.memory_space<vmem>>, vector<1x8x2xf32>
    %62 = vector.shape_cast %61 : vector<1x8x2xf32> to vector<8x2xf32>
    %cst_33 = arith.constant dense<0.000000e+00> : vector<8x256xf32>
    %63 = tpu.matmul %62, %60, %cst_33 {dimension_numbers = #tpu.dot_dimension_numbers<[1], [0], [0], [1], [0, 0, 1, 1], [], []>} : vector<8x2xf32>, vector<2x256xf32>, vector<8x256xf32> -> vector<8x256xf32>
    %64 = arith.addf %57, %63 : vector<8x256xf32>
    %c0_34 = arith.constant 0 : index
    %c143 = arith.constant 143 : index
    %65 = vector.load %arg19[%c0_34, %c143] : memref<24x401xf32, #tpu.memory_space<vmem>>, vector<2x256xf32>
    %66 = vector.broadcast %10 : vector<1x256xf32> to vector<2x256xf32>
    %67 = arith.mulf %65, %66 : vector<2x256xf32>
    %c6 = arith.constant 6 : index
    %c0_35 = arith.constant 0 : index
    %c0_36 = arith.constant 0 : index
    %68 = vector.load %arg2[%c6, %c0_35, %c0_36] : memref<9x8x2xf32, #tpu.memory_space<vmem>>, vector<1x8x2xf32>
    %69 = vector.shape_cast %68 : vector<1x8x2xf32> to vector<8x2xf32>
    %cst_37 = arith.constant dense<0.000000e+00> : vector<8x256xf32>
    %70 = tpu.matmul %69, %67, %cst_37 {dimension_numbers = #tpu.dot_dimension_numbers<[1], [0], [0], [1], [0, 0, 1, 1], [], []>} : vector<8x2xf32>, vector<2x256xf32>, vector<8x256xf32> -> vector<8x256xf32>
    %71 = arith.addf %64, %70 : vector<8x256xf32>
    %c0_38 = arith.constant 0 : index
    %c144 = arith.constant 144 : index
    %72 = vector.load %arg19[%c0_38, %c144] : memref<24x401xf32, #tpu.memory_space<vmem>>, vector<2x256xf32>
    %c7 = arith.constant 7 : index
    %c0_39 = arith.constant 0 : index
    %c0_40 = arith.constant 0 : index
    %73 = vector.load %arg2[%c7, %c0_39, %c0_40] : memref<9x8x2xf32, #tpu.memory_space<vmem>>, vector<1x8x2xf32>
    %74 = vector.shape_cast %73 : vector<1x8x2xf32> to vector<8x2xf32>
    %cst_41 = arith.constant dense<0.000000e+00> : vector<8x256xf32>
    %75 = tpu.matmul %74, %72, %cst_41 {dimension_numbers = #tpu.dot_dimension_numbers<[1], [0], [0], [1], [0, 0, 1, 1], [], []>} : vector<8x2xf32>, vector<2x256xf32>, vector<8x256xf32> -> vector<8x256xf32>
    %76 = arith.addf %71, %75 : vector<8x256xf32>
    %c0_42 = arith.constant 0 : index
    %c145 = arith.constant 145 : index
    %77 = vector.load %arg19[%c0_42, %c145] : memref<24x401xf32, #tpu.memory_space<vmem>>, vector<2x256xf32>
    %78 = vector.broadcast %14 : vector<1x256xf32> to vector<2x256xf32>
    %79 = arith.mulf %77, %78 : vector<2x256xf32>
    %c8 = arith.constant 8 : index
    %c0_43 = arith.constant 0 : index
    %c0_44 = arith.constant 0 : index
    %80 = vector.load %arg2[%c8, %c0_43, %c0_44] : memref<9x8x2xf32, #tpu.memory_space<vmem>>, vector<1x8x2xf32>
    %81 = vector.shape_cast %80 : vector<1x8x2xf32> to vector<8x2xf32>
    %cst_45 = arith.constant dense<0.000000e+00> : vector<8x256xf32>
    %82 = tpu.matmul %81, %79, %cst_45 {dimension_numbers = #tpu.dot_dimension_numbers<[1], [0], [0], [1], [0, 0, 1, 1], [], []>} : vector<8x2xf32>, vector<2x256xf32>, vector<8x256xf32> -> vector<8x256xf32>
    %83 = arith.addf %76, %82 : vector<8x256xf32>
    %c0_46 = arith.constant 0 : index
    %c0_47 = arith.constant 0 : index
    %84 = vector.load %arg3[%c0_46, %c0_47] : memref<8x1xf32, #tpu.memory_space<vmem>>, vector<8x1xf32>
    %85 = vector.broadcast %84 : vector<8x1xf32> to vector<8x256xf32>
    %86 = arith.addf %83, %85 : vector<8x256xf32>
    %cst_48 = arith.constant 0.000000e+00 : f32
    %87 = vector.broadcast %cst_48 : f32 to vector<8x256xf32>
    %88 = arith.maximumf %86, %87 : vector<8x256xf32>
    %c0_49 = arith.constant 0 : index
    %c128_50 = arith.constant 128 : index
    %89 = vector.load %arg19[%c0_49, %c128_50] : memref<24x401xf32, #tpu.memory_space<vmem>>, vector<8x256xf32>
    tpu.vector_store %arg19[%c0_49, %c128_50], %88 {strides = array<i32>} : memref<24x401xf32, #tpu.memory_space<vmem>>, vector<8x256xf32>,
    %c0_51 = arith.constant 0 : index
    %c111_52 = arith.constant 111 : index
    %90 = vector.load %arg19[%c0_51, %c111_52] : memref<24x401xf32, #tpu.memory_space<vmem>>, vector<8x256xf32>
    %91 = vector.broadcast %10 : vector<1x256xf32> to vector<8x256xf32>
    %92 = arith.mulf %90, %91 : vector<8x256xf32>
    %c0_53 = arith.constant 0 : index
    %c0_54 = arith.constant 0 : index
    %c0_55 = arith.constant 0 : index
    %93 = vector.load %arg4[%c0_53, %c0_54, %c0_55] : memref<9x8x8xf32, #tpu.memory_space<vmem>>, vector<1x8x8xf32>
    %94 = vector.shape_cast %93 : vector<1x8x8xf32> to vector<8x8xf32>
    %cst_56 = arith.constant dense<0.000000e+00> : vector<8x256xf32>
    %95 = tpu.matmul %94, %92, %cst_56 {dimension_numbers = #tpu.dot_dimension_numbers<[1], [0], [0], [1], [0, 0, 1, 1], [], []>} : vector<8x8xf32>, vector<8x256xf32>, vector<8x256xf32> -> vector<8x256xf32>
    %c0_57 = arith.constant 0 : index
    %c112_58 = arith.constant 112 : index
    %96 = vector.load %arg19[%c0_57, %c112_58] : memref<24x401xf32, #tpu.memory_space<vmem>>, vector<8x256xf32>
    %c1_59 = arith.constant 1 : index
    %c0_60 = arith.constant 0 : index
    %c0_61 = arith.constant 0 : index
    %97 = vector.load %arg4[%c1_59, %c0_60, %c0_61] : memref<9x8x8xf32, #tpu.memory_space<vmem>>, vector<1x8x8xf32>
    %98 = vector.shape_cast %97 : vector<1x8x8xf32> to vector<8x8xf32>
    %cst_62 = arith.constant dense<0.000000e+00> : vector<8x256xf32>
    %99 = tpu.matmul %98, %96, %cst_62 {dimension_numbers = #tpu.dot_dimension_numbers<[1], [0], [0], [1], [0, 0, 1, 1], [], []>} : vector<8x8xf32>, vector<8x256xf32>, vector<8x256xf32> -> vector<8x256xf32>
    %100 = arith.addf %95, %99 : vector<8x256xf32>
    %c0_63 = arith.constant 0 : index
    %c113_64 = arith.constant 113 : index
    %101 = vector.load %arg19[%c0_63, %c113_64] : memref<24x401xf32, #tpu.memory_space<vmem>>, vector<8x256xf32>
    %102 = vector.broadcast %14 : vector<1x256xf32> to vector<8x256xf32>
    %103 = arith.mulf %101, %102 : vector<8x256xf32>
    %c2_65 = arith.constant 2 : index
    %c0_66 = arith.constant 0 : index
    %c0_67 = arith.constant 0 : index
    %104 = vector.load %arg4[%c2_65, %c0_66, %c0_67] : memref<9x8x8xf32, #tpu.memory_space<vmem>>, vector<1x8x8xf32>
    %105 = vector.shape_cast %104 : vector<1x8x8xf32> to vector<8x8xf32>
    %cst_68 = arith.constant dense<0.000000e+00> : vector<8x256xf32>
    %106 = tpu.matmul %105, %103, %cst_68 {dimension_numbers = #tpu.dot_dimension_numbers<[1], [0], [0], [1], [0, 0, 1, 1], [], []>} : vector<8x8xf32>, vector<8x256xf32>, vector<8x256xf32> -> vector<8x256xf32>
    %107 = arith.addf %100, %106 : vector<8x256xf32>
    %c0_69 = arith.constant 0 : index
    %c127_70 = arith.constant 127 : index
    %108 = vector.load %arg19[%c0_69, %c127_70] : memref<24x401xf32, #tpu.memory_space<vmem>>, vector<8x256xf32>
    %109 = vector.broadcast %10 : vector<1x256xf32> to vector<8x256xf32>
    %110 = arith.mulf %108, %109 : vector<8x256xf32>
    %c3_71 = arith.constant 3 : index
    %c0_72 = arith.constant 0 : index
    %c0_73 = arith.constant 0 : index
    %111 = vector.load %arg4[%c3_71, %c0_72, %c0_73] : memref<9x8x8xf32, #tpu.memory_space<vmem>>, vector<1x8x8xf32>
    %112 = vector.shape_cast %111 : vector<1x8x8xf32> to vector<8x8xf32>
    %cst_74 = arith.constant dense<0.000000e+00> : vector<8x256xf32>
    %113 = tpu.matmul %112, %110, %cst_74 {dimension_numbers = #tpu.dot_dimension_numbers<[1], [0], [0], [1], [0, 0, 1, 1], [], []>} : vector<8x8xf32>, vector<8x256xf32>, vector<8x256xf32> -> vector<8x256xf32>
    %114 = arith.addf %107, %113 : vector<8x256xf32>
    %c0_75 = arith.constant 0 : index
    %c128_76 = arith.constant 128 : index
    %115 = vector.load %arg19[%c0_75, %c128_76] : memref<24x401xf32, #tpu.memory_space<vmem>>, vector<8x256xf32>
    %c4_77 = arith.constant 4 : index
    %c0_78 = arith.constant 0 : index
    %c0_79 = arith.constant 0 : index
    %116 = vector.load %arg4[%c4_77, %c0_78, %c0_79] : memref<9x8x8xf32, #tpu.memory_space<vmem>>, vector<1x8x8xf32>
    %117 = vector.shape_cast %116 : vector<1x8x8xf32> to vector<8x8xf32>
    %cst_80 = arith.constant dense<0.000000e+00> : vector<8x256xf32>
    %118 = tpu.matmul %117, %115, %cst_80 {dimension_numbers = #tpu.dot_dimension_numbers<[1], [0], [0], [1], [0, 0, 1, 1], [], []>} : vector<8x8xf32>, vector<8x256xf32>, vector<8x256xf32> -> vector<8x256xf32>
    %119 = arith.addf %114, %118 : vector<8x256xf32>
    %c0_81 = arith.constant 0 : index
    %c129_82 = arith.constant 129 : index
    %120 = vector.load %arg19[%c0_81, %c129_82] : memref<24x401xf32, #tpu.memory_space<vmem>>, vector<8x256xf32>
    %121 = vector.broadcast %14 : vector<1x256xf32> to vector<8x256xf32>
    %122 = arith.mulf %120, %121 : vector<8x256xf32>
    %c5_83 = arith.constant 5 : index
    %c0_84 = arith.constant 0 : index
    %c0_85 = arith.constant 0 : index
    %123 = vector.load %arg4[%c5_83, %c0_84, %c0_85] : memref<9x8x8xf32, #tpu.memory_space<vmem>>, vector<1x8x8xf32>
    %124 = vector.shape_cast %123 : vector<1x8x8xf32> to vector<8x8xf32>
    %cst_86 = arith.constant dense<0.000000e+00> : vector<8x256xf32>
    %125 = tpu.matmul %124, %122, %cst_86 {dimension_numbers = #tpu.dot_dimension_numbers<[1], [0], [0], [1], [0, 0, 1, 1], [], []>} : vector<8x8xf32>, vector<8x256xf32>, vector<8x256xf32> -> vector<8x256xf32>
    %126 = arith.addf %119, %125 : vector<8x256xf32>
    %c0_87 = arith.constant 0 : index
    %c143_88 = arith.constant 143 : index
    %127 = vector.load %arg19[%c0_87, %c143_88] : memref<24x401xf32, #tpu.memory_space<vmem>>, vector<8x256xf32>
    %128 = vector.broadcast %10 : vector<1x256xf32> to vector<8x256xf32>
    %129 = arith.mulf %127, %128 : vector<8x256xf32>
    %c6_89 = arith.constant 6 : index
    %c0_90 = arith.constant 0 : index
    %c0_91 = arith.constant 0 : index
    %130 = vector.load %arg4[%c6_89, %c0_90, %c0_91] : memref<9x8x8xf32, #tpu.memory_space<vmem>>, vector<1x8x8xf32>
    %131 = vector.shape_cast %130 : vector<1x8x8xf32> to vector<8x8xf32>
    %cst_92 = arith.constant dense<0.000000e+00> : vector<8x256xf32>
    %132 = tpu.matmul %131, %129, %cst_92 {dimension_numbers = #tpu.dot_dimension_numbers<[1], [0], [0], [1], [0, 0, 1, 1], [], []>} : vector<8x8xf32>, vector<8x256xf32>, vector<8x256xf32> -> vector<8x256xf32>
    %133 = arith.addf %126, %132 : vector<8x256xf32>
    %c0_93 = arith.constant 0 : index
    %c144_94 = arith.constant 144 : index
    %134 = vector.load %arg19[%c0_93, %c144_94] : memref<24x401xf32, #tpu.memory_space<vmem>>, vector<8x256xf32>
    %c7_95 = arith.constant 7 : index
    %c0_96 = arith.constant 0 : index
    %c0_97 = arith.constant 0 : index
    %135 = vector.load %arg4[%c7_95, %c0_96, %c0_97] : memref<9x8x8xf32, #tpu.memory_space<vmem>>, vector<1x8x8xf32>
    %136 = vector.shape_cast %135 : vector<1x8x8xf32> to vector<8x8xf32>
    %cst_98 = arith.constant dense<0.000000e+00> : vector<8x256xf32>
    %137 = tpu.matmul %136, %134, %cst_98 {dimension_numbers = #tpu.dot_dimension_numbers<[1], [0], [0], [1], [0, 0, 1, 1], [], []>} : vector<8x8xf32>, vector<8x256xf32>, vector<8x256xf32> -> vector<8x256xf32>
    %138 = arith.addf %133, %137 : vector<8x256xf32>
    %c0_99 = arith.constant 0 : index
    %c145_100 = arith.constant 145 : index
    %139 = vector.load %arg19[%c0_99, %c145_100] : memref<24x401xf32, #tpu.memory_space<vmem>>, vector<8x256xf32>
    %140 = vector.broadcast %14 : vector<1x256xf32> to vector<8x256xf32>
    %141 = arith.mulf %139, %140 : vector<8x256xf32>
    %c8_101 = arith.constant 8 : index
    %c0_102 = arith.constant 0 : index
    %c0_103 = arith.constant 0 : index
    %142 = vector.load %arg4[%c8_101, %c0_102, %c0_103] : memref<9x8x8xf32, #tpu.memory_space<vmem>>, vector<1x8x8xf32>
    %143 = vector.shape_cast %142 : vector<1x8x8xf32> to vector<8x8xf32>
    %cst_104 = arith.constant dense<0.000000e+00> : vector<8x256xf32>
    %144 = tpu.matmul %143, %141, %cst_104 {dimension_numbers = #tpu.dot_dimension_numbers<[1], [0], [0], [1], [0, 0, 1, 1], [], []>} : vector<8x8xf32>, vector<8x256xf32>, vector<8x256xf32> -> vector<8x256xf32>
    %145 = arith.addf %138, %144 : vector<8x256xf32>
    %c0_105 = arith.constant 0 : index
    %c0_106 = arith.constant 0 : index
    %146 = vector.load %arg5[%c0_105, %c0_106] : memref<8x1xf32, #tpu.memory_space<vmem>>, vector<8x1xf32>
    %147 = vector.broadcast %146 : vector<8x1xf32> to vector<8x256xf32>
    %148 = arith.addf %145, %147 : vector<8x256xf32>
    %cst_107 = arith.constant 0.000000e+00 : f32
    %149 = vector.broadcast %cst_107 : f32 to vector<8x256xf32>
    %150 = arith.maximumf %148, %149 : vector<8x256xf32>
    %c0_108 = arith.constant 0 : index
    %c128_109 = arith.constant 128 : index
    %151 = vector.load %arg19[%c0_108, %c128_109] : memref<24x401xf32, #tpu.memory_space<vmem>>, vector<8x256xf32>
    tpu.vector_store %arg19[%c0_108, %c128_109], %150 {strides = array<i32>} : memref<24x401xf32, #tpu.memory_space<vmem>>, vector<8x256xf32>,
    %c0_110 = arith.constant 0 : index
    %c129_111 = arith.constant 129 : index
    %152 = vector.load %arg19[%c0_110, %c129_111] : memref<24x401xf32, #tpu.memory_space<vmem>>, vector<8x256xf32>
    %c0_112 = arith.constant 0 : index
    %c144_113 = arith.constant 144 : index
    %153 = vector.load %arg19[%c0_112, %c144_113] : memref<24x401xf32, #tpu.memory_space<vmem>>, vector<8x256xf32>
    %c0_114 = arith.constant 0 : index
    %c145_115 = arith.constant 145 : index
    %154 = vector.load %arg19[%c0_114, %c145_115] : memref<24x401xf32, #tpu.memory_space<vmem>>, vector<8x256xf32>
    %155 = arith.maximumf %150, %152 : vector<8x256xf32>
    %156 = arith.maximumf %153, %154 : vector<8x256xf32>
    %157 = arith.maximumf %155, %156 : vector<8x256xf32>
    %c0_116 = arith.constant 0 : index
    %c0_117 = arith.constant 0 : index
    %158 = vector.load %arg16[%c0_116, %c0_117] : memref<256x64xf32, #tpu.memory_space<vmem>>, vector<256x64xf32>
    %cst_118 = arith.constant dense<0.000000e+00> : vector<8x64xf32>
    %159 = tpu.matmul %157, %158, %cst_118 {dimension_numbers = #tpu.dot_dimension_numbers<[1], [0], [0], [1], [0, 0, 1, 1], [], []>} : vector<8x256xf32>, vector<256x64xf32>, vector<8x64xf32> -> vector<8x64xf32>
    %c0_119 = arith.constant 0 : index
    %c128_120 = arith.constant 128 : index
    %160 = vector.load %arg20[%c0_119, %c128_120] : memref<16x201xf32, #tpu.memory_space<vmem>>, vector<8x64xf32>
    tpu.vector_store %arg20[%c0_119, %c128_120], %159 {strides = array<i32>} : memref<16x201xf32, #tpu.memory_space<vmem>>, vector<8x64xf32>,
    %c0_121 = arith.constant 0 : index
    %c119 = arith.constant 119 : index
    %161 = vector.load %arg20[%c0_121, %c119] : memref<16x201xf32, #tpu.memory_space<vmem>>, vector<8x64xf32>
    %162 = vector.broadcast %21 : vector<1x64xf32> to vector<8x64xf32>
    %163 = arith.mulf %161, %162 : vector<8x64xf32>
    %c0_122 = arith.constant 0 : index
    %c0_123 = arith.constant 0 : index
    %c0_124 = arith.constant 0 : index
    %164 = vector.load %arg6[%c0_122, %c0_123, %c0_124] : memref<9x16x8xf32, #tpu.memory_space<vmem>>, vector<1x16x8xf32>
    %165 = vector.shape_cast %164 : vector<1x16x8xf32> to vector<16x8xf32>
    %cst_125 = arith.constant dense<0.000000e+00> : vector<16x64xf32>
    %166 = tpu.matmul %165, %163, %cst_125 {dimension_numbers = #tpu.dot_dimension_numbers<[1], [0], [0], [1], [0, 0, 1, 1], [], []>} : vector<16x8xf32>, vector<8x64xf32>, vector<16x64xf32> -> vector<16x64xf32>
    %c0_126 = arith.constant 0 : index
    %c120 = arith.constant 120 : index
    %167 = vector.load %arg20[%c0_126, %c120] : memref<16x201xf32, #tpu.memory_space<vmem>>, vector<8x64xf32>
    %c1_127 = arith.constant 1 : index
    %c0_128 = arith.constant 0 : index
    %c0_129 = arith.constant 0 : index
    %168 = vector.load %arg6[%c1_127, %c0_128, %c0_129] : memref<9x16x8xf32, #tpu.memory_space<vmem>>, vector<1x16x8xf32>
    %169 = vector.shape_cast %168 : vector<1x16x8xf32> to vector<16x8xf32>
    %cst_130 = arith.constant dense<0.000000e+00> : vector<16x64xf32>
    %170 = tpu.matmul %169, %167, %cst_130 {dimension_numbers = #tpu.dot_dimension_numbers<[1], [0], [0], [1], [0, 0, 1, 1], [], []>} : vector<16x8xf32>, vector<8x64xf32>, vector<16x64xf32> -> vector<16x64xf32>
    %171 = arith.addf %166, %170 : vector<16x64xf32>
    %c0_131 = arith.constant 0 : index
    %c121 = arith.constant 121 : index
    %172 = vector.load %arg20[%c0_131, %c121] : memref<16x201xf32, #tpu.memory_space<vmem>>, vector<8x64xf32>
    %173 = vector.broadcast %25 : vector<1x64xf32> to vector<8x64xf32>
    %174 = arith.mulf %172, %173 : vector<8x64xf32>
    %c2_132 = arith.constant 2 : index
    %c0_133 = arith.constant 0 : index
    %c0_134 = arith.constant 0 : index
    %175 = vector.load %arg6[%c2_132, %c0_133, %c0_134] : memref<9x16x8xf32, #tpu.memory_space<vmem>>, vector<1x16x8xf32>
    %176 = vector.shape_cast %175 : vector<1x16x8xf32> to vector<16x8xf32>
    %cst_135 = arith.constant dense<0.000000e+00> : vector<16x64xf32>
    %177 = tpu.matmul %176, %174, %cst_135 {dimension_numbers = #tpu.dot_dimension_numbers<[1], [0], [0], [1], [0, 0, 1, 1], [], []>} : vector<16x8xf32>, vector<8x64xf32>, vector<16x64xf32> -> vector<16x64xf32>
    %178 = arith.addf %171, %177 : vector<16x64xf32>
    %c0_136 = arith.constant 0 : index
    %c127_137 = arith.constant 127 : index
    %179 = vector.load %arg20[%c0_136, %c127_137] : memref<16x201xf32, #tpu.memory_space<vmem>>, vector<8x64xf32>
    %180 = vector.broadcast %21 : vector<1x64xf32> to vector<8x64xf32>
    %181 = arith.mulf %179, %180 : vector<8x64xf32>
    %c3_138 = arith.constant 3 : index
    %c0_139 = arith.constant 0 : index
    %c0_140 = arith.constant 0 : index
    %182 = vector.load %arg6[%c3_138, %c0_139, %c0_140] : memref<9x16x8xf32, #tpu.memory_space<vmem>>, vector<1x16x8xf32>
    %183 = vector.shape_cast %182 : vector<1x16x8xf32> to vector<16x8xf32>
    %cst_141 = arith.constant dense<0.000000e+00> : vector<16x64xf32>
    %184 = tpu.matmul %183, %181, %cst_141 {dimension_numbers = #tpu.dot_dimension_numbers<[1], [0], [0], [1], [0, 0, 1, 1], [], []>} : vector<16x8xf32>, vector<8x64xf32>, vector<16x64xf32> -> vector<16x64xf32>
    %185 = arith.addf %178, %184 : vector<16x64xf32>
    %c0_142 = arith.constant 0 : index
    %c128_143 = arith.constant 128 : index
    %186 = vector.load %arg20[%c0_142, %c128_143] : memref<16x201xf32, #tpu.memory_space<vmem>>, vector<8x64xf32>
    %c4_144 = arith.constant 4 : index
    %c0_145 = arith.constant 0 : index
    %c0_146 = arith.constant 0 : index
    %187 = vector.load %arg6[%c4_144, %c0_145, %c0_146] : memref<9x16x8xf32, #tpu.memory_space<vmem>>, vector<1x16x8xf32>
    %188 = vector.shape_cast %187 : vector<1x16x8xf32> to vector<16x8xf32>
    %cst_147 = arith.constant dense<0.000000e+00> : vector<16x64xf32>
    %189 = tpu.matmul %188, %186, %cst_147 {dimension_numbers = #tpu.dot_dimension_numbers<[1], [0], [0], [1], [0, 0, 1, 1], [], []>} : vector<16x8xf32>, vector<8x64xf32>, vector<16x64xf32> -> vector<16x64xf32>
    %190 = arith.addf %185, %189 : vector<16x64xf32>
    %c0_148 = arith.constant 0 : index
    %c129_149 = arith.constant 129 : index
    %191 = vector.load %arg20[%c0_148, %c129_149] : memref<16x201xf32, #tpu.memory_space<vmem>>, vector<8x64xf32>
    %192 = vector.broadcast %25 : vector<1x64xf32> to vector<8x64xf32>
    %193 = arith.mulf %191, %192 : vector<8x64xf32>
    %c5_150 = arith.constant 5 : index
    %c0_151 = arith.constant 0 : index
    %c0_152 = arith.constant 0 : index
    %194 = vector.load %arg6[%c5_150, %c0_151, %c0_152] : memref<9x16x8xf32, #tpu.memory_space<vmem>>, vector<1x16x8xf32>
    %195 = vector.shape_cast %194 : vector<1x16x8xf32> to vector<16x8xf32>
    %cst_153 = arith.constant dense<0.000000e+00> : vector<16x64xf32>
    %196 = tpu.matmul %195, %193, %cst_153 {dimension_numbers = #tpu.dot_dimension_numbers<[1], [0], [0], [1], [0, 0, 1, 1], [], []>} : vector<16x8xf32>, vector<8x64xf32>, vector<16x64xf32> -> vector<16x64xf32>
    %197 = arith.addf %190, %196 : vector<16x64xf32>
    %c0_154 = arith.constant 0 : index
    %c135 = arith.constant 135 : index
    %198 = vector.load %arg20[%c0_154, %c135] : memref<16x201xf32, #tpu.memory_space<vmem>>, vector<8x64xf32>
    %199 = vector.broadcast %21 : vector<1x64xf32> to vector<8x64xf32>
    %200 = arith.mulf %198, %199 : vector<8x64xf32>
    %c6_155 = arith.constant 6 : index
    %c0_156 = arith.constant 0 : index
    %c0_157 = arith.constant 0 : index
    %201 = vector.load %arg6[%c6_155, %c0_156, %c0_157] : memref<9x16x8xf32, #tpu.memory_space<vmem>>, vector<1x16x8xf32>
    %202 = vector.shape_cast %201 : vector<1x16x8xf32> to vector<16x8xf32>
    %cst_158 = arith.constant dense<0.000000e+00> : vector<16x64xf32>
    %203 = tpu.matmul %202, %200, %cst_158 {dimension_numbers = #tpu.dot_dimension_numbers<[1], [0], [0], [1], [0, 0, 1, 1], [], []>} : vector<16x8xf32>, vector<8x64xf32>, vector<16x64xf32> -> vector<16x64xf32>
    %204 = arith.addf %197, %203 : vector<16x64xf32>
    %c0_159 = arith.constant 0 : index
    %c136 = arith.constant 136 : index
    %205 = vector.load %arg20[%c0_159, %c136] : memref<16x201xf32, #tpu.memory_space<vmem>>, vector<8x64xf32>
    %c7_160 = arith.constant 7 : index
    %c0_161 = arith.constant 0 : index
    %c0_162 = arith.constant 0 : index
    %206 = vector.load %arg6[%c7_160, %c0_161, %c0_162] : memref<9x16x8xf32, #tpu.memory_space<vmem>>, vector<1x16x8xf32>
    %207 = vector.shape_cast %206 : vector<1x16x8xf32> to vector<16x8xf32>
    %cst_163 = arith.constant dense<0.000000e+00> : vector<16x64xf32>
    %208 = tpu.matmul %207, %205, %cst_163 {dimension_numbers = #tpu.dot_dimension_numbers<[1], [0], [0], [1], [0, 0, 1, 1], [], []>} : vector<16x8xf32>, vector<8x64xf32>, vector<16x64xf32> -> vector<16x64xf32>
    %209 = arith.addf %204, %208 : vector<16x64xf32>
    %c0_164 = arith.constant 0 : index
    %c137 = arith.constant 137 : index
    %210 = vector.load %arg20[%c0_164, %c137] : memref<16x201xf32, #tpu.memory_space<vmem>>, vector<8x64xf32>
    %211 = vector.broadcast %25 : vector<1x64xf32> to vector<8x64xf32>
    %212 = arith.mulf %210, %211 : vector<8x64xf32>
    %c8_165 = arith.constant 8 : index
    %c0_166 = arith.constant 0 : index
    %c0_167 = arith.constant 0 : index
    %213 = vector.load %arg6[%c8_165, %c0_166, %c0_167] : memref<9x16x8xf32, #tpu.memory_space<vmem>>, vector<1x16x8xf32>
    %214 = vector.shape_cast %213 : vector<1x16x8xf32> to vector<16x8xf32>
    %cst_168 = arith.constant dense<0.000000e+00> : vector<16x64xf32>
    %215 = tpu.matmul %214, %212, %cst_168 {dimension_numbers = #tpu.dot_dimension_numbers<[1], [0], [0], [1], [0, 0, 1, 1], [], []>} : vector<16x8xf32>, vector<8x64xf32>, vector<16x64xf32> -> vector<16x64xf32>
    %216 = arith.addf %209, %215 : vector<16x64xf32>
    %c0_169 = arith.constant 0 : index
    %c0_170 = arith.constant 0 : index
    %217 = vector.load %arg7[%c0_169, %c0_170] : memref<16x1xf32, #tpu.memory_space<vmem>>, vector<16x1xf32>
    %218 = vector.broadcast %217 : vector<16x1xf32> to vector<16x64xf32>
    %219 = arith.addf %216, %218 : vector<16x64xf32>
    %cst_171 = arith.constant 0.000000e+00 : f32
    %220 = vector.broadcast %cst_171 : f32 to vector<16x64xf32>
    %221 = arith.maximumf %219, %220 : vector<16x64xf32>
    %c0_172 = arith.constant 0 : index
    %c128_173 = arith.constant 128 : index
    %222 = vector.load %arg20[%c0_172, %c128_173] : memref<16x201xf32, #tpu.memory_space<vmem>>, vector<16x64xf32>
    tpu.vector_store %arg20[%c0_172, %c128_173], %221 {strides = array<i32>} : memref<16x201xf32, #tpu.memory_space<vmem>>, vector<16x64xf32>,
    %c0_174 = arith.constant 0 : index
    %c119_175 = arith.constant 119 : index
    %223 = vector.load %arg20[%c0_174, %c119_175] : memref<16x201xf32, #tpu.memory_space<vmem>>, vector<16x64xf32>
    %224 = vector.broadcast %21 : vector<1x64xf32> to vector<16x64xf32>
    %225 = arith.mulf %223, %224 : vector<16x64xf32>
    %c0_176 = arith.constant 0 : index
    %c0_177 = arith.constant 0 : index
    %c0_178 = arith.constant 0 : index
    %226 = vector.load %arg8[%c0_176, %c0_177, %c0_178] : memref<9x16x16xf32, #tpu.memory_space<vmem>>, vector<1x16x16xf32>
    %227 = vector.shape_cast %226 : vector<1x16x16xf32> to vector<16x16xf32>
    %cst_179 = arith.constant dense<0.000000e+00> : vector<16x64xf32>
    %228 = tpu.matmul %227, %225, %cst_179 {dimension_numbers = #tpu.dot_dimension_numbers<[1], [0], [0], [1], [0, 0, 1, 1], [], []>} : vector<16x16xf32>, vector<16x64xf32>, vector<16x64xf32> -> vector<16x64xf32>
    %c0_180 = arith.constant 0 : index
    %c120_181 = arith.constant 120 : index
    %229 = vector.load %arg20[%c0_180, %c120_181] : memref<16x201xf32, #tpu.memory_space<vmem>>, vector<16x64xf32>
    %c1_182 = arith.constant 1 : index
    %c0_183 = arith.constant 0 : index
    %c0_184 = arith.constant 0 : index
    %230 = vector.load %arg8[%c1_182, %c0_183, %c0_184] : memref<9x16x16xf32, #tpu.memory_space<vmem>>, vector<1x16x16xf32>
    %231 = vector.shape_cast %230 : vector<1x16x16xf32> to vector<16x16xf32>
    %cst_185 = arith.constant dense<0.000000e+00> : vector<16x64xf32>
    %232 = tpu.matmul %231, %229, %cst_185 {dimension_numbers = #tpu.dot_dimension_numbers<[1], [0], [0], [1], [0, 0, 1, 1], [], []>} : vector<16x16xf32>, vector<16x64xf32>, vector<16x64xf32> -> vector<16x64xf32>
    %233 = arith.addf %228, %232 : vector<16x64xf32>
    %c0_186 = arith.constant 0 : index
    %c121_187 = arith.constant 121 : index
    %234 = vector.load %arg20[%c0_186, %c121_187] : memref<16x201xf32, #tpu.memory_space<vmem>>, vector<16x64xf32>
    %235 = vector.broadcast %25 : vector<1x64xf32> to vector<16x64xf32>
    %236 = arith.mulf %234, %235 : vector<16x64xf32>
    %c2_188 = arith.constant 2 : index
    %c0_189 = arith.constant 0 : index
    %c0_190 = arith.constant 0 : index
    %237 = vector.load %arg8[%c2_188, %c0_189, %c0_190] : memref<9x16x16xf32, #tpu.memory_space<vmem>>, vector<1x16x16xf32>
    %238 = vector.shape_cast %237 : vector<1x16x16xf32> to vector<16x16xf32>
    %cst_191 = arith.constant dense<0.000000e+00> : vector<16x64xf32>
    %239 = tpu.matmul %238, %236, %cst_191 {dimension_numbers = #tpu.dot_dimension_numbers<[1], [0], [0], [1], [0, 0, 1, 1], [], []>} : vector<16x16xf32>, vector<16x64xf32>, vector<16x64xf32> -> vector<16x64xf32>
    %240 = arith.addf %233, %239 : vector<16x64xf32>
    %c0_192 = arith.constant 0 : index
    %c127_193 = arith.constant 127 : index
    %241 = vector.load %arg20[%c0_192, %c127_193] : memref<16x201xf32, #tpu.memory_space<vmem>>, vector<16x64xf32>
    %242 = vector.broadcast %21 : vector<1x64xf32> to vector<16x64xf32>
    %243 = arith.mulf %241, %242 : vector<16x64xf32>
    %c3_194 = arith.constant 3 : index
    %c0_195 = arith.constant 0 : index
    %c0_196 = arith.constant 0 : index
    %244 = vector.load %arg8[%c3_194, %c0_195, %c0_196] : memref<9x16x16xf32, #tpu.memory_space<vmem>>, vector<1x16x16xf32>
    %245 = vector.shape_cast %244 : vector<1x16x16xf32> to vector<16x16xf32>
    %cst_197 = arith.constant dense<0.000000e+00> : vector<16x64xf32>
    %246 = tpu.matmul %245, %243, %cst_197 {dimension_numbers = #tpu.dot_dimension_numbers<[1], [0], [0], [1], [0, 0, 1, 1], [], []>} : vector<16x16xf32>, vector<16x64xf32>, vector<16x64xf32> -> vector<16x64xf32>
    %247 = arith.addf %240, %246 : vector<16x64xf32>
    %c0_198 = arith.constant 0 : index
    %c128_199 = arith.constant 128 : index
    %248 = vector.load %arg20[%c0_198, %c128_199] : memref<16x201xf32, #tpu.memory_space<vmem>>, vector<16x64xf32>
    %c4_200 = arith.constant 4 : index
    %c0_201 = arith.constant 0 : index
    %c0_202 = arith.constant 0 : index
    %249 = vector.load %arg8[%c4_200, %c0_201, %c0_202] : memref<9x16x16xf32, #tpu.memory_space<vmem>>, vector<1x16x16xf32>
    %250 = vector.shape_cast %249 : vector<1x16x16xf32> to vector<16x16xf32>
    %cst_203 = arith.constant dense<0.000000e+00> : vector<16x64xf32>
    %251 = tpu.matmul %250, %248, %cst_203 {dimension_numbers = #tpu.dot_dimension_numbers<[1], [0], [0], [1], [0, 0, 1, 1], [], []>} : vector<16x16xf32>, vector<16x64xf32>, vector<16x64xf32> -> vector<16x64xf32>
    %252 = arith.addf %247, %251 : vector<16x64xf32>
    %c0_204 = arith.constant 0 : index
    %c129_205 = arith.constant 129 : index
    %253 = vector.load %arg20[%c0_204, %c129_205] : memref<16x201xf32, #tpu.memory_space<vmem>>, vector<16x64xf32>
    %254 = vector.broadcast %25 : vector<1x64xf32> to vector<16x64xf32>
    %255 = arith.mulf %253, %254 : vector<16x64xf32>
    %c5_206 = arith.constant 5 : index
    %c0_207 = arith.constant 0 : index
    %c0_208 = arith.constant 0 : index
    %256 = vector.load %arg8[%c5_206, %c0_207, %c0_208] : memref<9x16x16xf32, #tpu.memory_space<vmem>>, vector<1x16x16xf32>
    %257 = vector.shape_cast %256 : vector<1x16x16xf32> to vector<16x16xf32>
    %cst_209 = arith.constant dense<0.000000e+00> : vector<16x64xf32>
    %258 = tpu.matmul %257, %255, %cst_209 {dimension_numbers = #tpu.dot_dimension_numbers<[1], [0], [0], [1], [0, 0, 1, 1], [], []>} : vector<16x16xf32>, vector<16x64xf32>, vector<16x64xf32> -> vector<16x64xf32>
    %259 = arith.addf %252, %258 : vector<16x64xf32>
    %c0_210 = arith.constant 0 : index
    %c135_211 = arith.constant 135 : index
    %260 = vector.load %arg20[%c0_210, %c135_211] : memref<16x201xf32, #tpu.memory_space<vmem>>, vector<16x64xf32>
    %261 = vector.broadcast %21 : vector<1x64xf32> to vector<16x64xf32>
    %262 = arith.mulf %260, %261 : vector<16x64xf32>
    %c6_212 = arith.constant 6 : index
    %c0_213 = arith.constant 0 : index
    %c0_214 = arith.constant 0 : index
    %263 = vector.load %arg8[%c6_212, %c0_213, %c0_214] : memref<9x16x16xf32, #tpu.memory_space<vmem>>, vector<1x16x16xf32>
    %264 = vector.shape_cast %263 : vector<1x16x16xf32> to vector<16x16xf32>
    %cst_215 = arith.constant dense<0.000000e+00> : vector<16x64xf32>
    %265 = tpu.matmul %264, %262, %cst_215 {dimension_numbers = #tpu.dot_dimension_numbers<[1], [0], [0], [1], [0, 0, 1, 1], [], []>} : vector<16x16xf32>, vector<16x64xf32>, vector<16x64xf32> -> vector<16x64xf32>
    %266 = arith.addf %259, %265 : vector<16x64xf32>
    %c0_216 = arith.constant 0 : index
    %c136_217 = arith.constant 136 : index
    %267 = vector.load %arg20[%c0_216, %c136_217] : memref<16x201xf32, #tpu.memory_space<vmem>>, vector<16x64xf32>
    %c7_218 = arith.constant 7 : index
    %c0_219 = arith.constant 0 : index
    %c0_220 = arith.constant 0 : index
    %268 = vector.load %arg8[%c7_218, %c0_219, %c0_220] : memref<9x16x16xf32, #tpu.memory_space<vmem>>, vector<1x16x16xf32>
    %269 = vector.shape_cast %268 : vector<1x16x16xf32> to vector<16x16xf32>
    %cst_221 = arith.constant dense<0.000000e+00> : vector<16x64xf32>
    %270 = tpu.matmul %269, %267, %cst_221 {dimension_numbers = #tpu.dot_dimension_numbers<[1], [0], [0], [1], [0, 0, 1, 1], [], []>} : vector<16x16xf32>, vector<16x64xf32>, vector<16x64xf32> -> vector<16x64xf32>
    %271 = arith.addf %266, %270 : vector<16x64xf32>
    %c0_222 = arith.constant 0 : index
    %c137_223 = arith.constant 137 : index
    %272 = vector.load %arg20[%c0_222, %c137_223] : memref<16x201xf32, #tpu.memory_space<vmem>>, vector<16x64xf32>
    %273 = vector.broadcast %25 : vector<1x64xf32> to vector<16x64xf32>
    %274 = arith.mulf %272, %273 : vector<16x64xf32>
    %c8_224 = arith.constant 8 : index
    %c0_225 = arith.constant 0 : index
    %c0_226 = arith.constant 0 : index
    %275 = vector.load %arg8[%c8_224, %c0_225, %c0_226] : memref<9x16x16xf32, #tpu.memory_space<vmem>>, vector<1x16x16xf32>
    %276 = vector.shape_cast %275 : vector<1x16x16xf32> to vector<16x16xf32>
    %cst_227 = arith.constant dense<0.000000e+00> : vector<16x64xf32>
    %277 = tpu.matmul %276, %274, %cst_227 {dimension_numbers = #tpu.dot_dimension_numbers<[1], [0], [0], [1], [0, 0, 1, 1], [], []>} : vector<16x16xf32>, vector<16x64xf32>, vector<16x64xf32> -> vector<16x64xf32>
    %278 = arith.addf %271, %277 : vector<16x64xf32>
    %c0_228 = arith.constant 0 : index
    %c0_229 = arith.constant 0 : index
    %279 = vector.load %arg9[%c0_228, %c0_229] : memref<16x1xf32, #tpu.memory_space<vmem>>, vector<16x1xf32>
    %280 = vector.broadcast %279 : vector<16x1xf32> to vector<16x64xf32>
    %281 = arith.addf %278, %280 : vector<16x64xf32>
    %cst_230 = arith.constant 0.000000e+00 : f32
    %282 = vector.broadcast %cst_230 : f32 to vector<16x64xf32>
    %283 = arith.maximumf %281, %282 : vector<16x64xf32>
    %c0_231 = arith.constant 0 : index
    %c0_232 = arith.constant 0 : index
    %284 = vector.load %arg17[%c0_231, %c0_232] : memref<64x256xf32, #tpu.memory_space<vmem>>, vector<64x256xf32>
    %cst_233 = arith.constant dense<0.000000e+00> : vector<16x256xf32>
    %285 = tpu.matmul %283, %284, %cst_233 {dimension_numbers = #tpu.dot_dimension_numbers<[1], [0], [0], [1], [0, 0, 1, 1], [], []>} : vector<16x64xf32>, vector<64x256xf32>, vector<16x256xf32> -> vector<16x256xf32>
    %c0_234 = arith.constant 0 : index
    %c128_235 = arith.constant 128 : index
    %286 = vector.load %arg19[%c0_234, %c128_235] : memref<24x401xf32, #tpu.memory_space<vmem>>, vector<16x256xf32>
    tpu.vector_store %arg19[%c0_234, %c128_235], %285 {strides = array<i32>} : memref<24x401xf32, #tpu.memory_space<vmem>>, vector<16x256xf32>,
    %c16 = arith.constant 16 : index
    %c128_236 = arith.constant 128 : index
    %287 = vector.load %arg19[%c16, %c128_236] : memref<24x401xf32, #tpu.memory_space<vmem>>, vector<8x256xf32>
    tpu.vector_store %arg19[%c16, %c128_236], %150 {strides = array<i32>} : memref<24x401xf32, #tpu.memory_space<vmem>>, vector<8x256xf32>,
    %c0_237 = arith.constant 0 : index
    %c111_238 = arith.constant 111 : index
    %288 = vector.load %arg19[%c0_237, %c111_238] : memref<24x401xf32, #tpu.memory_space<vmem>>, vector<24x256xf32>
    %289 = vector.broadcast %10 : vector<1x256xf32> to vector<24x256xf32>
    %290 = arith.mulf %288, %289 : vector<24x256xf32>
    %c0_239 = arith.constant 0 : index
    %c0_240 = arith.constant 0 : index
    %c0_241 = arith.constant 0 : index
    %291 = vector.load %arg10[%c0_239, %c0_240, %c0_241] : memref<9x8x24xf32, #tpu.memory_space<vmem>>, vector<1x8x24xf32>
    %292 = vector.shape_cast %291 : vector<1x8x24xf32> to vector<8x24xf32>
    %cst_242 = arith.constant dense<0.000000e+00> : vector<8x256xf32>
    %293 = tpu.matmul %292, %290, %cst_242 {dimension_numbers = #tpu.dot_dimension_numbers<[1], [0], [0], [1], [0, 0, 1, 1], [], []>} : vector<8x24xf32>, vector<24x256xf32>, vector<8x256xf32> -> vector<8x256xf32>
    %c0_243 = arith.constant 0 : index
    %c112_244 = arith.constant 112 : index
    %294 = vector.load %arg19[%c0_243, %c112_244] : memref<24x401xf32, #tpu.memory_space<vmem>>, vector<24x256xf32>
    %c1_245 = arith.constant 1 : index
    %c0_246 = arith.constant 0 : index
    %c0_247 = arith.constant 0 : index
    %295 = vector.load %arg10[%c1_245, %c0_246, %c0_247] : memref<9x8x24xf32, #tpu.memory_space<vmem>>, vector<1x8x24xf32>
    %296 = vector.shape_cast %295 : vector<1x8x24xf32> to vector<8x24xf32>
    %cst_248 = arith.constant dense<0.000000e+00> : vector<8x256xf32>
    %297 = tpu.matmul %296, %294, %cst_248 {dimension_numbers = #tpu.dot_dimension_numbers<[1], [0], [0], [1], [0, 0, 1, 1], [], []>} : vector<8x24xf32>, vector<24x256xf32>, vector<8x256xf32> -> vector<8x256xf32>
    %298 = arith.addf %293, %297 : vector<8x256xf32>
    %c0_249 = arith.constant 0 : index
    %c113_250 = arith.constant 113 : index
    %299 = vector.load %arg19[%c0_249, %c113_250] : memref<24x401xf32, #tpu.memory_space<vmem>>, vector<24x256xf32>
    %300 = vector.broadcast %14 : vector<1x256xf32> to vector<24x256xf32>
    %301 = arith.mulf %299, %300 : vector<24x256xf32>
    %c2_251 = arith.constant 2 : index
    %c0_252 = arith.constant 0 : index
    %c0_253 = arith.constant 0 : index
    %302 = vector.load %arg10[%c2_251, %c0_252, %c0_253] : memref<9x8x24xf32, #tpu.memory_space<vmem>>, vector<1x8x24xf32>
    %303 = vector.shape_cast %302 : vector<1x8x24xf32> to vector<8x24xf32>
    %cst_254 = arith.constant dense<0.000000e+00> : vector<8x256xf32>
    %304 = tpu.matmul %303, %301, %cst_254 {dimension_numbers = #tpu.dot_dimension_numbers<[1], [0], [0], [1], [0, 0, 1, 1], [], []>} : vector<8x24xf32>, vector<24x256xf32>, vector<8x256xf32> -> vector<8x256xf32>
    %305 = arith.addf %298, %304 : vector<8x256xf32>
    %c0_255 = arith.constant 0 : index
    %c127_256 = arith.constant 127 : index
    %306 = vector.load %arg19[%c0_255, %c127_256] : memref<24x401xf32, #tpu.memory_space<vmem>>, vector<24x256xf32>
    %307 = vector.broadcast %10 : vector<1x256xf32> to vector<24x256xf32>
    %308 = arith.mulf %306, %307 : vector<24x256xf32>
    %c3_257 = arith.constant 3 : index
    %c0_258 = arith.constant 0 : index
    %c0_259 = arith.constant 0 : index
    %309 = vector.load %arg10[%c3_257, %c0_258, %c0_259] : memref<9x8x24xf32, #tpu.memory_space<vmem>>, vector<1x8x24xf32>
    %310 = vector.shape_cast %309 : vector<1x8x24xf32> to vector<8x24xf32>
    %cst_260 = arith.constant dense<0.000000e+00> : vector<8x256xf32>
    %311 = tpu.matmul %310, %308, %cst_260 {dimension_numbers = #tpu.dot_dimension_numbers<[1], [0], [0], [1], [0, 0, 1, 1], [], []>} : vector<8x24xf32>, vector<24x256xf32>, vector<8x256xf32> -> vector<8x256xf32>
    %312 = arith.addf %305, %311 : vector<8x256xf32>
    %c0_261 = arith.constant 0 : index
    %c128_262 = arith.constant 128 : index
    %313 = vector.load %arg19[%c0_261, %c128_262] : memref<24x401xf32, #tpu.memory_space<vmem>>, vector<24x256xf32>
    %c4_263 = arith.constant 4 : index
    %c0_264 = arith.constant 0 : index
    %c0_265 = arith.constant 0 : index
    %314 = vector.load %arg10[%c4_263, %c0_264, %c0_265] : memref<9x8x24xf32, #tpu.memory_space<vmem>>, vector<1x8x24xf32>
    %315 = vector.shape_cast %314 : vector<1x8x24xf32> to vector<8x24xf32>
    %cst_266 = arith.constant dense<0.000000e+00> : vector<8x256xf32>
    %316 = tpu.matmul %315, %313, %cst_266 {dimension_numbers = #tpu.dot_dimension_numbers<[1], [0], [0], [1], [0, 0, 1, 1], [], []>} : vector<8x24xf32>, vector<24x256xf32>, vector<8x256xf32> -> vector<8x256xf32>
    %317 = arith.addf %312, %316 : vector<8x256xf32>
    %c0_267 = arith.constant 0 : index
    %c129_268 = arith.constant 129 : index
    %318 = vector.load %arg19[%c0_267, %c129_268] : memref<24x401xf32, #tpu.memory_space<vmem>>, vector<24x256xf32>
    %319 = vector.broadcast %14 : vector<1x256xf32> to vector<24x256xf32>
    %320 = arith.mulf %318, %319 : vector<24x256xf32>
    %c5_269 = arith.constant 5 : index
    %c0_270 = arith.constant 0 : index
    %c0_271 = arith.constant 0 : index
    %321 = vector.load %arg10[%c5_269, %c0_270, %c0_271] : memref<9x8x24xf32, #tpu.memory_space<vmem>>, vector<1x8x24xf32>
    %322 = vector.shape_cast %321 : vector<1x8x24xf32> to vector<8x24xf32>
    %cst_272 = arith.constant dense<0.000000e+00> : vector<8x256xf32>
    %323 = tpu.matmul %322, %320, %cst_272 {dimension_numbers = #tpu.dot_dimension_numbers<[1], [0], [0], [1], [0, 0, 1, 1], [], []>} : vector<8x24xf32>, vector<24x256xf32>, vector<8x256xf32> -> vector<8x256xf32>
    %324 = arith.addf %317, %323 : vector<8x256xf32>
    %c0_273 = arith.constant 0 : index
    %c143_274 = arith.constant 143 : index
    %325 = vector.load %arg19[%c0_273, %c143_274] : memref<24x401xf32, #tpu.memory_space<vmem>>, vector<24x256xf32>
    %326 = vector.broadcast %10 : vector<1x256xf32> to vector<24x256xf32>
    %327 = arith.mulf %325, %326 : vector<24x256xf32>
    %c6_275 = arith.constant 6 : index
    %c0_276 = arith.constant 0 : index
    %c0_277 = arith.constant 0 : index
    %328 = vector.load %arg10[%c6_275, %c0_276, %c0_277] : memref<9x8x24xf32, #tpu.memory_space<vmem>>, vector<1x8x24xf32>
    %329 = vector.shape_cast %328 : vector<1x8x24xf32> to vector<8x24xf32>
    %cst_278 = arith.constant dense<0.000000e+00> : vector<8x256xf32>
    %330 = tpu.matmul %329, %327, %cst_278 {dimension_numbers = #tpu.dot_dimension_numbers<[1], [0], [0], [1], [0, 0, 1, 1], [], []>} : vector<8x24xf32>, vector<24x256xf32>, vector<8x256xf32> -> vector<8x256xf32>
    %331 = arith.addf %324, %330 : vector<8x256xf32>
    %c0_279 = arith.constant 0 : index
    %c144_280 = arith.constant 144 : index
    %332 = vector.load %arg19[%c0_279, %c144_280] : memref<24x401xf32, #tpu.memory_space<vmem>>, vector<24x256xf32>
    %c7_281 = arith.constant 7 : index
    %c0_282 = arith.constant 0 : index
    %c0_283 = arith.constant 0 : index
    %333 = vector.load %arg10[%c7_281, %c0_282, %c0_283] : memref<9x8x24xf32, #tpu.memory_space<vmem>>, vector<1x8x24xf32>
    %334 = vector.shape_cast %333 : vector<1x8x24xf32> to vector<8x24xf32>
    %cst_284 = arith.constant dense<0.000000e+00> : vector<8x256xf32>
    %335 = tpu.matmul %334, %332, %cst_284 {dimension_numbers = #tpu.dot_dimension_numbers<[1], [0], [0], [1], [0, 0, 1, 1], [], []>} : vector<8x24xf32>, vector<24x256xf32>, vector<8x256xf32> -> vector<8x256xf32>
    %336 = arith.addf %331, %335 : vector<8x256xf32>
    %c0_285 = arith.constant 0 : index
    %c145_286 = arith.constant 145 : index
    %337 = vector.load %arg19[%c0_285, %c145_286] : memref<24x401xf32, #tpu.memory_space<vmem>>, vector<24x256xf32>
    %338 = vector.broadcast %14 : vector<1x256xf32> to vector<24x256xf32>
    %339 = arith.mulf %337, %338 : vector<24x256xf32>
    %c8_287 = arith.constant 8 : index
    %c0_288 = arith.constant 0 : index
    %c0_289 = arith.constant 0 : index
    %340 = vector.load %arg10[%c8_287, %c0_288, %c0_289] : memref<9x8x24xf32, #tpu.memory_space<vmem>>, vector<1x8x24xf32>
    %341 = vector.shape_cast %340 : vector<1x8x24xf32> to vector<8x24xf32>
    %cst_290 = arith.constant dense<0.000000e+00> : vector<8x256xf32>
    %342 = tpu.matmul %341, %339, %cst_290 {dimension_numbers = #tpu.dot_dimension_numbers<[1], [0], [0], [1], [0, 0, 1, 1], [], []>} : vector<8x24xf32>, vector<24x256xf32>, vector<8x256xf32> -> vector<8x256xf32>
    %343 = arith.addf %336, %342 : vector<8x256xf32>
    %c0_291 = arith.constant 0 : index
    %c0_292 = arith.constant 0 : index
    %344 = vector.load %arg11[%c0_291, %c0_292] : memref<8x1xf32, #tpu.memory_space<vmem>>, vector<8x1xf32>
    %345 = vector.broadcast %344 : vector<8x1xf32> to vector<8x256xf32>
    %346 = arith.addf %343, %345 : vector<8x256xf32>
    %cst_293 = arith.constant 0.000000e+00 : f32
    %347 = vector.broadcast %cst_293 : f32 to vector<8x256xf32>
    %348 = arith.maximumf %346, %347 : vector<8x256xf32>
    %c0_294 = arith.constant 0 : index
    %c128_295 = arith.constant 128 : index
    %349 = vector.load %arg19[%c0_294, %c128_295] : memref<24x401xf32, #tpu.memory_space<vmem>>, vector<8x256xf32>
    tpu.vector_store %arg19[%c0_294, %c128_295], %348 {strides = array<i32>} : memref<24x401xf32, #tpu.memory_space<vmem>>, vector<8x256xf32>,
    %c0_296 = arith.constant 0 : index
    %c111_297 = arith.constant 111 : index
    %350 = vector.load %arg19[%c0_296, %c111_297] : memref<24x401xf32, #tpu.memory_space<vmem>>, vector<8x256xf32>
    %351 = vector.broadcast %10 : vector<1x256xf32> to vector<8x256xf32>
    %352 = arith.mulf %350, %351 : vector<8x256xf32>
    %c0_298 = arith.constant 0 : index
    %c0_299 = arith.constant 0 : index
    %c0_300 = arith.constant 0 : index
    %353 = vector.load %arg12[%c0_298, %c0_299, %c0_300] : memref<9x8x8xf32, #tpu.memory_space<vmem>>, vector<1x8x8xf32>
    %354 = vector.shape_cast %353 : vector<1x8x8xf32> to vector<8x8xf32>
    %cst_301 = arith.constant dense<0.000000e+00> : vector<8x256xf32>
    %355 = tpu.matmul %354, %352, %cst_301 {dimension_numbers = #tpu.dot_dimension_numbers<[1], [0], [0], [1], [0, 0, 1, 1], [], []>} : vector<8x8xf32>, vector<8x256xf32>, vector<8x256xf32> -> vector<8x256xf32>
    %c0_302 = arith.constant 0 : index
    %c112_303 = arith.constant 112 : index
    %356 = vector.load %arg19[%c0_302, %c112_303] : memref<24x401xf32, #tpu.memory_space<vmem>>, vector<8x256xf32>
    %c1_304 = arith.constant 1 : index
    %c0_305 = arith.constant 0 : index
    %c0_306 = arith.constant 0 : index
    %357 = vector.load %arg12[%c1_304, %c0_305, %c0_306] : memref<9x8x8xf32, #tpu.memory_space<vmem>>, vector<1x8x8xf32>
    %358 = vector.shape_cast %357 : vector<1x8x8xf32> to vector<8x8xf32>
    %cst_307 = arith.constant dense<0.000000e+00> : vector<8x256xf32>
    %359 = tpu.matmul %358, %356, %cst_307 {dimension_numbers = #tpu.dot_dimension_numbers<[1], [0], [0], [1], [0, 0, 1, 1], [], []>} : vector<8x8xf32>, vector<8x256xf32>, vector<8x256xf32> -> vector<8x256xf32>
    %360 = arith.addf %355, %359 : vector<8x256xf32>
    %c0_308 = arith.constant 0 : index
    %c113_309 = arith.constant 113 : index
    %361 = vector.load %arg19[%c0_308, %c113_309] : memref<24x401xf32, #tpu.memory_space<vmem>>, vector<8x256xf32>
    %362 = vector.broadcast %14 : vector<1x256xf32> to vector<8x256xf32>
    %363 = arith.mulf %361, %362 : vector<8x256xf32>
    %c2_310 = arith.constant 2 : index
    %c0_311 = arith.constant 0 : index
    %c0_312 = arith.constant 0 : index
    %364 = vector.load %arg12[%c2_310, %c0_311, %c0_312] : memref<9x8x8xf32, #tpu.memory_space<vmem>>, vector<1x8x8xf32>
    %365 = vector.shape_cast %364 : vector<1x8x8xf32> to vector<8x8xf32>
    %cst_313 = arith.constant dense<0.000000e+00> : vector<8x256xf32>
    %366 = tpu.matmul %365, %363, %cst_313 {dimension_numbers = #tpu.dot_dimension_numbers<[1], [0], [0], [1], [0, 0, 1, 1], [], []>} : vector<8x8xf32>, vector<8x256xf32>, vector<8x256xf32> -> vector<8x256xf32>
    %367 = arith.addf %360, %366 : vector<8x256xf32>
    %c0_314 = arith.constant 0 : index
    %c127_315 = arith.constant 127 : index
    %368 = vector.load %arg19[%c0_314, %c127_315] : memref<24x401xf32, #tpu.memory_space<vmem>>, vector<8x256xf32>
    %369 = vector.broadcast %10 : vector<1x256xf32> to vector<8x256xf32>
    %370 = arith.mulf %368, %369 : vector<8x256xf32>
    %c3_316 = arith.constant 3 : index
    %c0_317 = arith.constant 0 : index
    %c0_318 = arith.constant 0 : index
    %371 = vector.load %arg12[%c3_316, %c0_317, %c0_318] : memref<9x8x8xf32, #tpu.memory_space<vmem>>, vector<1x8x8xf32>
    %372 = vector.shape_cast %371 : vector<1x8x8xf32> to vector<8x8xf32>
    %cst_319 = arith.constant dense<0.000000e+00> : vector<8x256xf32>
    %373 = tpu.matmul %372, %370, %cst_319 {dimension_numbers = #tpu.dot_dimension_numbers<[1], [0], [0], [1], [0, 0, 1, 1], [], []>} : vector<8x8xf32>, vector<8x256xf32>, vector<8x256xf32> -> vector<8x256xf32>
    %374 = arith.addf %367, %373 : vector<8x256xf32>
    %c0_320 = arith.constant 0 : index
    %c128_321 = arith.constant 128 : index
    %375 = vector.load %arg19[%c0_320, %c128_321] : memref<24x401xf32, #tpu.memory_space<vmem>>, vector<8x256xf32>
    %c4_322 = arith.constant 4 : index
    %c0_323 = arith.constant 0 : index
    %c0_324 = arith.constant 0 : index
    %376 = vector.load %arg12[%c4_322, %c0_323, %c0_324] : memref<9x8x8xf32, #tpu.memory_space<vmem>>, vector<1x8x8xf32>
    %377 = vector.shape_cast %376 : vector<1x8x8xf32> to vector<8x8xf32>
    %cst_325 = arith.constant dense<0.000000e+00> : vector<8x256xf32>
    %378 = tpu.matmul %377, %375, %cst_325 {dimension_numbers = #tpu.dot_dimension_numbers<[1], [0], [0], [1], [0, 0, 1, 1], [], []>} : vector<8x8xf32>, vector<8x256xf32>, vector<8x256xf32> -> vector<8x256xf32>
    %379 = arith.addf %374, %378 : vector<8x256xf32>
    %c0_326 = arith.constant 0 : index
    %c129_327 = arith.constant 129 : index
    %380 = vector.load %arg19[%c0_326, %c129_327] : memref<24x401xf32, #tpu.memory_space<vmem>>, vector<8x256xf32>
    %381 = vector.broadcast %14 : vector<1x256xf32> to vector<8x256xf32>
    %382 = arith.mulf %380, %381 : vector<8x256xf32>
    %c5_328 = arith.constant 5 : index
    %c0_329 = arith.constant 0 : index
    %c0_330 = arith.constant 0 : index
    %383 = vector.load %arg12[%c5_328, %c0_329, %c0_330] : memref<9x8x8xf32, #tpu.memory_space<vmem>>, vector<1x8x8xf32>
    %384 = vector.shape_cast %383 : vector<1x8x8xf32> to vector<8x8xf32>
    %cst_331 = arith.constant dense<0.000000e+00> : vector<8x256xf32>
    %385 = tpu.matmul %384, %382, %cst_331 {dimension_numbers = #tpu.dot_dimension_numbers<[1], [0], [0], [1], [0, 0, 1, 1], [], []>} : vector<8x8xf32>, vector<8x256xf32>, vector<8x256xf32> -> vector<8x256xf32>
    %386 = arith.addf %379, %385 : vector<8x256xf32>
    %c0_332 = arith.constant 0 : index
    %c143_333 = arith.constant 143 : index
    %387 = vector.load %arg19[%c0_332, %c143_333] : memref<24x401xf32, #tpu.memory_space<vmem>>, vector<8x256xf32>
    %388 = vector.broadcast %10 : vector<1x256xf32> to vector<8x256xf32>
    %389 = arith.mulf %387, %388 : vector<8x256xf32>
    %c6_334 = arith.constant 6 : index
    %c0_335 = arith.constant 0 : index
    %c0_336 = arith.constant 0 : index
    %390 = vector.load %arg12[%c6_334, %c0_335, %c0_336] : memref<9x8x8xf32, #tpu.memory_space<vmem>>, vector<1x8x8xf32>
    %391 = vector.shape_cast %390 : vector<1x8x8xf32> to vector<8x8xf32>
    %cst_337 = arith.constant dense<0.000000e+00> : vector<8x256xf32>
    %392 = tpu.matmul %391, %389, %cst_337 {dimension_numbers = #tpu.dot_dimension_numbers<[1], [0], [0], [1], [0, 0, 1, 1], [], []>} : vector<8x8xf32>, vector<8x256xf32>, vector<8x256xf32> -> vector<8x256xf32>
    %393 = arith.addf %386, %392 : vector<8x256xf32>
    %c0_338 = arith.constant 0 : index
    %c144_339 = arith.constant 144 : index
    %394 = vector.load %arg19[%c0_338, %c144_339] : memref<24x401xf32, #tpu.memory_space<vmem>>, vector<8x256xf32>
    %c7_340 = arith.constant 7 : index
    %c0_341 = arith.constant 0 : index
    %c0_342 = arith.constant 0 : index
    %395 = vector.load %arg12[%c7_340, %c0_341, %c0_342] : memref<9x8x8xf32, #tpu.memory_space<vmem>>, vector<1x8x8xf32>
    %396 = vector.shape_cast %395 : vector<1x8x8xf32> to vector<8x8xf32>
    %cst_343 = arith.constant dense<0.000000e+00> : vector<8x256xf32>
    %397 = tpu.matmul %396, %394, %cst_343 {dimension_numbers = #tpu.dot_dimension_numbers<[1], [0], [0], [1], [0, 0, 1, 1], [], []>} : vector<8x8xf32>, vector<8x256xf32>, vector<8x256xf32> -> vector<8x256xf32>
    %398 = arith.addf %393, %397 : vector<8x256xf32>
    %c0_344 = arith.constant 0 : index
    %c145_345 = arith.constant 145 : index
    %399 = vector.load %arg19[%c0_344, %c145_345] : memref<24x401xf32, #tpu.memory_space<vmem>>, vector<8x256xf32>
    %400 = vector.broadcast %14 : vector<1x256xf32> to vector<8x256xf32>
    %401 = arith.mulf %399, %400 : vector<8x256xf32>
    %c8_346 = arith.constant 8 : index
    %c0_347 = arith.constant 0 : index
    %c0_348 = arith.constant 0 : index
    %402 = vector.load %arg12[%c8_346, %c0_347, %c0_348] : memref<9x8x8xf32, #tpu.memory_space<vmem>>, vector<1x8x8xf32>
    %403 = vector.shape_cast %402 : vector<1x8x8xf32> to vector<8x8xf32>
    %cst_349 = arith.constant dense<0.000000e+00> : vector<8x256xf32>
    %404 = tpu.matmul %403, %401, %cst_349 {dimension_numbers = #tpu.dot_dimension_numbers<[1], [0], [0], [1], [0, 0, 1, 1], [], []>} : vector<8x8xf32>, vector<8x256xf32>, vector<8x256xf32> -> vector<8x256xf32>
    %405 = arith.addf %398, %404 : vector<8x256xf32>
    %c0_350 = arith.constant 0 : index
    %c0_351 = arith.constant 0 : index
    %406 = vector.load %arg13[%c0_350, %c0_351] : memref<8x1xf32, #tpu.memory_space<vmem>>, vector<8x1xf32>
    %407 = vector.broadcast %406 : vector<8x1xf32> to vector<8x256xf32>
    %408 = arith.addf %405, %407 : vector<8x256xf32>
    %cst_352 = arith.constant 0.000000e+00 : f32
    %409 = vector.broadcast %cst_352 : f32 to vector<8x256xf32>
    %410 = arith.maximumf %408, %409 : vector<8x256xf32>
    %c0_353 = arith.constant 0 : index
    %c0_354 = arith.constant 0 : index
    %411 = vector.load %arg14[%c0_353, %c0_354] : memref<2x8xf32, #tpu.memory_space<vmem>>, vector<2x8xf32>
    %cst_355 = arith.constant dense<0.000000e+00> : vector<2x256xf32>
    %412 = tpu.matmul %411, %410, %cst_355 {dimension_numbers = #tpu.dot_dimension_numbers<[1], [0], [0], [1], [0, 0, 1, 1], [], []>} : vector<2x8xf32>, vector<8x256xf32>, vector<2x256xf32> -> vector<2x256xf32>
    %c0_356 = arith.constant 0 : index
    %c0_357 = arith.constant 0 : index
    %413 = vector.load %arg15[%c0_356, %c0_357] : memref<2x1xf32, #tpu.memory_space<vmem>>, vector<2x1xf32>
    %414 = vector.broadcast %413 : vector<2x1xf32> to vector<2x256xf32>
    %415 = arith.addf %412, %414 : vector<2x256xf32>
    %c0_358 = arith.constant 0 : index
    %c0_359 = arith.constant 0 : index
    %416 = vector.load %arg18[%c0_358, %c0_359] : memref<2x256xf32, #tpu.memory_space<vmem>>, vector<2x256xf32>
    tpu.vector_store %arg18[%c0_358, %c0_359], %415 {strides = array<i32>} : memref<2x256xf32, #tpu.memory_space<vmem>>, vector<2x256xf32>,
    return
  }
  func.func @transform_0(%arg0: i32) -> (i32, i32) {
    %c0_i32 = arith.constant 0 : i32
    %c0_i32_0 = arith.constant 0 : i32
    %c0_i32_1 = arith.constant 0 : i32
    return %c0_i32, %c0_i32_0 : i32, i32
  }
  func.func @transform_1(%arg0: i32) -> (i32, i32, i32) {
    %c0_i32 = arith.constant 0 : i32
    %c0_i32_0 = arith.constant 0 : i32
    %c0_i32_1 = arith.constant 0 : i32
    %c0_i32_2 = arith.constant 0 : i32
    return %c0_i32, %c0_i32_0, %c0_i32_1 : i32, i32, i32
  }
  func.func @transform_2(%arg0: i32) -> (i32, i32) {
    %c0_i32 = arith.constant 0 : i32
    %c0_i32_0 = arith.constant 0 : i32
    %c0_i32_1 = arith.constant 0 : i32
    return %c0_i32, %c0_i32_0 : i32, i32
  }
  func.func @transform_3(%arg0: i32) -> (i32, i32, i32) {
    %c0_i32 = arith.constant 0 : i32
    %c0_i32_0 = arith.constant 0 : i32
    %c0_i32_1 = arith.constant 0 : i32
    %c0_i32_2 = arith.constant 0 : i32
    return %c0_i32, %c0_i32_0, %c0_i32_1 : i32, i32, i32
  }
  func.func @transform_4(%arg0: i32) -> (i32, i32) {
    %c0_i32 = arith.constant 0 : i32
    %c0_i32_0 = arith.constant 0 : i32
    %c0_i32_1 = arith.constant 0 : i32
    return %c0_i32, %c0_i32_0 : i32, i32
  }
  func.func @transform_5(%arg0: i32) -> (i32, i32, i32) {
    %c0_i32 = arith.constant 0 : i32
    %c0_i32_0 = arith.constant 0 : i32
    %c0_i32_1 = arith.constant 0 : i32
    %c0_i32_2 = arith.constant 0 : i32
    return %c0_i32, %c0_i32_0, %c0_i32_1 : i32, i32, i32
  }
  func.func @transform_6(%arg0: i32) -> (i32, i32) {
    %c0_i32 = arith.constant 0 : i32
    %c0_i32_0 = arith.constant 0 : i32
    %c0_i32_1 = arith.constant 0 : i32
    return %c0_i32, %c0_i32_0 : i32, i32
  }
  func.func @transform_7(%arg0: i32) -> (i32, i32, i32) {
    %c0_i32 = arith.constant 0 : i32
    %c0_i32_0 = arith.constant 0 : i32
    %c0_i32_1 = arith.constant 0 : i32
    %c0_i32_2 = arith.constant 0 : i32
    return %c0_i32, %c0_i32_0, %c0_i32_1 : i32, i32, i32
  }
  func.func @transform_8(%arg0: i32) -> (i32, i32) {
    %c0_i32 = arith.constant 0 : i32
    %c0_i32_0 = arith.constant 0 : i32
    %c0_i32_1 = arith.constant 0 : i32
    return %c0_i32, %c0_i32_0 : i32, i32
  }
  func.func @transform_9(%arg0: i32) -> (i32, i32, i32) {
    %c0_i32 = arith.constant 0 : i32
    %c0_i32_0 = arith.constant 0 : i32
    %c0_i32_1 = arith.constant 0 : i32
    %c0_i32_2 = arith.constant 0 : i32
    return %c0_i32, %c0_i32_0, %c0_i32_1 : i32, i32, i32
  }
  func.func @transform_10(%arg0: i32) -> (i32, i32) {
    %c0_i32 = arith.constant 0 : i32
    %c0_i32_0 = arith.constant 0 : i32
    %c0_i32_1 = arith.constant 0 : i32
    return %c0_i32, %c0_i32_0 : i32, i32
  }
  func.func @transform_11(%arg0: i32) -> (i32, i32, i32) {
    %c0_i32 = arith.constant 0 : i32
    %c0_i32_0 = arith.constant 0 : i32
    %c0_i32_1 = arith.constant 0 : i32
    %c0_i32_2 = arith.constant 0 : i32
    return %c0_i32, %c0_i32_0, %c0_i32_1 : i32, i32, i32
  }
  func.func @transform_12(%arg0: i32) -> (i32, i32) {
    %c0_i32 = arith.constant 0 : i32
    %c0_i32_0 = arith.constant 0 : i32
    %c0_i32_1 = arith.constant 0 : i32
    return %c0_i32, %c0_i32_0 : i32, i32
  }
  func.func @transform_13(%arg0: i32) -> (i32, i32) {
    %c0_i32 = arith.constant 0 : i32
    %c0_i32_0 = arith.constant 0 : i32
    %c0_i32_1 = arith.constant 0 : i32
    return %c0_i32, %c0_i32_0 : i32, i32
  }
  func.func @transform_14(%arg0: i32) -> (i32, i32) {
    %c0_i32 = arith.constant 0 : i32
    %c0_i32_0 = arith.constant 0 : i32
    %c0_i32_1 = arith.constant 0 : i32
    return %c0_i32, %c0_i32_0 : i32, i32
  }
  func.func @transform_15(%arg0: i32) -> (i32, i32) {
    %c0_i32 = arith.constant 0 : i32
    %c0_i32_0 = arith.constant 0 : i32
    %c0_i32_1 = arith.constant 0 : i32
    return %c0_i32, %c0_i32_0 : i32, i32
  }
  func.func @transform_16(%arg0: i32) -> (i32, i32) {
    %c0_i32 = arith.constant 0 : i32
    %c0_i32_0 = arith.constant 0 : i32
    %c0_i32_1 = arith.constant 0 : i32
    return %c0_i32, %c0_i32_0 : i32, i32
  }
  func.func @transform_17(%arg0: i32) -> (i32, i32) {
    %c0_i32 = arith.constant 0 : i32
    %c0_i32_0 = arith.constant 0 : i32
    %c0_i32_1 = arith.constant 0 : i32
    return %c0_i32, %c0_i32_0 : i32, i32
  }
}

</mosaic_0001>

<llo_original>
// kernel: squeeze.4
$region0: #{squeeze.4}
  %s0 = inlined_call_operand.hbm [shape: f32[1,2,16,16], index: 0, kind: input, shape index: {}]
  %s1 = inlined_call_operand.vmem [shape: f32[2,256], index: 1, kind: output, shape index: {}]
  $region1: #{squeeze.4} parent=0
    #allocation0 [shape = 'u8[16384]{0}', space=vmem, size = 0x4000, scoped, tag = 'operand span for operand 0']
    #allocation1 [shape = 's32[1]{0}', space=sflag, size = 0x4, scoped, tag = 'scoped memory for squeeze.4']
    #allocation2 [shape = 'u8[8192]{0}', space=vmem, size = 0x2000, scoped, tag = 'scoped mem for output reshape']
    %2 = vsyncpa [#allocation1], 0
    %s4 = ssub.s32 512, 512
    %5 = vsyncadd [#allocation1], %s4
    %s7 = sshll.u32 [#allocation0], 4
    %s8 = int_to_ptr.vmem [resolvable:$true] %s7
    %10 = dma.hbm_to_vmem [thread:$0]  %s0, 512, %s8, [#allocation1]
    %11 = dma.done [#allocation1], 512
    %v12 = vld [vmem:[#allocation0] ss:$8 sm:$0xf]
    %vm13 = vcmask 130048
    %14 = vst.msk [vmem:[#allocation2] ss:$8 sm:$0x3] %vm13, %v12
    %s15 = scalar_lea.vmem [#allocation2], 4294967281
    %16 = vst.msk [vmem:[%s15] ss:$8 sm:$0xc] %vm13, %v12
    %s17 = scalar_lea.vmem [#allocation0], 7
    %s18 = smov 3
    %v19 = vld [vmem:[%s17] ss:$16 sm:%s18]
    %s20 = scalar_lea.vmem [#allocation0], 4294967279
    %s21 = smov 12
    %v22 = vld [vmem:[%s20] ss:$16 sm:%s21]
    %vm23 = vcmask 1043458
    %v24 = vsel %vm23, %v22, %v19
    %25 = vrot.lane.b32.xlu0 %v24, 112
    %v26 = vpop.permute.xlu0 %25
    %vm27 = vcmask 1048448
    %28 = vst.msk [vmem:[#allocation2] sm:$0x3] %vm27, %v26
    %s29 = scalar_lea.vmem [#allocation2], 6
    %30 = vst.msk [vmem:[%s29] sm:$0xc] %vm27, %v26
    %s31 = scalar_lea.vmem [#allocation0], 6
    %s32 = smov 3
    %v33 = vld [vmem:[%s31] ss:$16 sm:%s32]
    %s34 = scalar_lea.vmem [#allocation0], 4294967278
    %s35 = smov 12
    %v36 = vld [vmem:[%s34] ss:$16 sm:%s35]
    %vm37 = vcmask 1043458
    %v38 = vsel %vm37, %v36, %v33
    %39 = vrot.lane.b32.xlu0 %v38, 96
    %v40 = vpop.permute.xlu0 %39
    %vm41 = vcmask 917248
    %42 = vst.msk [vmem:[#allocation2] sm:$0x3] %vm41, %v40
    %s43 = scalar_lea.vmem [#allocation2], 6
    %44 = vst.msk [vmem:[%s43] sm:$0xc] %vm41, %v40
    %s45 = scalar_lea.vmem [#allocation0], 5
    %s46 = smov 3
    %v47 = vld [vmem:[%s45] ss:$16 sm:%s46]
    %s48 = scalar_lea.vmem [#allocation0], 4294967277
    %s49 = smov 12
    %v50 = vld [vmem:[%s48] ss:$16 sm:%s49]
    %vm51 = vcmask 1043458
    %v52 = vsel %vm51, %v50, %v47
    %53 = vrot.lane.b32.xlu0 %v52, 80
    %v54 = vpop.permute.xlu0 %53
    %vm55 = vcmask 786048
    %56 = vst.msk [vmem:[#allocation2] sm:$0x3] %vm55, %v54
    %s57 = scalar_lea.vmem [#allocation2], 6
    %58 = vst.msk [vmem:[%s57] sm:$0xc] %vm55, %v54
    %s59 = scalar_lea.vmem [#allocation0], 4
    %s60 = smov 3
    %v61 = vld [vmem:[%s59] ss:$16 sm:%s60]
    %s62 = scalar_lea.vmem [#allocation0], 4294967276
    %s63 = smov 12
    %v64 = vld [vmem:[%s62] ss:$16 sm:%s63]
    %vm65 = vcmask 1043458
    %v66 = vsel %vm65, %v64, %v61
    %67 = vrot.lane.b32.xlu0 %v66, 64
    %v68 = vpop.permute.xlu0 %67
    %vm69 = vcmask 654848
    %70 = vst.msk [vmem:[#allocation2] sm:$0x3] %vm69, %v68
    %s71 = scalar_lea.vmem [#allocation2], 6
    %72 = vst.msk [vmem:[%s71] sm:$0xc] %vm69, %v68
    %s73 = scalar_lea.vmem [#allocation0], 3
    %s74 = smov 3
    %v75 = vld [vmem:[%s73] ss:$16 sm:%s74]
    %s76 = scalar_lea.vmem [#allocation0], 4294967275
    %s77 = smov 12
    %v78 = vld [vmem:[%s76] ss:$16 sm:%s77]
    %vm79 = vcmask 1043458
    %v80 = vsel %vm79, %v78, %v75
    %81 = vrot.lane.b32.xlu0 %v80, 48
    %v82 = vpop.permute.xlu0 %81
    %vm83 = vcmask 523648
    %84 = vst.msk [vmem:[#allocation2] sm:$0x3] %vm83, %v82
    %s85 = scalar_lea.vmem [#allocation2], 6
    %86 = vst.msk [vmem:[%s85] sm:$0xc] %vm83, %v82
    %s87 = scalar_lea.vmem [#allocation0], 2
    %s88 = smov 3
    %v89 = vld [vmem:[%s87] ss:$16 sm:%s88]
    %s90 = scalar_lea.vmem [#allocation0], 4294967274
    %s91 = smov 12
    %v92 = vld [vmem:[%s90] ss:$16 sm:%s91]
    %vm93 = vcmask 1043458
    %v94 = vsel %vm93, %v92, %v89
    %95 = vrot.lane.b32.xlu0 %v94, 32
    %v96 = vpop.permute.xlu0 %95
    %vm97 = vcmask 392448
    %98 = vst.msk [vmem:[#allocation2] sm:$0x3] %vm97, %v96
    %s99 = scalar_lea.vmem [#allocation2], 6
    %100 = vst.msk [vmem:[%s99] sm:$0xc] %vm97, %v96
    %s101 = scalar_lea.vmem [#allocation0], 1
    %s102 = smov 3
    %v103 = vld [vmem:[%s101] ss:$16 sm:%s102]
    %s104 = scalar_lea.vmem [#allocation0], 4294967273
    %s105 = smov 12
    %v106 = vld [vmem:[%s104] ss:$16 sm:%s105]
    %vm107 = vcmask 1043458
    %v108 = vsel %vm107, %v106, %v103
    %109 = vrot.lane.b32.xlu0 %v108, 16
    %v110 = vpop.permute.xlu0 %109
    %vm111 = vcmask 261248
    %112 = vst.msk [vmem:[#allocation2] sm:$0x3] %vm111, %v110
    %s113 = scalar_lea.vmem [#allocation2], 6
    %114 = vst.msk [vmem:[%s113] sm:$0xc] %vm111, %v110
    %s116 = sshll.u32 1, 2
    %s117 = ssub.s32 %s116, 1
    %v119 = vld [vmem:[#allocation2] sm:%s117]
    %s120 = sshll.u32 1, 2
    %s121 = ssub.s32 %s120, 1
    %122 = vst [vmem:[%s1] sm:%s121] %v119
    %s123 = scalar_lea.vmem [#allocation2], 8
    %v124 = vld [vmem:[%s123] sm:%s117]
    %s125 = sshll.u32 1, 2
    %s126 = ssub.s32 %s125, 1
    %s127 = scalar_lea.vmem %s1, 2
    %128 = vst [vmem:[%s127] sm:%s126] %v124
    %129 = vsyncpa [#allocation1], 1

// kernel: custom-call
$region0: #{custom-call}
  %s0 = inlined_call_operand.vmem [shape: f32[16,16], index: 0, kind: input, shape index: {}]
  %s1 = inlined_call_operand.vmem [shape: f32[16,16], index: 1, kind: input, shape index: {}]
  %s2 = inlined_call_operand.hbm [shape: c64[16,16], index: 2, kind: output, shape index: {}]
  %s3 = scalar_lea.hbm %s2, 256
  $region1: #{custom-call} parent=0
    #allocation0 [shape = 's32[1]{0}', space=sflag, size = 0x4, scoped, tag = 'scoped memory for custom-call']
    %4 = vsyncpa [#allocation0], 0
    %s5 = sshll.u32 %s0, 4
    %s6 = int_to_ptr.vmem [resolvable:$true] %s5
    %8 = dma.vmem_to_hbm [thread:$0]  %s6, 256, %s2, [#allocation0]
    %9 = dma.done [#allocation0], 256
    %10 = vsyncpa [#allocation0], 1
  $region2: #{custom-call} parent=0
    #allocation1 [shape = 's32[1]{0}', space=sflag, size = 0x4, scoped, tag = 'scoped memory for custom-call']
    %11 = vsyncpa [#allocation1], 0
    %s12 = sshll.u32 %s1, 4
    %s13 = int_to_ptr.vmem [resolvable:$true] %s12
    %15 = dma.vmem_to_hbm [thread:$0]  %s13, 256, %s3, [#allocation1]
    %16 = dma.done [#allocation1], 256
    %17 = vsyncpa [#allocation1], 1

// kernel: _lambda_.1
$region0: #{_lambda_.1}
  #allocation0 [shape = 'u32[]', space=smem, size = 0x4, offset = 0x4, fixed_abs, tag = 'smem constant byte address 0x4 - core index']
  #allocation1 [shape = 'u32[144,128]{1,0:T(1,128)}', space=vmem, size = 0x12000, scoped, tag = 'internal scratch']
  #allocation2 [shape = 'f32[24,401]{1,0:T(8,128)}', space=vmem, size = 0xc000, scoped, tag = 'scratch operand']
  #allocation3 [shape = 'f32[16,201]{1,0:T(8,128)}', space=vmem, size = 0x4000, scoped, tag = 'scratch operand']
  %s0 = inlined_call_operand.vmem [shape: f32[2,256], index: 0, kind: input, shape index: {}]
  %s1 = inlined_call_operand.vmem [shape: f32[9,8,2], index: 1, kind: input, shape index: {}]
  %s2 = inlined_call_operand.vmem [shape: f32[8,1], index: 2, kind: input, shape index: {}]
  %s3 = inlined_call_operand.vmem [shape: f32[9,8,8], index: 3, kind: input, shape index: {}]
  %s4 = inlined_call_operand.vmem [shape: f32[8,1], index: 4, kind: input, shape index: {}]
  %s5 = inlined_call_operand.vmem [shape: f32[9,16,8], index: 5, kind: input, shape index: {}]
  %s6 = inlined_call_operand.vmem [shape: f32[16,1], index: 6, kind: input, shape index: {}]
  %s7 = inlined_call_operand.vmem [shape: f32[9,16,16], index: 7, kind: input, shape index: {}]
  %s8 = inlined_call_operand.vmem [shape: f32[16,1], index: 8, kind: input, shape index: {}]
  %s9 = inlined_call_operand.vmem [shape: f32[9,8,24], index: 9, kind: input, shape index: {}]
  %s10 = inlined_call_operand.vmem [shape: f32[8,1], index: 10, kind: input, shape index: {}]
  %s11 = inlined_call_operand.vmem [shape: f32[9,8,8], index: 11, kind: input, shape index: {}]
  %s12 = inlined_call_operand.vmem [shape: f32[8,1], index: 12, kind: input, shape index: {}]
  %s13 = inlined_call_operand.vmem [shape: f32[2,8], index: 13, kind: input, shape index: {}]
  %s14 = inlined_call_operand.vmem [shape: f32[2,1], index: 14, kind: input, shape index: {}]
  %s15 = inlined_call_operand.vmem [shape: f32[256,64], index: 15, kind: input, shape index: {}]
  %s16 = inlined_call_operand.vmem [shape: f32[64,256], index: 16, kind: input, shape index: {}]
  %s17 = inlined_call_operand.vmem [shape: f32[2,256], index: 17, kind: output, shape index: {}]
  %s18 = sld [smem:[#allocation0]]
  $region78: #{_lambda_.1} parent=0
    _
  %s20 = ssub.s32 1, %s18
  %s21 = scalar_select 0, %s20, %s18
  // Predicated region
  $region2: #{_lambda_.1} parent=0 // pred_check
    _
  $region3: #{_lambda_.1} parent=0 // pred_check_branch
    %23 = sbr.rel (0) target = $region5
  $region4: #{_lambda_.1} parent=0 // pred_region
    _
  $region5: #{_lambda_.1} parent=0 // pred_fallthru
    _
  // Predicated region
  $region6: #{_lambda_.1} parent=0 // pred_check
    _
  $region7: #{_lambda_.1} parent=0 // pred_check_branch
    %25 = sbr.rel (0) target = $region9
  $region8: #{_lambda_.1} parent=0 // pred_region
    _
  $region9: #{_lambda_.1} parent=0 // pred_fallthru
    _
  // Predicated region
  $region10: #{_lambda_.1} parent=0 // pred_check
    _
  $region11: #{_lambda_.1} parent=0 // pred_check_branch
    %27 = sbr.rel (0) target = $region13
  $region12: #{_lambda_.1} parent=0 // pred_region
    _
  $region13: #{_lambda_.1} parent=0 // pred_fallthru
    _
  // Predicated region
  $region14: #{_lambda_.1} parent=0 // pred_check
    _
  $region15: #{_lambda_.1} parent=0 // pred_check_branch
    %29 = sbr.rel (0) target = $region17
  $region16: #{_lambda_.1} parent=0 // pred_region
    _
  $region17: #{_lambda_.1} parent=0 // pred_fallthru
    _
  // Predicated region
  $region18: #{_lambda_.1} parent=0 // pred_check
    _
  $region19: #{_lambda_.1} parent=0 // pred_check_branch
    %31 = sbr.rel (0) target = $region21
  $region20: #{_lambda_.1} parent=0 // pred_region
    _
  $region21: #{_lambda_.1} parent=0 // pred_fallthru
    _
  // Predicated region
  $region22: #{_lambda_.1} parent=0 // pred_check
    _
  $region23: #{_lambda_.1} parent=0 // pred_check_branch
    %33 = sbr.rel (0) target = $region25
  $region24: #{_lambda_.1} parent=0 // pred_region
    _
  $region25: #{_lambda_.1} parent=0 // pred_fallthru
    _
  // Predicated region
  $region26: #{_lambda_.1} parent=0 // pred_check
    _
  $region27: #{_lambda_.1} parent=0 // pred_check_branch
    %35 = sbr.rel (0) target = $region29
  $region28: #{_lambda_.1} parent=0 // pred_region
    _
  $region29: #{_lambda_.1} parent=0 // pred_fallthru
    _
  // Predicated region
  $region30: #{_lambda_.1} parent=0 // pred_check
    _
  $region31: #{_lambda_.1} parent=0 // pred_check_branch
    %37 = sbr.rel (0) target = $region33
  $region32: #{_lambda_.1} parent=0 // pred_region
    _
  $region33: #{_lambda_.1} parent=0 // pred_fallthru
    _
  // Predicated region
  $region34: #{_lambda_.1} parent=0 // pred_check
    _
  $region35: #{_lambda_.1} parent=0 // pred_check_branch
    %39 = sbr.rel (0) target = $region37
  $region36: #{_lambda_.1} parent=0 // pred_region
    _
  $region37: #{_lambda_.1} parent=0 // pred_fallthru
    _
  // Predicated region
  $region38: #{_lambda_.1} parent=0 // pred_check
    _
  $region39: #{_lambda_.1} parent=0 // pred_check_branch
    %41 = sbr.rel (0) target = $region41
  $region40: #{_lambda_.1} parent=0 // pred_region
    _
  $region41: #{_lambda_.1} parent=0 // pred_fallthru
    _
  // Predicated region
  $region42: #{_lambda_.1} parent=0 // pred_check
    _
  $region43: #{_lambda_.1} parent=0 // pred_check_branch
    %43 = sbr.rel (0) target = $region45
  $region44: #{_lambda_.1} parent=0 // pred_region
    _
  $region45: #{_lambda_.1} parent=0 // pred_fallthru
    _
  // Predicated region
  $region46: #{_lambda_.1} parent=0 // pred_check
    _
  $region47: #{_lambda_.1} parent=0 // pred_check_branch
    %45 = sbr.rel (0) target = $region49
  $region48: #{_lambda_.1} parent=0 // pred_region
    _
  $region49: #{_lambda_.1} parent=0 // pred_fallthru
    _
  // Predicated region
  $region50: #{_lambda_.1} parent=0 // pred_check
    _
  $region51: #{_lambda_.1} parent=0 // pred_check_branch
    %47 = sbr.rel (0) target = $region53
  $region52: #{_lambda_.1} parent=0 // pred_region
    _
  $region53: #{_lambda_.1} parent=0 // pred_fallthru
    _
  // Predicated region
  $region54: #{_lambda_.1} parent=0 // pred_check
    _
  $region55: #{_lambda_.1} parent=0 // pred_check_branch
    %49 = sbr.rel (0) target = $region57
  $region56: #{_lambda_.1} parent=0 // pred_region
    _
  $region57: #{_lambda_.1} parent=0 // pred_fallthru
    _
  // Predicated region
  $region58: #{_lambda_.1} parent=0 // pred_check
    _
  $region59: #{_lambda_.1} parent=0 // pred_check_branch
    %51 = sbr.rel (0) target = $region61
  $region60: #{_lambda_.1} parent=0 // pred_region
    _
  $region61: #{_lambda_.1} parent=0 // pred_fallthru
    _
  // Predicated region
  $region62: #{_lambda_.1} parent=0 // pred_check
    _
  $region63: #{_lambda_.1} parent=0 // pred_check_branch
    %53 = sbr.rel (0) target = $region65
  $region64: #{_lambda_.1} parent=0 // pred_region
    _
  $region65: #{_lambda_.1} parent=0 // pred_fallthru
    _
  // Predicated region
  $region66: #{_lambda_.1} parent=0 // pred_check
    _
  $region67: #{_lambda_.1} parent=0 // pred_check_branch
    %55 = sbr.rel (0) target = $region69
  $region68: #{_lambda_.1} parent=0 // pred_region
    _
  $region69: #{_lambda_.1} parent=0 // pred_fallthru
    _
  %56 = vst [vmem:[#allocation2] sm:$0xff] 0.0
  %57 = vst [vmem:[#allocation2 + $0x8] sm:$0xff] 0.0
  %58 = vst [vmem:[#allocation2 + $0x10] sm:$0xff] 0.0
  %vm59 = vcmask 138240
  %60 = vst.msk [vmem:[#allocation2 + $0x18] sm:$0xff] %vm59, 0.0
  %61 = vst [vmem:[#allocation2 + $0x20] sm:$0xff] 0.0
  %62 = vst [vmem:[#allocation2 + $0x28] sm:$0xff] 0.0
  %63 = vst [vmem:[#allocation2 + $0x30] sm:$0xff] 0.0
  %64 = vst.msk [vmem:[#allocation2 + $0x38] sm:$0xff] %vm59, 0.0
  %65 = vst [vmem:[#allocation2 + $0x40] sm:$0xff] 0.0
  %66 = vst [vmem:[#allocation2 + $0x48] sm:$0xff] 0.0
  %67 = vst [vmem:[#allocation2 + $0x50] sm:$0xff] 0.0
  %68 = vst.msk [vmem:[#allocation2 + $0x58] sm:$0xff] %vm59, 0.0
  %69 = vst [vmem:[#allocation3] sm:$0xff] 0.0
  %vm70 = vcmask 596992
  %71 = vst.msk [vmem:[#allocation3 + $0x8] sm:$0xff] %vm70, 0.0
  %72 = vst [vmem:[#allocation3 + $0x10] sm:$0xff] 0.0
  %73 = vst.msk [vmem:[#allocation3 + $0x18] sm:$0xff] %vm70, 0.0
  %v74 = vlaneseq
  %v75 = vand.u32 %v74, 127
  %v76 = vadd.s32 %v75, 128
  %v77 = vand.u32 %v75, 15
  %v78 = vand.u32 %v76, 15
  %vm79 = vcmp.ge.s32.totalorder %v77, 1
  %vm80 = vcmp.ge.s32.totalorder %v78, 1
  %v81 = vsel %vm79, 1, 0
  %v82 = vsel %vm80, 1, 0
  %v83 = vcvt.s32.f32 %v81
  %v84 = vcvt.s32.f32 %v82
  %vm85 = vcmp.le.s32.totalorder %v77, 14
  %vm86 = vcmp.le.s32.totalorder %v78, 14
  %v87 = vsel %vm85, 1, 0
  %v88 = vsel %vm86, 1, 0
  %v89 = vcvt.s32.f32 %v87
  %v90 = vcvt.s32.f32 %v88
  %v91 = vand.u32 %v75, 7
  %vm92 = vcmp.ge.s32.totalorder %v91, 1
  %v93 = vsel %vm92, 1, 0
  %v94 = vcvt.s32.f32 %v93
  %vm95 = vcmp.le.s32.totalorder %v91, 6
  %v96 = vsel %vm95, 1, 0
  %v97 = vcvt.s32.f32 %v96
  %v98 = vld [vmem:[%s0] sm:$0xf]
  %v101 = vunpack.c.l.s4 1983009808
  %v102 = vunpack.c.0.s8 %v101
  %v103 = vlaneseq
  %v104 = vshrl.u32 %v103, 7
  %v105 = vsub.s32 %v102, %v104
  %v106 = vrot.slane %v98, %v105
  %v107 = vcombine.high %v106, %v106
  %110 = vst [vmem:[#allocation2 + $0x8] sm:$0x3] %v106
  %111 = vst [vmem:[#allocation2 + $0x10] sm:$0x3] %v107
  %v112 = vld [vmem:[#allocation2] sm:$0x3]
  %v113 = vld [vmem:[#allocation2 + $0x8] sm:$0x3]
  %v114 = vld [vmem:[#allocation2 + $0x10] sm:$0x3]
  %117 = vrot.lane.b32.xlu0 %v83, 111
  %v118 = vpop.permute.xlu0 %117
  %119 = vrot.lane.b32.xlu0 %v84, 111
  %v120 = vpop.permute.xlu0 %119
  %vm121 = vcmask 908288
  %v122 = vsel %vm121, %v118, %v120
  %v126 = vmul.f32 %v112, %v118
  %v127 = vmul.f32 %v113, %v122
  %v128 = vmul.f32 %v114, %v120
  %v129 = vld [vmem:[%s1] sm:$0xff]
  %s130 = scalar_lea.vmem %s1, 8
  %v131 = vld [vmem:[%s130] sm:$0xff]
  %135 = vrot.lane.b32.xlu0 %v112, 16
  %v136 = vpop.permute.xlu0 %135
  %137 = vrot.lane.b32.xlu0 %v113, 16
  %v138 = vpop.permute.xlu0 %137
  %139 = vrot.lane.b32.xlu0 %v114, 16
  %v140 = vpop.permute.xlu0 %139
  %vm141 = vcmask 130048
  %v142 = vsel %vm141, %v136, %v138
  %v143 = vsel %vm141, %v138, %v140
  %vm144 = vcmask 15360
  %v146 = vsel %vm144, %v131, 0
  %vm148 = vcmask 1041408
  %v149 = vsel %vm148, %v142, 0
  %v151 = vsel %vm148, %v143, 0
  %153 = vmatprep.subr.mxu0 0.0
  %154 = vmatpush1.msra.mxu0 0.0
  %155 = vmatprep.subr.mxu0 0.0
  %156 = vmatpush1.msra.mxu0 0.0
  %157 = vmatprep.subr.mxu0 0.0
  %158 = vmatpush1.msra.mxu0 0.0
  %159 = vmatprep.subr.mxu0 0.0
  %160 = vmatpush1.msra.mxu0 0.0
  %161 = vmatprep.subr.mxu0 0.0
  %162 = vmatpush1.msra.mxu0 0.0
  %163 = vmatprep.subr.mxu0 0.0
  %164 = vmatpush1.msra.mxu0 0.0
  %165 = vmatprep.subr.mxu0 0.0
  %166 = vmatpush1.msra.mxu0 0.0
  %167 = vmatprep.subr.mxu0 0.0
  %168 = vmatpush1.msra.mxu0 0.0
  %169 = vmatprep.subr.mxu0 0.0
  %170 = vmatpush1.msra.mxu0 0.0
  %171 = vmatprep.subr.mxu0 0.0
  %172 = vmatpush1.msra.mxu0 0.0
  %173 = vmatprep.subr.mxu0 0.0
  %174 = vmatpush1.msra.mxu0 0.0
  %175 = vmatprep.subr.mxu0 0.0
  %176 = vmatpush1.msra.mxu0 0.0
  %177 = vmatprep.subr.mxu0 0.0
  %178 = vmatpush1.msra.mxu0 0.0
  %179 = vmatprep.subr.mxu0 0.0
  %180 = vmatpush1.msra.mxu0 0.0
  %181 = vmatprep.subr.mxu0 0.0
  %182 = vmatpush1.msra.mxu0 0.0
  %183 = vmatprep.subr.mxu0 %v151
  %184 = vmatpush1.msra.mxu0 %v149
  %185 = vmatprep.subr.mxu0 0.0
  %186 = vmatpush2.msra.mxu0 0.0
  %187 = vmatprep.subr.mxu0 0.0
  %188 = vmatpush2.msra.mxu0 0.0
  %189 = vmatprep.subr.mxu0 0.0
  %190 = vmatpush2.msra.mxu0 0.0
  %191 = vmatprep.subr.mxu0 0.0
  %192 = vmatpush2.msra.mxu0 0.0
  %193 = vmatprep.subr.mxu0 0.0
  %194 = vmatpush2.msra.mxu0 0.0
  %195 = vmatprep.subr.mxu0 0.0
  %196 = vmatpush2.msra.mxu0 0.0
  %197 = vmatprep.subr.mxu0 0.0
  %198 = vmatpush2.msra.mxu0 0.0
  %199 = vmatprep.subr.mxu0 0.0
  %200 = vmatpush2.msra.mxu0 0.0
  %201 = vmatprep.subr.mxu0 0.0
  %202 = vmatpush2.msra.mxu0 0.0
  %203 = vmatprep.subr.mxu0 0.0
  %204 = vmatpush2.msra.mxu0 0.0
  %205 = vmatprep.subr.mxu0 0.0
  %206 = vmatpush2.msra.mxu0 0.0
  %207 = vmatprep.subr.mxu0 0.0
  %208 = vmatpush2.msra.mxu0 0.0
  %209 = vmatprep.subr.mxu0 0.0
  %210 = vmatpush2.msra.mxu0 0.0
  %211 = vmatprep.subr.mxu0 0.0
  %212 = vmatpush2.msra.mxu0 0.0
  %213 = vmatprep.subr.mxu0 0.0
  %214 = vmatpush2.msra.mxu0 0.0
  %215 = vmatprep.subr.mxu0 0.0
  %216 = vmatpush2.msra.mxu0 0.0
  %217 = vmatprep.mubr.f32.mxu0 0.0
  %218 = vmatmul.mubr.f32.gmra.mxu0 %v146
  %v219 = vpop.f32.mrf.mxu0
  %v220 = vadd.f32 0.0, %v219
  %v221 = vpop.f32.mrf.mxu0
  %v222 = vadd.f32 0.0, %v221
  %223 = vdwg.mxu0
  %227 = vrot.lane.b32.xlu0 %v126, 17
  %v228 = vpop.permute.xlu0 %227
  %229 = vrot.lane.b32.xlu0 %v127, 17
  %v230 = vpop.permute.xlu0 %229
  %231 = vrot.lane.b32.xlu0 %v128, 17
  %v232 = vpop.permute.xlu0 %231
  %v233 = vsel %vm59, %v228, %v230
  %v234 = vsel %vm59, %v230, %v232
  %v236 = vsel %vm144, %v129, 0
  %v238 = vsel %vm148, %v233, 0
  %v240 = vsel %vm148, %v234, 0
  %242 = vmatprep.subr.mxu0 0.0
  %243 = vmatpush1.msra.mxu0 0.0
  %244 = vmatprep.subr.mxu0 0.0
  %245 = vmatpush1.msra.mxu0 0.0
  %246 = vmatprep.subr.mxu0 0.0
  %247 = vmatpush1.msra.mxu0 0.0
  %248 = vmatprep.subr.mxu0 0.0
  %249 = vmatpush1.msra.mxu0 0.0
  %250 = vmatprep.subr.mxu0 0.0
  %251 = vmatpush1.msra.mxu0 0.0
  %252 = vmatprep.subr.mxu0 0.0
  %253 = vmatpush1.msra.mxu0 0.0
  %254 = vmatprep.subr.mxu0 0.0
  %255 = vmatpush1.msra.mxu0 0.0
  %256 = vmatprep.subr.mxu0 0.0
  %257 = vmatpush1.msra.mxu0 0.0
  %258 = vmatprep.subr.mxu0 0.0
  %259 = vmatpush1.msra.mxu0 0.0
  %260 = vmatprep.subr.mxu0 0.0
  %261 = vmatpush1.msra.mxu0 0.0
  %262 = vmatprep.subr.mxu0 0.0
  %263 = vmatpush1.msra.mxu0 0.0
  %264 = vmatprep.subr.mxu0 0.0
  %265 = vmatpush1.msra.mxu0 0.0
  %266 = vmatprep.subr.mxu0 0.0
  %267 = vmatpush1.msra.mxu0 0.0
  %268 = vmatprep.subr.mxu0 0.0
  %269 = vmatpush1.msra.mxu0 0.0
  %270 = vmatprep.subr.mxu0 0.0
  %271 = vmatpush1.msra.mxu0 0.0
  %272 = vmatprep.subr.mxu0 %v240
  %273 = vmatpush1.msra.mxu0 %v238
  %274 = vmatprep.subr.mxu0 0.0
  %275 = vmatpush2.msra.mxu0 0.0
  %276 = vmatprep.subr.mxu0 0.0
  %277 = vmatpush2.msra.mxu0 0.0
  %278 = vmatprep.subr.mxu0 0.0
  %279 = vmatpush2.msra.mxu0 0.0
  %280 = vmatprep.subr.mxu0 0.0
  %281 = vmatpush2.msra.mxu0 0.0
  %282 = vmatprep.subr.mxu0 0.0
  %283 = vmatpush2.msra.mxu0 0.0
  %284 = vmatprep.subr.mxu0 0.0
  %285 = vmatpush2.msra.mxu0 0.0
  %286 = vmatprep.subr.mxu0 0.0
  %287 = vmatpush2.msra.mxu0 0.0
  %288 = vmatprep.subr.mxu0 0.0
  %289 = vmatpush2.msra.mxu0 0.0
  %290 = vmatprep.subr.mxu0 0.0
  %291 = vmatpush2.msra.mxu0 0.0
  %292 = vmatprep.subr.mxu0 0.0
  %293 = vmatpush2.msra.mxu0 0.0
  %294 = vmatprep.subr.mxu0 0.0
  %295 = vmatpush2.msra.mxu0 0.0
  %296 = vmatprep.subr.mxu0 0.0
  %297 = vmatpush2.msra.mxu0 0.0
  %298 = vmatprep.subr.mxu0 0.0
  %299 = vmatpush2.msra.mxu0 0.0
  %300 = vmatprep.subr.mxu0 0.0
  %301 = vmatpush2.msra.mxu0 0.0
  %302 = vmatprep.subr.mxu0 0.0
  %303 = vmatpush2.msra.mxu0 0.0
  %304 = vmatprep.subr.mxu0 0.0
  %305 = vmatpush2.msra.mxu0 0.0
  %306 = vmatprep.mubr.f32.mxu0 0.0
  %307 = vmatmul.mubr.f32.gmra.mxu0 %v236
  %v308 = vpop.f32.mrf.mxu0
  %v309 = vadd.f32 %v220, %v308
  %v310 = vpop.f32.mrf.mxu0
  %v311 = vadd.f32 %v222, %v310
  %312 = vdwg.mxu0
  %315 = vrot.lane.b32.xlu0 %v89, 113
  %v316 = vpop.permute.xlu0 %315
  %317 = vrot.lane.b32.xlu0 %v90, 113
  %v318 = vpop.permute.xlu0 %317
  %vm319 = vcmask 924672
  %v320 = vsel %vm319, %v316, %v318
  %v324 = vmul.f32 %v112, %v316
  %v325 = vmul.f32 %v113, %v320
  %v326 = vmul.f32 %v114, %v318
  %s327 = scalar_lea.vmem %s1, 16
  %v328 = vld [vmem:[%s327] sm:$0xff]
  %332 = vrot.lane.b32.xlu0 %v324, 15
  %v333 = vpop.permute.xlu0 %332
  %334 = vrot.lane.b32.xlu0 %v325, 15
  %v335 = vpop.permute.xlu0 %334
  %336 = vrot.lane.b32.xlu0 %v326, 15
  %v337 = vpop.permute.xlu0 %336
  %vm338 = vcmask 121856
  %v339 = vsel %vm338, %v333, %v335
  %v340 = vsel %vm338, %v335, %v337
  %v342 = vsel %vm144, %v328, 0
  %v344 = vsel %vm148, %v339, 0
  %v346 = vsel %vm148, %v340, 0
  %348 = vmatprep.subr.mxu0 0.0
  %349 = vmatpush1.msra.mxu0 0.0
  %350 = vmatprep.subr.mxu0 0.0
  %351 = vmatpush1.msra.mxu0 0.0
  %352 = vmatprep.subr.mxu0 0.0
  %353 = vmatpush1.msra.mxu0 0.0
  %354 = vmatprep.subr.mxu0 0.0
  %355 = vmatpush1.msra.mxu0 0.0
  %356 = vmatprep.subr.mxu0 0.0
  %357 = vmatpush1.msra.mxu0 0.0
  %358 = vmatprep.subr.mxu0 0.0
  %359 = vmatpush1.msra.mxu0 0.0
  %360 = vmatprep.subr.mxu0 0.0
  %361 = vmatpush1.msra.mxu0 0.0
  %362 = vmatprep.subr.mxu0 0.0
  %363 = vmatpush1.msra.mxu0 0.0
  %364 = vmatprep.subr.mxu0 0.0
  %365 = vmatpush1.msra.mxu0 0.0
  %366 = vmatprep.subr.mxu0 0.0
  %367 = vmatpush1.msra.mxu0 0.0
  %368 = vmatprep.subr.mxu0 0.0
  %369 = vmatpush1.msra.mxu0 0.0
  %370 = vmatprep.subr.mxu0 0.0
  %371 = vmatpush1.msra.mxu0 0.0
  %372 = vmatprep.subr.mxu0 0.0
  %373 = vmatpush1.msra.mxu0 0.0
  %374 = vmatprep.subr.mxu0 0.0
  %375 = vmatpush1.msra.mxu0 0.0
  %376 = vmatprep.subr.mxu0 0.0
  %377 = vmatpush1.msra.mxu0 0.0
  %378 = vmatprep.subr.mxu0 %v346
  %379 = vmatpush1.msra.mxu0 %v344
  %380 = vmatprep.subr.mxu0 0.0
  %381 = vmatpush2.msra.mxu0 0.0
  %382 = vmatprep.subr.mxu0 0.0
  %383 = vmatpush2.msra.mxu0 0.0
  %384 = vmatprep.subr.mxu0 0.0
  %385 = vmatpush2.msra.mxu0 0.0
  %386 = vmatprep.subr.mxu0 0.0
  %387 = vmatpush2.msra.mxu0 0.0
  %388 = vmatprep.subr.mxu0 0.0
  %389 = vmatpush2.msra.mxu0 0.0
  %390 = vmatprep.subr.mxu0 0.0
  %391 = vmatpush2.msra.mxu0 0.0
  %392 = vmatprep.subr.mxu0 0.0
  %393 = vmatpush2.msra.mxu0 0.0
  %394 = vmatprep.subr.mxu0 0.0
  %395 = vmatpush2.msra.mxu0 0.0
  %396 = vmatprep.subr.mxu0 0.0
  %397 = vmatpush2.msra.mxu0 0.0
  %398 = vmatprep.subr.mxu0 0.0
  %399 = vmatpush2.msra.mxu0 0.0
  %400 = vmatprep.subr.mxu0 0.0
  %401 = vmatpush2.msra.mxu0 0.0
  %402 = vmatprep.subr.mxu0 0.0
  %403 = vmatpush2.msra.mxu0 0.0
  %404 = vmatprep.subr.mxu0 0.0
  %405 = vmatpush2.msra.mxu0 0.0
  %406 = vmatprep.subr.mxu0 0.0
  %407 = vmatpush2.msra.mxu0 0.0
  %408 = vmatprep.subr.mxu0 0.0
  %409 = vmatpush2.msra.mxu0 0.0
  %410 = vmatprep.subr.mxu0 0.0
  %411 = vmatpush2.msra.mxu0 0.0
  %412 = vmatprep.mubr.f32.mxu0 0.0
  %413 = vmatmul.mubr.f32.gmra.mxu0 %v342
  %v414 = vpop.f32.mrf.mxu0
  %v415 = vadd.f32 0.0, %v414
  %v416 = vpop.f32.mrf.mxu0
  %v417 = vadd.f32 0.0, %v416
  %418 = vdwg.mxu0
  %v419 = vadd.f32 %v309, %v415
  %v420 = vadd.f32 %v311, %v417
  %421 = vrot.lane.b32.xlu0 %v83, 127
  %v422 = vpop.permute.xlu0 %421
  %423 = vrot.lane.b32.xlu0 %v84, 127
  %v424 = vpop.permute.xlu0 %423
  %vm425 = vcmask 1039360
  %v426 = vsel %vm425, %v422, %v424
  %v430 = vmul.f32 %v112, %v422
  %v431 = vmul.f32 %v113, %v426
  %v432 = vmul.f32 %v114, %v424
  %s433 = scalar_lea.vmem %s1, 24
  %v434 = vld [vmem:[%s433] sm:$0xff]
  %438 = vrot.lane.b32.xlu0 %v430, 1
  %v439 = vpop.permute.xlu0 %438
  %440 = vrot.lane.b32.xlu0 %v431, 1
  %v441 = vpop.permute.xlu0 %440
  %442 = vrot.lane.b32.xlu0 %v432, 1
  %v443 = vpop.permute.xlu0 %442
  %vm444 = vcmask 7168
  %v445 = vsel %vm444, %v439, %v441
  %v446 = vsel %vm444, %v441, %v443
  %v448 = vsel %vm144, %v434, 0
  %v450 = vsel %vm148, %v445, 0
  %v452 = vsel %vm148, %v446, 0
  %454 = vmatprep.subr.mxu0 0.0
  %455 = vmatpush1.msra.mxu0 0.0
  %456 = vmatprep.subr.mxu0 0.0
  %457 = vmatpush1.msra.mxu0 0.0
  %458 = vmatprep.subr.mxu0 0.0
  %459 = vmatpush1.msra.mxu0 0.0
  %460 = vmatprep.subr.mxu0 0.0
  %461 = vmatpush1.msra.mxu0 0.0
  %462 = vmatprep.subr.mxu0 0.0
  %463 = vmatpush1.msra.mxu0 0.0
  %464 = vmatprep.subr.mxu0 0.0
  %465 = vmatpush1.msra.mxu0 0.0
  %466 = vmatprep.subr.mxu0 0.0
  %467 = vmatpush1.msra.mxu0 0.0
  %468 = vmatprep.subr.mxu0 0.0
  %469 = vmatpush1.msra.mxu0 0.0
  %470 = vmatprep.subr.mxu0 0.0
  %471 = vmatpush1.msra.mxu0 0.0
  %472 = vmatprep.subr.mxu0 0.0
  %473 = vmatpush1.msra.mxu0 0.0
  %474 = vmatprep.subr.mxu0 0.0
  %475 = vmatpush1.msra.mxu0 0.0
  %476 = vmatprep.subr.mxu0 0.0
  %477 = vmatpush1.msra.mxu0 0.0
  %478 = vmatprep.subr.mxu0 0.0
  %479 = vmatpush1.msra.mxu0 0.0
  %480 = vmatprep.subr.mxu0 0.0
  %481 = vmatpush1.msra.mxu0 0.0
  %482 = vmatprep.subr.mxu0 0.0
  %483 = vmatpush1.msra.mxu0 0.0
  %484 = vmatprep.subr.mxu0 %v452
  %485 = vmatpush1.msra.mxu0 %v450
  %486 = vmatprep.subr.mxu0 0.0
  %487 = vmatpush2.msra.mxu0 0.0
  %488 = vmatprep.subr.mxu0 0.0
  %489 = vmatpush2.msra.mxu0 0.0
  %490 = vmatprep.subr.mxu0 0.0
  %491 = vmatpush2.msra.mxu0 0.0
  %492 = vmatprep.subr.mxu0 0.0
  %493 = vmatpush2.msra.mxu0 0.0
  %494 = vmatprep.subr.mxu0 0.0
  %495 = vmatpush2.msra.mxu0 0.0
  %496 = vmatprep.subr.mxu0 0.0
  %497 = vmatpush2.msra.mxu0 0.0
  %498 = vmatprep.subr.mxu0 0.0
  %499 = vmatpush2.msra.mxu0 0.0
  %500 = vmatprep.subr.mxu0 0.0
  %501 = vmatpush2.msra.mxu0 0.0
  %502 = vmatprep.subr.mxu0 0.0
  %503 = vmatpush2.msra.mxu0 0.0
  %504 = vmatprep.subr.mxu0 0.0
  %505 = vmatpush2.msra.mxu0 0.0
  %506 = vmatprep.subr.mxu0 0.0
  %507 = vmatpush2.msra.mxu0 0.0
  %508 = vmatprep.subr.mxu0 0.0
  %509 = vmatpush2.msra.mxu0 0.0
  %510 = vmatprep.subr.mxu0 0.0
  %511 = vmatpush2.msra.mxu0 0.0
  %512 = vmatprep.subr.mxu0 0.0
  %513 = vmatpush2.msra.mxu0 0.0
  %514 = vmatprep.subr.mxu0 0.0
  %515 = vmatpush2.msra.mxu0 0.0
  %516 = vmatprep.subr.mxu0 0.0
  %517 = vmatpush2.msra.mxu0 0.0
  %518 = vmatprep.mubr.f32.mxu0 0.0
  %519 = vmatmul.mubr.f32.gmra.mxu0 %v448
  %v520 = vpop.f32.mrf.mxu0
  %v521 = vadd.f32 0.0, %v520
  %v522 = vpop.f32.mrf.mxu0
  %v523 = vadd.f32 0.0, %v522
  %524 = vdwg.mxu0
  %v525 = vadd.f32 %v419, %v521
  %v526 = vadd.f32 %v420, %v523
  %s527 = scalar_lea.vmem %s1, 32
  %v528 = vld [vmem:[%s527] sm:$0xff]
  %v530 = vsel %vm144, %v528, 0
  %v532 = vsel %vm148, %v113, 0
  %v534 = vsel %vm148, %v114, 0
  %536 = vmatprep.subr.mxu0 0.0
  %537 = vmatpush1.msra.mxu0 0.0
  %538 = vmatprep.subr.mxu0 0.0
  %539 = vmatpush1.msra.mxu0 0.0
  %540 = vmatprep.subr.mxu0 0.0
  %541 = vmatpush1.msra.mxu0 0.0
  %542 = vmatprep.subr.mxu0 0.0
  %543 = vmatpush1.msra.mxu0 0.0
  %544 = vmatprep.subr.mxu0 0.0
  %545 = vmatpush1.msra.mxu0 0.0
  %546 = vmatprep.subr.mxu0 0.0
  %547 = vmatpush1.msra.mxu0 0.0
  %548 = vmatprep.subr.mxu0 0.0
  %549 = vmatpush1.msra.mxu0 0.0
  %550 = vmatprep.subr.mxu0 0.0
  %551 = vmatpush1.msra.mxu0 0.0
  %552 = vmatprep.subr.mxu0 0.0
  %553 = vmatpush1.msra.mxu0 0.0
  %554 = vmatprep.subr.mxu0 0.0
  %555 = vmatpush1.msra.mxu0 0.0
  %556 = vmatprep.subr.mxu0 0.0
  %557 = vmatpush1.msra.mxu0 0.0
  %558 = vmatprep.subr.mxu0 0.0
  %559 = vmatpush1.msra.mxu0 0.0
  %560 = vmatprep.subr.mxu0 0.0
  %561 = vmatpush1.msra.mxu0 0.0
  %562 = vmatprep.subr.mxu0 0.0
  %563 = vmatpush1.msra.mxu0 0.0
  %564 = vmatprep.subr.mxu0 0.0
  %565 = vmatpush1.msra.mxu0 0.0
  %566 = vmatprep.subr.mxu0 %v534
  %567 = vmatpush1.msra.mxu0 %v532
  %568 = vmatprep.subr.mxu0 0.0
  %569 = vmatpush2.msra.mxu0 0.0
  %570 = vmatprep.subr.mxu0 0.0
  %571 = vmatpush2.msra.mxu0 0.0
  %572 = vmatprep.subr.mxu0 0.0
  %573 = vmatpush2.msra.mxu0 0.0
  %574 = vmatprep.subr.mxu0 0.0
  %575 = vmatpush2.msra.mxu0 0.0
  %576 = vmatprep.subr.mxu0 0.0
  %577 = vmatpush2.msra.mxu0 0.0
  %578 = vmatprep.subr.mxu0 0.0
  %579 = vmatpush2.msra.mxu0 0.0
  %580 = vmatprep.subr.mxu0 0.0
  %581 = vmatpush2.msra.mxu0 0.0
  %582 = vmatprep.subr.mxu0 0.0
  %583 = vmatpush2.msra.mxu0 0.0
  %584 = vmatprep.subr.mxu0 0.0
  %585 = vmatpush2.msra.mxu0 0.0
  %586 = vmatprep.subr.mxu0 0.0
  %587 = vmatpush2.msra.mxu0 0.0
  %588 = vmatprep.subr.mxu0 0.0
  %589 = vmatpush2.msra.mxu0 0.0
  %590 = vmatprep.subr.mxu0 0.0
  %591 = vmatpush2.msra.mxu0 0.0
  %592 = vmatprep.subr.mxu0 0.0
  %593 = vmatpush2.msra.mxu0 0.0
  %594 = vmatprep.subr.mxu0 0.0
  %595 = vmatpush2.msra.mxu0 0.0
  %596 = vmatprep.subr.mxu0 0.0
  %597 = vmatpush2.msra.mxu0 0.0
  %598 = vmatprep.subr.mxu0 0.0
  %599 = vmatpush2.msra.mxu0 0.0
  %600 = vmatprep.mubr.f32.mxu0 0.0
  %601 = vmatmul.mubr.f32.gmra.mxu0 %v530
  %v602 = vpop.f32.mrf.mxu0
  %v603 = vadd.f32 0.0, %v602
  %v604 = vpop.f32.mrf.mxu0
  %v605 = vadd.f32 0.0, %v604
  %606 = vdwg.mxu0
  %v607 = vadd.f32 %v525, %v603
  %v608 = vadd.f32 %v526, %v605
  %v609 = vld [vmem:[#allocation2 + $0x8] sm:$0x3]
  %v610 = vld [vmem:[#allocation2 + $0x10] sm:$0x3]
  %v611 = vld [vmem:[#allocation2 + $0x18] sm:$0x3]
  %612 = vrot.lane.b32.xlu0 %v89, 1
  %v613 = vpop.permute.xlu0 %612
  %614 = vrot.lane.b32.xlu0 %v90, 1
  %v615 = vpop.permute.xlu0 %614
  %v616 = vsel %vm444, %v613, %v615
  %v620 = vmul.f32 %v609, %v613
  %v621 = vmul.f32 %v610, %v616
  %v622 = vmul.f32 %v611, %v615
  %s623 = scalar_lea.vmem %s1, 40
  %v624 = vld [vmem:[%s623] sm:$0xff]
  %628 = vrot.lane.b32.xlu0 %v620, 127
  %v629 = vpop.permute.xlu0 %628
  %630 = vrot.lane.b32.xlu0 %v621, 127
  %v631 = vpop.permute.xlu0 %630
  %632 = vrot.lane.b32.xlu0 %v622, 127
  %v633 = vpop.permute.xlu0 %632
  %v634 = vsel %vm425, %v629, %v631
  %v635 = vsel %vm425, %v631, %v633
  %v637 = vsel %vm144, %v624, 0
  %v639 = vsel %vm148, %v634, 0
  %v641 = vsel %vm148, %v635, 0
  %643 = vmatprep.subr.mxu0 0.0
  %644 = vmatpush1.msra.mxu0 0.0
  %645 = vmatprep.subr.mxu0 0.0
  %646 = vmatpush1.msra.mxu0 0.0
  %647 = vmatprep.subr.mxu0 0.0
  %648 = vmatpush1.msra.mxu0 0.0
  %649 = vmatprep.subr.mxu0 0.0
  %650 = vmatpush1.msra.mxu0 0.0
  %651 = vmatprep.subr.mxu0 0.0
  %652 = vmatpush1.msra.mxu0 0.0
  %653 = vmatprep.subr.mxu0 0.0
  %654 = vmatpush1.msra.mxu0 0.0
  %655 = vmatprep.subr.mxu0 0.0
  %656 = vmatpush1.msra.mxu0 0.0
  %657 = vmatprep.subr.mxu0 0.0
  %658 = vmatpush1.msra.mxu0 0.0
  %659 = vmatprep.subr.mxu0 0.0
  %660 = vmatpush1.msra.mxu0 0.0
  %661 = vmatprep.subr.mxu0 0.0
  %662 = vmatpush1.msra.mxu0 0.0
  %663 = vmatprep.subr.mxu0 0.0
  %664 = vmatpush1.msra.mxu0 0.0
  %665 = vmatprep.subr.mxu0 0.0
  %666 = vmatpush1.msra.mxu0 0.0
  %667 = vmatprep.subr.mxu0 0.0
  %668 = vmatpush1.msra.mxu0 0.0
  %669 = vmatprep.subr.mxu0 0.0
  %670 = vmatpush1.msra.mxu0 0.0
  %671 = vmatprep.subr.mxu0 0.0
  %672 = vmatpush1.msra.mxu0 0.0
  %673 = vmatprep.subr.mxu0 %v641
  %674 = vmatpush1.msra.mxu0 %v639
  %675 = vmatprep.subr.mxu0 0.0
  %676 = vmatpush2.msra.mxu0 0.0
  %677 = vmatprep.subr.mxu0 0.0
  %678 = vmatpush2.msra.mxu0 0.0
  %679 = vmatprep.subr.mxu0 0.0
  %680 = vmatpush2.msra.mxu0 0.0
  %681 = vmatprep.subr.mxu0 0.0
  %682 = vmatpush2.msra.mxu0 0.0
  %683 = vmatprep.subr.mxu0 0.0
  %684 = vmatpush2.msra.mxu0 0.0
  %685 = vmatprep.subr.mxu0 0.0
  %686 = vmatpush2.msra.mxu0 0.0
  %687 = vmatprep.subr.mxu0 0.0
  %688 = vmatpush2.msra.mxu0 0.0
  %689 = vmatprep.subr.mxu0 0.0
  %690 = vmatpush2.msra.mxu0 0.0
  %691 = vmatprep.subr.mxu0 0.0
  %692 = vmatpush2.msra.mxu0 0.0
  %693 = vmatprep.subr.mxu0 0.0
  %694 = vmatpush2.msra.mxu0 0.0
  %695 = vmatprep.subr.mxu0 0.0
  %696 = vmatpush2.msra.mxu0 0.0
  %697 = vmatprep.subr.mxu0 0.0
  %698 = vmatpush2.msra.mxu0 0.0
  %699 = vmatprep.subr.mxu0 0.0
  %700 = vmatpush2.msra.mxu0 0.0
  %701 = vmatprep.subr.mxu0 0.0
  %702 = vmatpush2.msra.mxu0 0.0
  %703 = vmatprep.subr.mxu0 0.0
  %704 = vmatpush2.msra.mxu0 0.0
  %705 = vmatprep.subr.mxu0 0.0
  %706 = vmatpush2.msra.mxu0 0.0
  %707 = vmatprep.mubr.f32.mxu0 0.0
  %708 = vmatmul.mubr.f32.gmra.mxu0 %v637
  %v709 = vpop.f32.mrf.mxu0
  %v710 = vadd.f32 0.0, %v709
  %v711 = vpop.f32.mrf.mxu0
  %v712 = vadd.f32 0.0, %v711
  %713 = vdwg.mxu0
  %v714 = vadd.f32 %v607, %v710
  %v715 = vadd.f32 %v608, %v712
  %716 = vrot.lane.b32.xlu0 %v83, 15
  %v717 = vpop.permute.xlu0 %716
  %718 = vrot.lane.b32.xlu0 %v84, 15
  %v719 = vpop.permute.xlu0 %718
  %v720 = vsel %vm338, %v717, %v719
  %v724 = vmul.f32 %v609, %v717
  %v725 = vmul.f32 %v610, %v720
  %v726 = vmul.f32 %v611, %v719
  %s727 = scalar_lea.vmem %s1, 48
  %v728 = vld [vmem:[%s727] sm:$0xff]
  %732 = vrot.lane.b32.xlu0 %v724, 113
  %v733 = vpop.permute.xlu0 %732
  %734 = vrot.lane.b32.xlu0 %v725, 113
  %v735 = vpop.permute.xlu0 %734
  %736 = vrot.lane.b32.xlu0 %v726, 113
  %v737 = vpop.permute.xlu0 %736
  %v738 = vsel %vm319, %v733, %v735
  %v739 = vsel %vm319, %v735, %v737
  %v741 = vsel %vm144, %v728, 0
  %v743 = vsel %vm148, %v738, 0
  %v745 = vsel %vm148, %v739, 0
  %747 = vmatprep.subr.mxu0 0.0
  %748 = vmatpush1.msra.mxu0 0.0
  %749 = vmatprep.subr.mxu0 0.0
  %750 = vmatpush1.msra.mxu0 0.0
  %751 = vmatprep.subr.mxu0 0.0
  %752 = vmatpush1.msra.mxu0 0.0
  %753 = vmatprep.subr.mxu0 0.0
  %754 = vmatpush1.msra.mxu0 0.0
  %755 = vmatprep.subr.mxu0 0.0
  %756 = vmatpush1.msra.mxu0 0.0
  %757 = vmatprep.subr.mxu0 0.0
  %758 = vmatpush1.msra.mxu0 0.0
  %759 = vmatprep.subr.mxu0 0.0
  %760 = vmatpush1.msra.mxu0 0.0
  %761 = vmatprep.subr.mxu0 0.0
  %762 = vmatpush1.msra.mxu0 0.0
  %763 = vmatprep.subr.mxu0 0.0
  %764 = vmatpush1.msra.mxu0 0.0
  %765 = vmatprep.subr.mxu0 0.0
  %766 = vmatpush1.msra.mxu0 0.0
  %767 = vmatprep.subr.mxu0 0.0
  %768 = vmatpush1.msra.mxu0 0.0
  %769 = vmatprep.subr.mxu0 0.0
  %770 = vmatpush1.msra.mxu0 0.0
  %771 = vmatprep.subr.mxu0 0.0
  %772 = vmatpush1.msra.mxu0 0.0
  %773 = vmatprep.subr.mxu0 0.0
  %774 = vmatpush1.msra.mxu0 0.0
  %775 = vmatprep.subr.mxu0 0.0
  %776 = vmatpush1.msra.mxu0 0.0
  %777 = vmatprep.subr.mxu0 %v745
  %778 = vmatpush1.msra.mxu0 %v743
  %779 = vmatprep.subr.mxu0 0.0
  %780 = vmatpush2.msra.mxu0 0.0
  %781 = vmatprep.subr.mxu0 0.0
  %782 = vmatpush2.msra.mxu0 0.0
  %783 = vmatprep.subr.mxu0 0.0
  %784 = vmatpush2.msra.mxu0 0.0
  %785 = vmatprep.subr.mxu0 0.0
  %786 = vmatpush2.msra.mxu0 0.0
  %787 = vmatprep.subr.mxu0 0.0
  %788 = vmatpush2.msra.mxu0 0.0
  %789 = vmatprep.subr.mxu0 0.0
  %790 = vmatpush2.msra.mxu0 0.0
  %791 = vmatprep.subr.mxu0 0.0
  %792 = vmatpush2.msra.mxu0 0.0
  %793 = vmatprep.subr.mxu0 0.0
  %794 = vmatpush2.msra.mxu0 0.0
  %795 = vmatprep.subr.mxu0 0.0
  %796 = vmatpush2.msra.mxu0 0.0
  %797 = vmatprep.subr.mxu0 0.0
  %798 = vmatpush2.msra.mxu0 0.0
  %799 = vmatprep.subr.mxu0 0.0
  %800 = vmatpush2.msra.mxu0 0.0
  %801 = vmatprep.subr.mxu0 0.0
  %802 = vmatpush2.msra.mxu0 0.0
  %803 = vmatprep.subr.mxu0 0.0
  %804 = vmatpush2.msra.mxu0 0.0
  %805 = vmatprep.subr.mxu0 0.0
  %806 = vmatpush2.msra.mxu0 0.0
  %807 = vmatprep.subr.mxu0 0.0
  %808 = vmatpush2.msra.mxu0 0.0
  %809 = vmatprep.subr.mxu0 0.0
  %810 = vmatpush2.msra.mxu0 0.0
  %811 = vmatprep.mubr.f32.mxu0 0.0
  %812 = vmatmul.mubr.f32.gmra.mxu0 %v741
  %v813 = vpop.f32.mrf.mxu0
  %v814 = vadd.f32 0.0, %v813
  %v815 = vpop.f32.mrf.mxu0
  %v816 = vadd.f32 0.0, %v815
  %817 = vdwg.mxu0
  %v818 = vadd.f32 %v714, %v814
  %v819 = vadd.f32 %v715, %v816
  %s820 = scalar_lea.vmem %s1, 56
  %v821 = vld [vmem:[%s820] sm:$0xff]
  %825 = vrot.lane.b32.xlu0 %v609, 112
  %v826 = vpop.permute.xlu0 %825
  %827 = vrot.lane.b32.xlu0 %v610, 112
  %v828 = vpop.permute.xlu0 %827
  %829 = vrot.lane.b32.xlu0 %v611, 112
  %v830 = vpop.permute.xlu0 %829
  %vm831 = vcmask 916480
  %v832 = vsel %vm831, %v826, %v828
  %v833 = vsel %vm831, %v828, %v830
  %v835 = vsel %vm144, %v821, 0
  %v837 = vsel %vm148, %v832, 0
  %v839 = vsel %vm148, %v833, 0
  %841 = vmatprep.subr.mxu0 0.0
  %842 = vmatpush1.msra.mxu0 0.0
  %843 = vmatprep.subr.mxu0 0.0
  %844 = vmatpush1.msra.mxu0 0.0
  %845 = vmatprep.subr.mxu0 0.0
  %846 = vmatpush1.msra.mxu0 0.0
  %847 = vmatprep.subr.mxu0 0.0
  %848 = vmatpush1.msra.mxu0 0.0
  %849 = vmatprep.subr.mxu0 0.0
  %850 = vmatpush1.msra.mxu0 0.0
  %851 = vmatprep.subr.mxu0 0.0
  %852 = vmatpush1.msra.mxu0 0.0
  %853 = vmatprep.subr.mxu0 0.0
  %854 = vmatpush1.msra.mxu0 0.0
  %855 = vmatprep.subr.mxu0 0.0
  %856 = vmatpush1.msra.mxu0 0.0
  %857 = vmatprep.subr.mxu0 0.0
  %858 = vmatpush1.msra.mxu0 0.0
  %859 = vmatprep.subr.mxu0 0.0
  %860 = vmatpush1.msra.mxu0 0.0
  %861 = vmatprep.subr.mxu0 0.0
  %862 = vmatpush1.msra.mxu0 0.0
  %863 = vmatprep.subr.mxu0 0.0
  %864 = vmatpush1.msra.mxu0 0.0
  %865 = vmatprep.subr.mxu0 0.0
  %866 = vmatpush1.msra.mxu0 0.0
  %867 = vmatprep.subr.mxu0 0.0
  %868 = vmatpush1.msra.mxu0 0.0
  %869 = vmatprep.subr.mxu0 0.0
  %870 = vmatpush1.msra.mxu0 0.0
  %871 = vmatprep.subr.mxu0 %v839
  %872 = vmatpush1.msra.mxu0 %v837
  %873 = vmatprep.subr.mxu0 0.0
  %874 = vmatpush2.msra.mxu0 0.0
  %875 = vmatprep.subr.mxu0 0.0
  %876 = vmatpush2.msra.mxu0 0.0
  %877 = vmatprep.subr.mxu0 0.0
  %878 = vmatpush2.msra.mxu0 0.0
  %879 = vmatprep.subr.mxu0 0.0
  %880 = vmatpush2.msra.mxu0 0.0
  %881 = vmatprep.subr.mxu0 0.0
  %882 = vmatpush2.msra.mxu0 0.0
  %883 = vmatprep.subr.mxu0 0.0
  %884 = vmatpush2.msra.mxu0 0.0
  %885 = vmatprep.subr.mxu0 0.0
  %886 = vmatpush2.msra.mxu0 0.0
  %887 = vmatprep.subr.mxu0 0.0
  %888 = vmatpush2.msra.mxu0 0.0
  %889 = vmatprep.subr.mxu0 0.0
  %890 = vmatpush2.msra.mxu0 0.0
  %891 = vmatprep.subr.mxu0 0.0
  %892 = vmatpush2.msra.mxu0 0.0
  %893 = vmatprep.subr.mxu0 0.0
  %894 = vmatpush2.msra.mxu0 0.0
  %895 = vmatprep.subr.mxu0 0.0
  %896 = vmatpush2.msra.mxu0 0.0
  %897 = vmatprep.subr.mxu0 0.0
  %898 = vmatpush2.msra.mxu0 0.0
  %899 = vmatprep.subr.mxu0 0.0
  %900 = vmatpush2.msra.mxu0 0.0
  %901 = vmatprep.subr.mxu0 0.0
  %902 = vmatpush2.msra.mxu0 0.0
  %903 = vmatprep.subr.mxu0 0.0
  %904 = vmatpush2.msra.mxu0 0.0
  %905 = vmatprep.mubr.f32.mxu0 0.0
  %906 = vmatmul.mubr.f32.gmra.mxu0 %v835
  %v907 = vpop.f32.mrf.mxu0
  %v908 = vadd.f32 0.0, %v907
  %v909 = vpop.f32.mrf.mxu0
  %v910 = vadd.f32 0.0, %v909
  %911 = vdwg.mxu0
  %v912 = vadd.f32 %v818, %v908
  %v913 = vadd.f32 %v819, %v910
  %914 = vrot.lane.b32.xlu0 %v89, 17
  %v915 = vpop.permute.xlu0 %914
  %916 = vrot.lane.b32.xlu0 %v90, 17
  %v917 = vpop.permute.xlu0 %916
  %v918 = vsel %vm59, %v915, %v917
  %v922 = vmul.f32 %v609, %v915
  %v923 = vmul.f32 %v610, %v918
  %v924 = vmul.f32 %v611, %v917
  %s925 = scalar_lea.vmem %s1, 64
  %v926 = vld [vmem:[%s925] sm:$0xff]
  %930 = vrot.lane.b32.xlu0 %v922, 111
  %v931 = vpop.permute.xlu0 %930
  %932 = vrot.lane.b32.xlu0 %v923, 111
  %v933 = vpop.permute.xlu0 %932
  %934 = vrot.lane.b32.xlu0 %v924, 111
  %v935 = vpop.permute.xlu0 %934
  %v936 = vsel %vm121, %v931, %v933
  %v937 = vsel %vm121, %v933, %v935
  %v939 = vsel %vm144, %v926, 0
  %v941 = vsel %vm148, %v936, 0
  %v943 = vsel %vm148, %v937, 0
  %945 = vmatprep.subr.mxu0 0.0
  %946 = vmatpush1.msra.mxu0 0.0
  %947 = vmatprep.subr.mxu0 0.0
  %948 = vmatpush1.msra.mxu0 0.0
  %949 = vmatprep.subr.mxu0 0.0
  %950 = vmatpush1.msra.mxu0 0.0
  %951 = vmatprep.subr.mxu0 0.0
  %952 = vmatpush1.msra.mxu0 0.0
  %953 = vmatprep.subr.mxu0 0.0
  %954 = vmatpush1.msra.mxu0 0.0
  %955 = vmatprep.subr.mxu0 0.0
  %956 = vmatpush1.msra.mxu0 0.0
  %957 = vmatprep.subr.mxu0 0.0
  %958 = vmatpush1.msra.mxu0 0.0
  %959 = vmatprep.subr.mxu0 0.0
  %960 = vmatpush1.msra.mxu0 0.0
  %961 = vmatprep.subr.mxu0 0.0
  %962 = vmatpush1.msra.mxu0 0.0
  %963 = vmatprep.subr.mxu0 0.0
  %964 = vmatpush1.msra.mxu0 0.0
  %965 = vmatprep.subr.mxu0 0.0
  %966 = vmatpush1.msra.mxu0 0.0
  %967 = vmatprep.subr.mxu0 0.0
  %968 = vmatpush1.msra.mxu0 0.0
  %969 = vmatprep.subr.mxu0 0.0
  %970 = vmatpush1.msra.mxu0 0.0
  %971 = vmatprep.subr.mxu0 0.0
  %972 = vmatpush1.msra.mxu0 0.0
  %973 = vmatprep.subr.mxu0 0.0
  %974 = vmatpush1.msra.mxu0 0.0
  %975 = vmatprep.subr.mxu0 %v943
  %976 = vmatpush1.msra.mxu0 %v941
  %977 = vmatprep.subr.mxu0 0.0
  %978 = vmatpush2.msra.mxu0 0.0
  %979 = vmatprep.subr.mxu0 0.0
  %980 = vmatpush2.msra.mxu0 0.0
  %981 = vmatprep.subr.mxu0 0.0
  %982 = vmatpush2.msra.mxu0 0.0
  %983 = vmatprep.subr.mxu0 0.0
  %984 = vmatpush2.msra.mxu0 0.0
  %985 = vmatprep.subr.mxu0 0.0
  %986 = vmatpush2.msra.mxu0 0.0
  %987 = vmatprep.subr.mxu0 0.0
  %988 = vmatpush2.msra.mxu0 0.0
  %989 = vmatprep.subr.mxu0 0.0
  %990 = vmatpush2.msra.mxu0 0.0
  %991 = vmatprep.subr.mxu0 0.0
  %992 = vmatpush2.msra.mxu0 0.0
  %993 = vmatprep.subr.mxu0 0.0
  %994 = vmatpush2.msra.mxu0 0.0
  %995 = vmatprep.subr.mxu0 0.0
  %996 = vmatpush2.msra.mxu0 0.0
  %997 = vmatprep.subr.mxu0 0.0
  %998 = vmatpush2.msra.mxu0 0.0
  %999 = vmatprep.subr.mxu0 0.0
  %1000 = vmatpush2.msra.mxu0 0.0
  %1001 = vmatprep.subr.mxu0 0.0
  %1002 = vmatpush2.msra.mxu0 0.0
  %1003 = vmatprep.subr.mxu0 0.0
  %1004 = vmatpush2.msra.mxu0 0.0
  %1005 = vmatprep.subr.mxu0 0.0
  %1006 = vmatpush2.msra.mxu0 0.0
  %1007 = vmatprep.subr.mxu0 0.0
  %1008 = vmatpush2.msra.mxu0 0.0
  %1009 = vmatprep.mubr.f32.mxu0 0.0
  %1010 = vmatmul.mubr.f32.gmra.mxu0 %v939
  %v1011 = vpop.f32.mrf.mxu0
  %v1012 = vadd.f32 0.0, %v1011
  %v1013 = vpop.f32.mrf.mxu0
  %v1014 = vadd.f32 0.0, %v1013
  %1015 = vdwg.mxu0
  %v1016 = vadd.f32 %v912, %v1012
  %v1017 = vadd.f32 %v913, %v1014
  %v1018 = vld [vmem:[%s2] sm:$0xff]
  %1020 = vset.pattern.permute.xlu0 0
  %1021 = vperm.xlu0 %1020, %v1018
  %v1022 = vpop.permute.xlu0 %1021
  %v1024 = vadd.f32 %v1016, %v1022
  %v1025 = vadd.f32 %v1017, %v1022
  %v1026 = vmax.f32 %v1024, 0.0
  %v1027 = vmax.f32 %v1025, 0.0
  %1028 = vst [vmem:[#allocation2 + $0x8] sm:$0xff] %v1026
  %1029 = vst [vmem:[#allocation2 + $0x10] sm:$0xff] %v1027
  %v1030 = vld [vmem:[#allocation2] sm:$0xff]
  %v1031 = vld [vmem:[#allocation2 + $0x8] sm:$0xff]
  %v1032 = vld [vmem:[#allocation2 + $0x10] sm:$0xff]
  %v1033 = vmul.f32 %v1030, %v118
  %v1034 = vmul.f32 %v1031, %v122
  %v1035 = vmul.f32 %v1032, %v120
  %v1036 = vld [vmem:[%s3] sm:$0xff]
  %s1037 = scalar_lea.vmem %s3, 8
  %v1038 = vld [vmem:[%s1037] sm:$0xff]
  %1042 = vrot.lane.b32.xlu0 %v1030, 16
  %v1043 = vpop.permute.xlu0 %1042
  %1044 = vrot.lane.b32.xlu0 %v1031, 16
  %v1045 = vpop.permute.xlu0 %1044
  %1046 = vrot.lane.b32.xlu0 %v1032, 16
  %v1047 = vpop.permute.xlu0 %1046
  %v1048 = vsel %vm141, %v1043, %v1045
  %v1049 = vsel %vm141, %v1045, %v1047
  %vm1052 = vcmask 64512
  %v1054 = vsel %vm1052, %v1038, 0
  %1056 = vmatprep.subr.mxu0 0.0
  %1057 = vmatpush1.msra.mxu0 0.0
  %1058 = vmatprep.subr.mxu0 0.0
  %1059 = vmatpush1.msra.mxu0 0.0
  %1060 = vmatprep.subr.mxu0 0.0
  %1061 = vmatpush1.msra.mxu0 0.0
  %1062 = vmatprep.subr.mxu0 0.0
  %1063 = vmatpush1.msra.mxu0 0.0
  %1064 = vmatprep.subr.mxu0 0.0
  %1065 = vmatpush1.msra.mxu0 0.0
  %1066 = vmatprep.subr.mxu0 0.0
  %1067 = vmatpush1.msra.mxu0 0.0
  %1068 = vmatprep.subr.mxu0 0.0
  %1069 = vmatpush1.msra.mxu0 0.0
  %1070 = vmatprep.subr.mxu0 0.0
  %1071 = vmatpush1.msra.mxu0 0.0
  %1072 = vmatprep.subr.mxu0 0.0
  %1073 = vmatpush1.msra.mxu0 0.0
  %1074 = vmatprep.subr.mxu0 0.0
  %1075 = vmatpush1.msra.mxu0 0.0
  %1076 = vmatprep.subr.mxu0 0.0
  %1077 = vmatpush1.msra.mxu0 0.0
  %1078 = vmatprep.subr.mxu0 0.0
  %1079 = vmatpush1.msra.mxu0 0.0
  %1080 = vmatprep.subr.mxu0 0.0
  %1081 = vmatpush1.msra.mxu0 0.0
  %1082 = vmatprep.subr.mxu0 0.0
  %1083 = vmatpush1.msra.mxu0 0.0
  %1084 = vmatprep.subr.mxu0 0.0
  %1085 = vmatpush1.msra.mxu0 0.0
  %1086 = vmatprep.subr.mxu0 %v1049
  %1087 = vmatpush1.msra.mxu0 %v1048
  %1088 = vmatprep.subr.mxu0 0.0
  %1089 = vmatpush2.msra.mxu0 0.0
  %1090 = vmatprep.subr.mxu0 0.0
  %1091 = vmatpush2.msra.mxu0 0.0
  %1092 = vmatprep.subr.mxu0 0.0
  %1093 = vmatpush2.msra.mxu0 0.0
  %1094 = vmatprep.subr.mxu0 0.0
  %1095 = vmatpush2.msra.mxu0 0.0
  %1096 = vmatprep.subr.mxu0 0.0
  %1097 = vmatpush2.msra.mxu0 0.0
  %1098 = vmatprep.subr.mxu0 0.0
  %1099 = vmatpush2.msra.mxu0 0.0
  %1100 = vmatprep.subr.mxu0 0.0
  %1101 = vmatpush2.msra.mxu0 0.0
  %1102 = vmatprep.subr.mxu0 0.0
  %1103 = vmatpush2.msra.mxu0 0.0
  %1104 = vmatprep.subr.mxu0 0.0
  %1105 = vmatpush2.msra.mxu0 0.0
  %1106 = vmatprep.subr.mxu0 0.0
  %1107 = vmatpush2.msra.mxu0 0.0
  %1108 = vmatprep.subr.mxu0 0.0
  %1109 = vmatpush2.msra.mxu0 0.0
  %1110 = vmatprep.subr.mxu0 0.0
  %1111 = vmatpush2.msra.mxu0 0.0
  %1112 = vmatprep.subr.mxu0 0.0
  %1113 = vmatpush2.msra.mxu0 0.0
  %1114 = vmatprep.subr.mxu0 0.0
  %1115 = vmatpush2.msra.mxu0 0.0
  %1116 = vmatprep.subr.mxu0 0.0
  %1117 = vmatpush2.msra.mxu0 0.0
  %1118 = vmatprep.subr.mxu0 0.0
  %1119 = vmatpush2.msra.mxu0 0.0
  %1120 = vmatprep.mubr.f32.mxu0 0.0
  %1121 = vmatmul.mubr.f32.gmra.mxu0 %v1054
  %v1122 = vpop.f32.mrf.mxu0
  %v1123 = vadd.f32 0.0, %v1122
  %v1124 = vpop.f32.mrf.mxu0
  %v1125 = vadd.f32 0.0, %v1124
  %1126 = vdwg.mxu0
  %1130 = vrot.lane.b32.xlu0 %v1033, 17
  %v1131 = vpop.permute.xlu0 %1130
  %1132 = vrot.lane.b32.xlu0 %v1034, 17
  %v1133 = vpop.permute.xlu0 %1132
  %1134 = vrot.lane.b32.xlu0 %v1035, 17
  %v1135 = vpop.permute.xlu0 %1134
  %v1136 = vsel %vm59, %v1131, %v1133
  %v1137 = vsel %vm59, %v1133, %v1135
  %v1141 = vsel %vm1052, %v1036, 0
  %1143 = vmatprep.subr.mxu0 0.0
  %1144 = vmatpush1.msra.mxu0 0.0
  %1145 = vmatprep.subr.mxu0 0.0
  %1146 = vmatpush1.msra.mxu0 0.0
  %1147 = vmatprep.subr.mxu0 0.0
  %1148 = vmatpush1.msra.mxu0 0.0
  %1149 = vmatprep.subr.mxu0 0.0
  %1150 = vmatpush1.msra.mxu0 0.0
  %1151 = vmatprep.subr.mxu0 0.0
  %1152 = vmatpush1.msra.mxu0 0.0
  %1153 = vmatprep.subr.mxu0 0.0
  %1154 = vmatpush1.msra.mxu0 0.0
  %1155 = vmatprep.subr.mxu0 0.0
  %1156 = vmatpush1.msra.mxu0 0.0
  %1157 = vmatprep.subr.mxu0 0.0
  %1158 = vmatpush1.msra.mxu0 0.0
  %1159 = vmatprep.subr.mxu0 0.0
  %1160 = vmatpush1.msra.mxu0 0.0
  %1161 = vmatprep.subr.mxu0 0.0
  %1162 = vmatpush1.msra.mxu0 0.0
  %1163 = vmatprep.subr.mxu0 0.0
  %1164 = vmatpush1.msra.mxu0 0.0
  %1165 = vmatprep.subr.mxu0 0.0
  %1166 = vmatpush1.msra.mxu0 0.0
  %1167 = vmatprep.subr.mxu0 0.0
  %1168 = vmatpush1.msra.mxu0 0.0
  %1169 = vmatprep.subr.mxu0 0.0
  %1170 = vmatpush1.msra.mxu0 0.0
  %1171 = vmatprep.subr.mxu0 0.0
  %1172 = vmatpush1.msra.mxu0 0.0
  %1173 = vmatprep.subr.mxu0 %v1137
  %1174 = vmatpush1.msra.mxu0 %v1136
  %1175 = vmatprep.subr.mxu0 0.0
  %1176 = vmatpush2.msra.mxu0 0.0
  %1177 = vmatprep.subr.mxu0 0.0
  %1178 = vmatpush2.msra.mxu0 0.0
  %1179 = vmatprep.subr.mxu0 0.0
  %1180 = vmatpush2.msra.mxu0 0.0
  %1181 = vmatprep.subr.mxu0 0.0
  %1182 = vmatpush2.msra.mxu0 0.0
  %1183 = vmatprep.subr.mxu0 0.0
  %1184 = vmatpush2.msra.mxu0 0.0
  %1185 = vmatprep.subr.mxu0 0.0
  %1186 = vmatpush2.msra.mxu0 0.0
  %1187 = vmatprep.subr.mxu0 0.0
  %1188 = vmatpush2.msra.mxu0 0.0
  %1189 = vmatprep.subr.mxu0 0.0
  %1190 = vmatpush2.msra.mxu0 0.0
  %1191 = vmatprep.subr.mxu0 0.0
  %1192 = vmatpush2.msra.mxu0 0.0
  %1193 = vmatprep.subr.mxu0 0.0
  %1194 = vmatpush2.msra.mxu0 0.0
  %1195 = vmatprep.subr.mxu0 0.0
  %1196 = vmatpush2.msra.mxu0 0.0
  %1197 = vmatprep.subr.mxu0 0.0
  %1198 = vmatpush2.msra.mxu0 0.0
  %1199 = vmatprep.subr.mxu0 0.0
  %1200 = vmatpush2.msra.mxu0 0.0
  %1201 = vmatprep.subr.mxu0 0.0
  %1202 = vmatpush2.msra.mxu0 0.0
  %1203 = vmatprep.subr.mxu0 0.0
  %1204 = vmatpush2.msra.mxu0 0.0
  %1205 = vmatprep.subr.mxu0 0.0
  %1206 = vmatpush2.msra.mxu0 0.0
  %1207 = vmatprep.mubr.f32.mxu0 0.0
  %1208 = vmatmul.mubr.f32.gmra.mxu0 %v1141
  %v1209 = vpop.f32.mrf.mxu0
  %v1210 = vadd.f32 %v1123, %v1209
  %v1211 = vpop.f32.mrf.mxu0
  %v1212 = vadd.f32 %v1125, %v1211
  %1213 = vdwg.mxu0
  %v1214 = vmul.f32 %v1030, %v316
  %v1215 = vmul.f32 %v1031, %v320
  %v1216 = vmul.f32 %v1032, %v318
  %s1217 = scalar_lea.vmem %s3, 16
  %v1218 = vld [vmem:[%s1217] sm:$0xff]
  %1222 = vrot.lane.b32.xlu0 %v1214, 15
  %v1223 = vpop.permute.xlu0 %1222
  %1224 = vrot.lane.b32.xlu0 %v1215, 15
  %v1225 = vpop.permute.xlu0 %1224
  %1226 = vrot.lane.b32.xlu0 %v1216, 15
  %v1227 = vpop.permute.xlu0 %1226
  %v1228 = vsel %vm338, %v1223, %v1225
  %v1229 = vsel %vm338, %v1225, %v1227
  %v1233 = vsel %vm1052, %v1218, 0
  %1235 = vmatprep.subr.mxu0 0.0
  %1236 = vmatpush1.msra.mxu0 0.0
  %1237 = vmatprep.subr.mxu0 0.0
  %1238 = vmatpush1.msra.mxu0 0.0
  %1239 = vmatprep.subr.mxu0 0.0
  %1240 = vmatpush1.msra.mxu0 0.0
  %1241 = vmatprep.subr.mxu0 0.0
  %1242 = vmatpush1.msra.mxu0 0.0
  %1243 = vmatprep.subr.mxu0 0.0
  %1244 = vmatpush1.msra.mxu0 0.0
  %1245 = vmatprep.subr.mxu0 0.0
  %1246 = vmatpush1.msra.mxu0 0.0
  %1247 = vmatprep.subr.mxu0 0.0
  %1248 = vmatpush1.msra.mxu0 0.0
  %1249 = vmatprep.subr.mxu0 0.0
  %1250 = vmatpush1.msra.mxu0 0.0
  %1251 = vmatprep.subr.mxu0 0.0
  %1252 = vmatpush1.msra.mxu0 0.0
  %1253 = vmatprep.subr.mxu0 0.0
  %1254 = vmatpush1.msra.mxu0 0.0
  %1255 = vmatprep.subr.mxu0 0.0
  %1256 = vmatpush1.msra.mxu0 0.0
  %1257 = vmatprep.subr.mxu0 0.0
  %1258 = vmatpush1.msra.mxu0 0.0
  %1259 = vmatprep.subr.mxu0 0.0
  %1260 = vmatpush1.msra.mxu0 0.0
  %1261 = vmatprep.subr.mxu0 0.0
  %1262 = vmatpush1.msra.mxu0 0.0
  %1263 = vmatprep.subr.mxu0 0.0
  %1264 = vmatpush1.msra.mxu0 0.0
  %1265 = vmatprep.subr.mxu0 %v1229
  %1266 = vmatpush1.msra.mxu0 %v1228
  %1267 = vmatprep.subr.mxu0 0.0
  %1268 = vmatpush2.msra.mxu0 0.0
  %1269 = vmatprep.subr.mxu0 0.0
  %1270 = vmatpush2.msra.mxu0 0.0
  %1271 = vmatprep.subr.mxu0 0.0
  %1272 = vmatpush2.msra.mxu0 0.0
  %1273 = vmatprep.subr.mxu0 0.0
  %1274 = vmatpush2.msra.mxu0 0.0
  %1275 = vmatprep.subr.mxu0 0.0
  %1276 = vmatpush2.msra.mxu0 0.0
  %1277 = vmatprep.subr.mxu0 0.0
  %1278 = vmatpush2.msra.mxu0 0.0
  %1279 = vmatprep.subr.mxu0 0.0
  %1280 = vmatpush2.msra.mxu0 0.0
  %1281 = vmatprep.subr.mxu0 0.0
  %1282 = vmatpush2.msra.mxu0 0.0
  %1283 = vmatprep.subr.mxu0 0.0
  %1284 = vmatpush2.msra.mxu0 0.0
  %1285 = vmatprep.subr.mxu0 0.0
  %1286 = vmatpush2.msra.mxu0 0.0
  %1287 = vmatprep.subr.mxu0 0.0
  %1288 = vmatpush2.msra.mxu0 0.0
  %1289 = vmatprep.subr.mxu0 0.0
  %1290 = vmatpush2.msra.mxu0 0.0
  %1291 = vmatprep.subr.mxu0 0.0
  %1292 = vmatpush2.msra.mxu0 0.0
  %1293 = vmatprep.subr.mxu0 0.0
  %1294 = vmatpush2.msra.mxu0 0.0
  %1295 = vmatprep.subr.mxu0 0.0
  %1296 = vmatpush2.msra.mxu0 0.0
  %1297 = vmatprep.subr.mxu0 0.0
  %1298 = vmatpush2.msra.mxu0 0.0
  %1299 = vmatprep.mubr.f32.mxu0 0.0
  %1300 = vmatmul.mubr.f32.gmra.mxu0 %v1233
  %v1301 = vpop.f32.mrf.mxu0
  %v1302 = vadd.f32 0.0, %v1301
  %v1303 = vpop.f32.mrf.mxu0
  %v1304 = vadd.f32 0.0, %v1303
  %1305 = vdwg.mxu0
  %v1306 = vadd.f32 %v1210, %v1302
  %v1307 = vadd.f32 %v1212, %v1304
  %v1308 = vmul.f32 %v1030, %v422
  %v1309 = vmul.f32 %v1031, %v426
  %v1310 = vmul.f32 %v1032, %v424
  %s1311 = scalar_lea.vmem %s3, 24
  %v1312 = vld [vmem:[%s1311] sm:$0xff]
  %1316 = vrot.lane.b32.xlu0 %v1308, 1
  %v1317 = vpop.permute.xlu0 %1316
  %1318 = vrot.lane.b32.xlu0 %v1309, 1
  %v1319 = vpop.permute.xlu0 %1318
  %1320 = vrot.lane.b32.xlu0 %v1310, 1
  %v1321 = vpop.permute.xlu0 %1320
  %v1322 = vsel %vm444, %v1317, %v1319
  %v1323 = vsel %vm444, %v1319, %v1321
  %v1327 = vsel %vm1052, %v1312, 0
  %1329 = vmatprep.subr.mxu0 0.0
  %1330 = vmatpush1.msra.mxu0 0.0
  %1331 = vmatprep.subr.mxu0 0.0
  %1332 = vmatpush1.msra.mxu0 0.0
  %1333 = vmatprep.subr.mxu0 0.0
  %1334 = vmatpush1.msra.mxu0 0.0
  %1335 = vmatprep.subr.mxu0 0.0
  %1336 = vmatpush1.msra.mxu0 0.0
  %1337 = vmatprep.subr.mxu0 0.0
  %1338 = vmatpush1.msra.mxu0 0.0
  %1339 = vmatprep.subr.mxu0 0.0
  %1340 = vmatpush1.msra.mxu0 0.0
  %1341 = vmatprep.subr.mxu0 0.0
  %1342 = vmatpush1.msra.mxu0 0.0
  %1343 = vmatprep.subr.mxu0 0.0
  %1344 = vmatpush1.msra.mxu0 0.0
  %1345 = vmatprep.subr.mxu0 0.0
  %1346 = vmatpush1.msra.mxu0 0.0
  %1347 = vmatprep.subr.mxu0 0.0
  %1348 = vmatpush1.msra.mxu0 0.0
  %1349 = vmatprep.subr.mxu0 0.0
  %1350 = vmatpush1.msra.mxu0 0.0
  %1351 = vmatprep.subr.mxu0 0.0
  %1352 = vmatpush1.msra.mxu0 0.0
  %1353 = vmatprep.subr.mxu0 0.0
  %1354 = vmatpush1.msra.mxu0 0.0
  %1355 = vmatprep.subr.mxu0 0.0
  %1356 = vmatpush1.msra.mxu0 0.0
  %1357 = vmatprep.subr.mxu0 0.0
  %1358 = vmatpush1.msra.mxu0 0.0
  %1359 = vmatprep.subr.mxu0 %v1323
  %1360 = vmatpush1.msra.mxu0 %v1322
  %1361 = vmatprep.subr.mxu0 0.0
  %1362 = vmatpush2.msra.mxu0 0.0
  %1363 = vmatprep.subr.mxu0 0.0
  %1364 = vmatpush2.msra.mxu0 0.0
  %1365 = vmatprep.subr.mxu0 0.0
  %1366 = vmatpush2.msra.mxu0 0.0
  %1367 = vmatprep.subr.mxu0 0.0
  %1368 = vmatpush2.msra.mxu0 0.0
  %1369 = vmatprep.subr.mxu0 0.0
  %1370 = vmatpush2.msra.mxu0 0.0
  %1371 = vmatprep.subr.mxu0 0.0
  %1372 = vmatpush2.msra.mxu0 0.0
  %1373 = vmatprep.subr.mxu0 0.0
  %1374 = vmatpush2.msra.mxu0 0.0
  %1375 = vmatprep.subr.mxu0 0.0
  %1376 = vmatpush2.msra.mxu0 0.0
  %1377 = vmatprep.subr.mxu0 0.0
  %1378 = vmatpush2.msra.mxu0 0.0
  %1379 = vmatprep.subr.mxu0 0.0
  %1380 = vmatpush2.msra.mxu0 0.0
  %1381 = vmatprep.subr.mxu0 0.0
  %1382 = vmatpush2.msra.mxu0 0.0
  %1383 = vmatprep.subr.mxu0 0.0
  %1384 = vmatpush2.msra.mxu0 0.0
  %1385 = vmatprep.subr.mxu0 0.0
  %1386 = vmatpush2.msra.mxu0 0.0
  %1387 = vmatprep.subr.mxu0 0.0
  %1388 = vmatpush2.msra.mxu0 0.0
  %1389 = vmatprep.subr.mxu0 0.0
  %1390 = vmatpush2.msra.mxu0 0.0
  %1391 = vmatprep.subr.mxu0 0.0
  %1392 = vmatpush2.msra.mxu0 0.0
  %1393 = vmatprep.mubr.f32.mxu0 0.0
  %1394 = vmatmul.mubr.f32.gmra.mxu0 %v1327
  %v1395 = vpop.f32.mrf.mxu0
  %v1396 = vadd.f32 0.0, %v1395
  %v1397 = vpop.f32.mrf.mxu0
  %v1398 = vadd.f32 0.0, %v1397
  %1399 = vdwg.mxu0
  %v1400 = vadd.f32 %v1306, %v1396
  %v1401 = vadd.f32 %v1307, %v1398
  %s1402 = scalar_lea.vmem %s3, 32
  %v1403 = vld [vmem:[%s1402] sm:$0xff]
  %v1405 = vsel %vm1052, %v1403, 0
  %1407 = vmatprep.subr.mxu0 0.0
  %1408 = vmatpush1.msra.mxu0 0.0
  %1409 = vmatprep.subr.mxu0 0.0
  %1410 = vmatpush1.msra.mxu0 0.0
  %1411 = vmatprep.subr.mxu0 0.0
  %1412 = vmatpush1.msra.mxu0 0.0
  %1413 = vmatprep.subr.mxu0 0.0
  %1414 = vmatpush1.msra.mxu0 0.0
  %1415 = vmatprep.subr.mxu0 0.0
  %1416 = vmatpush1.msra.mxu0 0.0
  %1417 = vmatprep.subr.mxu0 0.0
  %1418 = vmatpush1.msra.mxu0 0.0
  %1419 = vmatprep.subr.mxu0 0.0
  %1420 = vmatpush1.msra.mxu0 0.0
  %1421 = vmatprep.subr.mxu0 0.0
  %1422 = vmatpush1.msra.mxu0 0.0
  %1423 = vmatprep.subr.mxu0 0.0
  %1424 = vmatpush1.msra.mxu0 0.0
  %1425 = vmatprep.subr.mxu0 0.0
  %1426 = vmatpush1.msra.mxu0 0.0
  %1427 = vmatprep.subr.mxu0 0.0
  %1428 = vmatpush1.msra.mxu0 0.0
  %1429 = vmatprep.subr.mxu0 0.0
  %1430 = vmatpush1.msra.mxu0 0.0
  %1431 = vmatprep.subr.mxu0 0.0
  %1432 = vmatpush1.msra.mxu0 0.0
  %1433 = vmatprep.subr.mxu0 0.0
  %1434 = vmatpush1.msra.mxu0 0.0
  %1435 = vmatprep.subr.mxu0 0.0
  %1436 = vmatpush1.msra.mxu0 0.0
  %1437 = vmatprep.subr.mxu0 %v1032
  %1438 = vmatpush1.msra.mxu0 %v1031
  %1439 = vmatprep.subr.mxu0 0.0
  %1440 = vmatpush2.msra.mxu0 0.0
  %1441 = vmatprep.subr.mxu0 0.0
  %1442 = vmatpush2.msra.mxu0 0.0
  %1443 = vmatprep.subr.mxu0 0.0
  %1444 = vmatpush2.msra.mxu0 0.0
  %1445 = vmatprep.subr.mxu0 0.0
  %1446 = vmatpush2.msra.mxu0 0.0
  %1447 = vmatprep.subr.mxu0 0.0
  %1448 = vmatpush2.msra.mxu0 0.0
  %1449 = vmatprep.subr.mxu0 0.0
  %1450 = vmatpush2.msra.mxu0 0.0
  %1451 = vmatprep.subr.mxu0 0.0
  %1452 = vmatpush2.msra.mxu0 0.0
  %1453 = vmatprep.subr.mxu0 0.0
  %1454 = vmatpush2.msra.mxu0 0.0
  %1455 = vmatprep.subr.mxu0 0.0
  %1456 = vmatpush2.msra.mxu0 0.0
  %1457 = vmatprep.subr.mxu0 0.0
  %1458 = vmatpush2.msra.mxu0 0.0
  %1459 = vmatprep.subr.mxu0 0.0
  %1460 = vmatpush2.msra.mxu0 0.0
  %1461 = vmatprep.subr.mxu0 0.0
  %1462 = vmatpush2.msra.mxu0 0.0
  %1463 = vmatprep.subr.mxu0 0.0
  %1464 = vmatpush2.msra.mxu0 0.0
  %1465 = vmatprep.subr.mxu0 0.0
  %1466 = vmatpush2.msra.mxu0 0.0
  %1467 = vmatprep.subr.mxu0 0.0
  %1468 = vmatpush2.msra.mxu0 0.0
  %1469 = vmatprep.subr.mxu0 0.0
  %1470 = vmatpush2.msra.mxu0 0.0
  %1471 = vmatprep.mubr.f32.mxu0 0.0
  %1472 = vmatmul.mubr.f32.gmra.mxu0 %v1405
  %v1473 = vpop.f32.mrf.mxu0
  %v1474 = vadd.f32 0.0, %v1473
  %v1475 = vpop.f32.mrf.mxu0
  %v1476 = vadd.f32 0.0, %v1475
  %1477 = vdwg.mxu0
  %v1478 = vadd.f32 %v1400, %v1474
  %v1479 = vadd.f32 %v1401, %v1476
  %v1480 = vld [vmem:[#allocation2 + $0x8] sm:$0xff]
  %v1481 = vld [vmem:[#allocation2 + $0x10] sm:$0xff]
  %v1482 = vld [vmem:[#allocation2 + $0x18] sm:$0xff]
  %v1483 = vmul.f32 %v1480, %v613
  %v1484 = vmul.f32 %v1481, %v616
  %v1485 = vmul.f32 %v1482, %v615
  %s1486 = scalar_lea.vmem %s3, 40
  %v1487 = vld [vmem:[%s1486] sm:$0xff]
  %1491 = vrot.lane.b32.xlu0 %v1483, 127
  %v1492 = vpop.permute.xlu0 %1491
  %1493 = vrot.lane.b32.xlu0 %v1484, 127
  %v1494 = vpop.permute.xlu0 %1493
  %1495 = vrot.lane.b32.xlu0 %v1485, 127
  %v1496 = vpop.permute.xlu0 %1495
  %v1497 = vsel %vm425, %v1492, %v1494
  %v1498 = vsel %vm425, %v1494, %v1496
  %v1502 = vsel %vm1052, %v1487, 0
  %1504 = vmatprep.subr.mxu0 0.0
  %1505 = vmatpush1.msra.mxu0 0.0
  %1506 = vmatprep.subr.mxu0 0.0
  %1507 = vmatpush1.msra.mxu0 0.0
  %1508 = vmatprep.subr.mxu0 0.0
  %1509 = vmatpush1.msra.mxu0 0.0
  %1510 = vmatprep.subr.mxu0 0.0
  %1511 = vmatpush1.msra.mxu0 0.0
  %1512 = vmatprep.subr.mxu0 0.0
  %1513 = vmatpush1.msra.mxu0 0.0
  %1514 = vmatprep.subr.mxu0 0.0
  %1515 = vmatpush1.msra.mxu0 0.0
  %1516 = vmatprep.subr.mxu0 0.0
  %1517 = vmatpush1.msra.mxu0 0.0
  %1518 = vmatprep.subr.mxu0 0.0
  %1519 = vmatpush1.msra.mxu0 0.0
  %1520 = vmatprep.subr.mxu0 0.0
  %1521 = vmatpush1.msra.mxu0 0.0
  %1522 = vmatprep.subr.mxu0 0.0
  %1523 = vmatpush1.msra.mxu0 0.0
  %1524 = vmatprep.subr.mxu0 0.0
  %1525 = vmatpush1.msra.mxu0 0.0
  %1526 = vmatprep.subr.mxu0 0.0
  %1527 = vmatpush1.msra.mxu0 0.0
  %1528 = vmatprep.subr.mxu0 0.0
  %1529 = vmatpush1.msra.mxu0 0.0
  %1530 = vmatprep.subr.mxu0 0.0
  %1531 = vmatpush1.msra.mxu0 0.0
  %1532 = vmatprep.subr.mxu0 0.0
  %1533 = vmatpush1.msra.mxu0 0.0
  %1534 = vmatprep.subr.mxu0 %v1498
  %1535 = vmatpush1.msra.mxu0 %v1497
  %1536 = vmatprep.subr.mxu0 0.0
  %1537 = vmatpush2.msra.mxu0 0.0
  %1538 = vmatprep.subr.mxu0 0.0
  %1539 = vmatpush2.msra.mxu0 0.0
  %1540 = vmatprep.subr.mxu0 0.0
  %1541 = vmatpush2.msra.mxu0 0.0
  %1542 = vmatprep.subr.mxu0 0.0
  %1543 = vmatpush2.msra.mxu0 0.0
  %1544 = vmatprep.subr.mxu0 0.0
  %1545 = vmatpush2.msra.mxu0 0.0
  %1546 = vmatprep.subr.mxu0 0.0
  %1547 = vmatpush2.msra.mxu0 0.0
  %1548 = vmatprep.subr.mxu0 0.0
  %1549 = vmatpush2.msra.mxu0 0.0
  %1550 = vmatprep.subr.mxu0 0.0
  %1551 = vmatpush2.msra.mxu0 0.0
  %1552 = vmatprep.subr.mxu0 0.0
  %1553 = vmatpush2.msra.mxu0 0.0
  %1554 = vmatprep.subr.mxu0 0.0
  %1555 = vmatpush2.msra.mxu0 0.0
  %1556 = vmatprep.subr.mxu0 0.0
  %1557 = vmatpush2.msra.mxu0 0.0
  %1558 = vmatprep.subr.mxu0 0.0
  %1559 = vmatpush2.msra.mxu0 0.0
  %1560 = vmatprep.subr.mxu0 0.0
  %1561 = vmatpush2.msra.mxu0 0.0
  %1562 = vmatprep.subr.mxu0 0.0
  %1563 = vmatpush2.msra.mxu0 0.0
  %1564 = vmatprep.subr.mxu0 0.0
  %1565 = vmatpush2.msra.mxu0 0.0
  %1566 = vmatprep.subr.mxu0 0.0
  %1567 = vmatpush2.msra.mxu0 0.0
  %1568 = vmatprep.mubr.f32.mxu0 0.0
  %1569 = vmatmul.mubr.f32.gmra.mxu0 %v1502
  %v1570 = vpop.f32.mrf.mxu0
  %v1571 = vadd.f32 0.0, %v1570
  %v1572 = vpop.f32.mrf.mxu0
  %v1573 = vadd.f32 0.0, %v1572
  %1574 = vdwg.mxu0
  %v1575 = vadd.f32 %v1478, %v1571
  %v1576 = vadd.f32 %v1479, %v1573
  %v1577 = vmul.f32 %v1480, %v717
  %v1578 = vmul.f32 %v1481, %v720
  %v1579 = vmul.f32 %v1482, %v719
  %s1580 = scalar_lea.vmem %s3, 48
  %v1581 = vld [vmem:[%s1580] sm:$0xff]
  %1585 = vrot.lane.b32.xlu0 %v1577, 113
  %v1586 = vpop.permute.xlu0 %1585
  %1587 = vrot.lane.b32.xlu0 %v1578, 113
  %v1588 = vpop.permute.xlu0 %1587
  %1589 = vrot.lane.b32.xlu0 %v1579, 113
  %v1590 = vpop.permute.xlu0 %1589
  %v1591 = vsel %vm319, %v1586, %v1588
  %v1592 = vsel %vm319, %v1588, %v1590
  %v1596 = vsel %vm1052, %v1581, 0
  %1598 = vmatprep.subr.mxu0 0.0
  %1599 = vmatpush1.msra.mxu0 0.0
  %1600 = vmatprep.subr.mxu0 0.0
  %1601 = vmatpush1.msra.mxu0 0.0
  %1602 = vmatprep.subr.mxu0 0.0
  %1603 = vmatpush1.msra.mxu0 0.0
  %1604 = vmatprep.subr.mxu0 0.0
  %1605 = vmatpush1.msra.mxu0 0.0
  %1606 = vmatprep.subr.mxu0 0.0
  %1607 = vmatpush1.msra.mxu0 0.0
  %1608 = vmatprep.subr.mxu0 0.0
  %1609 = vmatpush1.msra.mxu0 0.0
  %1610 = vmatprep.subr.mxu0 0.0
  %1611 = vmatpush1.msra.mxu0 0.0
  %1612 = vmatprep.subr.mxu0 0.0
  %1613 = vmatpush1.msra.mxu0 0.0
  %1614 = vmatprep.subr.mxu0 0.0
  %1615 = vmatpush1.msra.mxu0 0.0
  %1616 = vmatprep.subr.mxu0 0.0
  %1617 = vmatpush1.msra.mxu0 0.0
  %1618 = vmatprep.subr.mxu0 0.0
  %1619 = vmatpush1.msra.mxu0 0.0
  %1620 = vmatprep.subr.mxu0 0.0
  %1621 = vmatpush1.msra.mxu0 0.0
  %1622 = vmatprep.subr.mxu0 0.0
  %1623 = vmatpush1.msra.mxu0 0.0
  %1624 = vmatprep.subr.mxu0 0.0
  %1625 = vmatpush1.msra.mxu0 0.0
  %1626 = vmatprep.subr.mxu0 0.0
  %1627 = vmatpush1.msra.mxu0 0.0
  %1628 = vmatprep.subr.mxu0 %v1592
  %1629 = vmatpush1.msra.mxu0 %v1591
  %1630 = vmatprep.subr.mxu0 0.0
  %1631 = vmatpush2.msra.mxu0 0.0
  %1632 = vmatprep.subr.mxu0 0.0
  %1633 = vmatpush2.msra.mxu0 0.0
  %1634 = vmatprep.subr.mxu0 0.0
  %1635 = vmatpush2.msra.mxu0 0.0
  %1636 = vmatprep.subr.mxu0 0.0
  %1637 = vmatpush2.msra.mxu0 0.0
  %1638 = vmatprep.subr.mxu0 0.0
  %1639 = vmatpush2.msra.mxu0 0.0
  %1640 = vmatprep.subr.mxu0 0.0
  %1641 = vmatpush2.msra.mxu0 0.0
  %1642 = vmatprep.subr.mxu0 0.0
  %1643 = vmatpush2.msra.mxu0 0.0
  %1644 = vmatprep.subr.mxu0 0.0
  %1645 = vmatpush2.msra.mxu0 0.0
  %1646 = vmatprep.subr.mxu0 0.0
  %1647 = vmatpush2.msra.mxu0 0.0
  %1648 = vmatprep.subr.mxu0 0.0
  %1649 = vmatpush2.msra.mxu0 0.0
  %1650 = vmatprep.subr.mxu0 0.0
  %1651 = vmatpush2.msra.mxu0 0.0
  %1652 = vmatprep.subr.mxu0 0.0
  %1653 = vmatpush2.msra.mxu0 0.0
  %1654 = vmatprep.subr.mxu0 0.0
  %1655 = vmatpush2.msra.mxu0 0.0
  %1656 = vmatprep.subr.mxu0 0.0
  %1657 = vmatpush2.msra.mxu0 0.0
  %1658 = vmatprep.subr.mxu0 0.0
  %1659 = vmatpush2.msra.mxu0 0.0
  %1660 = vmatprep.subr.mxu0 0.0
  %1661 = vmatpush2.msra.mxu0 0.0
  %1662 = vmatprep.mubr.f32.mxu0 0.0
  %1663 = vmatmul.mubr.f32.gmra.mxu0 %v1596
  %v1664 = vpop.f32.mrf.mxu0
  %v1665 = vadd.f32 0.0, %v1664
  %v1666 = vpop.f32.mrf.mxu0
  %v1667 = vadd.f32 0.0, %v1666
  %1668 = vdwg.mxu0
  %v1669 = vadd.f32 %v1575, %v1665
  %v1670 = vadd.f32 %v1576, %v1667
  %s1671 = scalar_lea.vmem %s3, 56
  %v1672 = vld [vmem:[%s1671] sm:$0xff]
  %1676 = vrot.lane.b32.xlu0 %v1480, 112
  %v1677 = vpop.permute.xlu0 %1676
  %1678 = vrot.lane.b32.xlu0 %v1481, 112
  %v1679 = vpop.permute.xlu0 %1678
  %1680 = vrot.lane.b32.xlu0 %v1482, 112
  %v1681 = vpop.permute.xlu0 %1680
  %v1682 = vsel %vm831, %v1677, %v1679
  %v1683 = vsel %vm831, %v1679, %v1681
  %v1687 = vsel %vm1052, %v1672, 0
  %1689 = vmatprep.subr.mxu0 0.0
  %1690 = vmatpush1.msra.mxu0 0.0
  %1691 = vmatprep.subr.mxu0 0.0
  %1692 = vmatpush1.msra.mxu0 0.0
  %1693 = vmatprep.subr.mxu0 0.0
  %1694 = vmatpush1.msra.mxu0 0.0
  %1695 = vmatprep.subr.mxu0 0.0
  %1696 = vmatpush1.msra.mxu0 0.0
  %1697 = vmatprep.subr.mxu0 0.0
  %1698 = vmatpush1.msra.mxu0 0.0
  %1699 = vmatprep.subr.mxu0 0.0
  %1700 = vmatpush1.msra.mxu0 0.0
  %1701 = vmatprep.subr.mxu0 0.0
  %1702 = vmatpush1.msra.mxu0 0.0
  %1703 = vmatprep.subr.mxu0 0.0
  %1704 = vmatpush1.msra.mxu0 0.0
  %1705 = vmatprep.subr.mxu0 0.0
  %1706 = vmatpush1.msra.mxu0 0.0
  %1707 = vmatprep.subr.mxu0 0.0
  %1708 = vmatpush1.msra.mxu0 0.0
  %1709 = vmatprep.subr.mxu0 0.0
  %1710 = vmatpush1.msra.mxu0 0.0
  %1711 = vmatprep.subr.mxu0 0.0
  %1712 = vmatpush1.msra.mxu0 0.0
  %1713 = vmatprep.subr.mxu0 0.0
  %1714 = vmatpush1.msra.mxu0 0.0
  %1715 = vmatprep.subr.mxu0 0.0
  %1716 = vmatpush1.msra.mxu0 0.0
  %1717 = vmatprep.subr.mxu0 0.0
  %1718 = vmatpush1.msra.mxu0 0.0
  %1719 = vmatprep.subr.mxu0 %v1683
  %1720 = vmatpush1.msra.mxu0 %v1682
  %1721 = vmatprep.subr.mxu0 0.0
  %1722 = vmatpush2.msra.mxu0 0.0
  %1723 = vmatprep.subr.mxu0 0.0
  %1724 = vmatpush2.msra.mxu0 0.0
  %1725 = vmatprep.subr.mxu0 0.0
  %1726 = vmatpush2.msra.mxu0 0.0
  %1727 = vmatprep.subr.mxu0 0.0
  %1728 = vmatpush2.msra.mxu0 0.0
  %1729 = vmatprep.subr.mxu0 0.0
  %1730 = vmatpush2.msra.mxu0 0.0
  %1731 = vmatprep.subr.mxu0 0.0
  %1732 = vmatpush2.msra.mxu0 0.0
  %1733 = vmatprep.subr.mxu0 0.0
  %1734 = vmatpush2.msra.mxu0 0.0
  %1735 = vmatprep.subr.mxu0 0.0
  %1736 = vmatpush2.msra.mxu0 0.0
  %1737 = vmatprep.subr.mxu0 0.0
  %1738 = vmatpush2.msra.mxu0 0.0
  %1739 = vmatprep.subr.mxu0 0.0
  %1740 = vmatpush2.msra.mxu0 0.0
  %1741 = vmatprep.subr.mxu0 0.0
  %1742 = vmatpush2.msra.mxu0 0.0
  %1743 = vmatprep.subr.mxu0 0.0
  %1744 = vmatpush2.msra.mxu0 0.0
  %1745 = vmatprep.subr.mxu0 0.0
  %1746 = vmatpush2.msra.mxu0 0.0
  %1747 = vmatprep.subr.mxu0 0.0
  %1748 = vmatpush2.msra.mxu0 0.0
  %1749 = vmatprep.subr.mxu0 0.0
  %1750 = vmatpush2.msra.mxu0 0.0
  %1751 = vmatprep.subr.mxu0 0.0
  %1752 = vmatpush2.msra.mxu0 0.0
  %1753 = vmatprep.mubr.f32.mxu0 0.0
  %1754 = vmatmul.mubr.f32.gmra.mxu0 %v1687
  %v1755 = vpop.f32.mrf.mxu0
  %v1756 = vadd.f32 0.0, %v1755
  %v1757 = vpop.f32.mrf.mxu0
  %v1758 = vadd.f32 0.0, %v1757
  %1759 = vdwg.mxu0
  %v1760 = vadd.f32 %v1669, %v1756
  %v1761 = vadd.f32 %v1670, %v1758
  %v1762 = vmul.f32 %v1480, %v915
  %v1763 = vmul.f32 %v1481, %v918
  %v1764 = vmul.f32 %v1482, %v917
  %s1765 = scalar_lea.vmem %s3, 64
  %v1766 = vld [vmem:[%s1765] sm:$0xff]
  %1770 = vrot.lane.b32.xlu0 %v1762, 111
  %v1771 = vpop.permute.xlu0 %1770
  %1772 = vrot.lane.b32.xlu0 %v1763, 111
  %v1773 = vpop.permute.xlu0 %1772
  %1774 = vrot.lane.b32.xlu0 %v1764, 111
  %v1775 = vpop.permute.xlu0 %1774
  %v1776 = vsel %vm121, %v1771, %v1773
  %v1777 = vsel %vm121, %v1773, %v1775
  %v1781 = vsel %vm1052, %v1766, 0
  %1783 = vmatprep.subr.mxu0 0.0
  %1784 = vmatpush1.msra.mxu0 0.0
  %1785 = vmatprep.subr.mxu0 0.0
  %1786 = vmatpush1.msra.mxu0 0.0
  %1787 = vmatprep.subr.mxu0 0.0
  %1788 = vmatpush1.msra.mxu0 0.0
  %1789 = vmatprep.subr.mxu0 0.0
  %1790 = vmatpush1.msra.mxu0 0.0
  %1791 = vmatprep.subr.mxu0 0.0
  %1792 = vmatpush1.msra.mxu0 0.0
  %1793 = vmatprep.subr.mxu0 0.0
  %1794 = vmatpush1.msra.mxu0 0.0
  %1795 = vmatprep.subr.mxu0 0.0
  %1796 = vmatpush1.msra.mxu0 0.0
  %1797 = vmatprep.subr.mxu0 0.0
  %1798 = vmatpush1.msra.mxu0 0.0
  %1799 = vmatprep.subr.mxu0 0.0
  %1800 = vmatpush1.msra.mxu0 0.0
  %1801 = vmatprep.subr.mxu0 0.0
  %1802 = vmatpush1.msra.mxu0 0.0
  %1803 = vmatprep.subr.mxu0 0.0
  %1804 = vmatpush1.msra.mxu0 0.0
  %1805 = vmatprep.subr.mxu0 0.0
  %1806 = vmatpush1.msra.mxu0 0.0
  %1807 = vmatprep.subr.mxu0 0.0
  %1808 = vmatpush1.msra.mxu0 0.0
  %1809 = vmatprep.subr.mxu0 0.0
  %1810 = vmatpush1.msra.mxu0 0.0
  %1811 = vmatprep.subr.mxu0 0.0
  %1812 = vmatpush1.msra.mxu0 0.0
  %1813 = vmatprep.subr.mxu0 %v1777
  %1814 = vmatpush1.msra.mxu0 %v1776
  %1815 = vmatprep.subr.mxu0 0.0
  %1816 = vmatpush2.msra.mxu0 0.0
  %1817 = vmatprep.subr.mxu0 0.0
  %1818 = vmatpush2.msra.mxu0 0.0
  %1819 = vmatprep.subr.mxu0 0.0
  %1820 = vmatpush2.msra.mxu0 0.0
  %1821 = vmatprep.subr.mxu0 0.0
  %1822 = vmatpush2.msra.mxu0 0.0
  %1823 = vmatprep.subr.mxu0 0.0
  %1824 = vmatpush2.msra.mxu0 0.0
  %1825 = vmatprep.subr.mxu0 0.0
  %1826 = vmatpush2.msra.mxu0 0.0
  %1827 = vmatprep.subr.mxu0 0.0
  %1828 = vmatpush2.msra.mxu0 0.0
  %1829 = vmatprep.subr.mxu0 0.0
  %1830 = vmatpush2.msra.mxu0 0.0
  %1831 = vmatprep.subr.mxu0 0.0
  %1832 = vmatpush2.msra.mxu0 0.0
  %1833 = vmatprep.subr.mxu0 0.0
  %1834 = vmatpush2.msra.mxu0 0.0
  %1835 = vmatprep.subr.mxu0 0.0
  %1836 = vmatpush2.msra.mxu0 0.0
  %1837 = vmatprep.subr.mxu0 0.0
  %1838 = vmatpush2.msra.mxu0 0.0
  %1839 = vmatprep.subr.mxu0 0.0
  %1840 = vmatpush2.msra.mxu0 0.0
  %1841 = vmatprep.subr.mxu0 0.0
  %1842 = vmatpush2.msra.mxu0 0.0
  %1843 = vmatprep.subr.mxu0 0.0
  %1844 = vmatpush2.msra.mxu0 0.0
  %1845 = vmatprep.subr.mxu0 0.0
  %1846 = vmatpush2.msra.mxu0 0.0
  %1847 = vmatprep.mubr.f32.mxu0 0.0
  %1848 = vmatmul.mubr.f32.gmra.mxu0 %v1781
  %v1849 = vpop.f32.mrf.mxu0
  %v1850 = vadd.f32 0.0, %v1849
  %v1851 = vpop.f32.mrf.mxu0
  %v1852 = vadd.f32 0.0, %v1851
  %1853 = vdwg.mxu0
  %v1854 = vadd.f32 %v1760, %v1850
  %v1855 = vadd.f32 %v1761, %v1852
  %v1856 = vld [vmem:[%s4] sm:$0xff]
  %1858 = vset.pattern.permute.xlu0 0
  %1859 = vperm.xlu0 %1858, %v1856
  %v1860 = vpop.permute.xlu0 %1859
  %v1862 = vadd.f32 %v1854, %v1860
  %v1863 = vadd.f32 %v1855, %v1860
  %v1864 = vmax.f32 %v1862, 0.0
  %v1865 = vmax.f32 %v1863, 0.0
  %1866 = vst [vmem:[#allocation2 + $0x8] sm:$0xff] %v1864
  %1867 = vst [vmem:[#allocation2 + $0x10] sm:$0xff] %v1865
  %v1868 = vld [vmem:[#allocation2 + $0x8] sm:$0xff]
  %v1869 = vld [vmem:[#allocation2 + $0x10] sm:$0xff]
  %v1870 = vld [vmem:[#allocation2 + $0x18] sm:$0xff]
  %1874 = vrot.lane.b32.xlu0 %v1868, 127
  %v1875 = vpop.permute.xlu0 %1874
  %1876 = vrot.lane.b32.xlu0 %v1869, 127
  %v1877 = vpop.permute.xlu0 %1876
  %1878 = vrot.lane.b32.xlu0 %v1870, 127
  %v1879 = vpop.permute.xlu0 %1878
  %v1880 = vsel %vm425, %v1875, %v1877
  %v1881 = vsel %vm425, %v1877, %v1879
  %v1884 = vmax.f32 %v1864, %v1880
  %v1885 = vmax.f32 %v1865, %v1881
  %v1887 = vmax.f32 %v1868, %v1880
  %v1888 = vmax.f32 %v1869, %v1881
  %v1889 = vmax.f32 %v1870, %v1879
  %1893 = vrot.lane.b32.xlu0 %v1887, 112
  %v1894 = vpop.permute.xlu0 %1893
  %1895 = vrot.lane.b32.xlu0 %v1888, 112
  %v1896 = vpop.permute.xlu0 %1895
  %1897 = vrot.lane.b32.xlu0 %v1889, 112
  %v1898 = vpop.permute.xlu0 %1897
  %v1899 = vsel %vm831, %v1894, %v1896
  %v1900 = vsel %vm831, %v1896, %v1898
  %v1903 = vmax.f32 %v1884, %v1899
  %v1904 = vmax.f32 %v1885, %v1900
  %v1905 = vld [vmem:[%s15] sm:$0xff]
  %v1906 = vld [vmem:[%s15 + $0x8] sm:$0xff]
  %v1907 = vld [vmem:[%s15 + $0x10] sm:$0xff]
  %v1908 = vld [vmem:[%s15 + $0x18] sm:$0xff]
  %v1909 = vld [vmem:[%s15 + $0x20] sm:$0xff]
  %v1910 = vld [vmem:[%s15 + $0x28] sm:$0xff]
  %v1911 = vld [vmem:[%s15 + $0x30] sm:$0xff]
  %v1912 = vld [vmem:[%s15 + $0x38] sm:$0xff]
  %v1913 = vld [vmem:[%s15 + $0x40] sm:$0xff]
  %v1914 = vld [vmem:[%s15 + $0x48] sm:$0xff]
  %v1915 = vld [vmem:[%s15 + $0x50] sm:$0xff]
  %v1916 = vld [vmem:[%s15 + $0x58] sm:$0xff]
  %v1917 = vld [vmem:[%s15 + $0x60] sm:$0xff]
  %v1918 = vld [vmem:[%s15 + $0x68] sm:$0xff]
  %v1919 = vld [vmem:[%s15 + $0x70] sm:$0xff]
  %v1920 = vld [vmem:[%s15 + $0x78] sm:$0xff]
  %v1921 = vld [vmem:[%s15 + $0x80] sm:$0xff]
  %v1922 = vld [vmem:[%s15 + $0x88] sm:$0xff]
  %v1923 = vld [vmem:[%s15 + $0x90] sm:$0xff]
  %v1924 = vld [vmem:[%s15 + $0x98] sm:$0xff]
  %v1925 = vld [vmem:[%s15 + $0xa0] sm:$0xff]
  %v1926 = vld [vmem:[%s15 + $0xa8] sm:$0xff]
  %v1927 = vld [vmem:[%s15 + $0xb0] sm:$0xff]
  %v1928 = vld [vmem:[%s15 + $0xb8] sm:$0xff]
  %v1929 = vld [vmem:[%s15 + $0xc0] sm:$0xff]
  %v1930 = vld [vmem:[%s15 + $0xc8] sm:$0xff]
  %v1931 = vld [vmem:[%s15 + $0xd0] sm:$0xff]
  %v1932 = vld [vmem:[%s15 + $0xd8] sm:$0xff]
  %v1933 = vld [vmem:[%s15 + $0xe0] sm:$0xff]
  %v1934 = vld [vmem:[%s15 + $0xe8] sm:$0xff]
  %v1935 = vld [vmem:[%s15 + $0xf0] sm:$0xff]
  %v1936 = vld [vmem:[%s15 + $0xf8] sm:$0xff]
  %1937 = vmatprep.subr.mxu0 0.0
  %1938 = vmatpush1.msra.mxu0 %v1920
  %1939 = vmatprep.subr.mxu0 0.0
  %1940 = vmatpush1.msra.mxu0 %v1919
  %1941 = vmatprep.subr.mxu0 0.0
  %1942 = vmatpush1.msra.mxu0 %v1918
  %1943 = vmatprep.subr.mxu0 0.0
  %1944 = vmatpush1.msra.mxu0 %v1917
  %1945 = vmatprep.subr.mxu0 0.0
  %1946 = vmatpush1.msra.mxu0 %v1916
  %1947 = vmatprep.subr.mxu0 0.0
  %1948 = vmatpush1.msra.mxu0 %v1915
  %1949 = vmatprep.subr.mxu0 0.0
  %1950 = vmatpush1.msra.mxu0 %v1914
  %1951 = vmatprep.subr.mxu0 0.0
  %1952 = vmatpush1.msra.mxu0 %v1913
  %1953 = vmatprep.subr.mxu0 0.0
  %1954 = vmatpush1.msra.mxu0 %v1912
  %1955 = vmatprep.subr.mxu0 0.0
  %1956 = vmatpush1.msra.mxu0 %v1911
  %1957 = vmatprep.subr.mxu0 0.0
  %1958 = vmatpush1.msra.mxu0 %v1910
  %1959 = vmatprep.subr.mxu0 0.0
  %1960 = vmatpush1.msra.mxu0 %v1909
  %1961 = vmatprep.subr.mxu0 0.0
  %1962 = vmatpush1.msra.mxu0 %v1908
  %1963 = vmatprep.subr.mxu0 0.0
  %1964 = vmatpush1.msra.mxu0 %v1907
  %1965 = vmatprep.subr.mxu0 0.0
  %1966 = vmatpush1.msra.mxu0 %v1906
  %1967 = vmatprep.subr.mxu0 0.0
  %1968 = vmatpush1.msra.mxu0 %v1905
  %1969 = vmatprep.subr.mxu0 0.0
  %1970 = vmatpush2.msra.mxu0 %v1936
  %1971 = vmatprep.subr.mxu0 0.0
  %1972 = vmatpush2.msra.mxu0 %v1935
  %1973 = vmatprep.subr.mxu0 0.0
  %1974 = vmatpush2.msra.mxu0 %v1934
  %1975 = vmatprep.subr.mxu0 0.0
  %1976 = vmatpush2.msra.mxu0 %v1933
  %1977 = vmatprep.subr.mxu0 0.0
  %1978 = vmatpush2.msra.mxu0 %v1932
  %1979 = vmatprep.subr.mxu0 0.0
  %1980 = vmatpush2.msra.mxu0 %v1931
  %1981 = vmatprep.subr.mxu0 0.0
  %1982 = vmatpush2.msra.mxu0 %v1930
  %1983 = vmatprep.subr.mxu0 0.0
  %1984 = vmatpush2.msra.mxu0 %v1929
  %1985 = vmatprep.subr.mxu0 0.0
  %1986 = vmatpush2.msra.mxu0 %v1928
  %1987 = vmatprep.subr.mxu0 0.0
  %1988 = vmatpush2.msra.mxu0 %v1927
  %1989 = vmatprep.subr.mxu0 0.0
  %1990 = vmatpush2.msra.mxu0 %v1926
  %1991 = vmatprep.subr.mxu0 0.0
  %1992 = vmatpush2.msra.mxu0 %v1925
  %1993 = vmatprep.subr.mxu0 0.0
  %1994 = vmatpush2.msra.mxu0 %v1924
  %1995 = vmatprep.subr.mxu0 0.0
  %1996 = vmatpush2.msra.mxu0 %v1923
  %1997 = vmatprep.subr.mxu0 0.0
  %1998 = vmatpush2.msra.mxu0 %v1922
  %1999 = vmatprep.subr.mxu0 0.0
  %2000 = vmatpush2.msra.mxu0 %v1921
  %2001 = vmatprep.mubr.f32.mxu0 %v1904
  %2002 = vmatmul.mubr.f32.gmra.mxu0 %v1903
  %v2003 = vpop.f32.mrf.mxu0
  %v2004 = vadd.f32 0.0, %v2003
  %v2005 = vpop.f32.mrf.mxu0
  %2006 = vdwg.mxu0
  %vm2007 = vcmask 523264
  %2008 = vst.msk [vmem:[#allocation3 + $0x8] sm:$0xff] %vm2007, %v2004
  %v2009 = vld [vmem:[#allocation3] sm:$0xff]
  %v2010 = vld [vmem:[#allocation3 + $0x8] sm:$0xff]
  %2012 = vrot.lane.b32.xlu0 %v94, 119
  %v2013 = vpop.permute.xlu0 %2012
  %v2015 = vmul.f32 %v2009, %v2013
  %v2016 = vmul.f32 %v2010, %v2013
  %v2017 = vld [vmem:[%s5] sm:$0xff]
  %v2018 = vld [vmem:[%s5 + $0x8] sm:$0xff]
  %s2019 = scalar_lea.vmem %s5, 16
  %v2020 = vld [vmem:[%s2019] sm:$0xff]
  %v2021 = vld [vmem:[%s2019 + $0x8] sm:$0xff]
  %2024 = vrot.lane.b32.xlu0 %v2009, 8
  %v2025 = vpop.permute.xlu0 %2024
  %2026 = vrot.lane.b32.xlu0 %v2010, 8
  %v2027 = vpop.permute.xlu0 %2026
  %v2028 = vsel %vm1052, %v2025, %v2027
  %v2031 = vsel %vm1052, %v2020, 0
  %v2034 = vsel %vm1052, %v2021, 0
  %2036 = vmatprep.subr.mxu0 0.0
  %2037 = vmatpush1.msra.mxu0 0.0
  %2038 = vmatprep.subr.mxu0 0.0
  %2039 = vmatpush1.msra.mxu0 0.0
  %2040 = vmatprep.subr.mxu0 0.0
  %2041 = vmatpush1.msra.mxu0 0.0
  %2042 = vmatprep.subr.mxu0 0.0
  %2043 = vmatpush1.msra.mxu0 0.0
  %2044 = vmatprep.subr.mxu0 0.0
  %2045 = vmatpush1.msra.mxu0 0.0
  %2046 = vmatprep.subr.mxu0 0.0
  %2047 = vmatpush1.msra.mxu0 0.0
  %2048 = vmatprep.subr.mxu0 0.0
  %2049 = vmatpush1.msra.mxu0 0.0
  %2050 = vmatprep.subr.mxu0 0.0
  %2051 = vmatpush1.msra.mxu0 0.0
  %2052 = vmatprep.subr.mxu0 0.0
  %2053 = vmatpush1.msra.mxu0 0.0
  %2054 = vmatprep.subr.mxu0 0.0
  %2055 = vmatpush1.msra.mxu0 0.0
  %2056 = vmatprep.subr.mxu0 0.0
  %2057 = vmatpush1.msra.mxu0 0.0
  %2058 = vmatprep.subr.mxu0 0.0
  %2059 = vmatpush1.msra.mxu0 0.0
  %2060 = vmatprep.subr.mxu0 0.0
  %2061 = vmatpush1.msra.mxu0 0.0
  %2062 = vmatprep.subr.mxu0 0.0
  %2063 = vmatpush1.msra.mxu0 0.0
  %2064 = vmatprep.subr.mxu0 0.0
  %2065 = vmatpush1.msra.mxu0 0.0
  %2066 = vmatprep.subr.mxu0 0.0
  %2067 = vmatpush1.msra.mxu0 %v2028
  %2068 = vmatprep.subr.mxu0 0.0
  %2069 = vmatpush2.msra.mxu0 0.0
  %2070 = vmatprep.subr.mxu0 0.0
  %2071 = vmatpush2.msra.mxu0 0.0
  %2072 = vmatprep.subr.mxu0 0.0
  %2073 = vmatpush2.msra.mxu0 0.0
  %2074 = vmatprep.subr.mxu0 0.0
  %2075 = vmatpush2.msra.mxu0 0.0
  %2076 = vmatprep.subr.mxu0 0.0
  %2077 = vmatpush2.msra.mxu0 0.0
  %2078 = vmatprep.subr.mxu0 0.0
  %2079 = vmatpush2.msra.mxu0 0.0
  %2080 = vmatprep.subr.mxu0 0.0
  %2081 = vmatpush2.msra.mxu0 0.0
  %2082 = vmatprep.subr.mxu0 0.0
  %2083 = vmatpush2.msra.mxu0 0.0
  %2084 = vmatprep.subr.mxu0 0.0
  %2085 = vmatpush2.msra.mxu0 0.0
  %2086 = vmatprep.subr.mxu0 0.0
  %2087 = vmatpush2.msra.mxu0 0.0
  %2088 = vmatprep.subr.mxu0 0.0
  %2089 = vmatpush2.msra.mxu0 0.0
  %2090 = vmatprep.subr.mxu0 0.0
  %2091 = vmatpush2.msra.mxu0 0.0
  %2092 = vmatprep.subr.mxu0 0.0
  %2093 = vmatpush2.msra.mxu0 0.0
  %2094 = vmatprep.subr.mxu0 0.0
  %2095 = vmatpush2.msra.mxu0 0.0
  %2096 = vmatprep.subr.mxu0 0.0
  %2097 = vmatpush2.msra.mxu0 0.0
  %2098 = vmatprep.subr.mxu0 0.0
  %2099 = vmatpush2.msra.mxu0 0.0
  %2100 = vmatprep.mubr.f32.mxu0 0.0
  %2101 = vmatmul.mubr.f32.gmra.mxu0 %v2031
  %v2102 = vpop.f32.mrf.mxu0
  %v2103 = vadd.f32 0.0, %v2102
  %v2104 = vpop.f32.mrf.mxu0
  %2105 = vmatprep.mubr.f32.mxu0 0.0
  %2106 = vmatmul.mubr.f32.gmra.mxu0 %v2034
  %v2107 = vpop.f32.mrf.mxu0
  %v2108 = vadd.f32 0.0, %v2107
  %v2109 = vpop.f32.mrf.mxu0
  %2110 = vdwg.mxu0
  %2113 = vrot.lane.b32.xlu0 %v2015, 9
  %v2114 = vpop.permute.xlu0 %2113
  %2115 = vrot.lane.b32.xlu0 %v2016, 9
  %v2116 = vpop.permute.xlu0 %2115
  %vm2117 = vcmask 72704
  %v2118 = vsel %vm2117, %v2114, %v2116
  %v2121 = vsel %vm1052, %v2017, 0
  %v2124 = vsel %vm1052, %v2018, 0
  %2126 = vmatprep.subr.mxu0 0.0
  %2127 = vmatpush1.msra.mxu0 0.0
  %2128 = vmatprep.subr.mxu0 0.0
  %2129 = vmatpush1.msra.mxu0 0.0
  %2130 = vmatprep.subr.mxu0 0.0
  %2131 = vmatpush1.msra.mxu0 0.0
  %2132 = vmatprep.subr.mxu0 0.0
  %2133 = vmatpush1.msra.mxu0 0.0
  %2134 = vmatprep.subr.mxu0 0.0
  %2135 = vmatpush1.msra.mxu0 0.0
  %2136 = vmatprep.subr.mxu0 0.0
  %2137 = vmatpush1.msra.mxu0 0.0
  %2138 = vmatprep.subr.mxu0 0.0
  %2139 = vmatpush1.msra.mxu0 0.0
  %2140 = vmatprep.subr.mxu0 0.0
  %2141 = vmatpush1.msra.mxu0 0.0
  %2142 = vmatprep.subr.mxu0 0.0
  %2143 = vmatpush1.msra.mxu0 0.0
  %2144 = vmatprep.subr.mxu0 0.0
  %2145 = vmatpush1.msra.mxu0 0.0
  %2146 = vmatprep.subr.mxu0 0.0
  %2147 = vmatpush1.msra.mxu0 0.0
  %2148 = vmatprep.subr.mxu0 0.0
  %2149 = vmatpush1.msra.mxu0 0.0
  %2150 = vmatprep.subr.mxu0 0.0
  %2151 = vmatpush1.msra.mxu0 0.0
  %2152 = vmatprep.subr.mxu0 0.0
  %2153 = vmatpush1.msra.mxu0 0.0
  %2154 = vmatprep.subr.mxu0 0.0
  %2155 = vmatpush1.msra.mxu0 0.0
  %2156 = vmatprep.subr.mxu0 0.0
  %2157 = vmatpush1.msra.mxu0 %v2118
  %2158 = vmatprep.subr.mxu0 0.0
  %2159 = vmatpush2.msra.mxu0 0.0
  %2160 = vmatprep.subr.mxu0 0.0
  %2161 = vmatpush2.msra.mxu0 0.0
  %2162 = vmatprep.subr.mxu0 0.0
  %2163 = vmatpush2.msra.mxu0 0.0
  %2164 = vmatprep.subr.mxu0 0.0
  %2165 = vmatpush2.msra.mxu0 0.0
  %2166 = vmatprep.subr.mxu0 0.0
  %2167 = vmatpush2.msra.mxu0 0.0
  %2168 = vmatprep.subr.mxu0 0.0
  %2169 = vmatpush2.msra.mxu0 0.0
  %2170 = vmatprep.subr.mxu0 0.0
  %2171 = vmatpush2.msra.mxu0 0.0
  %2172 = vmatprep.subr.mxu0 0.0
  %2173 = vmatpush2.msra.mxu0 0.0
  %2174 = vmatprep.subr.mxu0 0.0
  %2175 = vmatpush2.msra.mxu0 0.0
  %2176 = vmatprep.subr.mxu0 0.0
  %2177 = vmatpush2.msra.mxu0 0.0
  %2178 = vmatprep.subr.mxu0 0.0
  %2179 = vmatpush2.msra.mxu0 0.0
  %2180 = vmatprep.subr.mxu0 0.0
  %2181 = vmatpush2.msra.mxu0 0.0
  %2182 = vmatprep.subr.mxu0 0.0
  %2183 = vmatpush2.msra.mxu0 0.0
  %2184 = vmatprep.subr.mxu0 0.0
  %2185 = vmatpush2.msra.mxu0 0.0
  %2186 = vmatprep.subr.mxu0 0.0
  %2187 = vmatpush2.msra.mxu0 0.0
  %2188 = vmatprep.subr.mxu0 0.0
  %2189 = vmatpush2.msra.mxu0 0.0
  %2190 = vmatprep.mubr.f32.mxu0 0.0
  %2191 = vmatmul.mubr.f32.gmra.mxu0 %v2121
  %v2192 = vpop.f32.mrf.mxu0
  %v2193 = vadd.f32 %v2103, %v2192
  %v2194 = vpop.f32.mrf.mxu0
  %2195 = vmatprep.mubr.f32.mxu0 0.0
  %2196 = vmatmul.mubr.f32.gmra.mxu0 %v2124
  %v2197 = vpop.f32.mrf.mxu0
  %v2198 = vadd.f32 %v2108, %v2197
  %v2199 = vpop.f32.mrf.mxu0
  %2200 = vdwg.mxu0
  %2202 = vrot.lane.b32.xlu0 %v97, 121
  %v2203 = vpop.permute.xlu0 %2202
  %v2205 = vmul.f32 %v2009, %v2203
  %v2206 = vmul.f32 %v2010, %v2203
  %s2207 = scalar_lea.vmem %s5, 32
  %v2208 = vld [vmem:[%s2207] sm:$0xff]
  %v2209 = vld [vmem:[%s2207 + $0x8] sm:$0xff]
  %2212 = vrot.lane.b32.xlu0 %v2205, 7
  %v2213 = vpop.permute.xlu0 %2212
  %2214 = vrot.lane.b32.xlu0 %v2206, 7
  %v2215 = vpop.permute.xlu0 %2214
  %vm2216 = vcmask 56320
  %v2217 = vsel %vm2216, %v2213, %v2215
  %v2220 = vsel %vm1052, %v2208, 0
  %v2223 = vsel %vm1052, %v2209, 0
  %2225 = vmatprep.subr.mxu0 0.0
  %2226 = vmatpush1.msra.mxu0 0.0
  %2227 = vmatprep.subr.mxu0 0.0
  %2228 = vmatpush1.msra.mxu0 0.0
  %2229 = vmatprep.subr.mxu0 0.0
  %2230 = vmatpush1.msra.mxu0 0.0
  %2231 = vmatprep.subr.mxu0 0.0
  %2232 = vmatpush1.msra.mxu0 0.0
  %2233 = vmatprep.subr.mxu0 0.0
  %2234 = vmatpush1.msra.mxu0 0.0
  %2235 = vmatprep.subr.mxu0 0.0
  %2236 = vmatpush1.msra.mxu0 0.0
  %2237 = vmatprep.subr.mxu0 0.0
  %2238 = vmatpush1.msra.mxu0 0.0
  %2239 = vmatprep.subr.mxu0 0.0
  %2240 = vmatpush1.msra.mxu0 0.0
  %2241 = vmatprep.subr.mxu0 0.0
  %2242 = vmatpush1.msra.mxu0 0.0
  %2243 = vmatprep.subr.mxu0 0.0
  %2244 = vmatpush1.msra.mxu0 0.0
  %2245 = vmatprep.subr.mxu0 0.0
  %2246 = vmatpush1.msra.mxu0 0.0
  %2247 = vmatprep.subr.mxu0 0.0
  %2248 = vmatpush1.msra.mxu0 0.0
  %2249 = vmatprep.subr.mxu0 0.0
  %2250 = vmatpush1.msra.mxu0 0.0
  %2251 = vmatprep.subr.mxu0 0.0
  %2252 = vmatpush1.msra.mxu0 0.0
  %2253 = vmatprep.subr.mxu0 0.0
  %2254 = vmatpush1.msra.mxu0 0.0
  %2255 = vmatprep.subr.mxu0 0.0
  %2256 = vmatpush1.msra.mxu0 %v2217
  %2257 = vmatprep.subr.mxu0 0.0
  %2258 = vmatpush2.msra.mxu0 0.0
  %2259 = vmatprep.subr.mxu0 0.0
  %2260 = vmatpush2.msra.mxu0 0.0
  %2261 = vmatprep.subr.mxu0 0.0
  %2262 = vmatpush2.msra.mxu0 0.0
  %2263 = vmatprep.subr.mxu0 0.0
  %2264 = vmatpush2.msra.mxu0 0.0
  %2265 = vmatprep.subr.mxu0 0.0
  %2266 = vmatpush2.msra.mxu0 0.0
  %2267 = vmatprep.subr.mxu0 0.0
  %2268 = vmatpush2.msra.mxu0 0.0
  %2269 = vmatprep.subr.mxu0 0.0
  %2270 = vmatpush2.msra.mxu0 0.0
  %2271 = vmatprep.subr.mxu0 0.0
  %2272 = vmatpush2.msra.mxu0 0.0
  %2273 = vmatprep.subr.mxu0 0.0
  %2274 = vmatpush2.msra.mxu0 0.0
  %2275 = vmatprep.subr.mxu0 0.0
  %2276 = vmatpush2.msra.mxu0 0.0
  %2277 = vmatprep.subr.mxu0 0.0
  %2278 = vmatpush2.msra.mxu0 0.0
  %2279 = vmatprep.subr.mxu0 0.0
  %2280 = vmatpush2.msra.mxu0 0.0
  %2281 = vmatprep.subr.mxu0 0.0
  %2282 = vmatpush2.msra.mxu0 0.0
  %2283 = vmatprep.subr.mxu0 0.0
  %2284 = vmatpush2.msra.mxu0 0.0
  %2285 = vmatprep.subr.mxu0 0.0
  %2286 = vmatpush2.msra.mxu0 0.0
  %2287 = vmatprep.subr.mxu0 0.0
  %2288 = vmatpush2.msra.mxu0 0.0
  %2289 = vmatprep.mubr.f32.mxu0 0.0
  %2290 = vmatmul.mubr.f32.gmra.mxu0 %v2220
  %v2291 = vpop.f32.mrf.mxu0
  %v2292 = vadd.f32 0.0, %v2291
  %v2293 = vpop.f32.mrf.mxu0
  %2294 = vmatprep.mubr.f32.mxu0 0.0
  %2295 = vmatmul.mubr.f32.gmra.mxu0 %v2223
  %v2296 = vpop.f32.mrf.mxu0
  %v2297 = vadd.f32 0.0, %v2296
  %v2298 = vpop.f32.mrf.mxu0
  %2299 = vdwg.mxu0
  %v2300 = vadd.f32 %v2193, %v2292
  %v2301 = vadd.f32 %v2198, %v2297
  %2302 = vrot.lane.b32.xlu0 %v94, 127
  %v2303 = vpop.permute.xlu0 %2302
  %v2305 = vmul.f32 %v2009, %v2303
  %v2306 = vmul.f32 %v2010, %v2303
  %s2307 = scalar_lea.vmem %s5, 48
  %v2308 = vld [vmem:[%s2307] sm:$0xff]
  %v2309 = vld [vmem:[%s2307 + $0x8] sm:$0xff]
  %2312 = vrot.lane.b32.xlu0 %v2305, 1
  %v2313 = vpop.permute.xlu0 %2312
  %2314 = vrot.lane.b32.xlu0 %v2306, 1
  %v2315 = vpop.permute.xlu0 %2314
  %v2316 = vsel %vm444, %v2313, %v2315
  %v2319 = vsel %vm1052, %v2308, 0
  %v2322 = vsel %vm1052, %v2309, 0
  %2324 = vmatprep.subr.mxu0 0.0
  %2325 = vmatpush1.msra.mxu0 0.0
  %2326 = vmatprep.subr.mxu0 0.0
  %2327 = vmatpush1.msra.mxu0 0.0
  %2328 = vmatprep.subr.mxu0 0.0
  %2329 = vmatpush1.msra.mxu0 0.0
  %2330 = vmatprep.subr.mxu0 0.0
  %2331 = vmatpush1.msra.mxu0 0.0
  %2332 = vmatprep.subr.mxu0 0.0
  %2333 = vmatpush1.msra.mxu0 0.0
  %2334 = vmatprep.subr.mxu0 0.0
  %2335 = vmatpush1.msra.mxu0 0.0
  %2336 = vmatprep.subr.mxu0 0.0
  %2337 = vmatpush1.msra.mxu0 0.0
  %2338 = vmatprep.subr.mxu0 0.0
  %2339 = vmatpush1.msra.mxu0 0.0
  %2340 = vmatprep.subr.mxu0 0.0
  %2341 = vmatpush1.msra.mxu0 0.0
  %2342 = vmatprep.subr.mxu0 0.0
  %2343 = vmatpush1.msra.mxu0 0.0
  %2344 = vmatprep.subr.mxu0 0.0
  %2345 = vmatpush1.msra.mxu0 0.0
  %2346 = vmatprep.subr.mxu0 0.0
  %2347 = vmatpush1.msra.mxu0 0.0
  %2348 = vmatprep.subr.mxu0 0.0
  %2349 = vmatpush1.msra.mxu0 0.0
  %2350 = vmatprep.subr.mxu0 0.0
  %2351 = vmatpush1.msra.mxu0 0.0
  %2352 = vmatprep.subr.mxu0 0.0
  %2353 = vmatpush1.msra.mxu0 0.0
  %2354 = vmatprep.subr.mxu0 0.0
  %2355 = vmatpush1.msra.mxu0 %v2316
  %2356 = vmatprep.subr.mxu0 0.0
  %2357 = vmatpush2.msra.mxu0 0.0
  %2358 = vmatprep.subr.mxu0 0.0
  %2359 = vmatpush2.msra.mxu0 0.0
  %2360 = vmatprep.subr.mxu0 0.0
  %2361 = vmatpush2.msra.mxu0 0.0
  %2362 = vmatprep.subr.mxu0 0.0
  %2363 = vmatpush2.msra.mxu0 0.0
  %2364 = vmatprep.subr.mxu0 0.0
  %2365 = vmatpush2.msra.mxu0 0.0
  %2366 = vmatprep.subr.mxu0 0.0
  %2367 = vmatpush2.msra.mxu0 0.0
  %2368 = vmatprep.subr.mxu0 0.0
  %2369 = vmatpush2.msra.mxu0 0.0
  %2370 = vmatprep.subr.mxu0 0.0
  %2371 = vmatpush2.msra.mxu0 0.0
  %2372 = vmatprep.subr.mxu0 0.0
  %2373 = vmatpush2.msra.mxu0 0.0
  %2374 = vmatprep.subr.mxu0 0.0
  %2375 = vmatpush2.msra.mxu0 0.0
  %2376 = vmatprep.subr.mxu0 0.0
  %2377 = vmatpush2.msra.mxu0 0.0
  %2378 = vmatprep.subr.mxu0 0.0
  %2379 = vmatpush2.msra.mxu0 0.0
  %2380 = vmatprep.subr.mxu0 0.0
  %2381 = vmatpush2.msra.mxu0 0.0
  %2382 = vmatprep.subr.mxu0 0.0
  %2383 = vmatpush2.msra.mxu0 0.0
  %2384 = vmatprep.subr.mxu0 0.0
  %2385 = vmatpush2.msra.mxu0 0.0
  %2386 = vmatprep.subr.mxu0 0.0
  %2387 = vmatpush2.msra.mxu0 0.0
  %2388 = vmatprep.mubr.f32.mxu0 0.0
  %2389 = vmatmul.mubr.f32.gmra.mxu0 %v2319
  %v2390 = vpop.f32.mrf.mxu0
  %v2391 = vadd.f32 0.0, %v2390
  %v2392 = vpop.f32.mrf.mxu0
  %2393 = vmatprep.mubr.f32.mxu0 0.0
  %2394 = vmatmul.mubr.f32.gmra.mxu0 %v2322
  %v2395 = vpop.f32.mrf.mxu0
  %v2396 = vadd.f32 0.0, %v2395
  %v2397 = vpop.f32.mrf.mxu0
  %2398 = vdwg.mxu0
  %v2399 = vadd.f32 %v2300, %v2391
  %v2400 = vadd.f32 %v2301, %v2396
  %s2401 = scalar_lea.vmem %s5, 64
  %v2402 = vld [vmem:[%s2401] sm:$0xff]
  %v2403 = vld [vmem:[%s2401 + $0x8] sm:$0xff]
  %v2405 = vsel %vm1052, %v2402, 0
  %v2408 = vsel %vm1052, %v2403, 0
  %2410 = vmatprep.subr.mxu0 0.0
  %2411 = vmatpush1.msra.mxu0 0.0
  %2412 = vmatprep.subr.mxu0 0.0
  %2413 = vmatpush1.msra.mxu0 0.0
  %2414 = vmatprep.subr.mxu0 0.0
  %2415 = vmatpush1.msra.mxu0 0.0
  %2416 = vmatprep.subr.mxu0 0.0
  %2417 = vmatpush1.msra.mxu0 0.0
  %2418 = vmatprep.subr.mxu0 0.0
  %2419 = vmatpush1.msra.mxu0 0.0
  %2420 = vmatprep.subr.mxu0 0.0
  %2421 = vmatpush1.msra.mxu0 0.0
  %2422 = vmatprep.subr.mxu0 0.0
  %2423 = vmatpush1.msra.mxu0 0.0
  %2424 = vmatprep.subr.mxu0 0.0
  %2425 = vmatpush1.msra.mxu0 0.0
  %2426 = vmatprep.subr.mxu0 0.0
  %2427 = vmatpush1.msra.mxu0 0.0
  %2428 = vmatprep.subr.mxu0 0.0
  %2429 = vmatpush1.msra.mxu0 0.0
  %2430 = vmatprep.subr.mxu0 0.0
  %2431 = vmatpush1.msra.mxu0 0.0
  %2432 = vmatprep.subr.mxu0 0.0
  %2433 = vmatpush1.msra.mxu0 0.0
  %2434 = vmatprep.subr.mxu0 0.0
  %2435 = vmatpush1.msra.mxu0 0.0
  %2436 = vmatprep.subr.mxu0 0.0
  %2437 = vmatpush1.msra.mxu0 0.0
  %2438 = vmatprep.subr.mxu0 0.0
  %2439 = vmatpush1.msra.mxu0 0.0
  %2440 = vmatprep.subr.mxu0 0.0
  %2441 = vmatpush1.msra.mxu0 %v2010
  %2442 = vmatprep.subr.mxu0 0.0
  %2443 = vmatpush2.msra.mxu0 0.0
  %2444 = vmatprep.subr.mxu0 0.0
  %2445 = vmatpush2.msra.mxu0 0.0
  %2446 = vmatprep.subr.mxu0 0.0
  %2447 = vmatpush2.msra.mxu0 0.0
  %2448 = vmatprep.subr.mxu0 0.0
  %2449 = vmatpush2.msra.mxu0 0.0
  %2450 = vmatprep.subr.mxu0 0.0
  %2451 = vmatpush2.msra.mxu0 0.0
  %2452 = vmatprep.subr.mxu0 0.0
  %2453 = vmatpush2.msra.mxu0 0.0
  %2454 = vmatprep.subr.mxu0 0.0
  %2455 = vmatpush2.msra.mxu0 0.0
  %2456 = vmatprep.subr.mxu0 0.0
  %2457 = vmatpush2.msra.mxu0 0.0
  %2458 = vmatprep.subr.mxu0 0.0
  %2459 = vmatpush2.msra.mxu0 0.0
  %2460 = vmatprep.subr.mxu0 0.0
  %2461 = vmatpush2.msra.mxu0 0.0
  %2462 = vmatprep.subr.mxu0 0.0
  %2463 = vmatpush2.msra.mxu0 0.0
  %2464 = vmatprep.subr.mxu0 0.0
  %2465 = vmatpush2.msra.mxu0 0.0
  %2466 = vmatprep.subr.mxu0 0.0
  %2467 = vmatpush2.msra.mxu0 0.0
  %2468 = vmatprep.subr.mxu0 0.0
  %2469 = vmatpush2.msra.mxu0 0.0
  %2470 = vmatprep.subr.mxu0 0.0
  %2471 = vmatpush2.msra.mxu0 0.0
  %2472 = vmatprep.subr.mxu0 0.0
  %2473 = vmatpush2.msra.mxu0 0.0
  %2474 = vmatprep.mubr.f32.mxu0 0.0
  %2475 = vmatmul.mubr.f32.gmra.mxu0 %v2405
  %v2476 = vpop.f32.mrf.mxu0
  %v2477 = vadd.f32 0.0, %v2476
  %v2478 = vpop.f32.mrf.mxu0
  %2479 = vmatprep.mubr.f32.mxu0 0.0
  %2480 = vmatmul.mubr.f32.gmra.mxu0 %v2408
  %v2481 = vpop.f32.mrf.mxu0
  %v2482 = vadd.f32 0.0, %v2481
  %v2483 = vpop.f32.mrf.mxu0
  %2484 = vdwg.mxu0
  %v2485 = vadd.f32 %v2399, %v2477
  %v2486 = vadd.f32 %v2400, %v2482
  %2487 = vrot.lane.b32.xlu0 %v97, 1
  %v2488 = vpop.permute.xlu0 %2487
  %v2490 = vmul.f32 %v2010, %v2488
  %s2491 = scalar_lea.vmem %s5, 80
  %v2492 = vld [vmem:[%s2491] sm:$0xff]
  %v2493 = vld [vmem:[%s2491 + $0x8] sm:$0xff]
  %2495 = vrot.lane.b32.xlu0 %v2490, 127
  %v2496 = vpop.permute.xlu0 %2495
  %v2499 = vsel %vm1052, %v2492, 0
  %v2502 = vsel %vm1052, %v2493, 0
  %2504 = vmatprep.subr.mxu0 0.0
  %2505 = vmatpush1.msra.mxu0 0.0
  %2506 = vmatprep.subr.mxu0 0.0
  %2507 = vmatpush1.msra.mxu0 0.0
  %2508 = vmatprep.subr.mxu0 0.0
  %2509 = vmatpush1.msra.mxu0 0.0
  %2510 = vmatprep.subr.mxu0 0.0
  %2511 = vmatpush1.msra.mxu0 0.0
  %2512 = vmatprep.subr.mxu0 0.0
  %2513 = vmatpush1.msra.mxu0 0.0
  %2514 = vmatprep.subr.mxu0 0.0
  %2515 = vmatpush1.msra.mxu0 0.0
  %2516 = vmatprep.subr.mxu0 0.0
  %2517 = vmatpush1.msra.mxu0 0.0
  %2518 = vmatprep.subr.mxu0 0.0
  %2519 = vmatpush1.msra.mxu0 0.0
  %2520 = vmatprep.subr.mxu0 0.0
  %2521 = vmatpush1.msra.mxu0 0.0
  %2522 = vmatprep.subr.mxu0 0.0
  %2523 = vmatpush1.msra.mxu0 0.0
  %2524 = vmatprep.subr.mxu0 0.0
  %2525 = vmatpush1.msra.mxu0 0.0
  %2526 = vmatprep.subr.mxu0 0.0
  %2527 = vmatpush1.msra.mxu0 0.0
  %2528 = vmatprep.subr.mxu0 0.0
  %2529 = vmatpush1.msra.mxu0 0.0
  %2530 = vmatprep.subr.mxu0 0.0
  %2531 = vmatpush1.msra.mxu0 0.0
  %2532 = vmatprep.subr.mxu0 0.0
  %2533 = vmatpush1.msra.mxu0 0.0
  %2534 = vmatprep.subr.mxu0 0.0
  %2535 = vmatpush1.msra.mxu0 %v2496
  %2536 = vmatprep.subr.mxu0 0.0
  %2537 = vmatpush2.msra.mxu0 0.0
  %2538 = vmatprep.subr.mxu0 0.0
  %2539 = vmatpush2.msra.mxu0 0.0
  %2540 = vmatprep.subr.mxu0 0.0
  %2541 = vmatpush2.msra.mxu0 0.0
  %2542 = vmatprep.subr.mxu0 0.0
  %2543 = vmatpush2.msra.mxu0 0.0
  %2544 = vmatprep.subr.mxu0 0.0
  %2545 = vmatpush2.msra.mxu0 0.0
  %2546 = vmatprep.subr.mxu0 0.0
  %2547 = vmatpush2.msra.mxu0 0.0
  %2548 = vmatprep.subr.mxu0 0.0
  %2549 = vmatpush2.msra.mxu0 0.0
  %2550 = vmatprep.subr.mxu0 0.0
  %2551 = vmatpush2.msra.mxu0 0.0
  %2552 = vmatprep.subr.mxu0 0.0
  %2553 = vmatpush2.msra.mxu0 0.0
  %2554 = vmatprep.subr.mxu0 0.0
  %2555 = vmatpush2.msra.mxu0 0.0
  %2556 = vmatprep.subr.mxu0 0.0
  %2557 = vmatpush2.msra.mxu0 0.0
  %2558 = vmatprep.subr.mxu0 0.0
  %2559 = vmatpush2.msra.mxu0 0.0
  %2560 = vmatprep.subr.mxu0 0.0
  %2561 = vmatpush2.msra.mxu0 0.0
  %2562 = vmatprep.subr.mxu0 0.0
  %2563 = vmatpush2.msra.mxu0 0.0
  %2564 = vmatprep.subr.mxu0 0.0
  %2565 = vmatpush2.msra.mxu0 0.0
  %2566 = vmatprep.subr.mxu0 0.0
  %2567 = vmatpush2.msra.mxu0 0.0
  %2568 = vmatprep.mubr.f32.mxu0 0.0
  %2569 = vmatmul.mubr.f32.gmra.mxu0 %v2499
  %v2570 = vpop.f32.mrf.mxu0
  %v2571 = vadd.f32 0.0, %v2570
  %v2572 = vpop.f32.mrf.mxu0
  %2573 = vmatprep.mubr.f32.mxu0 0.0
  %2574 = vmatmul.mubr.f32.gmra.mxu0 %v2502
  %v2575 = vpop.f32.mrf.mxu0
  %v2576 = vadd.f32 0.0, %v2575
  %v2577 = vpop.f32.mrf.mxu0
  %2578 = vdwg.mxu0
  %v2579 = vadd.f32 %v2485, %v2571
  %v2580 = vadd.f32 %v2486, %v2576
  %2581 = vrot.lane.b32.xlu0 %v94, 7
  %v2582 = vpop.permute.xlu0 %2581
  %v2584 = vmul.f32 %v2010, %v2582
  %s2585 = scalar_lea.vmem %s5, 96
  %v2586 = vld [vmem:[%s2585] sm:$0xff]
  %v2587 = vld [vmem:[%s2585 + $0x8] sm:$0xff]
  %2589 = vrot.lane.b32.xlu0 %v2584, 121
  %v2590 = vpop.permute.xlu0 %2589
  %v2593 = vsel %vm1052, %v2586, 0
  %v2596 = vsel %vm1052, %v2587, 0
  %2598 = vmatprep.subr.mxu0 0.0
  %2599 = vmatpush1.msra.mxu0 0.0
  %2600 = vmatprep.subr.mxu0 0.0
  %2601 = vmatpush1.msra.mxu0 0.0
  %2602 = vmatprep.subr.mxu0 0.0
  %2603 = vmatpush1.msra.mxu0 0.0
  %2604 = vmatprep.subr.mxu0 0.0
  %2605 = vmatpush1.msra.mxu0 0.0
  %2606 = vmatprep.subr.mxu0 0.0
  %2607 = vmatpush1.msra.mxu0 0.0
  %2608 = vmatprep.subr.mxu0 0.0
  %2609 = vmatpush1.msra.mxu0 0.0
  %2610 = vmatprep.subr.mxu0 0.0
  %2611 = vmatpush1.msra.mxu0 0.0
  %2612 = vmatprep.subr.mxu0 0.0
  %2613 = vmatpush1.msra.mxu0 0.0
  %2614 = vmatprep.subr.mxu0 0.0
  %2615 = vmatpush1.msra.mxu0 0.0
  %2616 = vmatprep.subr.mxu0 0.0
  %2617 = vmatpush1.msra.mxu0 0.0
  %2618 = vmatprep.subr.mxu0 0.0
  %2619 = vmatpush1.msra.mxu0 0.0
  %2620 = vmatprep.subr.mxu0 0.0
  %2621 = vmatpush1.msra.mxu0 0.0
  %2622 = vmatprep.subr.mxu0 0.0
  %2623 = vmatpush1.msra.mxu0 0.0
  %2624 = vmatprep.subr.mxu0 0.0
  %2625 = vmatpush1.msra.mxu0 0.0
  %2626 = vmatprep.subr.mxu0 0.0
  %2627 = vmatpush1.msra.mxu0 0.0
  %2628 = vmatprep.subr.mxu0 0.0
  %2629 = vmatpush1.msra.mxu0 %v2590
  %2630 = vmatprep.subr.mxu0 0.0
  %2631 = vmatpush2.msra.mxu0 0.0
  %2632 = vmatprep.subr.mxu0 0.0
  %2633 = vmatpush2.msra.mxu0 0.0
  %2634 = vmatprep.subr.mxu0 0.0
  %2635 = vmatpush2.msra.mxu0 0.0
  %2636 = vmatprep.subr.mxu0 0.0
  %2637 = vmatpush2.msra.mxu0 0.0
  %2638 = vmatprep.subr.mxu0 0.0
  %2639 = vmatpush2.msra.mxu0 0.0
  %2640 = vmatprep.subr.mxu0 0.0
  %2641 = vmatpush2.msra.mxu0 0.0
  %2642 = vmatprep.subr.mxu0 0.0
  %2643 = vmatpush2.msra.mxu0 0.0
  %2644 = vmatprep.subr.mxu0 0.0
  %2645 = vmatpush2.msra.mxu0 0.0
  %2646 = vmatprep.subr.mxu0 0.0
  %2647 = vmatpush2.msra.mxu0 0.0
  %2648 = vmatprep.subr.mxu0 0.0
  %2649 = vmatpush2.msra.mxu0 0.0
  %2650 = vmatprep.subr.mxu0 0.0
  %2651 = vmatpush2.msra.mxu0 0.0
  %2652 = vmatprep.subr.mxu0 0.0
  %2653 = vmatpush2.msra.mxu0 0.0
  %2654 = vmatprep.subr.mxu0 0.0
  %2655 = vmatpush2.msra.mxu0 0.0
  %2656 = vmatprep.subr.mxu0 0.0
  %2657 = vmatpush2.msra.mxu0 0.0
  %2658 = vmatprep.subr.mxu0 0.0
  %2659 = vmatpush2.msra.mxu0 0.0
  %2660 = vmatprep.subr.mxu0 0.0
  %2661 = vmatpush2.msra.mxu0 0.0
  %2662 = vmatprep.mubr.f32.mxu0 0.0
  %2663 = vmatmul.mubr.f32.gmra.mxu0 %v2593
  %v2664 = vpop.f32.mrf.mxu0
  %v2665 = vadd.f32 0.0, %v2664
  %v2666 = vpop.f32.mrf.mxu0
  %2667 = vmatprep.mubr.f32.mxu0 0.0
  %2668 = vmatmul.mubr.f32.gmra.mxu0 %v2596
  %v2669 = vpop.f32.mrf.mxu0
  %v2670 = vadd.f32 0.0, %v2669
  %v2671 = vpop.f32.mrf.mxu0
  %2672 = vdwg.mxu0
  %v2673 = vadd.f32 %v2579, %v2665
  %v2674 = vadd.f32 %v2580, %v2670
  %s2675 = scalar_lea.vmem %s5, 112
  %v2676 = vld [vmem:[%s2675] sm:$0xff]
  %v2677 = vld [vmem:[%s2675 + $0x8] sm:$0xff]
  %2678 = vrot.lane.b32.xlu0 %v2010, 120
  %v2679 = vpop.permute.xlu0 %2678
  %v2682 = vsel %vm1052, %v2676, 0
  %v2685 = vsel %vm1052, %v2677, 0
  %2687 = vmatprep.subr.mxu0 0.0
  %2688 = vmatpush1.msra.mxu0 0.0
  %2689 = vmatprep.subr.mxu0 0.0
  %2690 = vmatpush1.msra.mxu0 0.0
  %2691 = vmatprep.subr.mxu0 0.0
  %2692 = vmatpush1.msra.mxu0 0.0
  %2693 = vmatprep.subr.mxu0 0.0
  %2694 = vmatpush1.msra.mxu0 0.0
  %2695 = vmatprep.subr.mxu0 0.0
  %2696 = vmatpush1.msra.mxu0 0.0
  %2697 = vmatprep.subr.mxu0 0.0
  %2698 = vmatpush1.msra.mxu0 0.0
  %2699 = vmatprep.subr.mxu0 0.0
  %2700 = vmatpush1.msra.mxu0 0.0
  %2701 = vmatprep.subr.mxu0 0.0
  %2702 = vmatpush1.msra.mxu0 0.0
  %2703 = vmatprep.subr.mxu0 0.0
  %2704 = vmatpush1.msra.mxu0 0.0
  %2705 = vmatprep.subr.mxu0 0.0
  %2706 = vmatpush1.msra.mxu0 0.0
  %2707 = vmatprep.subr.mxu0 0.0
  %2708 = vmatpush1.msra.mxu0 0.0
  %2709 = vmatprep.subr.mxu0 0.0
  %2710 = vmatpush1.msra.mxu0 0.0
  %2711 = vmatprep.subr.mxu0 0.0
  %2712 = vmatpush1.msra.mxu0 0.0
  %2713 = vmatprep.subr.mxu0 0.0
  %2714 = vmatpush1.msra.mxu0 0.0
  %2715 = vmatprep.subr.mxu0 0.0
  %2716 = vmatpush1.msra.mxu0 0.0
  %2717 = vmatprep.subr.mxu0 0.0
  %2718 = vmatpush1.msra.mxu0 %v2679
  %2719 = vmatprep.subr.mxu0 0.0
  %2720 = vmatpush2.msra.mxu0 0.0
  %2721 = vmatprep.subr.mxu0 0.0
  %2722 = vmatpush2.msra.mxu0 0.0
  %2723 = vmatprep.subr.mxu0 0.0
  %2724 = vmatpush2.msra.mxu0 0.0
  %2725 = vmatprep.subr.mxu0 0.0
  %2726 = vmatpush2.msra.mxu0 0.0
  %2727 = vmatprep.subr.mxu0 0.0
  %2728 = vmatpush2.msra.mxu0 0.0
  %2729 = vmatprep.subr.mxu0 0.0
  %2730 = vmatpush2.msra.mxu0 0.0
  %2731 = vmatprep.subr.mxu0 0.0
  %2732 = vmatpush2.msra.mxu0 0.0
  %2733 = vmatprep.subr.mxu0 0.0
  %2734 = vmatpush2.msra.mxu0 0.0
  %2735 = vmatprep.subr.mxu0 0.0
  %2736 = vmatpush2.msra.mxu0 0.0
  %2737 = vmatprep.subr.mxu0 0.0
  %2738 = vmatpush2.msra.mxu0 0.0
  %2739 = vmatprep.subr.mxu0 0.0
  %2740 = vmatpush2.msra.mxu0 0.0
  %2741 = vmatprep.subr.mxu0 0.0
  %2742 = vmatpush2.msra.mxu0 0.0
  %2743 = vmatprep.subr.mxu0 0.0
  %2744 = vmatpush2.msra.mxu0 0.0
  %2745 = vmatprep.subr.mxu0 0.0
  %2746 = vmatpush2.msra.mxu0 0.0
  %2747 = vmatprep.subr.mxu0 0.0
  %2748 = vmatpush2.msra.mxu0 0.0
  %2749 = vmatprep.subr.mxu0 0.0
  %2750 = vmatpush2.msra.mxu0 0.0
  %2751 = vmatprep.mubr.f32.mxu0 0.0
  %2752 = vmatmul.mubr.f32.gmra.mxu0 %v2682
  %v2753 = vpop.f32.mrf.mxu0
  %v2754 = vadd.f32 0.0, %v2753
  %v2755 = vpop.f32.mrf.mxu0
  %2756 = vmatprep.mubr.f32.mxu0 0.0
  %2757 = vmatmul.mubr.f32.gmra.mxu0 %v2685
  %v2758 = vpop.f32.mrf.mxu0
  %v2759 = vadd.f32 0.0, %v2758
  %v2760 = vpop.f32.mrf.mxu0
  %2761 = vdwg.mxu0
  %v2762 = vadd.f32 %v2673, %v2754
  %v2763 = vadd.f32 %v2674, %v2759
  %2764 = vrot.lane.b32.xlu0 %v97, 9
  %v2765 = vpop.permute.xlu0 %2764
  %v2767 = vmul.f32 %v2010, %v2765
  %s2768 = scalar_lea.vmem %s5, 128
  %v2769 = vld [vmem:[%s2768] sm:$0xff]
  %v2770 = vld [vmem:[%s2768 + $0x8] sm:$0xff]
  %2772 = vrot.lane.b32.xlu0 %v2767, 119
  %v2773 = vpop.permute.xlu0 %2772
  %v2776 = vsel %vm1052, %v2769, 0
  %v2779 = vsel %vm1052, %v2770, 0
  %2781 = vmatprep.subr.mxu0 0.0
  %2782 = vmatpush1.msra.mxu0 0.0
  %2783 = vmatprep.subr.mxu0 0.0
  %2784 = vmatpush1.msra.mxu0 0.0
  %2785 = vmatprep.subr.mxu0 0.0
  %2786 = vmatpush1.msra.mxu0 0.0
  %2787 = vmatprep.subr.mxu0 0.0
  %2788 = vmatpush1.msra.mxu0 0.0
  %2789 = vmatprep.subr.mxu0 0.0
  %2790 = vmatpush1.msra.mxu0 0.0
  %2791 = vmatprep.subr.mxu0 0.0
  %2792 = vmatpush1.msra.mxu0 0.0
  %2793 = vmatprep.subr.mxu0 0.0
  %2794 = vmatpush1.msra.mxu0 0.0
  %2795 = vmatprep.subr.mxu0 0.0
  %2796 = vmatpush1.msra.mxu0 0.0
  %2797 = vmatprep.subr.mxu0 0.0
  %2798 = vmatpush1.msra.mxu0 0.0
  %2799 = vmatprep.subr.mxu0 0.0
  %2800 = vmatpush1.msra.mxu0 0.0
  %2801 = vmatprep.subr.mxu0 0.0
  %2802 = vmatpush1.msra.mxu0 0.0
  %2803 = vmatprep.subr.mxu0 0.0
  %2804 = vmatpush1.msra.mxu0 0.0
  %2805 = vmatprep.subr.mxu0 0.0
  %2806 = vmatpush1.msra.mxu0 0.0
  %2807 = vmatprep.subr.mxu0 0.0
  %2808 = vmatpush1.msra.mxu0 0.0
  %2809 = vmatprep.subr.mxu0 0.0
  %2810 = vmatpush1.msra.mxu0 0.0
  %2811 = vmatprep.subr.mxu0 0.0
  %2812 = vmatpush1.msra.mxu0 %v2773
  %2813 = vmatprep.subr.mxu0 0.0
  %2814 = vmatpush2.msra.mxu0 0.0
  %2815 = vmatprep.subr.mxu0 0.0
  %2816 = vmatpush2.msra.mxu0 0.0
  %2817 = vmatprep.subr.mxu0 0.0
  %2818 = vmatpush2.msra.mxu0 0.0
  %2819 = vmatprep.subr.mxu0 0.0
  %2820 = vmatpush2.msra.mxu0 0.0
  %2821 = vmatprep.subr.mxu0 0.0
  %2822 = vmatpush2.msra.mxu0 0.0
  %2823 = vmatprep.subr.mxu0 0.0
  %2824 = vmatpush2.msra.mxu0 0.0
  %2825 = vmatprep.subr.mxu0 0.0
  %2826 = vmatpush2.msra.mxu0 0.0
  %2827 = vmatprep.subr.mxu0 0.0
  %2828 = vmatpush2.msra.mxu0 0.0
  %2829 = vmatprep.subr.mxu0 0.0
  %2830 = vmatpush2.msra.mxu0 0.0
  %2831 = vmatprep.subr.mxu0 0.0
  %2832 = vmatpush2.msra.mxu0 0.0
  %2833 = vmatprep.subr.mxu0 0.0
  %2834 = vmatpush2.msra.mxu0 0.0
  %2835 = vmatprep.subr.mxu0 0.0
  %2836 = vmatpush2.msra.mxu0 0.0
  %2837 = vmatprep.subr.mxu0 0.0
  %2838 = vmatpush2.msra.mxu0 0.0
  %2839 = vmatprep.subr.mxu0 0.0
  %2840 = vmatpush2.msra.mxu0 0.0
  %2841 = vmatprep.subr.mxu0 0.0
  %2842 = vmatpush2.msra.mxu0 0.0
  %2843 = vmatprep.subr.mxu0 0.0
  %2844 = vmatpush2.msra.mxu0 0.0
  %2845 = vmatprep.mubr.f32.mxu0 0.0
  %2846 = vmatmul.mubr.f32.gmra.mxu0 %v2776
  %v2847 = vpop.f32.mrf.mxu0
  %v2848 = vadd.f32 0.0, %v2847
  %v2849 = vpop.f32.mrf.mxu0
  %2850 = vmatprep.mubr.f32.mxu0 0.0
  %2851 = vmatmul.mubr.f32.gmra.mxu0 %v2779
  %v2852 = vpop.f32.mrf.mxu0
  %v2853 = vadd.f32 0.0, %v2852
  %v2854 = vpop.f32.mrf.mxu0
  %2855 = vdwg.mxu0
  %v2856 = vadd.f32 %v2762, %v2848
  %v2857 = vadd.f32 %v2763, %v2853
  %v2858 = vld [vmem:[%s6] sm:$0xff]
  %v2859 = vld [vmem:[%s6 + $0x8] sm:$0xff]
  %2861 = vset.pattern.permute.xlu0 0
  %2862 = vperm.xlu0 %2861, %v2858
  %v2863 = vpop.permute.xlu0 %2862
  %2866 = vset.pattern.permute.xlu0 0
  %2867 = vperm.xlu0 %2866, %v2859
  %v2868 = vpop.permute.xlu0 %2867
  %v2870 = vadd.f32 %v2856, %v2863
  %v2871 = vadd.f32 %v2857, %v2868
  %v2872 = vmax.f32 %v2870, 0.0
  %v2873 = vmax.f32 %v2871, 0.0
  %2874 = vst.msk [vmem:[#allocation3 + $0x8] sm:$0xff] %vm2007, %v2872
  %2875 = vst.msk [vmem:[#allocation3 + $0x18] sm:$0xff] %vm2007, %v2873
  %v2876 = vld [vmem:[#allocation3] sm:$0xff]
  %v2877 = vld [vmem:[#allocation3 + $0x8] sm:$0xff]
  %v2878 = vld [vmem:[#allocation3 + $0x10] sm:$0xff]
  %v2879 = vld [vmem:[#allocation3 + $0x18] sm:$0xff]
  %v2880 = vmul.f32 %v2876, %v2013
  %v2881 = vmul.f32 %v2877, %v2013
  %v2882 = vmul.f32 %v2878, %v2013
  %v2883 = vmul.f32 %v2879, %v2013
  %v2884 = vld [vmem:[%s7] sm:$0xff]
  %v2885 = vld [vmem:[%s7 + $0x8] sm:$0xff]
  %s2886 = scalar_lea.vmem %s7, 16
  %v2887 = vld [vmem:[%s2886] sm:$0xff]
  %v2888 = vld [vmem:[%s2886 + $0x8] sm:$0xff]
  %2893 = vrot.lane.b32.xlu0 %v2876, 8
  %v2894 = vpop.permute.xlu0 %2893
  %2895 = vrot.lane.b32.xlu0 %v2877, 8
  %v2896 = vpop.permute.xlu0 %2895
  %2897 = vrot.lane.b32.xlu0 %v2878, 8
  %v2898 = vpop.permute.xlu0 %2897
  %2899 = vrot.lane.b32.xlu0 %v2879, 8
  %v2900 = vpop.permute.xlu0 %2899
  %v2901 = vsel %vm1052, %v2894, %v2896
  %v2902 = vsel %vm1052, %v2898, %v2900
  %v2906 = vsel %vm141, %v2887, 0
  %v2909 = vsel %vm141, %v2888, 0
  %2911 = vmatprep.subr.mxu0 0.0
  %2912 = vmatpush1.msra.mxu0 0.0
  %2913 = vmatprep.subr.mxu0 0.0
  %2914 = vmatpush1.msra.mxu0 0.0
  %2915 = vmatprep.subr.mxu0 0.0
  %2916 = vmatpush1.msra.mxu0 0.0
  %2917 = vmatprep.subr.mxu0 0.0
  %2918 = vmatpush1.msra.mxu0 0.0
  %2919 = vmatprep.subr.mxu0 0.0
  %2920 = vmatpush1.msra.mxu0 0.0
  %2921 = vmatprep.subr.mxu0 0.0
  %2922 = vmatpush1.msra.mxu0 0.0
  %2923 = vmatprep.subr.mxu0 0.0
  %2924 = vmatpush1.msra.mxu0 0.0
  %2925 = vmatprep.subr.mxu0 0.0
  %2926 = vmatpush1.msra.mxu0 0.0
  %2927 = vmatprep.subr.mxu0 0.0
  %2928 = vmatpush1.msra.mxu0 0.0
  %2929 = vmatprep.subr.mxu0 0.0
  %2930 = vmatpush1.msra.mxu0 0.0
  %2931 = vmatprep.subr.mxu0 0.0
  %2932 = vmatpush1.msra.mxu0 0.0
  %2933 = vmatprep.subr.mxu0 0.0
  %2934 = vmatpush1.msra.mxu0 0.0
  %2935 = vmatprep.subr.mxu0 0.0
  %2936 = vmatpush1.msra.mxu0 0.0
  %2937 = vmatprep.subr.mxu0 0.0
  %2938 = vmatpush1.msra.mxu0 0.0
  %2939 = vmatprep.subr.mxu0 0.0
  %2940 = vmatpush1.msra.mxu0 %v2902
  %2941 = vmatprep.subr.mxu0 0.0
  %2942 = vmatpush1.msra.mxu0 %v2901
  %2943 = vmatprep.subr.mxu0 0.0
  %2944 = vmatpush2.msra.mxu0 0.0
  %2945 = vmatprep.subr.mxu0 0.0
  %2946 = vmatpush2.msra.mxu0 0.0
  %2947 = vmatprep.subr.mxu0 0.0
  %2948 = vmatpush2.msra.mxu0 0.0
  %2949 = vmatprep.subr.mxu0 0.0
  %2950 = vmatpush2.msra.mxu0 0.0
  %2951 = vmatprep.subr.mxu0 0.0
  %2952 = vmatpush2.msra.mxu0 0.0
  %2953 = vmatprep.subr.mxu0 0.0
  %2954 = vmatpush2.msra.mxu0 0.0
  %2955 = vmatprep.subr.mxu0 0.0
  %2956 = vmatpush2.msra.mxu0 0.0
  %2957 = vmatprep.subr.mxu0 0.0
  %2958 = vmatpush2.msra.mxu0 0.0
  %2959 = vmatprep.subr.mxu0 0.0
  %2960 = vmatpush2.msra.mxu0 0.0
  %2961 = vmatprep.subr.mxu0 0.0
  %2962 = vmatpush2.msra.mxu0 0.0
  %2963 = vmatprep.subr.mxu0 0.0
  %2964 = vmatpush2.msra.mxu0 0.0
  %2965 = vmatprep.subr.mxu0 0.0
  %2966 = vmatpush2.msra.mxu0 0.0
  %2967 = vmatprep.subr.mxu0 0.0
  %2968 = vmatpush2.msra.mxu0 0.0
  %2969 = vmatprep.subr.mxu0 0.0
  %2970 = vmatpush2.msra.mxu0 0.0
  %2971 = vmatprep.subr.mxu0 0.0
  %2972 = vmatpush2.msra.mxu0 0.0
  %2973 = vmatprep.subr.mxu0 0.0
  %2974 = vmatpush2.msra.mxu0 0.0
  %2975 = vmatprep.mubr.f32.mxu0 0.0
  %2976 = vmatmul.mubr.f32.gmra.mxu0 %v2906
  %v2977 = vpop.f32.mrf.mxu0
  %v2978 = vadd.f32 0.0, %v2977
  %v2979 = vpop.f32.mrf.mxu0
  %2980 = vmatprep.mubr.f32.mxu0 0.0
  %2981 = vmatmul.mubr.f32.gmra.mxu0 %v2909
  %v2982 = vpop.f32.mrf.mxu0
  %v2983 = vadd.f32 0.0, %v2982
  %v2984 = vpop.f32.mrf.mxu0
  %2985 = vdwg.mxu0
  %2990 = vrot.lane.b32.xlu0 %v2880, 9
  %v2991 = vpop.permute.xlu0 %2990
  %2992 = vrot.lane.b32.xlu0 %v2881, 9
  %v2993 = vpop.permute.xlu0 %2992
  %2994 = vrot.lane.b32.xlu0 %v2882, 9
  %v2995 = vpop.permute.xlu0 %2994
  %2996 = vrot.lane.b32.xlu0 %v2883, 9
  %v2997 = vpop.permute.xlu0 %2996
  %v2998 = vsel %vm2117, %v2991, %v2993
  %v2999 = vsel %vm2117, %v2995, %v2997
  %v3003 = vsel %vm141, %v2884, 0
  %v3006 = vsel %vm141, %v2885, 0
  %3008 = vmatprep.subr.mxu0 0.0
  %3009 = vmatpush1.msra.mxu0 0.0
  %3010 = vmatprep.subr.mxu0 0.0
  %3011 = vmatpush1.msra.mxu0 0.0
  %3012 = vmatprep.subr.mxu0 0.0
  %3013 = vmatpush1.msra.mxu0 0.0
  %3014 = vmatprep.subr.mxu0 0.0
  %3015 = vmatpush1.msra.mxu0 0.0
  %3016 = vmatprep.subr.mxu0 0.0
  %3017 = vmatpush1.msra.mxu0 0.0
  %3018 = vmatprep.subr.mxu0 0.0
  %3019 = vmatpush1.msra.mxu0 0.0
  %3020 = vmatprep.subr.mxu0 0.0
  %3021 = vmatpush1.msra.mxu0 0.0
  %3022 = vmatprep.subr.mxu0 0.0
  %3023 = vmatpush1.msra.mxu0 0.0
  %3024 = vmatprep.subr.mxu0 0.0
  %3025 = vmatpush1.msra.mxu0 0.0
  %3026 = vmatprep.subr.mxu0 0.0
  %3027 = vmatpush1.msra.mxu0 0.0
  %3028 = vmatprep.subr.mxu0 0.0
  %3029 = vmatpush1.msra.mxu0 0.0
  %3030 = vmatprep.subr.mxu0 0.0
  %3031 = vmatpush1.msra.mxu0 0.0
  %3032 = vmatprep.subr.mxu0 0.0
  %3033 = vmatpush1.msra.mxu0 0.0
  %3034 = vmatprep.subr.mxu0 0.0
  %3035 = vmatpush1.msra.mxu0 0.0
  %3036 = vmatprep.subr.mxu0 0.0
  %3037 = vmatpush1.msra.mxu0 %v2999
  %3038 = vmatprep.subr.mxu0 0.0
  %3039 = vmatpush1.msra.mxu0 %v2998
  %3040 = vmatprep.subr.mxu0 0.0
  %3041 = vmatpush2.msra.mxu0 0.0
  %3042 = vmatprep.subr.mxu0 0.0
  %3043 = vmatpush2.msra.mxu0 0.0
  %3044 = vmatprep.subr.mxu0 0.0
  %3045 = vmatpush2.msra.mxu0 0.0
  %3046 = vmatprep.subr.mxu0 0.0
  %3047 = vmatpush2.msra.mxu0 0.0
  %3048 = vmatprep.subr.mxu0 0.0
  %3049 = vmatpush2.msra.mxu0 0.0
  %3050 = vmatprep.subr.mxu0 0.0
  %3051 = vmatpush2.msra.mxu0 0.0
  %3052 = vmatprep.subr.mxu0 0.0
  %3053 = vmatpush2.msra.mxu0 0.0
  %3054 = vmatprep.subr.mxu0 0.0
  %3055 = vmatpush2.msra.mxu0 0.0
  %3056 = vmatprep.subr.mxu0 0.0
  %3057 = vmatpush2.msra.mxu0 0.0
  %3058 = vmatprep.subr.mxu0 0.0
  %3059 = vmatpush2.msra.mxu0 0.0
  %3060 = vmatprep.subr.mxu0 0.0
  %3061 = vmatpush2.msra.mxu0 0.0
  %3062 = vmatprep.subr.mxu0 0.0
  %3063 = vmatpush2.msra.mxu0 0.0
  %3064 = vmatprep.subr.mxu0 0.0
  %3065 = vmatpush2.msra.mxu0 0.0
  %3066 = vmatprep.subr.mxu0 0.0
  %3067 = vmatpush2.msra.mxu0 0.0
  %3068 = vmatprep.subr.mxu0 0.0
  %3069 = vmatpush2.msra.mxu0 0.0
  %3070 = vmatprep.subr.mxu0 0.0
  %3071 = vmatpush2.msra.mxu0 0.0
  %3072 = vmatprep.mubr.f32.mxu0 0.0
  %3073 = vmatmul.mubr.f32.gmra.mxu0 %v3003
  %v3074 = vpop.f32.mrf.mxu0
  %v3075 = vadd.f32 %v2978, %v3074
  %v3076 = vpop.f32.mrf.mxu0
  %3077 = vmatprep.mubr.f32.mxu0 0.0
  %3078 = vmatmul.mubr.f32.gmra.mxu0 %v3006
  %v3079 = vpop.f32.mrf.mxu0
  %v3080 = vadd.f32 %v2983, %v3079
  %v3081 = vpop.f32.mrf.mxu0
  %3082 = vdwg.mxu0
  %v3083 = vmul.f32 %v2876, %v2203
  %v3084 = vmul.f32 %v2877, %v2203
  %v3085 = vmul.f32 %v2878, %v2203
  %v3086 = vmul.f32 %v2879, %v2203
  %s3087 = scalar_lea.vmem %s7, 32
  %v3088 = vld [vmem:[%s3087] sm:$0xff]
  %v3089 = vld [vmem:[%s3087 + $0x8] sm:$0xff]
  %3094 = vrot.lane.b32.xlu0 %v3083, 7
  %v3095 = vpop.permute.xlu0 %3094
  %3096 = vrot.lane.b32.xlu0 %v3084, 7
  %v3097 = vpop.permute.xlu0 %3096
  %3098 = vrot.lane.b32.xlu0 %v3085, 7
  %v3099 = vpop.permute.xlu0 %3098
  %3100 = vrot.lane.b32.xlu0 %v3086, 7
  %v3101 = vpop.permute.xlu0 %3100
  %v3102 = vsel %vm2216, %v3095, %v3097
  %v3103 = vsel %vm2216, %v3099, %v3101
  %v3107 = vsel %vm141, %v3088, 0
  %v3110 = vsel %vm141, %v3089, 0
  %3112 = vmatprep.subr.mxu0 0.0
  %3113 = vmatpush1.msra.mxu0 0.0
  %3114 = vmatprep.subr.mxu0 0.0
  %3115 = vmatpush1.msra.mxu0 0.0
  %3116 = vmatprep.subr.mxu0 0.0
  %3117 = vmatpush1.msra.mxu0 0.0
  %3118 = vmatprep.subr.mxu0 0.0
  %3119 = vmatpush1.msra.mxu0 0.0
  %3120 = vmatprep.subr.mxu0 0.0
  %3121 = vmatpush1.msra.mxu0 0.0
  %3122 = vmatprep.subr.mxu0 0.0
  %3123 = vmatpush1.msra.mxu0 0.0
  %3124 = vmatprep.subr.mxu0 0.0
  %3125 = vmatpush1.msra.mxu0 0.0
  %3126 = vmatprep.subr.mxu0 0.0
  %3127 = vmatpush1.msra.mxu0 0.0
  %3128 = vmatprep.subr.mxu0 0.0
  %3129 = vmatpush1.msra.mxu0 0.0
  %3130 = vmatprep.subr.mxu0 0.0
  %3131 = vmatpush1.msra.mxu0 0.0
  %3132 = vmatprep.subr.mxu0 0.0
  %3133 = vmatpush1.msra.mxu0 0.0
  %3134 = vmatprep.subr.mxu0 0.0
  %3135 = vmatpush1.msra.mxu0 0.0
  %3136 = vmatprep.subr.mxu0 0.0
  %3137 = vmatpush1.msra.mxu0 0.0
  %3138 = vmatprep.subr.mxu0 0.0
  %3139 = vmatpush1.msra.mxu0 0.0
  %3140 = vmatprep.subr.mxu0 0.0
  %3141 = vmatpush1.msra.mxu0 %v3103
  %3142 = vmatprep.subr.mxu0 0.0
  %3143 = vmatpush1.msra.mxu0 %v3102
  %3144 = vmatprep.subr.mxu0 0.0
  %3145 = vmatpush2.msra.mxu0 0.0
  %3146 = vmatprep.subr.mxu0 0.0
  %3147 = vmatpush2.msra.mxu0 0.0
  %3148 = vmatprep.subr.mxu0 0.0
  %3149 = vmatpush2.msra.mxu0 0.0
  %3150 = vmatprep.subr.mxu0 0.0
  %3151 = vmatpush2.msra.mxu0 0.0
  %3152 = vmatprep.subr.mxu0 0.0
  %3153 = vmatpush2.msra.mxu0 0.0
  %3154 = vmatprep.subr.mxu0 0.0
  %3155 = vmatpush2.msra.mxu0 0.0
  %3156 = vmatprep.subr.mxu0 0.0
  %3157 = vmatpush2.msra.mxu0 0.0
  %3158 = vmatprep.subr.mxu0 0.0
  %3159 = vmatpush2.msra.mxu0 0.0
  %3160 = vmatprep.subr.mxu0 0.0
  %3161 = vmatpush2.msra.mxu0 0.0
  %3162 = vmatprep.subr.mxu0 0.0
  %3163 = vmatpush2.msra.mxu0 0.0
  %3164 = vmatprep.subr.mxu0 0.0
  %3165 = vmatpush2.msra.mxu0 0.0
  %3166 = vmatprep.subr.mxu0 0.0
  %3167 = vmatpush2.msra.mxu0 0.0
  %3168 = vmatprep.subr.mxu0 0.0
  %3169 = vmatpush2.msra.mxu0 0.0
  %3170 = vmatprep.subr.mxu0 0.0
  %3171 = vmatpush2.msra.mxu0 0.0
  %3172 = vmatprep.subr.mxu0 0.0
  %3173 = vmatpush2.msra.mxu0 0.0
  %3174 = vmatprep.subr.mxu0 0.0
  %3175 = vmatpush2.msra.mxu0 0.0
  %3176 = vmatprep.mubr.f32.mxu0 0.0
  %3177 = vmatmul.mubr.f32.gmra.mxu0 %v3107
  %v3178 = vpop.f32.mrf.mxu0
  %v3179 = vadd.f32 0.0, %v3178
  %v3180 = vpop.f32.mrf.mxu0
  %3181 = vmatprep.mubr.f32.mxu0 0.0
  %3182 = vmatmul.mubr.f32.gmra.mxu0 %v3110
  %v3183 = vpop.f32.mrf.mxu0
  %v3184 = vadd.f32 0.0, %v3183
  %v3185 = vpop.f32.mrf.mxu0
  %3186 = vdwg.mxu0
  %v3187 = vadd.f32 %v3075, %v3179
  %v3188 = vadd.f32 %v3080, %v3184
  %v3189 = vmul.f32 %v2876, %v2303
  %v3190 = vmul.f32 %v2877, %v2303
  %v3191 = vmul.f32 %v2878, %v2303
  %v3192 = vmul.f32 %v2879, %v2303
  %s3193 = scalar_lea.vmem %s7, 48
  %v3194 = vld [vmem:[%s3193] sm:$0xff]
  %v3195 = vld [vmem:[%s3193 + $0x8] sm:$0xff]
  %3200 = vrot.lane.b32.xlu0 %v3189, 1
  %v3201 = vpop.permute.xlu0 %3200
  %3202 = vrot.lane.b32.xlu0 %v3190, 1
  %v3203 = vpop.permute.xlu0 %3202
  %3204 = vrot.lane.b32.xlu0 %v3191, 1
  %v3205 = vpop.permute.xlu0 %3204
  %3206 = vrot.lane.b32.xlu0 %v3192, 1
  %v3207 = vpop.permute.xlu0 %3206
  %v3208 = vsel %vm444, %v3201, %v3203
  %v3209 = vsel %vm444, %v3205, %v3207
  %v3213 = vsel %vm141, %v3194, 0
  %v3216 = vsel %vm141, %v3195, 0
  %3218 = vmatprep.subr.mxu0 0.0
  %3219 = vmatpush1.msra.mxu0 0.0
  %3220 = vmatprep.subr.mxu0 0.0
  %3221 = vmatpush1.msra.mxu0 0.0
  %3222 = vmatprep.subr.mxu0 0.0
  %3223 = vmatpush1.msra.mxu0 0.0
  %3224 = vmatprep.subr.mxu0 0.0
  %3225 = vmatpush1.msra.mxu0 0.0
  %3226 = vmatprep.subr.mxu0 0.0
  %3227 = vmatpush1.msra.mxu0 0.0
  %3228 = vmatprep.subr.mxu0 0.0
  %3229 = vmatpush1.msra.mxu0 0.0
  %3230 = vmatprep.subr.mxu0 0.0
  %3231 = vmatpush1.msra.mxu0 0.0
  %3232 = vmatprep.subr.mxu0 0.0
  %3233 = vmatpush1.msra.mxu0 0.0
  %3234 = vmatprep.subr.mxu0 0.0
  %3235 = vmatpush1.msra.mxu0 0.0
  %3236 = vmatprep.subr.mxu0 0.0
  %3237 = vmatpush1.msra.mxu0 0.0
  %3238 = vmatprep.subr.mxu0 0.0
  %3239 = vmatpush1.msra.mxu0 0.0
  %3240 = vmatprep.subr.mxu0 0.0
  %3241 = vmatpush1.msra.mxu0 0.0
  %3242 = vmatprep.subr.mxu0 0.0
  %3243 = vmatpush1.msra.mxu0 0.0
  %3244 = vmatprep.subr.mxu0 0.0
  %3245 = vmatpush1.msra.mxu0 0.0
  %3246 = vmatprep.subr.mxu0 0.0
  %3247 = vmatpush1.msra.mxu0 %v3209
  %3248 = vmatprep.subr.mxu0 0.0
  %3249 = vmatpush1.msra.mxu0 %v3208
  %3250 = vmatprep.subr.mxu0 0.0
  %3251 = vmatpush2.msra.mxu0 0.0
  %3252 = vmatprep.subr.mxu0 0.0
  %3253 = vmatpush2.msra.mxu0 0.0
  %3254 = vmatprep.subr.mxu0 0.0
  %3255 = vmatpush2.msra.mxu0 0.0
  %3256 = vmatprep.subr.mxu0 0.0
  %3257 = vmatpush2.msra.mxu0 0.0
  %3258 = vmatprep.subr.mxu0 0.0
  %3259 = vmatpush2.msra.mxu0 0.0
  %3260 = vmatprep.subr.mxu0 0.0
  %3261 = vmatpush2.msra.mxu0 0.0
  %3262 = vmatprep.subr.mxu0 0.0
  %3263 = vmatpush2.msra.mxu0 0.0
  %3264 = vmatprep.subr.mxu0 0.0
  %3265 = vmatpush2.msra.mxu0 0.0
  %3266 = vmatprep.subr.mxu0 0.0
  %3267 = vmatpush2.msra.mxu0 0.0
  %3268 = vmatprep.subr.mxu0 0.0
  %3269 = vmatpush2.msra.mxu0 0.0
  %3270 = vmatprep.subr.mxu0 0.0
  %3271 = vmatpush2.msra.mxu0 0.0
  %3272 = vmatprep.subr.mxu0 0.0
  %3273 = vmatpush2.msra.mxu0 0.0
  %3274 = vmatprep.subr.mxu0 0.0
  %3275 = vmatpush2.msra.mxu0 0.0
  %3276 = vmatprep.subr.mxu0 0.0
  %3277 = vmatpush2.msra.mxu0 0.0
  %3278 = vmatprep.subr.mxu0 0.0
  %3279 = vmatpush2.msra.mxu0 0.0
  %3280 = vmatprep.subr.mxu0 0.0
  %3281 = vmatpush2.msra.mxu0 0.0
  %3282 = vmatprep.mubr.f32.mxu0 0.0
  %3283 = vmatmul.mubr.f32.gmra.mxu0 %v3213
  %v3284 = vpop.f32.mrf.mxu0
  %v3285 = vadd.f32 0.0, %v3284
  %v3286 = vpop.f32.mrf.mxu0
  %3287 = vmatprep.mubr.f32.mxu0 0.0
  %3288 = vmatmul.mubr.f32.gmra.mxu0 %v3216
  %v3289 = vpop.f32.mrf.mxu0
  %v3290 = vadd.f32 0.0, %v3289
  %v3291 = vpop.f32.mrf.mxu0
  %3292 = vdwg.mxu0
  %v3293 = vadd.f32 %v3187, %v3285
  %v3294 = vadd.f32 %v3188, %v3290
  %s3295 = scalar_lea.vmem %s7, 64
  %v3296 = vld [vmem:[%s3295] sm:$0xff]
  %v3297 = vld [vmem:[%s3295 + $0x8] sm:$0xff]
  %v3299 = vsel %vm141, %v3296, 0
  %v3302 = vsel %vm141, %v3297, 0
  %3304 = vmatprep.subr.mxu0 0.0
  %3305 = vmatpush1.msra.mxu0 0.0
  %3306 = vmatprep.subr.mxu0 0.0
  %3307 = vmatpush1.msra.mxu0 0.0
  %3308 = vmatprep.subr.mxu0 0.0
  %3309 = vmatpush1.msra.mxu0 0.0
  %3310 = vmatprep.subr.mxu0 0.0
  %3311 = vmatpush1.msra.mxu0 0.0
  %3312 = vmatprep.subr.mxu0 0.0
  %3313 = vmatpush1.msra.mxu0 0.0
  %3314 = vmatprep.subr.mxu0 0.0
  %3315 = vmatpush1.msra.mxu0 0.0
  %3316 = vmatprep.subr.mxu0 0.0
  %3317 = vmatpush1.msra.mxu0 0.0
  %3318 = vmatprep.subr.mxu0 0.0
  %3319 = vmatpush1.msra.mxu0 0.0
  %3320 = vmatprep.subr.mxu0 0.0
  %3321 = vmatpush1.msra.mxu0 0.0
  %3322 = vmatprep.subr.mxu0 0.0
  %3323 = vmatpush1.msra.mxu0 0.0
  %3324 = vmatprep.subr.mxu0 0.0
  %3325 = vmatpush1.msra.mxu0 0.0
  %3326 = vmatprep.subr.mxu0 0.0
  %3327 = vmatpush1.msra.mxu0 0.0
  %3328 = vmatprep.subr.mxu0 0.0
  %3329 = vmatpush1.msra.mxu0 0.0
  %3330 = vmatprep.subr.mxu0 0.0
  %3331 = vmatpush1.msra.mxu0 0.0
  %3332 = vmatprep.subr.mxu0 0.0
  %3333 = vmatpush1.msra.mxu0 %v2879
  %3334 = vmatprep.subr.mxu0 0.0
  %3335 = vmatpush1.msra.mxu0 %v2877
  %3336 = vmatprep.subr.mxu0 0.0
  %3337 = vmatpush2.msra.mxu0 0.0
  %3338 = vmatprep.subr.mxu0 0.0
  %3339 = vmatpush2.msra.mxu0 0.0
  %3340 = vmatprep.subr.mxu0 0.0
  %3341 = vmatpush2.msra.mxu0 0.0
  %3342 = vmatprep.subr.mxu0 0.0
  %3343 = vmatpush2.msra.mxu0 0.0
  %3344 = vmatprep.subr.mxu0 0.0
  %3345 = vmatpush2.msra.mxu0 0.0
  %3346 = vmatprep.subr.mxu0 0.0
  %3347 = vmatpush2.msra.mxu0 0.0
  %3348 = vmatprep.subr.mxu0 0.0
  %3349 = vmatpush2.msra.mxu0 0.0
  %3350 = vmatprep.subr.mxu0 0.0
  %3351 = vmatpush2.msra.mxu0 0.0
  %3352 = vmatprep.subr.mxu0 0.0
  %3353 = vmatpush2.msra.mxu0 0.0
  %3354 = vmatprep.subr.mxu0 0.0
  %3355 = vmatpush2.msra.mxu0 0.0
  %3356 = vmatprep.subr.mxu0 0.0
  %3357 = vmatpush2.msra.mxu0 0.0
  %3358 = vmatprep.subr.mxu0 0.0
  %3359 = vmatpush2.msra.mxu0 0.0
  %3360 = vmatprep.subr.mxu0 0.0
  %3361 = vmatpush2.msra.mxu0 0.0
  %3362 = vmatprep.subr.mxu0 0.0
  %3363 = vmatpush2.msra.mxu0 0.0
  %3364 = vmatprep.subr.mxu0 0.0
  %3365 = vmatpush2.msra.mxu0 0.0
  %3366 = vmatprep.subr.mxu0 0.0
  %3367 = vmatpush2.msra.mxu0 0.0
  %3368 = vmatprep.mubr.f32.mxu0 0.0
  %3369 = vmatmul.mubr.f32.gmra.mxu0 %v3299
  %v3370 = vpop.f32.mrf.mxu0
  %v3371 = vadd.f32 0.0, %v3370
  %v3372 = vpop.f32.mrf.mxu0
  %3373 = vmatprep.mubr.f32.mxu0 0.0
  %3374 = vmatmul.mubr.f32.gmra.mxu0 %v3302
  %v3375 = vpop.f32.mrf.mxu0
  %v3376 = vadd.f32 0.0, %v3375
  %v3377 = vpop.f32.mrf.mxu0
  %3378 = vdwg.mxu0
  %v3379 = vadd.f32 %v3293, %v3371
  %v3380 = vadd.f32 %v3294, %v3376
  %v3381 = vmul.f32 %v2877, %v2488
  %v3382 = vmul.f32 %v2879, %v2488
  %s3383 = scalar_lea.vmem %s7, 80
  %v3384 = vld [vmem:[%s3383] sm:$0xff]
  %v3385 = vld [vmem:[%s3383 + $0x8] sm:$0xff]
  %3388 = vrot.lane.b32.xlu0 %v3381, 127
  %v3389 = vpop.permute.xlu0 %3388
  %3390 = vrot.lane.b32.xlu0 %v3382, 127
  %v3391 = vpop.permute.xlu0 %3390
  %v3395 = vsel %vm141, %v3384, 0
  %v3398 = vsel %vm141, %v3385, 0
  %3400 = vmatprep.subr.mxu0 0.0
  %3401 = vmatpush1.msra.mxu0 0.0
  %3402 = vmatprep.subr.mxu0 0.0
  %3403 = vmatpush1.msra.mxu0 0.0
  %3404 = vmatprep.subr.mxu0 0.0
  %3405 = vmatpush1.msra.mxu0 0.0
  %3406 = vmatprep.subr.mxu0 0.0
  %3407 = vmatpush1.msra.mxu0 0.0
  %3408 = vmatprep.subr.mxu0 0.0
  %3409 = vmatpush1.msra.mxu0 0.0
  %3410 = vmatprep.subr.mxu0 0.0
  %3411 = vmatpush1.msra.mxu0 0.0
  %3412 = vmatprep.subr.mxu0 0.0
  %3413 = vmatpush1.msra.mxu0 0.0
  %3414 = vmatprep.subr.mxu0 0.0
  %3415 = vmatpush1.msra.mxu0 0.0
  %3416 = vmatprep.subr.mxu0 0.0
  %3417 = vmatpush1.msra.mxu0 0.0
  %3418 = vmatprep.subr.mxu0 0.0
  %3419 = vmatpush1.msra.mxu0 0.0
  %3420 = vmatprep.subr.mxu0 0.0
  %3421 = vmatpush1.msra.mxu0 0.0
  %3422 = vmatprep.subr.mxu0 0.0
  %3423 = vmatpush1.msra.mxu0 0.0
  %3424 = vmatprep.subr.mxu0 0.0
  %3425 = vmatpush1.msra.mxu0 0.0
  %3426 = vmatprep.subr.mxu0 0.0
  %3427 = vmatpush1.msra.mxu0 0.0
  %3428 = vmatprep.subr.mxu0 0.0
  %3429 = vmatpush1.msra.mxu0 %v3391
  %3430 = vmatprep.subr.mxu0 0.0
  %3431 = vmatpush1.msra.mxu0 %v3389
  %3432 = vmatprep.subr.mxu0 0.0
  %3433 = vmatpush2.msra.mxu0 0.0
  %3434 = vmatprep.subr.mxu0 0.0
  %3435 = vmatpush2.msra.mxu0 0.0
  %3436 = vmatprep.subr.mxu0 0.0
  %3437 = vmatpush2.msra.mxu0 0.0
  %3438 = vmatprep.subr.mxu0 0.0
  %3439 = vmatpush2.msra.mxu0 0.0
  %3440 = vmatprep.subr.mxu0 0.0
  %3441 = vmatpush2.msra.mxu0 0.0
  %3442 = vmatprep.subr.mxu0 0.0
  %3443 = vmatpush2.msra.mxu0 0.0
  %3444 = vmatprep.subr.mxu0 0.0
  %3445 = vmatpush2.msra.mxu0 0.0
  %3446 = vmatprep.subr.mxu0 0.0
  %3447 = vmatpush2.msra.mxu0 0.0
  %3448 = vmatprep.subr.mxu0 0.0
  %3449 = vmatpush2.msra.mxu0 0.0
  %3450 = vmatprep.subr.mxu0 0.0
  %3451 = vmatpush2.msra.mxu0 0.0
  %3452 = vmatprep.subr.mxu0 0.0
  %3453 = vmatpush2.msra.mxu0 0.0
  %3454 = vmatprep.subr.mxu0 0.0
  %3455 = vmatpush2.msra.mxu0 0.0
  %3456 = vmatprep.subr.mxu0 0.0
  %3457 = vmatpush2.msra.mxu0 0.0
  %3458 = vmatprep.subr.mxu0 0.0
  %3459 = vmatpush2.msra.mxu0 0.0
  %3460 = vmatprep.subr.mxu0 0.0
  %3461 = vmatpush2.msra.mxu0 0.0
  %3462 = vmatprep.subr.mxu0 0.0
  %3463 = vmatpush2.msra.mxu0 0.0
  %3464 = vmatprep.mubr.f32.mxu0 0.0
  %3465 = vmatmul.mubr.f32.gmra.mxu0 %v3395
  %v3466 = vpop.f32.mrf.mxu0
  %v3467 = vadd.f32 0.0, %v3466
  %v3468 = vpop.f32.mrf.mxu0
  %3469 = vmatprep.mubr.f32.mxu0 0.0
  %3470 = vmatmul.mubr.f32.gmra.mxu0 %v3398
  %v3471 = vpop.f32.mrf.mxu0
  %v3472 = vadd.f32 0.0, %v3471
  %v3473 = vpop.f32.mrf.mxu0
  %3474 = vdwg.mxu0
  %v3475 = vadd.f32 %v3379, %v3467
  %v3476 = vadd.f32 %v3380, %v3472
  %v3477 = vmul.f32 %v2877, %v2582
  %v3478 = vmul.f32 %v2879, %v2582
  %s3479 = scalar_lea.vmem %s7, 96
  %v3480 = vld [vmem:[%s3479] sm:$0xff]
  %v3481 = vld [vmem:[%s3479 + $0x8] sm:$0xff]
  %3484 = vrot.lane.b32.xlu0 %v3477, 121
  %v3485 = vpop.permute.xlu0 %3484
  %3486 = vrot.lane.b32.xlu0 %v3478, 121
  %v3487 = vpop.permute.xlu0 %3486
  %v3491 = vsel %vm141, %v3480, 0
  %v3494 = vsel %vm141, %v3481, 0
  %3496 = vmatprep.subr.mxu0 0.0
  %3497 = vmatpush1.msra.mxu0 0.0
  %3498 = vmatprep.subr.mxu0 0.0
  %3499 = vmatpush1.msra.mxu0 0.0
  %3500 = vmatprep.subr.mxu0 0.0
  %3501 = vmatpush1.msra.mxu0 0.0
  %3502 = vmatprep.subr.mxu0 0.0
  %3503 = vmatpush1.msra.mxu0 0.0
  %3504 = vmatprep.subr.mxu0 0.0
  %3505 = vmatpush1.msra.mxu0 0.0
  %3506 = vmatprep.subr.mxu0 0.0
  %3507 = vmatpush1.msra.mxu0 0.0
  %3508 = vmatprep.subr.mxu0 0.0
  %3509 = vmatpush1.msra.mxu0 0.0
  %3510 = vmatprep.subr.mxu0 0.0
  %3511 = vmatpush1.msra.mxu0 0.0
  %3512 = vmatprep.subr.mxu0 0.0
  %3513 = vmatpush1.msra.mxu0 0.0
  %3514 = vmatprep.subr.mxu0 0.0
  %3515 = vmatpush1.msra.mxu0 0.0
  %3516 = vmatprep.subr.mxu0 0.0
  %3517 = vmatpush1.msra.mxu0 0.0
  %3518 = vmatprep.subr.mxu0 0.0
  %3519 = vmatpush1.msra.mxu0 0.0
  %3520 = vmatprep.subr.mxu0 0.0
  %3521 = vmatpush1.msra.mxu0 0.0
  %3522 = vmatprep.subr.mxu0 0.0
  %3523 = vmatpush1.msra.mxu0 0.0
  %3524 = vmatprep.subr.mxu0 0.0
  %3525 = vmatpush1.msra.mxu0 %v3487
  %3526 = vmatprep.subr.mxu0 0.0
  %3527 = vmatpush1.msra.mxu0 %v3485
  %3528 = vmatprep.subr.mxu0 0.0
  %3529 = vmatpush2.msra.mxu0 0.0
  %3530 = vmatprep.subr.mxu0 0.0
  %3531 = vmatpush2.msra.mxu0 0.0
  %3532 = vmatprep.subr.mxu0 0.0
  %3533 = vmatpush2.msra.mxu0 0.0
  %3534 = vmatprep.subr.mxu0 0.0
  %3535 = vmatpush2.msra.mxu0 0.0
  %3536 = vmatprep.subr.mxu0 0.0
  %3537 = vmatpush2.msra.mxu0 0.0
  %3538 = vmatprep.subr.mxu0 0.0
  %3539 = vmatpush2.msra.mxu0 0.0
  %3540 = vmatprep.subr.mxu0 0.0
  %3541 = vmatpush2.msra.mxu0 0.0
  %3542 = vmatprep.subr.mxu0 0.0
  %3543 = vmatpush2.msra.mxu0 0.0
  %3544 = vmatprep.subr.mxu0 0.0
  %3545 = vmatpush2.msra.mxu0 0.0
  %3546 = vmatprep.subr.mxu0 0.0
  %3547 = vmatpush2.msra.mxu0 0.0
  %3548 = vmatprep.subr.mxu0 0.0
  %3549 = vmatpush2.msra.mxu0 0.0
  %3550 = vmatprep.subr.mxu0 0.0
  %3551 = vmatpush2.msra.mxu0 0.0
  %3552 = vmatprep.subr.mxu0 0.0
  %3553 = vmatpush2.msra.mxu0 0.0
  %3554 = vmatprep.subr.mxu0 0.0
  %3555 = vmatpush2.msra.mxu0 0.0
  %3556 = vmatprep.subr.mxu0 0.0
  %3557 = vmatpush2.msra.mxu0 0.0
  %3558 = vmatprep.subr.mxu0 0.0
  %3559 = vmatpush2.msra.mxu0 0.0
  %3560 = vmatprep.mubr.f32.mxu0 0.0
  %3561 = vmatmul.mubr.f32.gmra.mxu0 %v3491
  %v3562 = vpop.f32.mrf.mxu0
  %v3563 = vadd.f32 0.0, %v3562
  %v3564 = vpop.f32.mrf.mxu0
  %3565 = vmatprep.mubr.f32.mxu0 0.0
  %3566 = vmatmul.mubr.f32.gmra.mxu0 %v3494
  %v3567 = vpop.f32.mrf.mxu0
  %v3568 = vadd.f32 0.0, %v3567
  %v3569 = vpop.f32.mrf.mxu0
  %3570 = vdwg.mxu0
  %v3571 = vadd.f32 %v3475, %v3563
  %v3572 = vadd.f32 %v3476, %v3568
  %s3573 = scalar_lea.vmem %s7, 112
  %v3574 = vld [vmem:[%s3573] sm:$0xff]
  %v3575 = vld [vmem:[%s3573 + $0x8] sm:$0xff]
  %3576 = vrot.lane.b32.xlu0 %v2877, 120
  %v3577 = vpop.permute.xlu0 %3576
  %3578 = vrot.lane.b32.xlu0 %v2879, 120
  %v3579 = vpop.permute.xlu0 %3578
  %v3583 = vsel %vm141, %v3574, 0
  %v3586 = vsel %vm141, %v3575, 0
  %3588 = vmatprep.subr.mxu0 0.0
  %3589 = vmatpush1.msra.mxu0 0.0
  %3590 = vmatprep.subr.mxu0 0.0
  %3591 = vmatpush1.msra.mxu0 0.0
  %3592 = vmatprep.subr.mxu0 0.0
  %3593 = vmatpush1.msra.mxu0 0.0
  %3594 = vmatprep.subr.mxu0 0.0
  %3595 = vmatpush1.msra.mxu0 0.0
  %3596 = vmatprep.subr.mxu0 0.0
  %3597 = vmatpush1.msra.mxu0 0.0
  %3598 = vmatprep.subr.mxu0 0.0
  %3599 = vmatpush1.msra.mxu0 0.0
  %3600 = vmatprep.subr.mxu0 0.0
  %3601 = vmatpush1.msra.mxu0 0.0
  %3602 = vmatprep.subr.mxu0 0.0
  %3603 = vmatpush1.msra.mxu0 0.0
  %3604 = vmatprep.subr.mxu0 0.0
  %3605 = vmatpush1.msra.mxu0 0.0
  %3606 = vmatprep.subr.mxu0 0.0
  %3607 = vmatpush1.msra.mxu0 0.0
  %3608 = vmatprep.subr.mxu0 0.0
  %3609 = vmatpush1.msra.mxu0 0.0
  %3610 = vmatprep.subr.mxu0 0.0
  %3611 = vmatpush1.msra.mxu0 0.0
  %3612 = vmatprep.subr.mxu0 0.0
  %3613 = vmatpush1.msra.mxu0 0.0
  %3614 = vmatprep.subr.mxu0 0.0
  %3615 = vmatpush1.msra.mxu0 0.0
  %3616 = vmatprep.subr.mxu0 0.0
  %3617 = vmatpush1.msra.mxu0 %v3579
  %3618 = vmatprep.subr.mxu0 0.0
  %3619 = vmatpush1.msra.mxu0 %v3577
  %3620 = vmatprep.subr.mxu0 0.0
  %3621 = vmatpush2.msra.mxu0 0.0
  %3622 = vmatprep.subr.mxu0 0.0
  %3623 = vmatpush2.msra.mxu0 0.0
  %3624 = vmatprep.subr.mxu0 0.0
  %3625 = vmatpush2.msra.mxu0 0.0
  %3626 = vmatprep.subr.mxu0 0.0
  %3627 = vmatpush2.msra.mxu0 0.0
  %3628 = vmatprep.subr.mxu0 0.0
  %3629 = vmatpush2.msra.mxu0 0.0
  %3630 = vmatprep.subr.mxu0 0.0
  %3631 = vmatpush2.msra.mxu0 0.0
  %3632 = vmatprep.subr.mxu0 0.0
  %3633 = vmatpush2.msra.mxu0 0.0
  %3634 = vmatprep.subr.mxu0 0.0
  %3635 = vmatpush2.msra.mxu0 0.0
  %3636 = vmatprep.subr.mxu0 0.0
  %3637 = vmatpush2.msra.mxu0 0.0
  %3638 = vmatprep.subr.mxu0 0.0
  %3639 = vmatpush2.msra.mxu0 0.0
  %3640 = vmatprep.subr.mxu0 0.0
  %3641 = vmatpush2.msra.mxu0 0.0
  %3642 = vmatprep.subr.mxu0 0.0
  %3643 = vmatpush2.msra.mxu0 0.0
  %3644 = vmatprep.subr.mxu0 0.0
  %3645 = vmatpush2.msra.mxu0 0.0
  %3646 = vmatprep.subr.mxu0 0.0
  %3647 = vmatpush2.msra.mxu0 0.0
  %3648 = vmatprep.subr.mxu0 0.0
  %3649 = vmatpush2.msra.mxu0 0.0
  %3650 = vmatprep.subr.mxu0 0.0
  %3651 = vmatpush2.msra.mxu0 0.0
  %3652 = vmatprep.mubr.f32.mxu0 0.0
  %3653 = vmatmul.mubr.f32.gmra.mxu0 %v3583
  %v3654 = vpop.f32.mrf.mxu0
  %v3655 = vadd.f32 0.0, %v3654
  %v3656 = vpop.f32.mrf.mxu0
  %3657 = vmatprep.mubr.f32.mxu0 0.0
  %3658 = vmatmul.mubr.f32.gmra.mxu0 %v3586
  %v3659 = vpop.f32.mrf.mxu0
  %v3660 = vadd.f32 0.0, %v3659
  %v3661 = vpop.f32.mrf.mxu0
  %3662 = vdwg.mxu0
  %v3663 = vadd.f32 %v3571, %v3655
  %v3664 = vadd.f32 %v3572, %v3660
  %v3665 = vmul.f32 %v2877, %v2765
  %v3666 = vmul.f32 %v2879, %v2765
  %s3667 = scalar_lea.vmem %s7, 128
  %v3668 = vld [vmem:[%s3667] sm:$0xff]
  %v3669 = vld [vmem:[%s3667 + $0x8] sm:$0xff]
  %3672 = vrot.lane.b32.xlu0 %v3665, 119
  %v3673 = vpop.permute.xlu0 %3672
  %3674 = vrot.lane.b32.xlu0 %v3666, 119
  %v3675 = vpop.permute.xlu0 %3674
  %v3679 = vsel %vm141, %v3668, 0
  %v3682 = vsel %vm141, %v3669, 0
  %3684 = vmatprep.subr.mxu0 0.0
  %3685 = vmatpush1.msra.mxu0 0.0
  %3686 = vmatprep.subr.mxu0 0.0
  %3687 = vmatpush1.msra.mxu0 0.0
  %3688 = vmatprep.subr.mxu0 0.0
  %3689 = vmatpush1.msra.mxu0 0.0
  %3690 = vmatprep.subr.mxu0 0.0
  %3691 = vmatpush1.msra.mxu0 0.0
  %3692 = vmatprep.subr.mxu0 0.0
  %3693 = vmatpush1.msra.mxu0 0.0
  %3694 = vmatprep.subr.mxu0 0.0
  %3695 = vmatpush1.msra.mxu0 0.0
  %3696 = vmatprep.subr.mxu0 0.0
  %3697 = vmatpush1.msra.mxu0 0.0
  %3698 = vmatprep.subr.mxu0 0.0
  %3699 = vmatpush1.msra.mxu0 0.0
  %3700 = vmatprep.subr.mxu0 0.0
  %3701 = vmatpush1.msra.mxu0 0.0
  %3702 = vmatprep.subr.mxu0 0.0
  %3703 = vmatpush1.msra.mxu0 0.0
  %3704 = vmatprep.subr.mxu0 0.0
  %3705 = vmatpush1.msra.mxu0 0.0
  %3706 = vmatprep.subr.mxu0 0.0
  %3707 = vmatpush1.msra.mxu0 0.0
  %3708 = vmatprep.subr.mxu0 0.0
  %3709 = vmatpush1.msra.mxu0 0.0
  %3710 = vmatprep.subr.mxu0 0.0
  %3711 = vmatpush1.msra.mxu0 0.0
  %3712 = vmatprep.subr.mxu0 0.0
  %3713 = vmatpush1.msra.mxu0 %v3675
  %3714 = vmatprep.subr.mxu0 0.0
  %3715 = vmatpush1.msra.mxu0 %v3673
  %3716 = vmatprep.subr.mxu0 0.0
  %3717 = vmatpush2.msra.mxu0 0.0
  %3718 = vmatprep.subr.mxu0 0.0
  %3719 = vmatpush2.msra.mxu0 0.0
  %3720 = vmatprep.subr.mxu0 0.0
  %3721 = vmatpush2.msra.mxu0 0.0
  %3722 = vmatprep.subr.mxu0 0.0
  %3723 = vmatpush2.msra.mxu0 0.0
  %3724 = vmatprep.subr.mxu0 0.0
  %3725 = vmatpush2.msra.mxu0 0.0
  %3726 = vmatprep.subr.mxu0 0.0
  %3727 = vmatpush2.msra.mxu0 0.0
  %3728 = vmatprep.subr.mxu0 0.0
  %3729 = vmatpush2.msra.mxu0 0.0
  %3730 = vmatprep.subr.mxu0 0.0
  %3731 = vmatpush2.msra.mxu0 0.0
  %3732 = vmatprep.subr.mxu0 0.0
  %3733 = vmatpush2.msra.mxu0 0.0
  %3734 = vmatprep.subr.mxu0 0.0
  %3735 = vmatpush2.msra.mxu0 0.0
  %3736 = vmatprep.subr.mxu0 0.0
  %3737 = vmatpush2.msra.mxu0 0.0
  %3738 = vmatprep.subr.mxu0 0.0
  %3739 = vmatpush2.msra.mxu0 0.0
  %3740 = vmatprep.subr.mxu0 0.0
  %3741 = vmatpush2.msra.mxu0 0.0
  %3742 = vmatprep.subr.mxu0 0.0
  %3743 = vmatpush2.msra.mxu0 0.0
  %3744 = vmatprep.subr.mxu0 0.0
  %3745 = vmatpush2.msra.mxu0 0.0
  %3746 = vmatprep.subr.mxu0 0.0
  %3747 = vmatpush2.msra.mxu0 0.0
  %3748 = vmatprep.mubr.f32.mxu0 0.0
  %3749 = vmatmul.mubr.f32.gmra.mxu0 %v3679
  %v3750 = vpop.f32.mrf.mxu0
  %v3751 = vadd.f32 0.0, %v3750
  %v3752 = vpop.f32.mrf.mxu0
  %3753 = vmatprep.mubr.f32.mxu0 0.0
  %3754 = vmatmul.mubr.f32.gmra.mxu0 %v3682
  %v3755 = vpop.f32.mrf.mxu0
  %v3756 = vadd.f32 0.0, %v3755
  %v3757 = vpop.f32.mrf.mxu0
  %3758 = vdwg.mxu0
  %v3759 = vadd.f32 %v3663, %v3751
  %v3760 = vadd.f32 %v3664, %v3756
  %v3761 = vld [vmem:[%s8] sm:$0xff]
  %v3762 = vld [vmem:[%s8 + $0x8] sm:$0xff]
  %3764 = vset.pattern.permute.xlu0 0
  %3765 = vperm.xlu0 %3764, %v3761
  %v3766 = vpop.permute.xlu0 %3765
  %3769 = vset.pattern.permute.xlu0 0
  %3770 = vperm.xlu0 %3769, %v3762
  %v3771 = vpop.permute.xlu0 %3770
  %v3773 = vadd.f32 %v3759, %v3766
  %v3774 = vadd.f32 %v3760, %v3771
  %v3775 = vmax.f32 %v3773, 0.0
  %v3776 = vmax.f32 %v3774, 0.0
  %v3777 = vld [vmem:[%s16] sm:$0xff]
  %v3778 = vld [vmem:[%s16 + $0x8] sm:$0xff]
  %v3779 = vld [vmem:[%s16 + $0x10] sm:$0xff]
  %v3780 = vld [vmem:[%s16 + $0x18] sm:$0xff]
  %v3781 = vld [vmem:[%s16 + $0x20] sm:$0xff]
  %v3782 = vld [vmem:[%s16 + $0x28] sm:$0xff]
  %v3783 = vld [vmem:[%s16 + $0x30] sm:$0xff]
  %v3784 = vld [vmem:[%s16 + $0x38] sm:$0xff]
  %v3785 = vld [vmem:[%s16 + $0x40] sm:$0xff]
  %v3786 = vld [vmem:[%s16 + $0x48] sm:$0xff]
  %v3787 = vld [vmem:[%s16 + $0x50] sm:$0xff]
  %v3788 = vld [vmem:[%s16 + $0x58] sm:$0xff]
  %v3789 = vld [vmem:[%s16 + $0x60] sm:$0xff]
  %v3790 = vld [vmem:[%s16 + $0x68] sm:$0xff]
  %v3791 = vld [vmem:[%s16 + $0x70] sm:$0xff]
  %v3792 = vld [vmem:[%s16 + $0x78] sm:$0xff]
  %v3794 = vsel %vm2007, %v3775, 0
  %v3797 = vsel %vm2007, %v3776, 0
  %3799 = vmatprep.subr.mxu0 0.0
  %3800 = vmatpush1.msra.mxu0 0.0
  %3801 = vmatprep.subr.mxu0 0.0
  %3802 = vmatpush1.msra.mxu0 0.0
  %3803 = vmatprep.subr.mxu0 0.0
  %3804 = vmatpush1.msra.mxu0 0.0
  %3805 = vmatprep.subr.mxu0 0.0
  %3806 = vmatpush1.msra.mxu0 0.0
  %3807 = vmatprep.subr.mxu0 0.0
  %3808 = vmatpush1.msra.mxu0 0.0
  %3809 = vmatprep.subr.mxu0 0.0
  %3810 = vmatpush1.msra.mxu0 0.0
  %3811 = vmatprep.subr.mxu0 0.0
  %3812 = vmatpush1.msra.mxu0 0.0
  %3813 = vmatprep.subr.mxu0 0.0
  %3814 = vmatpush1.msra.mxu0 0.0
  %3815 = vmatprep.subr.mxu0 %v3792
  %3816 = vmatpush1.msra.mxu0 %v3791
  %3817 = vmatprep.subr.mxu0 %v3790
  %3818 = vmatpush1.msra.mxu0 %v3789
  %3819 = vmatprep.subr.mxu0 %v3788
  %3820 = vmatpush1.msra.mxu0 %v3787
  %3821 = vmatprep.subr.mxu0 %v3786
  %3822 = vmatpush1.msra.mxu0 %v3785
  %3823 = vmatprep.subr.mxu0 %v3784
  %3824 = vmatpush1.msra.mxu0 %v3783
  %3825 = vmatprep.subr.mxu0 %v3782
  %3826 = vmatpush1.msra.mxu0 %v3781
  %3827 = vmatprep.subr.mxu0 %v3780
  %3828 = vmatpush1.msra.mxu0 %v3779
  %3829 = vmatprep.subr.mxu0 %v3778
  %3830 = vmatpush1.msra.mxu0 %v3777
  %3831 = vmatprep.subr.mxu0 0.0
  %3832 = vmatpush2.msra.mxu0 0.0
  %3833 = vmatprep.subr.mxu0 0.0
  %3834 = vmatpush2.msra.mxu0 0.0
  %3835 = vmatprep.subr.mxu0 0.0
  %3836 = vmatpush2.msra.mxu0 0.0
  %3837 = vmatprep.subr.mxu0 0.0
  %3838 = vmatpush2.msra.mxu0 0.0
  %3839 = vmatprep.subr.mxu0 0.0
  %3840 = vmatpush2.msra.mxu0 0.0
  %3841 = vmatprep.subr.mxu0 0.0
  %3842 = vmatpush2.msra.mxu0 0.0
  %3843 = vmatprep.subr.mxu0 0.0
  %3844 = vmatpush2.msra.mxu0 0.0
  %3845 = vmatprep.subr.mxu0 0.0
  %3846 = vmatpush2.msra.mxu0 0.0
  %3847 = vmatprep.subr.mxu0 0.0
  %3848 = vmatpush2.msra.mxu0 0.0
  %3849 = vmatprep.subr.mxu0 0.0
  %3850 = vmatpush2.msra.mxu0 0.0
  %3851 = vmatprep.subr.mxu0 0.0
  %3852 = vmatpush2.msra.mxu0 0.0
  %3853 = vmatprep.subr.mxu0 0.0
  %3854 = vmatpush2.msra.mxu0 0.0
  %3855 = vmatprep.subr.mxu0 0.0
  %3856 = vmatpush2.msra.mxu0 0.0
  %3857 = vmatprep.subr.mxu0 0.0
  %3858 = vmatpush2.msra.mxu0 0.0
  %3859 = vmatprep.subr.mxu0 0.0
  %3860 = vmatpush2.msra.mxu0 0.0
  %3861 = vmatprep.subr.mxu0 0.0
  %3862 = vmatpush2.msra.mxu0 0.0
  %3863 = vmatprep.mubr.f32.mxu0 0.0
  %3864 = vmatmul.mubr.f32.gmra.mxu0 %v3794
  %v3865 = vpop.f32.mrf.mxu0
  %v3866 = vadd.f32 0.0, %v3865
  %v3867 = vpop.f32.mrf.mxu0
  %v3868 = vadd.f32 0.0, %v3867
  %3869 = vmatprep.mubr.f32.mxu0 0.0
  %3870 = vmatmul.mubr.f32.gmra.mxu0 %v3797
  %v3871 = vpop.f32.mrf.mxu0
  %v3872 = vadd.f32 0.0, %v3871
  %v3873 = vpop.f32.mrf.mxu0
  %v3874 = vadd.f32 0.0, %v3873
  %3875 = vdwg.mxu0
  %3876 = vst [vmem:[#allocation2 + $0x8] sm:$0xff] %v3866
  %3877 = vst [vmem:[#allocation2 + $0x10] sm:$0xff] %v3868
  %3878 = vst [vmem:[#allocation2 + $0x28] sm:$0xff] %v3872
  %3879 = vst [vmem:[#allocation2 + $0x30] sm:$0xff] %v3874
  %3880 = vst [vmem:[#allocation2 + $0x48] sm:$0xff] %v1864
  %3881 = vst [vmem:[#allocation2 + $0x50] sm:$0xff] %v1865
  %v3882 = vld [vmem:[#allocation2] sm:$0xff]
  %v3883 = vld [vmem:[#allocation2 + $0x8] sm:$0xff]
  %v3884 = vld [vmem:[#allocation2 + $0x10] sm:$0xff]
  %v3885 = vld [vmem:[#allocation2 + $0x20] sm:$0xff]
  %v3886 = vld [vmem:[#allocation2 + $0x28] sm:$0xff]
  %v3887 = vld [vmem:[#allocation2 + $0x30] sm:$0xff]
  %v3888 = vld [vmem:[#allocation2 + $0x40] sm:$0xff]
  %v3889 = vld [vmem:[#allocation2 + $0x48] sm:$0xff]
  %v3890 = vld [vmem:[#allocation2 + $0x50] sm:$0xff]
  %v3891 = vmul.f32 %v3882, %v118
  %v3892 = vmul.f32 %v3883, %v122
  %v3893 = vmul.f32 %v3884, %v120
  %v3894 = vmul.f32 %v3885, %v118
  %v3895 = vmul.f32 %v3886, %v122
  %v3896 = vmul.f32 %v3887, %v120
  %v3897 = vmul.f32 %v3888, %v118
  %v3898 = vmul.f32 %v3889, %v122
  %v3899 = vmul.f32 %v3890, %v120
  %v3900 = vld [vmem:[%s9] sm:$0xff]
  %s3901 = scalar_lea.vmem %s9, 8
  %v3902 = vld [vmem:[%s3901] sm:$0xff]
  %3912 = vrot.lane.b32.xlu0 %v3882, 16
  %v3913 = vpop.permute.xlu0 %3912
  %3914 = vrot.lane.b32.xlu0 %v3883, 16
  %v3915 = vpop.permute.xlu0 %3914
  %3916 = vrot.lane.b32.xlu0 %v3884, 16
  %v3917 = vpop.permute.xlu0 %3916
  %3918 = vrot.lane.b32.xlu0 %v3885, 16
  %v3919 = vpop.permute.xlu0 %3918
  %3920 = vrot.lane.b32.xlu0 %v3886, 16
  %v3921 = vpop.permute.xlu0 %3920
  %3922 = vrot.lane.b32.xlu0 %v3887, 16
  %v3923 = vpop.permute.xlu0 %3922
  %3924 = vrot.lane.b32.xlu0 %v3888, 16
  %v3925 = vpop.permute.xlu0 %3924
  %3926 = vrot.lane.b32.xlu0 %v3889, 16
  %v3927 = vpop.permute.xlu0 %3926
  %3928 = vrot.lane.b32.xlu0 %v3890, 16
  %v3929 = vpop.permute.xlu0 %3928
  %v3930 = vsel %vm141, %v3913, %v3915
  %v3931 = vsel %vm141, %v3915, %v3917
  %v3932 = vsel %vm141, %v3919, %v3921
  %v3933 = vsel %vm141, %v3921, %v3923
  %v3934 = vsel %vm141, %v3925, %v3927
  %v3935 = vsel %vm141, %v3927, %v3929
  %vm3942 = vcmask 195584
  %v3944 = vsel %vm3942, %v3902, 0
  %3946 = vmatprep.subr.mxu0 0.0
  %3947 = vmatpush1.msra.mxu0 0.0
  %3948 = vmatprep.subr.mxu0 0.0
  %3949 = vmatpush1.msra.mxu0 0.0
  %3950 = vmatprep.subr.mxu0 0.0
  %3951 = vmatpush1.msra.mxu0 0.0
  %3952 = vmatprep.subr.mxu0 0.0
  %3953 = vmatpush1.msra.mxu0 0.0
  %3954 = vmatprep.subr.mxu0 0.0
  %3955 = vmatpush1.msra.mxu0 0.0
  %3956 = vmatprep.subr.mxu0 0.0
  %3957 = vmatpush1.msra.mxu0 0.0
  %3958 = vmatprep.subr.mxu0 0.0
  %3959 = vmatpush1.msra.mxu0 0.0
  %3960 = vmatprep.subr.mxu0 0.0
  %3961 = vmatpush1.msra.mxu0 0.0
  %3962 = vmatprep.subr.mxu0 0.0
  %3963 = vmatpush1.msra.mxu0 0.0
  %3964 = vmatprep.subr.mxu0 0.0
  %3965 = vmatpush1.msra.mxu0 0.0
  %3966 = vmatprep.subr.mxu0 0.0
  %3967 = vmatpush1.msra.mxu0 0.0
  %3968 = vmatprep.subr.mxu0 0.0
  %3969 = vmatpush1.msra.mxu0 0.0
  %3970 = vmatprep.subr.mxu0 0.0
  %3971 = vmatpush1.msra.mxu0 0.0
  %3972 = vmatprep.subr.mxu0 %v3935
  %3973 = vmatpush1.msra.mxu0 %v3934
  %3974 = vmatprep.subr.mxu0 %v3933
  %3975 = vmatpush1.msra.mxu0 %v3932
  %3976 = vmatprep.subr.mxu0 %v3931
  %3977 = vmatpush1.msra.mxu0 %v3930
  %3978 = vmatprep.subr.mxu0 0.0
  %3979 = vmatpush2.msra.mxu0 0.0
  %3980 = vmatprep.subr.mxu0 0.0
  %3981 = vmatpush2.msra.mxu0 0.0
  %3982 = vmatprep.subr.mxu0 0.0
  %3983 = vmatpush2.msra.mxu0 0.0
  %3984 = vmatprep.subr.mxu0 0.0
  %3985 = vmatpush2.msra.mxu0 0.0
  %3986 = vmatprep.subr.mxu0 0.0
  %3987 = vmatpush2.msra.mxu0 0.0
  %3988 = vmatprep.subr.mxu0 0.0
  %3989 = vmatpush2.msra.mxu0 0.0
  %3990 = vmatprep.subr.mxu0 0.0
  %3991 = vmatpush2.msra.mxu0 0.0
  %3992 = vmatprep.subr.mxu0 0.0
  %3993 = vmatpush2.msra.mxu0 0.0
  %3994 = vmatprep.subr.mxu0 0.0
  %3995 = vmatpush2.msra.mxu0 0.0
  %3996 = vmatprep.subr.mxu0 0.0
  %3997 = vmatpush2.msra.mxu0 0.0
  %3998 = vmatprep.subr.mxu0 0.0
  %3999 = vmatpush2.msra.mxu0 0.0
  %4000 = vmatprep.subr.mxu0 0.0
  %4001 = vmatpush2.msra.mxu0 0.0
  %4002 = vmatprep.subr.mxu0 0.0
  %4003 = vmatpush2.msra.mxu0 0.0
  %4004 = vmatprep.subr.mxu0 0.0
  %4005 = vmatpush2.msra.mxu0 0.0
  %4006 = vmatprep.subr.mxu0 0.0
  %4007 = vmatpush2.msra.mxu0 0.0
  %4008 = vmatprep.subr.mxu0 0.0
  %4009 = vmatpush2.msra.mxu0 0.0
  %4010 = vmatprep.mubr.f32.mxu0 0.0
  %4011 = vmatmul.mubr.f32.gmra.mxu0 %v3944
  %v4012 = vpop.f32.mrf.mxu0
  %v4013 = vadd.f32 0.0, %v4012
  %v4014 = vpop.f32.mrf.mxu0
  %v4015 = vadd.f32 0.0, %v4014
  %4016 = vdwg.mxu0
  %4026 = vrot.lane.b32.xlu0 %v3891, 17
  %v4027 = vpop.permute.xlu0 %4026
  %4028 = vrot.lane.b32.xlu0 %v3892, 17
  %v4029 = vpop.permute.xlu0 %4028
  %4030 = vrot.lane.b32.xlu0 %v3893, 17
  %v4031 = vpop.permute.xlu0 %4030
  %4032 = vrot.lane.b32.xlu0 %v3894, 17
  %v4033 = vpop.permute.xlu0 %4032
  %4034 = vrot.lane.b32.xlu0 %v3895, 17
  %v4035 = vpop.permute.xlu0 %4034
  %4036 = vrot.lane.b32.xlu0 %v3896, 17
  %v4037 = vpop.permute.xlu0 %4036
  %4038 = vrot.lane.b32.xlu0 %v3897, 17
  %v4039 = vpop.permute.xlu0 %4038
  %4040 = vrot.lane.b32.xlu0 %v3898, 17
  %v4041 = vpop.permute.xlu0 %4040
  %4042 = vrot.lane.b32.xlu0 %v3899, 17
  %v4043 = vpop.permute.xlu0 %4042
  %v4044 = vsel %vm59, %v4027, %v4029
  %v4045 = vsel %vm59, %v4029, %v4031
  %v4046 = vsel %vm59, %v4033, %v4035
  %v4047 = vsel %vm59, %v4035, %v4037
  %v4048 = vsel %vm59, %v4039, %v4041
  %v4049 = vsel %vm59, %v4041, %v4043
  %v4057 = vsel %vm3942, %v3900, 0
  %4059 = vmatprep.subr.mxu0 0.0
  %4060 = vmatpush1.msra.mxu0 0.0
  %4061 = vmatprep.subr.mxu0 0.0
  %4062 = vmatpush1.msra.mxu0 0.0
  %4063 = vmatprep.subr.mxu0 0.0
  %4064 = vmatpush1.msra.mxu0 0.0
  %4065 = vmatprep.subr.mxu0 0.0
  %4066 = vmatpush1.msra.mxu0 0.0
  %4067 = vmatprep.subr.mxu0 0.0
  %4068 = vmatpush1.msra.mxu0 0.0
  %4069 = vmatprep.subr.mxu0 0.0
  %4070 = vmatpush1.msra.mxu0 0.0
  %4071 = vmatprep.subr.mxu0 0.0
  %4072 = vmatpush1.msra.mxu0 0.0
  %4073 = vmatprep.subr.mxu0 0.0
  %4074 = vmatpush1.msra.mxu0 0.0
  %4075 = vmatprep.subr.mxu0 0.0
  %4076 = vmatpush1.msra.mxu0 0.0
  %4077 = vmatprep.subr.mxu0 0.0
  %4078 = vmatpush1.msra.mxu0 0.0
  %4079 = vmatprep.subr.mxu0 0.0
  %4080 = vmatpush1.msra.mxu0 0.0
  %4081 = vmatprep.subr.mxu0 0.0
  %4082 = vmatpush1.msra.mxu0 0.0
  %4083 = vmatprep.subr.mxu0 0.0
  %4084 = vmatpush1.msra.mxu0 0.0
  %4085 = vmatprep.subr.mxu0 %v4049
  %4086 = vmatpush1.msra.mxu0 %v4048
  %4087 = vmatprep.subr.mxu0 %v4047
  %4088 = vmatpush1.msra.mxu0 %v4046
  %4089 = vmatprep.subr.mxu0 %v4045
  %4090 = vmatpush1.msra.mxu0 %v4044
  %4091 = vmatprep.subr.mxu0 0.0
  %4092 = vmatpush2.msra.mxu0 0.0
  %4093 = vmatprep.subr.mxu0 0.0
  %4094 = vmatpush2.msra.mxu0 0.0
  %4095 = vmatprep.subr.mxu0 0.0
  %4096 = vmatpush2.msra.mxu0 0.0
  %4097 = vmatprep.subr.mxu0 0.0
  %4098 = vmatpush2.msra.mxu0 0.0
  %4099 = vmatprep.subr.mxu0 0.0
  %4100 = vmatpush2.msra.mxu0 0.0
  %4101 = vmatprep.subr.mxu0 0.0
  %4102 = vmatpush2.msra.mxu0 0.0
  %4103 = vmatprep.subr.mxu0 0.0
  %4104 = vmatpush2.msra.mxu0 0.0
  %4105 = vmatprep.subr.mxu0 0.0
  %4106 = vmatpush2.msra.mxu0 0.0
  %4107 = vmatprep.subr.mxu0 0.0
  %4108 = vmatpush2.msra.mxu0 0.0
  %4109 = vmatprep.subr.mxu0 0.0
  %4110 = vmatpush2.msra.mxu0 0.0
  %4111 = vmatprep.subr.mxu0 0.0
  %4112 = vmatpush2.msra.mxu0 0.0
  %4113 = vmatprep.subr.mxu0 0.0
  %4114 = vmatpush2.msra.mxu0 0.0
  %4115 = vmatprep.subr.mxu0 0.0
  %4116 = vmatpush2.msra.mxu0 0.0
  %4117 = vmatprep.subr.mxu0 0.0
  %4118 = vmatpush2.msra.mxu0 0.0
  %4119 = vmatprep.subr.mxu0 0.0
  %4120 = vmatpush2.msra.mxu0 0.0
  %4121 = vmatprep.subr.mxu0 0.0
  %4122 = vmatpush2.msra.mxu0 0.0
  %4123 = vmatprep.mubr.f32.mxu0 0.0
  %4124 = vmatmul.mubr.f32.gmra.mxu0 %v4057
  %v4125 = vpop.f32.mrf.mxu0
  %v4126 = vadd.f32 %v4013, %v4125
  %v4127 = vpop.f32.mrf.mxu0
  %v4128 = vadd.f32 %v4015, %v4127
  %4129 = vdwg.mxu0
  %v4130 = vmul.f32 %v3882, %v316
  %v4131 = vmul.f32 %v3883, %v320
  %v4132 = vmul.f32 %v3884, %v318
  %v4133 = vmul.f32 %v3885, %v316
  %v4134 = vmul.f32 %v3886, %v320
  %v4135 = vmul.f32 %v3887, %v318
  %v4136 = vmul.f32 %v3888, %v316
  %v4137 = vmul.f32 %v3889, %v320
  %v4138 = vmul.f32 %v3890, %v318
  %s4139 = scalar_lea.vmem %s9, 16
  %v4140 = vld [vmem:[%s4139] sm:$0xff]
  %4150 = vrot.lane.b32.xlu0 %v4130, 15
  %v4151 = vpop.permute.xlu0 %4150
  %4152 = vrot.lane.b32.xlu0 %v4131, 15
  %v4153 = vpop.permute.xlu0 %4152
  %4154 = vrot.lane.b32.xlu0 %v4132, 15
  %v4155 = vpop.permute.xlu0 %4154
  %4156 = vrot.lane.b32.xlu0 %v4133, 15
  %v4157 = vpop.permute.xlu0 %4156
  %4158 = vrot.lane.b32.xlu0 %v4134, 15
  %v4159 = vpop.permute.xlu0 %4158
  %4160 = vrot.lane.b32.xlu0 %v4135, 15
  %v4161 = vpop.permute.xlu0 %4160
  %4162 = vrot.lane.b32.xlu0 %v4136, 15
  %v4163 = vpop.permute.xlu0 %4162
  %4164 = vrot.lane.b32.xlu0 %v4137, 15
  %v4165 = vpop.permute.xlu0 %4164
  %4166 = vrot.lane.b32.xlu0 %v4138, 15
  %v4167 = vpop.permute.xlu0 %4166
  %v4168 = vsel %vm338, %v4151, %v4153
  %v4169 = vsel %vm338, %v4153, %v4155
  %v4170 = vsel %vm338, %v4157, %v4159
  %v4171 = vsel %vm338, %v4159, %v4161
  %v4172 = vsel %vm338, %v4163, %v4165
  %v4173 = vsel %vm338, %v4165, %v4167
  %v4181 = vsel %vm3942, %v4140, 0
  %4183 = vmatprep.subr.mxu0 0.0
  %4184 = vmatpush1.msra.mxu0 0.0
  %4185 = vmatprep.subr.mxu0 0.0
  %4186 = vmatpush1.msra.mxu0 0.0
  %4187 = vmatprep.subr.mxu0 0.0
  %4188 = vmatpush1.msra.mxu0 0.0
  %4189 = vmatprep.subr.mxu0 0.0
  %4190 = vmatpush1.msra.mxu0 0.0
  %4191 = vmatprep.subr.mxu0 0.0
  %4192 = vmatpush1.msra.mxu0 0.0
  %4193 = vmatprep.subr.mxu0 0.0
  %4194 = vmatpush1.msra.mxu0 0.0
  %4195 = vmatprep.subr.mxu0 0.0
  %4196 = vmatpush1.msra.mxu0 0.0
  %4197 = vmatprep.subr.mxu0 0.0
  %4198 = vmatpush1.msra.mxu0 0.0
  %4199 = vmatprep.subr.mxu0 0.0
  %4200 = vmatpush1.msra.mxu0 0.0
  %4201 = vmatprep.subr.mxu0 0.0
  %4202 = vmatpush1.msra.mxu0 0.0
  %4203 = vmatprep.subr.mxu0 0.0
  %4204 = vmatpush1.msra.mxu0 0.0
  %4205 = vmatprep.subr.mxu0 0.0
  %4206 = vmatpush1.msra.mxu0 0.0
  %4207 = vmatprep.subr.mxu0 0.0
  %4208 = vmatpush1.msra.mxu0 0.0
  %4209 = vmatprep.subr.mxu0 %v4173
  %4210 = vmatpush1.msra.mxu0 %v4172
  %4211 = vmatprep.subr.mxu0 %v4171
  %4212 = vmatpush1.msra.mxu0 %v4170
  %4213 = vmatprep.subr.mxu0 %v4169
  %4214 = vmatpush1.msra.mxu0 %v4168
  %4215 = vmatprep.subr.mxu0 0.0
  %4216 = vmatpush2.msra.mxu0 0.0
  %4217 = vmatprep.subr.mxu0 0.0
  %4218 = vmatpush2.msra.mxu0 0.0
  %4219 = vmatprep.subr.mxu0 0.0
  %4220 = vmatpush2.msra.mxu0 0.0
  %4221 = vmatprep.subr.mxu0 0.0
  %4222 = vmatpush2.msra.mxu0 0.0
  %4223 = vmatprep.subr.mxu0 0.0
  %4224 = vmatpush2.msra.mxu0 0.0
  %4225 = vmatprep.subr.mxu0 0.0
  %4226 = vmatpush2.msra.mxu0 0.0
  %4227 = vmatprep.subr.mxu0 0.0
  %4228 = vmatpush2.msra.mxu0 0.0
  %4229 = vmatprep.subr.mxu0 0.0
  %4230 = vmatpush2.msra.mxu0 0.0
  %4231 = vmatprep.subr.mxu0 0.0
  %4232 = vmatpush2.msra.mxu0 0.0
  %4233 = vmatprep.subr.mxu0 0.0
  %4234 = vmatpush2.msra.mxu0 0.0
  %4235 = vmatprep.subr.mxu0 0.0
  %4236 = vmatpush2.msra.mxu0 0.0
  %4237 = vmatprep.subr.mxu0 0.0
  %4238 = vmatpush2.msra.mxu0 0.0
  %4239 = vmatprep.subr.mxu0 0.0
  %4240 = vmatpush2.msra.mxu0 0.0
  %4241 = vmatprep.subr.mxu0 0.0
  %4242 = vmatpush2.msra.mxu0 0.0
  %4243 = vmatprep.subr.mxu0 0.0
  %4244 = vmatpush2.msra.mxu0 0.0
  %4245 = vmatprep.subr.mxu0 0.0
  %4246 = vmatpush2.msra.mxu0 0.0
  %4247 = vmatprep.mubr.f32.mxu0 0.0
  %4248 = vmatmul.mubr.f32.gmra.mxu0 %v4181
  %v4249 = vpop.f32.mrf.mxu0
  %v4250 = vadd.f32 0.0, %v4249
  %v4251 = vpop.f32.mrf.mxu0
  %v4252 = vadd.f32 0.0, %v4251
  %4253 = vdwg.mxu0
  %v4254 = vadd.f32 %v4126, %v4250
  %v4255 = vadd.f32 %v4128, %v4252
  %v4256 = vmul.f32 %v3882, %v422
  %v4257 = vmul.f32 %v3883, %v426
  %v4258 = vmul.f32 %v3884, %v424
  %v4259 = vmul.f32 %v3885, %v422
  %v4260 = vmul.f32 %v3886, %v426
  %v4261 = vmul.f32 %v3887, %v424
  %v4262 = vmul.f32 %v3888, %v422
  %v4263 = vmul.f32 %v3889, %v426
  %v4264 = vmul.f32 %v3890, %v424
  %s4265 = scalar_lea.vmem %s9, 24
  %v4266 = vld [vmem:[%s4265] sm:$0xff]
  %4276 = vrot.lane.b32.xlu0 %v4256, 1
  %v4277 = vpop.permute.xlu0 %4276
  %4278 = vrot.lane.b32.xlu0 %v4257, 1
  %v4279 = vpop.permute.xlu0 %4278
  %4280 = vrot.lane.b32.xlu0 %v4258, 1
  %v4281 = vpop.permute.xlu0 %4280
  %4282 = vrot.lane.b32.xlu0 %v4259, 1
  %v4283 = vpop.permute.xlu0 %4282
  %4284 = vrot.lane.b32.xlu0 %v4260, 1
  %v4285 = vpop.permute.xlu0 %4284
  %4286 = vrot.lane.b32.xlu0 %v4261, 1
  %v4287 = vpop.permute.xlu0 %4286
  %4288 = vrot.lane.b32.xlu0 %v4262, 1
  %v4289 = vpop.permute.xlu0 %4288
  %4290 = vrot.lane.b32.xlu0 %v4263, 1
  %v4291 = vpop.permute.xlu0 %4290
  %4292 = vrot.lane.b32.xlu0 %v4264, 1
  %v4293 = vpop.permute.xlu0 %4292
  %v4294 = vsel %vm444, %v4277, %v4279
  %v4295 = vsel %vm444, %v4279, %v4281
  %v4296 = vsel %vm444, %v4283, %v4285
  %v4297 = vsel %vm444, %v4285, %v4287
  %v4298 = vsel %vm444, %v4289, %v4291
  %v4299 = vsel %vm444, %v4291, %v4293
  %v4307 = vsel %vm3942, %v4266, 0
  %4309 = vmatprep.subr.mxu0 0.0
  %4310 = vmatpush1.msra.mxu0 0.0
  %4311 = vmatprep.subr.mxu0 0.0
  %4312 = vmatpush1.msra.mxu0 0.0
  %4313 = vmatprep.subr.mxu0 0.0
  %4314 = vmatpush1.msra.mxu0 0.0
  %4315 = vmatprep.subr.mxu0 0.0
  %4316 = vmatpush1.msra.mxu0 0.0
  %4317 = vmatprep.subr.mxu0 0.0
  %4318 = vmatpush1.msra.mxu0 0.0
  %4319 = vmatprep.subr.mxu0 0.0
  %4320 = vmatpush1.msra.mxu0 0.0
  %4321 = vmatprep.subr.mxu0 0.0
  %4322 = vmatpush1.msra.mxu0 0.0
  %4323 = vmatprep.subr.mxu0 0.0
  %4324 = vmatpush1.msra.mxu0 0.0
  %4325 = vmatprep.subr.mxu0 0.0
  %4326 = vmatpush1.msra.mxu0 0.0
  %4327 = vmatprep.subr.mxu0 0.0
  %4328 = vmatpush1.msra.mxu0 0.0
  %4329 = vmatprep.subr.mxu0 0.0
  %4330 = vmatpush1.msra.mxu0 0.0
  %4331 = vmatprep.subr.mxu0 0.0
  %4332 = vmatpush1.msra.mxu0 0.0
  %4333 = vmatprep.subr.mxu0 0.0
  %4334 = vmatpush1.msra.mxu0 0.0
  %4335 = vmatprep.subr.mxu0 %v4299
  %4336 = vmatpush1.msra.mxu0 %v4298
  %4337 = vmatprep.subr.mxu0 %v4297
  %4338 = vmatpush1.msra.mxu0 %v4296
  %4339 = vmatprep.subr.mxu0 %v4295
  %4340 = vmatpush1.msra.mxu0 %v4294
  %4341 = vmatprep.subr.mxu0 0.0
  %4342 = vmatpush2.msra.mxu0 0.0
  %4343 = vmatprep.subr.mxu0 0.0
  %4344 = vmatpush2.msra.mxu0 0.0
  %4345 = vmatprep.subr.mxu0 0.0
  %4346 = vmatpush2.msra.mxu0 0.0
  %4347 = vmatprep.subr.mxu0 0.0
  %4348 = vmatpush2.msra.mxu0 0.0
  %4349 = vmatprep.subr.mxu0 0.0
  %4350 = vmatpush2.msra.mxu0 0.0
  %4351 = vmatprep.subr.mxu0 0.0
  %4352 = vmatpush2.msra.mxu0 0.0
  %4353 = vmatprep.subr.mxu0 0.0
  %4354 = vmatpush2.msra.mxu0 0.0
  %4355 = vmatprep.subr.mxu0 0.0
  %4356 = vmatpush2.msra.mxu0 0.0
  %4357 = vmatprep.subr.mxu0 0.0
  %4358 = vmatpush2.msra.mxu0 0.0
  %4359 = vmatprep.subr.mxu0 0.0
  %4360 = vmatpush2.msra.mxu0 0.0
  %4361 = vmatprep.subr.mxu0 0.0
  %4362 = vmatpush2.msra.mxu0 0.0
  %4363 = vmatprep.subr.mxu0 0.0
  %4364 = vmatpush2.msra.mxu0 0.0
  %4365 = vmatprep.subr.mxu0 0.0
  %4366 = vmatpush2.msra.mxu0 0.0
  %4367 = vmatprep.subr.mxu0 0.0
  %4368 = vmatpush2.msra.mxu0 0.0
  %4369 = vmatprep.subr.mxu0 0.0
  %4370 = vmatpush2.msra.mxu0 0.0
  %4371 = vmatprep.subr.mxu0 0.0
  %4372 = vmatpush2.msra.mxu0 0.0
  %4373 = vmatprep.mubr.f32.mxu0 0.0
  %4374 = vmatmul.mubr.f32.gmra.mxu0 %v4307
  %v4375 = vpop.f32.mrf.mxu0
  %v4376 = vadd.f32 0.0, %v4375
  %v4377 = vpop.f32.mrf.mxu0
  %v4378 = vadd.f32 0.0, %v4377
  %4379 = vdwg.mxu0
  %v4380 = vadd.f32 %v4254, %v4376
  %v4381 = vadd.f32 %v4255, %v4378
  %s4382 = scalar_lea.vmem %s9, 32
  %v4383 = vld [vmem:[%s4382] sm:$0xff]
  %v4385 = vsel %vm3942, %v4383, 0
  %4387 = vmatprep.subr.mxu0 0.0
  %4388 = vmatpush1.msra.mxu0 0.0
  %4389 = vmatprep.subr.mxu0 0.0
  %4390 = vmatpush1.msra.mxu0 0.0
  %4391 = vmatprep.subr.mxu0 0.0
  %4392 = vmatpush1.msra.mxu0 0.0
  %4393 = vmatprep.subr.mxu0 0.0
  %4394 = vmatpush1.msra.mxu0 0.0
  %4395 = vmatprep.subr.mxu0 0.0
  %4396 = vmatpush1.msra.mxu0 0.0
  %4397 = vmatprep.subr.mxu0 0.0
  %4398 = vmatpush1.msra.mxu0 0.0
  %4399 = vmatprep.subr.mxu0 0.0
  %4400 = vmatpush1.msra.mxu0 0.0
  %4401 = vmatprep.subr.mxu0 0.0
  %4402 = vmatpush1.msra.mxu0 0.0
  %4403 = vmatprep.subr.mxu0 0.0
  %4404 = vmatpush1.msra.mxu0 0.0
  %4405 = vmatprep.subr.mxu0 0.0
  %4406 = vmatpush1.msra.mxu0 0.0
  %4407 = vmatprep.subr.mxu0 0.0
  %4408 = vmatpush1.msra.mxu0 0.0
  %4409 = vmatprep.subr.mxu0 0.0
  %4410 = vmatpush1.msra.mxu0 0.0
  %4411 = vmatprep.subr.mxu0 0.0
  %4412 = vmatpush1.msra.mxu0 0.0
  %4413 = vmatprep.subr.mxu0 %v3890
  %4414 = vmatpush1.msra.mxu0 %v3889
  %4415 = vmatprep.subr.mxu0 %v3887
  %4416 = vmatpush1.msra.mxu0 %v3886
  %4417 = vmatprep.subr.mxu0 %v3884
  %4418 = vmatpush1.msra.mxu0 %v3883
  %4419 = vmatprep.subr.mxu0 0.0
  %4420 = vmatpush2.msra.mxu0 0.0
  %4421 = vmatprep.subr.mxu0 0.0
  %4422 = vmatpush2.msra.mxu0 0.0
  %4423 = vmatprep.subr.mxu0 0.0
  %4424 = vmatpush2.msra.mxu0 0.0
  %4425 = vmatprep.subr.mxu0 0.0
  %4426 = vmatpush2.msra.mxu0 0.0
  %4427 = vmatprep.subr.mxu0 0.0
  %4428 = vmatpush2.msra.mxu0 0.0
  %4429 = vmatprep.subr.mxu0 0.0
  %4430 = vmatpush2.msra.mxu0 0.0
  %4431 = vmatprep.subr.mxu0 0.0
  %4432 = vmatpush2.msra.mxu0 0.0
  %4433 = vmatprep.subr.mxu0 0.0
  %4434 = vmatpush2.msra.mxu0 0.0
  %4435 = vmatprep.subr.mxu0 0.0
  %4436 = vmatpush2.msra.mxu0 0.0
  %4437 = vmatprep.subr.mxu0 0.0
  %4438 = vmatpush2.msra.mxu0 0.0
  %4439 = vmatprep.subr.mxu0 0.0
  %4440 = vmatpush2.msra.mxu0 0.0
  %4441 = vmatprep.subr.mxu0 0.0
  %4442 = vmatpush2.msra.mxu0 0.0
  %4443 = vmatprep.subr.mxu0 0.0
  %4444 = vmatpush2.msra.mxu0 0.0
  %4445 = vmatprep.subr.mxu0 0.0
  %4446 = vmatpush2.msra.mxu0 0.0
  %4447 = vmatprep.subr.mxu0 0.0
  %4448 = vmatpush2.msra.mxu0 0.0
  %4449 = vmatprep.subr.mxu0 0.0
  %4450 = vmatpush2.msra.mxu0 0.0
  %4451 = vmatprep.mubr.f32.mxu0 0.0
  %4452 = vmatmul.mubr.f32.gmra.mxu0 %v4385
  %v4453 = vpop.f32.mrf.mxu0
  %v4454 = vadd.f32 0.0, %v4453
  %v4455 = vpop.f32.mrf.mxu0
  %v4456 = vadd.f32 0.0, %v4455
  %4457 = vdwg.mxu0
  %v4458 = vadd.f32 %v4380, %v4454
  %v4459 = vadd.f32 %v4381, %v4456
  %v4460 = vld [vmem:[#allocation2 + $0x8] sm:$0xff]
  %v4461 = vld [vmem:[#allocation2 + $0x10] sm:$0xff]
  %v4462 = vld [vmem:[#allocation2 + $0x18] sm:$0xff]
  %v4463 = vld [vmem:[#allocation2 + $0x28] sm:$0xff]
  %v4464 = vld [vmem:[#allocation2 + $0x30] sm:$0xff]
  %v4465 = vld [vmem:[#allocation2 + $0x38] sm:$0xff]
  %v4466 = vld [vmem:[#allocation2 + $0x48] sm:$0xff]
  %v4467 = vld [vmem:[#allocation2 + $0x50] sm:$0xff]
  %v4468 = vld [vmem:[#allocation2 + $0x58] sm:$0xff]
  %v4469 = vmul.f32 %v4460, %v613
  %v4470 = vmul.f32 %v4461, %v616
  %v4471 = vmul.f32 %v4462, %v615
  %v4472 = vmul.f32 %v4463, %v613
  %v4473 = vmul.f32 %v4464, %v616
  %v4474 = vmul.f32 %v4465, %v615
  %v4475 = vmul.f32 %v4466, %v613
  %v4476 = vmul.f32 %v4467, %v616
  %v4477 = vmul.f32 %v4468, %v615
  %s4478 = scalar_lea.vmem %s9, 40
  %v4479 = vld [vmem:[%s4478] sm:$0xff]
  %4489 = vrot.lane.b32.xlu0 %v4469, 127
  %v4490 = vpop.permute.xlu0 %4489
  %4491 = vrot.lane.b32.xlu0 %v4470, 127
  %v4492 = vpop.permute.xlu0 %4491
  %4493 = vrot.lane.b32.xlu0 %v4471, 127
  %v4494 = vpop.permute.xlu0 %4493
  %4495 = vrot.lane.b32.xlu0 %v4472, 127
  %v4496 = vpop.permute.xlu0 %4495
  %4497 = vrot.lane.b32.xlu0 %v4473, 127
  %v4498 = vpop.permute.xlu0 %4497
  %4499 = vrot.lane.b32.xlu0 %v4474, 127
  %v4500 = vpop.permute.xlu0 %4499
  %4501 = vrot.lane.b32.xlu0 %v4475, 127
  %v4502 = vpop.permute.xlu0 %4501
  %4503 = vrot.lane.b32.xlu0 %v4476, 127
  %v4504 = vpop.permute.xlu0 %4503
  %4505 = vrot.lane.b32.xlu0 %v4477, 127
  %v4506 = vpop.permute.xlu0 %4505
  %v4507 = vsel %vm425, %v4490, %v4492
  %v4508 = vsel %vm425, %v4492, %v4494
  %v4509 = vsel %vm425, %v4496, %v4498
  %v4510 = vsel %vm425, %v4498, %v4500
  %v4511 = vsel %vm425, %v4502, %v4504
  %v4512 = vsel %vm425, %v4504, %v4506
  %v4520 = vsel %vm3942, %v4479, 0
  %4522 = vmatprep.subr.mxu0 0.0
  %4523 = vmatpush1.msra.mxu0 0.0
  %4524 = vmatprep.subr.mxu0 0.0
  %4525 = vmatpush1.msra.mxu0 0.0
  %4526 = vmatprep.subr.mxu0 0.0
  %4527 = vmatpush1.msra.mxu0 0.0
  %4528 = vmatprep.subr.mxu0 0.0
  %4529 = vmatpush1.msra.mxu0 0.0
  %4530 = vmatprep.subr.mxu0 0.0
  %4531 = vmatpush1.msra.mxu0 0.0
  %4532 = vmatprep.subr.mxu0 0.0
  %4533 = vmatpush1.msra.mxu0 0.0
  %4534 = vmatprep.subr.mxu0 0.0
  %4535 = vmatpush1.msra.mxu0 0.0
  %4536 = vmatprep.subr.mxu0 0.0
  %4537 = vmatpush1.msra.mxu0 0.0
  %4538 = vmatprep.subr.mxu0 0.0
  %4539 = vmatpush1.msra.mxu0 0.0
  %4540 = vmatprep.subr.mxu0 0.0
  %4541 = vmatpush1.msra.mxu0 0.0
  %4542 = vmatprep.subr.mxu0 0.0
  %4543 = vmatpush1.msra.mxu0 0.0
  %4544 = vmatprep.subr.mxu0 0.0
  %4545 = vmatpush1.msra.mxu0 0.0
  %4546 = vmatprep.subr.mxu0 0.0
  %4547 = vmatpush1.msra.mxu0 0.0
  %4548 = vmatprep.subr.mxu0 %v4512
  %4549 = vmatpush1.msra.mxu0 %v4511
  %4550 = vmatprep.subr.mxu0 %v4510
  %4551 = vmatpush1.msra.mxu0 %v4509
  %4552 = vmatprep.subr.mxu0 %v4508
  %4553 = vmatpush1.msra.mxu0 %v4507
  %4554 = vmatprep.subr.mxu0 0.0
  %4555 = vmatpush2.msra.mxu0 0.0
  %4556 = vmatprep.subr.mxu0 0.0
  %4557 = vmatpush2.msra.mxu0 0.0
  %4558 = vmatprep.subr.mxu0 0.0
  %4559 = vmatpush2.msra.mxu0 0.0
  %4560 = vmatprep.subr.mxu0 0.0
  %4561 = vmatpush2.msra.mxu0 0.0
  %4562 = vmatprep.subr.mxu0 0.0
  %4563 = vmatpush2.msra.mxu0 0.0
  %4564 = vmatprep.subr.mxu0 0.0
  %4565 = vmatpush2.msra.mxu0 0.0
  %4566 = vmatprep.subr.mxu0 0.0
  %4567 = vmatpush2.msra.mxu0 0.0
  %4568 = vmatprep.subr.mxu0 0.0
  %4569 = vmatpush2.msra.mxu0 0.0
  %4570 = vmatprep.subr.mxu0 0.0
  %4571 = vmatpush2.msra.mxu0 0.0
  %4572 = vmatprep.subr.mxu0 0.0
  %4573 = vmatpush2.msra.mxu0 0.0
  %4574 = vmatprep.subr.mxu0 0.0
  %4575 = vmatpush2.msra.mxu0 0.0
  %4576 = vmatprep.subr.mxu0 0.0
  %4577 = vmatpush2.msra.mxu0 0.0
  %4578 = vmatprep.subr.mxu0 0.0
  %4579 = vmatpush2.msra.mxu0 0.0
  %4580 = vmatprep.subr.mxu0 0.0
  %4581 = vmatpush2.msra.mxu0 0.0
  %4582 = vmatprep.subr.mxu0 0.0
  %4583 = vmatpush2.msra.mxu0 0.0
  %4584 = vmatprep.subr.mxu0 0.0
  %4585 = vmatpush2.msra.mxu0 0.0
  %4586 = vmatprep.mubr.f32.mxu0 0.0
  %4587 = vmatmul.mubr.f32.gmra.mxu0 %v4520
  %v4588 = vpop.f32.mrf.mxu0
  %v4589 = vadd.f32 0.0, %v4588
  %v4590 = vpop.f32.mrf.mxu0
  %v4591 = vadd.f32 0.0, %v4590
  %4592 = vdwg.mxu0
  %v4593 = vadd.f32 %v4458, %v4589
  %v4594 = vadd.f32 %v4459, %v4591
  %v4595 = vmul.f32 %v4460, %v717
  %v4596 = vmul.f32 %v4461, %v720
  %v4597 = vmul.f32 %v4462, %v719
  %v4598 = vmul.f32 %v4463, %v717
  %v4599 = vmul.f32 %v4464, %v720
  %v4600 = vmul.f32 %v4465, %v719
  %v4601 = vmul.f32 %v4466, %v717
  %v4602 = vmul.f32 %v4467, %v720
  %v4603 = vmul.f32 %v4468, %v719
  %s4604 = scalar_lea.vmem %s9, 48
  %v4605 = vld [vmem:[%s4604] sm:$0xff]
  %4615 = vrot.lane.b32.xlu0 %v4595, 113
  %v4616 = vpop.permute.xlu0 %4615
  %4617 = vrot.lane.b32.xlu0 %v4596, 113
  %v4618 = vpop.permute.xlu0 %4617
  %4619 = vrot.lane.b32.xlu0 %v4597, 113
  %v4620 = vpop.permute.xlu0 %4619
  %4621 = vrot.lane.b32.xlu0 %v4598, 113
  %v4622 = vpop.permute.xlu0 %4621
  %4623 = vrot.lane.b32.xlu0 %v4599, 113
  %v4624 = vpop.permute.xlu0 %4623
  %4625 = vrot.lane.b32.xlu0 %v4600, 113
  %v4626 = vpop.permute.xlu0 %4625
  %4627 = vrot.lane.b32.xlu0 %v4601, 113
  %v4628 = vpop.permute.xlu0 %4627
  %4629 = vrot.lane.b32.xlu0 %v4602, 113
  %v4630 = vpop.permute.xlu0 %4629
  %4631 = vrot.lane.b32.xlu0 %v4603, 113
  %v4632 = vpop.permute.xlu0 %4631
  %v4633 = vsel %vm319, %v4616, %v4618
  %v4634 = vsel %vm319, %v4618, %v4620
  %v4635 = vsel %vm319, %v4622, %v4624
  %v4636 = vsel %vm319, %v4624, %v4626
  %v4637 = vsel %vm319, %v4628, %v4630
  %v4638 = vsel %vm319, %v4630, %v4632
  %v4646 = vsel %vm3942, %v4605, 0
  %4648 = vmatprep.subr.mxu0 0.0
  %4649 = vmatpush1.msra.mxu0 0.0
  %4650 = vmatprep.subr.mxu0 0.0
  %4651 = vmatpush1.msra.mxu0 0.0
  %4652 = vmatprep.subr.mxu0 0.0
  %4653 = vmatpush1.msra.mxu0 0.0
  %4654 = vmatprep.subr.mxu0 0.0
  %4655 = vmatpush1.msra.mxu0 0.0
  %4656 = vmatprep.subr.mxu0 0.0
  %4657 = vmatpush1.msra.mxu0 0.0
  %4658 = vmatprep.subr.mxu0 0.0
  %4659 = vmatpush1.msra.mxu0 0.0
  %4660 = vmatprep.subr.mxu0 0.0
  %4661 = vmatpush1.msra.mxu0 0.0
  %4662 = vmatprep.subr.mxu0 0.0
  %4663 = vmatpush1.msra.mxu0 0.0
  %4664 = vmatprep.subr.mxu0 0.0
  %4665 = vmatpush1.msra.mxu0 0.0
  %4666 = vmatprep.subr.mxu0 0.0
  %4667 = vmatpush1.msra.mxu0 0.0
  %4668 = vmatprep.subr.mxu0 0.0
  %4669 = vmatpush1.msra.mxu0 0.0
  %4670 = vmatprep.subr.mxu0 0.0
  %4671 = vmatpush1.msra.mxu0 0.0
  %4672 = vmatprep.subr.mxu0 0.0
  %4673 = vmatpush1.msra.mxu0 0.0
  %4674 = vmatprep.subr.mxu0 %v4638
  %4675 = vmatpush1.msra.mxu0 %v4637
  %4676 = vmatprep.subr.mxu0 %v4636
  %4677 = vmatpush1.msra.mxu0 %v4635
  %4678 = vmatprep.subr.mxu0 %v4634
  %4679 = vmatpush1.msra.mxu0 %v4633
  %4680 = vmatprep.subr.mxu0 0.0
  %4681 = vmatpush2.msra.mxu0 0.0
  %4682 = vmatprep.subr.mxu0 0.0
  %4683 = vmatpush2.msra.mxu0 0.0
  %4684 = vmatprep.subr.mxu0 0.0
  %4685 = vmatpush2.msra.mxu0 0.0
  %4686 = vmatprep.subr.mxu0 0.0
  %4687 = vmatpush2.msra.mxu0 0.0
  %4688 = vmatprep.subr.mxu0 0.0
  %4689 = vmatpush2.msra.mxu0 0.0
  %4690 = vmatprep.subr.mxu0 0.0
  %4691 = vmatpush2.msra.mxu0 0.0
  %4692 = vmatprep.subr.mxu0 0.0
  %4693 = vmatpush2.msra.mxu0 0.0
  %4694 = vmatprep.subr.mxu0 0.0
  %4695 = vmatpush2.msra.mxu0 0.0
  %4696 = vmatprep.subr.mxu0 0.0
  %4697 = vmatpush2.msra.mxu0 0.0
  %4698 = vmatprep.subr.mxu0 0.0
  %4699 = vmatpush2.msra.mxu0 0.0
  %4700 = vmatprep.subr.mxu0 0.0
  %4701 = vmatpush2.msra.mxu0 0.0
  %4702 = vmatprep.subr.mxu0 0.0
  %4703 = vmatpush2.msra.mxu0 0.0
  %4704 = vmatprep.subr.mxu0 0.0
  %4705 = vmatpush2.msra.mxu0 0.0
  %4706 = vmatprep.subr.mxu0 0.0
  %4707 = vmatpush2.msra.mxu0 0.0
  %4708 = vmatprep.subr.mxu0 0.0
  %4709 = vmatpush2.msra.mxu0 0.0
  %4710 = vmatprep.subr.mxu0 0.0
  %4711 = vmatpush2.msra.mxu0 0.0
  %4712 = vmatprep.mubr.f32.mxu0 0.0
  %4713 = vmatmul.mubr.f32.gmra.mxu0 %v4646
  %v4714 = vpop.f32.mrf.mxu0
  %v4715 = vadd.f32 0.0, %v4714
  %v4716 = vpop.f32.mrf.mxu0
  %v4717 = vadd.f32 0.0, %v4716
  %4718 = vdwg.mxu0
  %v4719 = vadd.f32 %v4593, %v4715
  %v4720 = vadd.f32 %v4594, %v4717
  %s4721 = scalar_lea.vmem %s9, 56
  %v4722 = vld [vmem:[%s4721] sm:$0xff]
  %4732 = vrot.lane.b32.xlu0 %v4460, 112
  %v4733 = vpop.permute.xlu0 %4732
  %4734 = vrot.lane.b32.xlu0 %v4461, 112
  %v4735 = vpop.permute.xlu0 %4734
  %4736 = vrot.lane.b32.xlu0 %v4462, 112
  %v4737 = vpop.permute.xlu0 %4736
  %4738 = vrot.lane.b32.xlu0 %v4463, 112
  %v4739 = vpop.permute.xlu0 %4738
  %4740 = vrot.lane.b32.xlu0 %v4464, 112
  %v4741 = vpop.permute.xlu0 %4740
  %4742 = vrot.lane.b32.xlu0 %v4465, 112
  %v4743 = vpop.permute.xlu0 %4742
  %4744 = vrot.lane.b32.xlu0 %v4466, 112
  %v4745 = vpop.permute.xlu0 %4744
  %4746 = vrot.lane.b32.xlu0 %v4467, 112
  %v4747 = vpop.permute.xlu0 %4746
  %4748 = vrot.lane.b32.xlu0 %v4468, 112
  %v4749 = vpop.permute.xlu0 %4748
  %v4750 = vsel %vm831, %v4733, %v4735
  %v4751 = vsel %vm831, %v4735, %v4737
  %v4752 = vsel %vm831, %v4739, %v4741
  %v4753 = vsel %vm831, %v4741, %v4743
  %v4754 = vsel %vm831, %v4745, %v4747
  %v4755 = vsel %vm831, %v4747, %v4749
  %v4763 = vsel %vm3942, %v4722, 0
  %4765 = vmatprep.subr.mxu0 0.0
  %4766 = vmatpush1.msra.mxu0 0.0
  %4767 = vmatprep.subr.mxu0 0.0
  %4768 = vmatpush1.msra.mxu0 0.0
  %4769 = vmatprep.subr.mxu0 0.0
  %4770 = vmatpush1.msra.mxu0 0.0
  %4771 = vmatprep.subr.mxu0 0.0
  %4772 = vmatpush1.msra.mxu0 0.0
  %4773 = vmatprep.subr.mxu0 0.0
  %4774 = vmatpush1.msra.mxu0 0.0
  %4775 = vmatprep.subr.mxu0 0.0
  %4776 = vmatpush1.msra.mxu0 0.0
  %4777 = vmatprep.subr.mxu0 0.0
  %4778 = vmatpush1.msra.mxu0 0.0
  %4779 = vmatprep.subr.mxu0 0.0
  %4780 = vmatpush1.msra.mxu0 0.0
  %4781 = vmatprep.subr.mxu0 0.0
  %4782 = vmatpush1.msra.mxu0 0.0
  %4783 = vmatprep.subr.mxu0 0.0
  %4784 = vmatpush1.msra.mxu0 0.0
  %4785 = vmatprep.subr.mxu0 0.0
  %4786 = vmatpush1.msra.mxu0 0.0
  %4787 = vmatprep.subr.mxu0 0.0
  %4788 = vmatpush1.msra.mxu0 0.0
  %4789 = vmatprep.subr.mxu0 0.0
  %4790 = vmatpush1.msra.mxu0 0.0
  %4791 = vmatprep.subr.mxu0 %v4755
  %4792 = vmatpush1.msra.mxu0 %v4754
  %4793 = vmatprep.subr.mxu0 %v4753
  %4794 = vmatpush1.msra.mxu0 %v4752
  %4795 = vmatprep.subr.mxu0 %v4751
  %4796 = vmatpush1.msra.mxu0 %v4750
  %4797 = vmatprep.subr.mxu0 0.0
  %4798 = vmatpush2.msra.mxu0 0.0
  %4799 = vmatprep.subr.mxu0 0.0
  %4800 = vmatpush2.msra.mxu0 0.0
  %4801 = vmatprep.subr.mxu0 0.0
  %4802 = vmatpush2.msra.mxu0 0.0
  %4803 = vmatprep.subr.mxu0 0.0
  %4804 = vmatpush2.msra.mxu0 0.0
  %4805 = vmatprep.subr.mxu0 0.0
  %4806 = vmatpush2.msra.mxu0 0.0
  %4807 = vmatprep.subr.mxu0 0.0
  %4808 = vmatpush2.msra.mxu0 0.0
  %4809 = vmatprep.subr.mxu0 0.0
  %4810 = vmatpush2.msra.mxu0 0.0
  %4811 = vmatprep.subr.mxu0 0.0
  %4812 = vmatpush2.msra.mxu0 0.0
  %4813 = vmatprep.subr.mxu0 0.0
  %4814 = vmatpush2.msra.mxu0 0.0
  %4815 = vmatprep.subr.mxu0 0.0
  %4816 = vmatpush2.msra.mxu0 0.0
  %4817 = vmatprep.subr.mxu0 0.0
  %4818 = vmatpush2.msra.mxu0 0.0
  %4819 = vmatprep.subr.mxu0 0.0
  %4820 = vmatpush2.msra.mxu0 0.0
  %4821 = vmatprep.subr.mxu0 0.0
  %4822 = vmatpush2.msra.mxu0 0.0
  %4823 = vmatprep.subr.mxu0 0.0
  %4824 = vmatpush2.msra.mxu0 0.0
  %4825 = vmatprep.subr.mxu0 0.0
  %4826 = vmatpush2.msra.mxu0 0.0
  %4827 = vmatprep.subr.mxu0 0.0
  %4828 = vmatpush2.msra.mxu0 0.0
  %4829 = vmatprep.mubr.f32.mxu0 0.0
  %4830 = vmatmul.mubr.f32.gmra.mxu0 %v4763
  %v4831 = vpop.f32.mrf.mxu0
  %v4832 = vadd.f32 0.0, %v4831
  %v4833 = vpop.f32.mrf.mxu0
  %v4834 = vadd.f32 0.0, %v4833
  %4835 = vdwg.mxu0
  %v4836 = vadd.f32 %v4719, %v4832
  %v4837 = vadd.f32 %v4720, %v4834
  %v4838 = vmul.f32 %v4460, %v915
  %v4839 = vmul.f32 %v4461, %v918
  %v4840 = vmul.f32 %v4462, %v917
  %v4841 = vmul.f32 %v4463, %v915
  %v4842 = vmul.f32 %v4464, %v918
  %v4843 = vmul.f32 %v4465, %v917
  %v4844 = vmul.f32 %v4466, %v915
  %v4845 = vmul.f32 %v4467, %v918
  %v4846 = vmul.f32 %v4468, %v917
  %s4847 = scalar_lea.vmem %s9, 64
  %v4848 = vld [vmem:[%s4847] sm:$0xff]
  %4858 = vrot.lane.b32.xlu0 %v4838, 111
  %v4859 = vpop.permute.xlu0 %4858
  %4860 = vrot.lane.b32.xlu0 %v4839, 111
  %v4861 = vpop.permute.xlu0 %4860
  %4862 = vrot.lane.b32.xlu0 %v4840, 111
  %v4863 = vpop.permute.xlu0 %4862
  %4864 = vrot.lane.b32.xlu0 %v4841, 111
  %v4865 = vpop.permute.xlu0 %4864
  %4866 = vrot.lane.b32.xlu0 %v4842, 111
  %v4867 = vpop.permute.xlu0 %4866
  %4868 = vrot.lane.b32.xlu0 %v4843, 111
  %v4869 = vpop.permute.xlu0 %4868
  %4870 = vrot.lane.b32.xlu0 %v4844, 111
  %v4871 = vpop.permute.xlu0 %4870
  %4872 = vrot.lane.b32.xlu0 %v4845, 111
  %v4873 = vpop.permute.xlu0 %4872
  %4874 = vrot.lane.b32.xlu0 %v4846, 111
  %v4875 = vpop.permute.xlu0 %4874
  %v4876 = vsel %vm121, %v4859, %v4861
  %v4877 = vsel %vm121, %v4861, %v4863
  %v4878 = vsel %vm121, %v4865, %v4867
  %v4879 = vsel %vm121, %v4867, %v4869
  %v4880 = vsel %vm121, %v4871, %v4873
  %v4881 = vsel %vm121, %v4873, %v4875
  %v4889 = vsel %vm3942, %v4848, 0
  %4891 = vmatprep.subr.mxu0 0.0
  %4892 = vmatpush1.msra.mxu0 0.0
  %4893 = vmatprep.subr.mxu0 0.0
  %4894 = vmatpush1.msra.mxu0 0.0
  %4895 = vmatprep.subr.mxu0 0.0
  %4896 = vmatpush1.msra.mxu0 0.0
  %4897 = vmatprep.subr.mxu0 0.0
  %4898 = vmatpush1.msra.mxu0 0.0
  %4899 = vmatprep.subr.mxu0 0.0
  %4900 = vmatpush1.msra.mxu0 0.0
  %4901 = vmatprep.subr.mxu0 0.0
  %4902 = vmatpush1.msra.mxu0 0.0
  %4903 = vmatprep.subr.mxu0 0.0
  %4904 = vmatpush1.msra.mxu0 0.0
  %4905 = vmatprep.subr.mxu0 0.0
  %4906 = vmatpush1.msra.mxu0 0.0
  %4907 = vmatprep.subr.mxu0 0.0
  %4908 = vmatpush1.msra.mxu0 0.0
  %4909 = vmatprep.subr.mxu0 0.0
  %4910 = vmatpush1.msra.mxu0 0.0
  %4911 = vmatprep.subr.mxu0 0.0
  %4912 = vmatpush1.msra.mxu0 0.0
  %4913 = vmatprep.subr.mxu0 0.0
  %4914 = vmatpush1.msra.mxu0 0.0
  %4915 = vmatprep.subr.mxu0 0.0
  %4916 = vmatpush1.msra.mxu0 0.0
  %4917 = vmatprep.subr.mxu0 %v4881
  %4918 = vmatpush1.msra.mxu0 %v4880
  %4919 = vmatprep.subr.mxu0 %v4879
  %4920 = vmatpush1.msra.mxu0 %v4878
  %4921 = vmatprep.subr.mxu0 %v4877
  %4922 = vmatpush1.msra.mxu0 %v4876
  %4923 = vmatprep.subr.mxu0 0.0
  %4924 = vmatpush2.msra.mxu0 0.0
  %4925 = vmatprep.subr.mxu0 0.0
  %4926 = vmatpush2.msra.mxu0 0.0
  %4927 = vmatprep.subr.mxu0 0.0
  %4928 = vmatpush2.msra.mxu0 0.0
  %4929 = vmatprep.subr.mxu0 0.0
  %4930 = vmatpush2.msra.mxu0 0.0
  %4931 = vmatprep.subr.mxu0 0.0
  %4932 = vmatpush2.msra.mxu0 0.0
  %4933 = vmatprep.subr.mxu0 0.0
  %4934 = vmatpush2.msra.mxu0 0.0
  %4935 = vmatprep.subr.mxu0 0.0
  %4936 = vmatpush2.msra.mxu0 0.0
  %4937 = vmatprep.subr.mxu0 0.0
  %4938 = vmatpush2.msra.mxu0 0.0
  %4939 = vmatprep.subr.mxu0 0.0
  %4940 = vmatpush2.msra.mxu0 0.0
  %4941 = vmatprep.subr.mxu0 0.0
  %4942 = vmatpush2.msra.mxu0 0.0
  %4943 = vmatprep.subr.mxu0 0.0
  %4944 = vmatpush2.msra.mxu0 0.0
  %4945 = vmatprep.subr.mxu0 0.0
  %4946 = vmatpush2.msra.mxu0 0.0
  %4947 = vmatprep.subr.mxu0 0.0
  %4948 = vmatpush2.msra.mxu0 0.0
  %4949 = vmatprep.subr.mxu0 0.0
  %4950 = vmatpush2.msra.mxu0 0.0
  %4951 = vmatprep.subr.mxu0 0.0
  %4952 = vmatpush2.msra.mxu0 0.0
  %4953 = vmatprep.subr.mxu0 0.0
  %4954 = vmatpush2.msra.mxu0 0.0
  %4955 = vmatprep.mubr.f32.mxu0 0.0
  %4956 = vmatmul.mubr.f32.gmra.mxu0 %v4889
  %v4957 = vpop.f32.mrf.mxu0
  %v4958 = vadd.f32 0.0, %v4957
  %v4959 = vpop.f32.mrf.mxu0
  %v4960 = vadd.f32 0.0, %v4959
  %4961 = vdwg.mxu0
  %v4962 = vadd.f32 %v4836, %v4958
  %v4963 = vadd.f32 %v4837, %v4960
  %v4964 = vld [vmem:[%s10] sm:$0xff]
  %4966 = vset.pattern.permute.xlu0 0
  %4967 = vperm.xlu0 %4966, %v4964
  %v4968 = vpop.permute.xlu0 %4967
  %v4970 = vadd.f32 %v4962, %v4968
  %v4971 = vadd.f32 %v4963, %v4968
  %v4972 = vmax.f32 %v4970, 0.0
  %v4973 = vmax.f32 %v4971, 0.0
  %4974 = vst [vmem:[#allocation2 + $0x8] sm:$0xff] %v4972
  %4975 = vst [vmem:[#allocation2 + $0x10] sm:$0xff] %v4973
  %v4976 = vld [vmem:[#allocation2] sm:$0xff]
  %v4977 = vld [vmem:[#allocation2 + $0x8] sm:$0xff]
  %v4978 = vld [vmem:[#allocation2 + $0x10] sm:$0xff]
  %v4979 = vmul.f32 %v4976, %v118
  %v4980 = vmul.f32 %v4977, %v122
  %v4981 = vmul.f32 %v4978, %v120
  %v4982 = vld [vmem:[%s11] sm:$0xff]
  %s4983 = scalar_lea.vmem %s11, 8
  %v4984 = vld [vmem:[%s4983] sm:$0xff]
  %4988 = vrot.lane.b32.xlu0 %v4976, 16
  %v4989 = vpop.permute.xlu0 %4988
  %4990 = vrot.lane.b32.xlu0 %v4977, 16
  %v4991 = vpop.permute.xlu0 %4990
  %4992 = vrot.lane.b32.xlu0 %v4978, 16
  %v4993 = vpop.permute.xlu0 %4992
  %v4994 = vsel %vm141, %v4989, %v4991
  %v4995 = vsel %vm141, %v4991, %v4993
  %v4999 = vsel %vm1052, %v4984, 0
  %5001 = vmatprep.subr.mxu0 0.0
  %5002 = vmatpush1.msra.mxu0 0.0
  %5003 = vmatprep.subr.mxu0 0.0
  %5004 = vmatpush1.msra.mxu0 0.0
  %5005 = vmatprep.subr.mxu0 0.0
  %5006 = vmatpush1.msra.mxu0 0.0
  %5007 = vmatprep.subr.mxu0 0.0
  %5008 = vmatpush1.msra.mxu0 0.0
  %5009 = vmatprep.subr.mxu0 0.0
  %5010 = vmatpush1.msra.mxu0 0.0
  %5011 = vmatprep.subr.mxu0 0.0
  %5012 = vmatpush1.msra.mxu0 0.0
  %5013 = vmatprep.subr.mxu0 0.0
  %5014 = vmatpush1.msra.mxu0 0.0
  %5015 = vmatprep.subr.mxu0 0.0
  %5016 = vmatpush1.msra.mxu0 0.0
  %5017 = vmatprep.subr.mxu0 0.0
  %5018 = vmatpush1.msra.mxu0 0.0
  %5019 = vmatprep.subr.mxu0 0.0
  %5020 = vmatpush1.msra.mxu0 0.0
  %5021 = vmatprep.subr.mxu0 0.0
  %5022 = vmatpush1.msra.mxu0 0.0
  %5023 = vmatprep.subr.mxu0 0.0
  %5024 = vmatpush1.msra.mxu0 0.0
  %5025 = vmatprep.subr.mxu0 0.0
  %5026 = vmatpush1.msra.mxu0 0.0
  %5027 = vmatprep.subr.mxu0 0.0
  %5028 = vmatpush1.msra.mxu0 0.0
  %5029 = vmatprep.subr.mxu0 0.0
  %5030 = vmatpush1.msra.mxu0 0.0
  %5031 = vmatprep.subr.mxu0 %v4995
  %5032 = vmatpush1.msra.mxu0 %v4994
  %5033 = vmatprep.subr.mxu0 0.0
  %5034 = vmatpush2.msra.mxu0 0.0
  %5035 = vmatprep.subr.mxu0 0.0
  %5036 = vmatpush2.msra.mxu0 0.0
  %5037 = vmatprep.subr.mxu0 0.0
  %5038 = vmatpush2.msra.mxu0 0.0
  %5039 = vmatprep.subr.mxu0 0.0
  %5040 = vmatpush2.msra.mxu0 0.0
  %5041 = vmatprep.subr.mxu0 0.0
  %5042 = vmatpush2.msra.mxu0 0.0
  %5043 = vmatprep.subr.mxu0 0.0
  %5044 = vmatpush2.msra.mxu0 0.0
  %5045 = vmatprep.subr.mxu0 0.0
  %5046 = vmatpush2.msra.mxu0 0.0
  %5047 = vmatprep.subr.mxu0 0.0
  %5048 = vmatpush2.msra.mxu0 0.0
  %5049 = vmatprep.subr.mxu0 0.0
  %5050 = vmatpush2.msra.mxu0 0.0
  %5051 = vmatprep.subr.mxu0 0.0
  %5052 = vmatpush2.msra.mxu0 0.0
  %5053 = vmatprep.subr.mxu0 0.0
  %5054 = vmatpush2.msra.mxu0 0.0
  %5055 = vmatprep.subr.mxu0 0.0
  %5056 = vmatpush2.msra.mxu0 0.0
  %5057 = vmatprep.subr.mxu0 0.0
  %5058 = vmatpush2.msra.mxu0 0.0
  %5059 = vmatprep.subr.mxu0 0.0
  %5060 = vmatpush2.msra.mxu0 0.0
  %5061 = vmatprep.subr.mxu0 0.0
  %5062 = vmatpush2.msra.mxu0 0.0
  %5063 = vmatprep.subr.mxu0 0.0
  %5064 = vmatpush2.msra.mxu0 0.0
  %5065 = vmatprep.mubr.f32.mxu0 0.0
  %5066 = vmatmul.mubr.f32.gmra.mxu0 %v4999
  %v5067 = vpop.f32.mrf.mxu0
  %v5068 = vadd.f32 0.0, %v5067
  %v5069 = vpop.f32.mrf.mxu0
  %v5070 = vadd.f32 0.0, %v5069
  %5071 = vdwg.mxu0
  %5075 = vrot.lane.b32.xlu0 %v4979, 17
  %v5076 = vpop.permute.xlu0 %5075
  %5077 = vrot.lane.b32.xlu0 %v4980, 17
  %v5078 = vpop.permute.xlu0 %5077
  %5079 = vrot.lane.b32.xlu0 %v4981, 17
  %v5080 = vpop.permute.xlu0 %5079
  %v5081 = vsel %vm59, %v5076, %v5078
  %v5082 = vsel %vm59, %v5078, %v5080
  %v5086 = vsel %vm1052, %v4982, 0
  %5088 = vmatprep.subr.mxu0 0.0
  %5089 = vmatpush1.msra.mxu0 0.0
  %5090 = vmatprep.subr.mxu0 0.0
  %5091 = vmatpush1.msra.mxu0 0.0
  %5092 = vmatprep.subr.mxu0 0.0
  %5093 = vmatpush1.msra.mxu0 0.0
  %5094 = vmatprep.subr.mxu0 0.0
  %5095 = vmatpush1.msra.mxu0 0.0
  %5096 = vmatprep.subr.mxu0 0.0
  %5097 = vmatpush1.msra.mxu0 0.0
  %5098 = vmatprep.subr.mxu0 0.0
  %5099 = vmatpush1.msra.mxu0 0.0
  %5100 = vmatprep.subr.mxu0 0.0
  %5101 = vmatpush1.msra.mxu0 0.0
  %5102 = vmatprep.subr.mxu0 0.0
  %5103 = vmatpush1.msra.mxu0 0.0
  %5104 = vmatprep.subr.mxu0 0.0
  %5105 = vmatpush1.msra.mxu0 0.0
  %5106 = vmatprep.subr.mxu0 0.0
  %5107 = vmatpush1.msra.mxu0 0.0
  %5108 = vmatprep.subr.mxu0 0.0
  %5109 = vmatpush1.msra.mxu0 0.0
  %5110 = vmatprep.subr.mxu0 0.0
  %5111 = vmatpush1.msra.mxu0 0.0
  %5112 = vmatprep.subr.mxu0 0.0
  %5113 = vmatpush1.msra.mxu0 0.0
  %5114 = vmatprep.subr.mxu0 0.0
  %5115 = vmatpush1.msra.mxu0 0.0
  %5116 = vmatprep.subr.mxu0 0.0
  %5117 = vmatpush1.msra.mxu0 0.0
  %5118 = vmatprep.subr.mxu0 %v5082
  %5119 = vmatpush1.msra.mxu0 %v5081
  %5120 = vmatprep.subr.mxu0 0.0
  %5121 = vmatpush2.msra.mxu0 0.0
  %5122 = vmatprep.subr.mxu0 0.0
  %5123 = vmatpush2.msra.mxu0 0.0
  %5124 = vmatprep.subr.mxu0 0.0
  %5125 = vmatpush2.msra.mxu0 0.0
  %5126 = vmatprep.subr.mxu0 0.0
  %5127 = vmatpush2.msra.mxu0 0.0
  %5128 = vmatprep.subr.mxu0 0.0
  %5129 = vmatpush2.msra.mxu0 0.0
  %5130 = vmatprep.subr.mxu0 0.0
  %5131 = vmatpush2.msra.mxu0 0.0
  %5132 = vmatprep.subr.mxu0 0.0
  %5133 = vmatpush2.msra.mxu0 0.0
  %5134 = vmatprep.subr.mxu0 0.0
  %5135 = vmatpush2.msra.mxu0 0.0
  %5136 = vmatprep.subr.mxu0 0.0
  %5137 = vmatpush2.msra.mxu0 0.0
  %5138 = vmatprep.subr.mxu0 0.0
  %5139 = vmatpush2.msra.mxu0 0.0
  %5140 = vmatprep.subr.mxu0 0.0
  %5141 = vmatpush2.msra.mxu0 0.0
  %5142 = vmatprep.subr.mxu0 0.0
  %5143 = vmatpush2.msra.mxu0 0.0
  %5144 = vmatprep.subr.mxu0 0.0
  %5145 = vmatpush2.msra.mxu0 0.0
  %5146 = vmatprep.subr.mxu0 0.0
  %5147 = vmatpush2.msra.mxu0 0.0
  %5148 = vmatprep.subr.mxu0 0.0
  %5149 = vmatpush2.msra.mxu0 0.0
  %5150 = vmatprep.subr.mxu0 0.0
  %5151 = vmatpush2.msra.mxu0 0.0
  %5152 = vmatprep.mubr.f32.mxu0 0.0
  %5153 = vmatmul.mubr.f32.gmra.mxu0 %v5086
  %v5154 = vpop.f32.mrf.mxu0
  %v5155 = vadd.f32 %v5068, %v5154
  %v5156 = vpop.f32.mrf.mxu0
  %v5157 = vadd.f32 %v5070, %v5156
  %5158 = vdwg.mxu0
  %v5159 = vmul.f32 %v4976, %v316
  %v5160 = vmul.f32 %v4977, %v320
  %v5161 = vmul.f32 %v4978, %v318
  %s5162 = scalar_lea.vmem %s11, 16
  %v5163 = vld [vmem:[%s5162] sm:$0xff]
  %5167 = vrot.lane.b32.xlu0 %v5159, 15
  %v5168 = vpop.permute.xlu0 %5167
  %5169 = vrot.lane.b32.xlu0 %v5160, 15
  %v5170 = vpop.permute.xlu0 %5169
  %5171 = vrot.lane.b32.xlu0 %v5161, 15
  %v5172 = vpop.permute.xlu0 %5171
  %v5173 = vsel %vm338, %v5168, %v5170
  %v5174 = vsel %vm338, %v5170, %v5172
  %v5178 = vsel %vm1052, %v5163, 0
  %5180 = vmatprep.subr.mxu0 0.0
  %5181 = vmatpush1.msra.mxu0 0.0
  %5182 = vmatprep.subr.mxu0 0.0
  %5183 = vmatpush1.msra.mxu0 0.0
  %5184 = vmatprep.subr.mxu0 0.0
  %5185 = vmatpush1.msra.mxu0 0.0
  %5186 = vmatprep.subr.mxu0 0.0
  %5187 = vmatpush1.msra.mxu0 0.0
  %5188 = vmatprep.subr.mxu0 0.0
  %5189 = vmatpush1.msra.mxu0 0.0
  %5190 = vmatprep.subr.mxu0 0.0
  %5191 = vmatpush1.msra.mxu0 0.0
  %5192 = vmatprep.subr.mxu0 0.0
  %5193 = vmatpush1.msra.mxu0 0.0
  %5194 = vmatprep.subr.mxu0 0.0
  %5195 = vmatpush1.msra.mxu0 0.0
  %5196 = vmatprep.subr.mxu0 0.0
  %5197 = vmatpush1.msra.mxu0 0.0
  %5198 = vmatprep.subr.mxu0 0.0
  %5199 = vmatpush1.msra.mxu0 0.0
  %5200 = vmatprep.subr.mxu0 0.0
  %5201 = vmatpush1.msra.mxu0 0.0
  %5202 = vmatprep.subr.mxu0 0.0
  %5203 = vmatpush1.msra.mxu0 0.0
  %5204 = vmatprep.subr.mxu0 0.0
  %5205 = vmatpush1.msra.mxu0 0.0
  %5206 = vmatprep.subr.mxu0 0.0
  %5207 = vmatpush1.msra.mxu0 0.0
  %5208 = vmatprep.subr.mxu0 0.0
  %5209 = vmatpush1.msra.mxu0 0.0
  %5210 = vmatprep.subr.mxu0 %v5174
  %5211 = vmatpush1.msra.mxu0 %v5173
  %5212 = vmatprep.subr.mxu0 0.0
  %5213 = vmatpush2.msra.mxu0 0.0
  %5214 = vmatprep.subr.mxu0 0.0
  %5215 = vmatpush2.msra.mxu0 0.0
  %5216 = vmatprep.subr.mxu0 0.0
  %5217 = vmatpush2.msra.mxu0 0.0
  %5218 = vmatprep.subr.mxu0 0.0
  %5219 = vmatpush2.msra.mxu0 0.0
  %5220 = vmatprep.subr.mxu0 0.0
  %5221 = vmatpush2.msra.mxu0 0.0
  %5222 = vmatprep.subr.mxu0 0.0
  %5223 = vmatpush2.msra.mxu0 0.0
  %5224 = vmatprep.subr.mxu0 0.0
  %5225 = vmatpush2.msra.mxu0 0.0
  %5226 = vmatprep.subr.mxu0 0.0
  %5227 = vmatpush2.msra.mxu0 0.0
  %5228 = vmatprep.subr.mxu0 0.0
  %5229 = vmatpush2.msra.mxu0 0.0
  %5230 = vmatprep.subr.mxu0 0.0
  %5231 = vmatpush2.msra.mxu0 0.0
  %5232 = vmatprep.subr.mxu0 0.0
  %5233 = vmatpush2.msra.mxu0 0.0
  %5234 = vmatprep.subr.mxu0 0.0
  %5235 = vmatpush2.msra.mxu0 0.0
  %5236 = vmatprep.subr.mxu0 0.0
  %5237 = vmatpush2.msra.mxu0 0.0
  %5238 = vmatprep.subr.mxu0 0.0
  %5239 = vmatpush2.msra.mxu0 0.0
  %5240 = vmatprep.subr.mxu0 0.0
  %5241 = vmatpush2.msra.mxu0 0.0
  %5242 = vmatprep.subr.mxu0 0.0
  %5243 = vmatpush2.msra.mxu0 0.0
  %5244 = vmatprep.mubr.f32.mxu0 0.0
  %5245 = vmatmul.mubr.f32.gmra.mxu0 %v5178
  %v5246 = vpop.f32.mrf.mxu0
  %v5247 = vadd.f32 0.0, %v5246
  %v5248 = vpop.f32.mrf.mxu0
  %v5249 = vadd.f32 0.0, %v5248
  %5250 = vdwg.mxu0
  %v5251 = vadd.f32 %v5155, %v5247
  %v5252 = vadd.f32 %v5157, %v5249
  %v5253 = vmul.f32 %v4976, %v422
  %v5254 = vmul.f32 %v4977, %v426
  %v5255 = vmul.f32 %v4978, %v424
  %s5256 = scalar_lea.vmem %s11, 24
  %v5257 = vld [vmem:[%s5256] sm:$0xff]
  %5261 = vrot.lane.b32.xlu0 %v5253, 1
  %v5262 = vpop.permute.xlu0 %5261
  %5263 = vrot.lane.b32.xlu0 %v5254, 1
  %v5264 = vpop.permute.xlu0 %5263
  %5265 = vrot.lane.b32.xlu0 %v5255, 1
  %v5266 = vpop.permute.xlu0 %5265
  %v5267 = vsel %vm444, %v5262, %v5264
  %v5268 = vsel %vm444, %v5264, %v5266
  %v5272 = vsel %vm1052, %v5257, 0
  %5274 = vmatprep.subr.mxu0 0.0
  %5275 = vmatpush1.msra.mxu0 0.0
  %5276 = vmatprep.subr.mxu0 0.0
  %5277 = vmatpush1.msra.mxu0 0.0
  %5278 = vmatprep.subr.mxu0 0.0
  %5279 = vmatpush1.msra.mxu0 0.0
  %5280 = vmatprep.subr.mxu0 0.0
  %5281 = vmatpush1.msra.mxu0 0.0
  %5282 = vmatprep.subr.mxu0 0.0
  %5283 = vmatpush1.msra.mxu0 0.0
  %5284 = vmatprep.subr.mxu0 0.0
  %5285 = vmatpush1.msra.mxu0 0.0
  %5286 = vmatprep.subr.mxu0 0.0
  %5287 = vmatpush1.msra.mxu0 0.0
  %5288 = vmatprep.subr.mxu0 0.0
  %5289 = vmatpush1.msra.mxu0 0.0
  %5290 = vmatprep.subr.mxu0 0.0
  %5291 = vmatpush1.msra.mxu0 0.0
  %5292 = vmatprep.subr.mxu0 0.0
  %5293 = vmatpush1.msra.mxu0 0.0
  %5294 = vmatprep.subr.mxu0 0.0
  %5295 = vmatpush1.msra.mxu0 0.0
  %5296 = vmatprep.subr.mxu0 0.0
  %5297 = vmatpush1.msra.mxu0 0.0
  %5298 = vmatprep.subr.mxu0 0.0
  %5299 = vmatpush1.msra.mxu0 0.0
  %5300 = vmatprep.subr.mxu0 0.0
  %5301 = vmatpush1.msra.mxu0 0.0
  %5302 = vmatprep.subr.mxu0 0.0
  %5303 = vmatpush1.msra.mxu0 0.0
  %5304 = vmatprep.subr.mxu0 %v5268
  %5305 = vmatpush1.msra.mxu0 %v5267
  %5306 = vmatprep.subr.mxu0 0.0
  %5307 = vmatpush2.msra.mxu0 0.0
  %5308 = vmatprep.subr.mxu0 0.0
  %5309 = vmatpush2.msra.mxu0 0.0
  %5310 = vmatprep.subr.mxu0 0.0
  %5311 = vmatpush2.msra.mxu0 0.0
  %5312 = vmatprep.subr.mxu0 0.0
  %5313 = vmatpush2.msra.mxu0 0.0
  %5314 = vmatprep.subr.mxu0 0.0
  %5315 = vmatpush2.msra.mxu0 0.0
  %5316 = vmatprep.subr.mxu0 0.0
  %5317 = vmatpush2.msra.mxu0 0.0
  %5318 = vmatprep.subr.mxu0 0.0
  %5319 = vmatpush2.msra.mxu0 0.0
  %5320 = vmatprep.subr.mxu0 0.0
  %5321 = vmatpush2.msra.mxu0 0.0
  %5322 = vmatprep.subr.mxu0 0.0
  %5323 = vmatpush2.msra.mxu0 0.0
  %5324 = vmatprep.subr.mxu0 0.0
  %5325 = vmatpush2.msra.mxu0 0.0
  %5326 = vmatprep.subr.mxu0 0.0
  %5327 = vmatpush2.msra.mxu0 0.0
  %5328 = vmatprep.subr.mxu0 0.0
  %5329 = vmatpush2.msra.mxu0 0.0
  %5330 = vmatprep.subr.mxu0 0.0
  %5331 = vmatpush2.msra.mxu0 0.0
  %5332 = vmatprep.subr.mxu0 0.0
  %5333 = vmatpush2.msra.mxu0 0.0
  %5334 = vmatprep.subr.mxu0 0.0
  %5335 = vmatpush2.msra.mxu0 0.0
  %5336 = vmatprep.subr.mxu0 0.0
  %5337 = vmatpush2.msra.mxu0 0.0
  %5338 = vmatprep.mubr.f32.mxu0 0.0
  %5339 = vmatmul.mubr.f32.gmra.mxu0 %v5272
  %v5340 = vpop.f32.mrf.mxu0
  %v5341 = vadd.f32 0.0, %v5340
  %v5342 = vpop.f32.mrf.mxu0
  %v5343 = vadd.f32 0.0, %v5342
  %5344 = vdwg.mxu0
  %v5345 = vadd.f32 %v5251, %v5341
  %v5346 = vadd.f32 %v5252, %v5343
  %s5347 = scalar_lea.vmem %s11, 32
  %v5348 = vld [vmem:[%s5347] sm:$0xff]
  %v5350 = vsel %vm1052, %v5348, 0
  %5352 = vmatprep.subr.mxu0 0.0
  %5353 = vmatpush1.msra.mxu0 0.0
  %5354 = vmatprep.subr.mxu0 0.0
  %5355 = vmatpush1.msra.mxu0 0.0
  %5356 = vmatprep.subr.mxu0 0.0
  %5357 = vmatpush1.msra.mxu0 0.0
  %5358 = vmatprep.subr.mxu0 0.0
  %5359 = vmatpush1.msra.mxu0 0.0
  %5360 = vmatprep.subr.mxu0 0.0
  %5361 = vmatpush1.msra.mxu0 0.0
  %5362 = vmatprep.subr.mxu0 0.0
  %5363 = vmatpush1.msra.mxu0 0.0
  %5364 = vmatprep.subr.mxu0 0.0
  %5365 = vmatpush1.msra.mxu0 0.0
  %5366 = vmatprep.subr.mxu0 0.0
  %5367 = vmatpush1.msra.mxu0 0.0
  %5368 = vmatprep.subr.mxu0 0.0
  %5369 = vmatpush1.msra.mxu0 0.0
  %5370 = vmatprep.subr.mxu0 0.0
  %5371 = vmatpush1.msra.mxu0 0.0
  %5372 = vmatprep.subr.mxu0 0.0
  %5373 = vmatpush1.msra.mxu0 0.0
  %5374 = vmatprep.subr.mxu0 0.0
  %5375 = vmatpush1.msra.mxu0 0.0
  %5376 = vmatprep.subr.mxu0 0.0
  %5377 = vmatpush1.msra.mxu0 0.0
  %5378 = vmatprep.subr.mxu0 0.0
  %5379 = vmatpush1.msra.mxu0 0.0
  %5380 = vmatprep.subr.mxu0 0.0
  %5381 = vmatpush1.msra.mxu0 0.0
  %5382 = vmatprep.subr.mxu0 %v4978
  %5383 = vmatpush1.msra.mxu0 %v4977
  %5384 = vmatprep.subr.mxu0 0.0
  %5385 = vmatpush2.msra.mxu0 0.0
  %5386 = vmatprep.subr.mxu0 0.0
  %5387 = vmatpush2.msra.mxu0 0.0
  %5388 = vmatprep.subr.mxu0 0.0
  %5389 = vmatpush2.msra.mxu0 0.0
  %5390 = vmatprep.subr.mxu0 0.0
  %5391 = vmatpush2.msra.mxu0 0.0
  %5392 = vmatprep.subr.mxu0 0.0
  %5393 = vmatpush2.msra.mxu0 0.0
  %5394 = vmatprep.subr.mxu0 0.0
  %5395 = vmatpush2.msra.mxu0 0.0
  %5396 = vmatprep.subr.mxu0 0.0
  %5397 = vmatpush2.msra.mxu0 0.0
  %5398 = vmatprep.subr.mxu0 0.0
  %5399 = vmatpush2.msra.mxu0 0.0
  %5400 = vmatprep.subr.mxu0 0.0
  %5401 = vmatpush2.msra.mxu0 0.0
  %5402 = vmatprep.subr.mxu0 0.0
  %5403 = vmatpush2.msra.mxu0 0.0
  %5404 = vmatprep.subr.mxu0 0.0
  %5405 = vmatpush2.msra.mxu0 0.0
  %5406 = vmatprep.subr.mxu0 0.0
  %5407 = vmatpush2.msra.mxu0 0.0
  %5408 = vmatprep.subr.mxu0 0.0
  %5409 = vmatpush2.msra.mxu0 0.0
  %5410 = vmatprep.subr.mxu0 0.0
  %5411 = vmatpush2.msra.mxu0 0.0
  %5412 = vmatprep.subr.mxu0 0.0
  %5413 = vmatpush2.msra.mxu0 0.0
  %5414 = vmatprep.subr.mxu0 0.0
  %5415 = vmatpush2.msra.mxu0 0.0
  %5416 = vmatprep.mubr.f32.mxu0 0.0
  %5417 = vmatmul.mubr.f32.gmra.mxu0 %v5350
  %v5418 = vpop.f32.mrf.mxu0
  %v5419 = vadd.f32 0.0, %v5418
  %v5420 = vpop.f32.mrf.mxu0
  %v5421 = vadd.f32 0.0, %v5420
  %5422 = vdwg.mxu0
  %v5423 = vadd.f32 %v5345, %v5419
  %v5424 = vadd.f32 %v5346, %v5421
  %v5425 = vld [vmem:[#allocation2 + $0x8] sm:$0xff]
  %v5426 = vld [vmem:[#allocation2 + $0x10] sm:$0xff]
  %v5427 = vld [vmem:[#allocation2 + $0x18] sm:$0xff]
  %v5428 = vmul.f32 %v5425, %v613
  %v5429 = vmul.f32 %v5426, %v616
  %v5430 = vmul.f32 %v5427, %v615
  %s5431 = scalar_lea.vmem %s11, 40
  %v5432 = vld [vmem:[%s5431] sm:$0xff]
  %5436 = vrot.lane.b32.xlu0 %v5428, 127
  %v5437 = vpop.permute.xlu0 %5436
  %5438 = vrot.lane.b32.xlu0 %v5429, 127
  %v5439 = vpop.permute.xlu0 %5438
  %5440 = vrot.lane.b32.xlu0 %v5430, 127
  %v5441 = vpop.permute.xlu0 %5440
  %v5442 = vsel %vm425, %v5437, %v5439
  %v5443 = vsel %vm425, %v5439, %v5441
  %v5447 = vsel %vm1052, %v5432, 0
  %5449 = vmatprep.subr.mxu0 0.0
  %5450 = vmatpush1.msra.mxu0 0.0
  %5451 = vmatprep.subr.mxu0 0.0
  %5452 = vmatpush1.msra.mxu0 0.0
  %5453 = vmatprep.subr.mxu0 0.0
  %5454 = vmatpush1.msra.mxu0 0.0
  %5455 = vmatprep.subr.mxu0 0.0
  %5456 = vmatpush1.msra.mxu0 0.0
  %5457 = vmatprep.subr.mxu0 0.0
  %5458 = vmatpush1.msra.mxu0 0.0
  %5459 = vmatprep.subr.mxu0 0.0
  %5460 = vmatpush1.msra.mxu0 0.0
  %5461 = vmatprep.subr.mxu0 0.0
  %5462 = vmatpush1.msra.mxu0 0.0
  %5463 = vmatprep.subr.mxu0 0.0
  %5464 = vmatpush1.msra.mxu0 0.0
  %5465 = vmatprep.subr.mxu0 0.0
  %5466 = vmatpush1.msra.mxu0 0.0
  %5467 = vmatprep.subr.mxu0 0.0
  %5468 = vmatpush1.msra.mxu0 0.0
  %5469 = vmatprep.subr.mxu0 0.0
  %5470 = vmatpush1.msra.mxu0 0.0
  %5471 = vmatprep.subr.mxu0 0.0
  %5472 = vmatpush1.msra.mxu0 0.0
  %5473 = vmatprep.subr.mxu0 0.0
  %5474 = vmatpush1.msra.mxu0 0.0
  %5475 = vmatprep.subr.mxu0 0.0
  %5476 = vmatpush1.msra.mxu0 0.0
  %5477 = vmatprep.subr.mxu0 0.0
  %5478 = vmatpush1.msra.mxu0 0.0
  %5479 = vmatprep.subr.mxu0 %v5443
  %5480 = vmatpush1.msra.mxu0 %v5442
  %5481 = vmatprep.subr.mxu0 0.0
  %5482 = vmatpush2.msra.mxu0 0.0
  %5483 = vmatprep.subr.mxu0 0.0
  %5484 = vmatpush2.msra.mxu0 0.0
  %5485 = vmatprep.subr.mxu0 0.0
  %5486 = vmatpush2.msra.mxu0 0.0
  %5487 = vmatprep.subr.mxu0 0.0
  %5488 = vmatpush2.msra.mxu0 0.0
  %5489 = vmatprep.subr.mxu0 0.0
  %5490 = vmatpush2.msra.mxu0 0.0
  %5491 = vmatprep.subr.mxu0 0.0
  %5492 = vmatpush2.msra.mxu0 0.0
  %5493 = vmatprep.subr.mxu0 0.0
  %5494 = vmatpush2.msra.mxu0 0.0
  %5495 = vmatprep.subr.mxu0 0.0
  %5496 = vmatpush2.msra.mxu0 0.0
  %5497 = vmatprep.subr.mxu0 0.0
  %5498 = vmatpush2.msra.mxu0 0.0
  %5499 = vmatprep.subr.mxu0 0.0
  %5500 = vmatpush2.msra.mxu0 0.0
  %5501 = vmatprep.subr.mxu0 0.0
  %5502 = vmatpush2.msra.mxu0 0.0
  %5503 = vmatprep.subr.mxu0 0.0
  %5504 = vmatpush2.msra.mxu0 0.0
  %5505 = vmatprep.subr.mxu0 0.0
  %5506 = vmatpush2.msra.mxu0 0.0
  %5507 = vmatprep.subr.mxu0 0.0
  %5508 = vmatpush2.msra.mxu0 0.0
  %5509 = vmatprep.subr.mxu0 0.0
  %5510 = vmatpush2.msra.mxu0 0.0
  %5511 = vmatprep.subr.mxu0 0.0
  %5512 = vmatpush2.msra.mxu0 0.0
  %5513 = vmatprep.mubr.f32.mxu0 0.0
  %5514 = vmatmul.mubr.f32.gmra.mxu0 %v5447
  %v5515 = vpop.f32.mrf.mxu0
  %v5516 = vadd.f32 0.0, %v5515
  %v5517 = vpop.f32.mrf.mxu0
  %v5518 = vadd.f32 0.0, %v5517
  %5519 = vdwg.mxu0
  %v5520 = vadd.f32 %v5423, %v5516
  %v5521 = vadd.f32 %v5424, %v5518
  %v5522 = vmul.f32 %v5425, %v717
  %v5523 = vmul.f32 %v5426, %v720
  %v5524 = vmul.f32 %v5427, %v719
  %s5525 = scalar_lea.vmem %s11, 48
  %v5526 = vld [vmem:[%s5525] sm:$0xff]
  %5530 = vrot.lane.b32.xlu0 %v5522, 113
  %v5531 = vpop.permute.xlu0 %5530
  %5532 = vrot.lane.b32.xlu0 %v5523, 113
  %v5533 = vpop.permute.xlu0 %5532
  %5534 = vrot.lane.b32.xlu0 %v5524, 113
  %v5535 = vpop.permute.xlu0 %5534
  %v5536 = vsel %vm319, %v5531, %v5533
  %v5537 = vsel %vm319, %v5533, %v5535
  %v5541 = vsel %vm1052, %v5526, 0
  %5543 = vmatprep.subr.mxu0 0.0
  %5544 = vmatpush1.msra.mxu0 0.0
  %5545 = vmatprep.subr.mxu0 0.0
  %5546 = vmatpush1.msra.mxu0 0.0
  %5547 = vmatprep.subr.mxu0 0.0
  %5548 = vmatpush1.msra.mxu0 0.0
  %5549 = vmatprep.subr.mxu0 0.0
  %5550 = vmatpush1.msra.mxu0 0.0
  %5551 = vmatprep.subr.mxu0 0.0
  %5552 = vmatpush1.msra.mxu0 0.0
  %5553 = vmatprep.subr.mxu0 0.0
  %5554 = vmatpush1.msra.mxu0 0.0
  %5555 = vmatprep.subr.mxu0 0.0
  %5556 = vmatpush1.msra.mxu0 0.0
  %5557 = vmatprep.subr.mxu0 0.0
  %5558 = vmatpush1.msra.mxu0 0.0
  %5559 = vmatprep.subr.mxu0 0.0
  %5560 = vmatpush1.msra.mxu0 0.0
  %5561 = vmatprep.subr.mxu0 0.0
  %5562 = vmatpush1.msra.mxu0 0.0
  %5563 = vmatprep.subr.mxu0 0.0
  %5564 = vmatpush1.msra.mxu0 0.0
  %5565 = vmatprep.subr.mxu0 0.0
  %5566 = vmatpush1.msra.mxu0 0.0
  %5567 = vmatprep.subr.mxu0 0.0
  %5568 = vmatpush1.msra.mxu0 0.0
  %5569 = vmatprep.subr.mxu0 0.0
  %5570 = vmatpush1.msra.mxu0 0.0
  %5571 = vmatprep.subr.mxu0 0.0
  %5572 = vmatpush1.msra.mxu0 0.0
  %5573 = vmatprep.subr.mxu0 %v5537
  %5574 = vmatpush1.msra.mxu0 %v5536
  %5575 = vmatprep.subr.mxu0 0.0
  %5576 = vmatpush2.msra.mxu0 0.0
  %5577 = vmatprep.subr.mxu0 0.0
  %5578 = vmatpush2.msra.mxu0 0.0
  %5579 = vmatprep.subr.mxu0 0.0
  %5580 = vmatpush2.msra.mxu0 0.0
  %5581 = vmatprep.subr.mxu0 0.0
  %5582 = vmatpush2.msra.mxu0 0.0
  %5583 = vmatprep.subr.mxu0 0.0
  %5584 = vmatpush2.msra.mxu0 0.0
  %5585 = vmatprep.subr.mxu0 0.0
  %5586 = vmatpush2.msra.mxu0 0.0
  %5587 = vmatprep.subr.mxu0 0.0
  %5588 = vmatpush2.msra.mxu0 0.0
  %5589 = vmatprep.subr.mxu0 0.0
  %5590 = vmatpush2.msra.mxu0 0.0
  %5591 = vmatprep.subr.mxu0 0.0
  %5592 = vmatpush2.msra.mxu0 0.0
  %5593 = vmatprep.subr.mxu0 0.0
  %5594 = vmatpush2.msra.mxu0 0.0
  %5595 = vmatprep.subr.mxu0 0.0
  %5596 = vmatpush2.msra.mxu0 0.0
  %5597 = vmatprep.subr.mxu0 0.0
  %5598 = vmatpush2.msra.mxu0 0.0
  %5599 = vmatprep.subr.mxu0 0.0
  %5600 = vmatpush2.msra.mxu0 0.0
  %5601 = vmatprep.subr.mxu0 0.0
  %5602 = vmatpush2.msra.mxu0 0.0
  %5603 = vmatprep.subr.mxu0 0.0
  %5604 = vmatpush2.msra.mxu0 0.0
  %5605 = vmatprep.subr.mxu0 0.0
  %5606 = vmatpush2.msra.mxu0 0.0
  %5607 = vmatprep.mubr.f32.mxu0 0.0
  %5608 = vmatmul.mubr.f32.gmra.mxu0 %v5541
  %v5609 = vpop.f32.mrf.mxu0
  %v5610 = vadd.f32 0.0, %v5609
  %v5611 = vpop.f32.mrf.mxu0
  %v5612 = vadd.f32 0.0, %v5611
  %5613 = vdwg.mxu0
  %v5614 = vadd.f32 %v5520, %v5610
  %v5615 = vadd.f32 %v5521, %v5612
  %s5616 = scalar_lea.vmem %s11, 56
  %v5617 = vld [vmem:[%s5616] sm:$0xff]
  %5621 = vrot.lane.b32.xlu0 %v5425, 112
  %v5622 = vpop.permute.xlu0 %5621
  %5623 = vrot.lane.b32.xlu0 %v5426, 112
  %v5624 = vpop.permute.xlu0 %5623
  %5625 = vrot.lane.b32.xlu0 %v5427, 112
  %v5626 = vpop.permute.xlu0 %5625
  %v5627 = vsel %vm831, %v5622, %v5624
  %v5628 = vsel %vm831, %v5624, %v5626
  %v5632 = vsel %vm1052, %v5617, 0
  %5634 = vmatprep.subr.mxu0 0.0
  %5635 = vmatpush1.msra.mxu0 0.0
  %5636 = vmatprep.subr.mxu0 0.0
  %5637 = vmatpush1.msra.mxu0 0.0
  %5638 = vmatprep.subr.mxu0 0.0
  %5639 = vmatpush1.msra.mxu0 0.0
  %5640 = vmatprep.subr.mxu0 0.0
  %5641 = vmatpush1.msra.mxu0 0.0
  %5642 = vmatprep.subr.mxu0 0.0
  %5643 = vmatpush1.msra.mxu0 0.0
  %5644 = vmatprep.subr.mxu0 0.0
  %5645 = vmatpush1.msra.mxu0 0.0
  %5646 = vmatprep.subr.mxu0 0.0
  %5647 = vmatpush1.msra.mxu0 0.0
  %5648 = vmatprep.subr.mxu0 0.0
  %5649 = vmatpush1.msra.mxu0 0.0
  %5650 = vmatprep.subr.mxu0 0.0
  %5651 = vmatpush1.msra.mxu0 0.0
  %5652 = vmatprep.subr.mxu0 0.0
  %5653 = vmatpush1.msra.mxu0 0.0
  %5654 = vmatprep.subr.mxu0 0.0
  %5655 = vmatpush1.msra.mxu0 0.0
  %5656 = vmatprep.subr.mxu0 0.0
  %5657 = vmatpush1.msra.mxu0 0.0
  %5658 = vmatprep.subr.mxu0 0.0
  %5659 = vmatpush1.msra.mxu0 0.0
  %5660 = vmatprep.subr.mxu0 0.0
  %5661 = vmatpush1.msra.mxu0 0.0
  %5662 = vmatprep.subr.mxu0 0.0
  %5663 = vmatpush1.msra.mxu0 0.0
  %5664 = vmatprep.subr.mxu0 %v5628
  %5665 = vmatpush1.msra.mxu0 %v5627
  %5666 = vmatprep.subr.mxu0 0.0
  %5667 = vmatpush2.msra.mxu0 0.0
  %5668 = vmatprep.subr.mxu0 0.0
  %5669 = vmatpush2.msra.mxu0 0.0
  %5670 = vmatprep.subr.mxu0 0.0
  %5671 = vmatpush2.msra.mxu0 0.0
  %5672 = vmatprep.subr.mxu0 0.0
  %5673 = vmatpush2.msra.mxu0 0.0
  %5674 = vmatprep.subr.mxu0 0.0
  %5675 = vmatpush2.msra.mxu0 0.0
  %5676 = vmatprep.subr.mxu0 0.0
  %5677 = vmatpush2.msra.mxu0 0.0
  %5678 = vmatprep.subr.mxu0 0.0
  %5679 = vmatpush2.msra.mxu0 0.0
  %5680 = vmatprep.subr.mxu0 0.0
  %5681 = vmatpush2.msra.mxu0 0.0
  %5682 = vmatprep.subr.mxu0 0.0
  %5683 = vmatpush2.msra.mxu0 0.0
  %5684 = vmatprep.subr.mxu0 0.0
  %5685 = vmatpush2.msra.mxu0 0.0
  %5686 = vmatprep.subr.mxu0 0.0
  %5687 = vmatpush2.msra.mxu0 0.0
  %5688 = vmatprep.subr.mxu0 0.0
  %5689 = vmatpush2.msra.mxu0 0.0
  %5690 = vmatprep.subr.mxu0 0.0
  %5691 = vmatpush2.msra.mxu0 0.0
  %5692 = vmatprep.subr.mxu0 0.0
  %5693 = vmatpush2.msra.mxu0 0.0
  %5694 = vmatprep.subr.mxu0 0.0
  %5695 = vmatpush2.msra.mxu0 0.0
  %5696 = vmatprep.subr.mxu0 0.0
  %5697 = vmatpush2.msra.mxu0 0.0
  %5698 = vmatprep.mubr.f32.mxu0 0.0
  %5699 = vmatmul.mubr.f32.gmra.mxu0 %v5632
  %v5700 = vpop.f32.mrf.mxu0
  %v5701 = vadd.f32 0.0, %v5700
  %v5702 = vpop.f32.mrf.mxu0
  %v5703 = vadd.f32 0.0, %v5702
  %5704 = vdwg.mxu0
  %v5705 = vadd.f32 %v5614, %v5701
  %v5706 = vadd.f32 %v5615, %v5703
  %v5707 = vmul.f32 %v5425, %v915
  %v5708 = vmul.f32 %v5426, %v918
  %v5709 = vmul.f32 %v5427, %v917
  %s5710 = scalar_lea.vmem %s11, 64
  %v5711 = vld [vmem:[%s5710] sm:$0xff]
  %5715 = vrot.lane.b32.xlu0 %v5707, 111
  %v5716 = vpop.permute.xlu0 %5715
  %5717 = vrot.lane.b32.xlu0 %v5708, 111
  %v5718 = vpop.permute.xlu0 %5717
  %5719 = vrot.lane.b32.xlu0 %v5709, 111
  %v5720 = vpop.permute.xlu0 %5719
  %v5721 = vsel %vm121, %v5716, %v5718
  %v5722 = vsel %vm121, %v5718, %v5720
  %v5726 = vsel %vm1052, %v5711, 0
  %5728 = vmatprep.subr.mxu0 0.0
  %5729 = vmatpush1.msra.mxu0 0.0
  %5730 = vmatprep.subr.mxu0 0.0
  %5731 = vmatpush1.msra.mxu0 0.0
  %5732 = vmatprep.subr.mxu0 0.0
  %5733 = vmatpush1.msra.mxu0 0.0
  %5734 = vmatprep.subr.mxu0 0.0
  %5735 = vmatpush1.msra.mxu0 0.0
  %5736 = vmatprep.subr.mxu0 0.0
  %5737 = vmatpush1.msra.mxu0 0.0
  %5738 = vmatprep.subr.mxu0 0.0
  %5739 = vmatpush1.msra.mxu0 0.0
  %5740 = vmatprep.subr.mxu0 0.0
  %5741 = vmatpush1.msra.mxu0 0.0
  %5742 = vmatprep.subr.mxu0 0.0
  %5743 = vmatpush1.msra.mxu0 0.0
  %5744 = vmatprep.subr.mxu0 0.0
  %5745 = vmatpush1.msra.mxu0 0.0
  %5746 = vmatprep.subr.mxu0 0.0
  %5747 = vmatpush1.msra.mxu0 0.0
  %5748 = vmatprep.subr.mxu0 0.0
  %5749 = vmatpush1.msra.mxu0 0.0
  %5750 = vmatprep.subr.mxu0 0.0
  %5751 = vmatpush1.msra.mxu0 0.0
  %5752 = vmatprep.subr.mxu0 0.0
  %5753 = vmatpush1.msra.mxu0 0.0
  %5754 = vmatprep.subr.mxu0 0.0
  %5755 = vmatpush1.msra.mxu0 0.0
  %5756 = vmatprep.subr.mxu0 0.0
  %5757 = vmatpush1.msra.mxu0 0.0
  %5758 = vmatprep.subr.mxu0 %v5722
  %5759 = vmatpush1.msra.mxu0 %v5721
  %5760 = vmatprep.subr.mxu0 0.0
  %5761 = vmatpush2.msra.mxu0 0.0
  %5762 = vmatprep.subr.mxu0 0.0
  %5763 = vmatpush2.msra.mxu0 0.0
  %5764 = vmatprep.subr.mxu0 0.0
  %5765 = vmatpush2.msra.mxu0 0.0
  %5766 = vmatprep.subr.mxu0 0.0
  %5767 = vmatpush2.msra.mxu0 0.0
  %5768 = vmatprep.subr.mxu0 0.0
  %5769 = vmatpush2.msra.mxu0 0.0
  %5770 = vmatprep.subr.mxu0 0.0
  %5771 = vmatpush2.msra.mxu0 0.0
  %5772 = vmatprep.subr.mxu0 0.0
  %5773 = vmatpush2.msra.mxu0 0.0
  %5774 = vmatprep.subr.mxu0 0.0
  %5775 = vmatpush2.msra.mxu0 0.0
  %5776 = vmatprep.subr.mxu0 0.0
  %5777 = vmatpush2.msra.mxu0 0.0
  %5778 = vmatprep.subr.mxu0 0.0
  %5779 = vmatpush2.msra.mxu0 0.0
  %5780 = vmatprep.subr.mxu0 0.0
  %5781 = vmatpush2.msra.mxu0 0.0
  %5782 = vmatprep.subr.mxu0 0.0
  %5783 = vmatpush2.msra.mxu0 0.0
  %5784 = vmatprep.subr.mxu0 0.0
  %5785 = vmatpush2.msra.mxu0 0.0
  %5786 = vmatprep.subr.mxu0 0.0
  %5787 = vmatpush2.msra.mxu0 0.0
  %5788 = vmatprep.subr.mxu0 0.0
  %5789 = vmatpush2.msra.mxu0 0.0
  %5790 = vmatprep.subr.mxu0 0.0
  %5791 = vmatpush2.msra.mxu0 0.0
  %5792 = vmatprep.mubr.f32.mxu0 0.0
  %5793 = vmatmul.mubr.f32.gmra.mxu0 %v5726
  %v5794 = vpop.f32.mrf.mxu0
  %v5795 = vadd.f32 0.0, %v5794
  %v5796 = vpop.f32.mrf.mxu0
  %v5797 = vadd.f32 0.0, %v5796
  %5798 = vdwg.mxu0
  %v5799 = vadd.f32 %v5705, %v5795
  %v5800 = vadd.f32 %v5706, %v5797
  %v5801 = vld [vmem:[%s12] sm:$0xff]
  %5803 = vset.pattern.permute.xlu0 0
  %5804 = vperm.xlu0 %5803, %v5801
  %v5805 = vpop.permute.xlu0 %5804
  %v5807 = vadd.f32 %v5799, %v5805
  %v5808 = vadd.f32 %v5800, %v5805
  %v5809 = vmax.f32 %v5807, 0.0
  %v5810 = vmax.f32 %v5808, 0.0
  %v5811 = vld [vmem:[%s13] sm:$0x3]
  %v5812 = vld [vmem:[%s14] sm:$0x3]
  %5814 = vset.pattern.permute.xlu0 0
  %5815 = vperm.xlu0 %5814, %v5812
  %v5816 = vpop.permute.xlu0 %5815
  %v5819 = vsel %vm1052, %v5811, 0
  %5821 = vmatprep.subr.mxu0 0.0
  %5822 = vmatpush1.msra.mxu0 0.0
  %5823 = vmatprep.subr.mxu0 0.0
  %5824 = vmatpush1.msra.mxu0 0.0
  %5825 = vmatprep.subr.mxu0 0.0
  %5826 = vmatpush1.msra.mxu0 0.0
  %5827 = vmatprep.subr.mxu0 0.0
  %5828 = vmatpush1.msra.mxu0 0.0
  %5829 = vmatprep.subr.mxu0 0.0
  %5830 = vmatpush1.msra.mxu0 0.0
  %5831 = vmatprep.subr.mxu0 0.0
  %5832 = vmatpush1.msra.mxu0 0.0
  %5833 = vmatprep.subr.mxu0 0.0
  %5834 = vmatpush1.msra.mxu0 0.0
  %5835 = vmatprep.subr.mxu0 0.0
  %5836 = vmatpush1.msra.mxu0 0.0
  %5837 = vmatprep.subr.mxu0 0.0
  %5838 = vmatpush1.msra.mxu0 0.0
  %5839 = vmatprep.subr.mxu0 0.0
  %5840 = vmatpush1.msra.mxu0 0.0
  %5841 = vmatprep.subr.mxu0 0.0
  %5842 = vmatpush1.msra.mxu0 0.0
  %5843 = vmatprep.subr.mxu0 0.0
  %5844 = vmatpush1.msra.mxu0 0.0
  %5845 = vmatprep.subr.mxu0 0.0
  %5846 = vmatpush1.msra.mxu0 0.0
  %5847 = vmatprep.subr.mxu0 0.0
  %5848 = vmatpush1.msra.mxu0 0.0
  %5849 = vmatprep.subr.mxu0 0.0
  %5850 = vmatpush1.msra.mxu0 0.0
  %5851 = vmatprep.subr.mxu0 %v5810
  %5852 = vmatpush1.msra.mxu0 %v5809
  %5853 = vmatprep.subr.mxu0 0.0
  %5854 = vmatpush2.msra.mxu0 0.0
  %5855 = vmatprep.subr.mxu0 0.0
  %5856 = vmatpush2.msra.mxu0 0.0
  %5857 = vmatprep.subr.mxu0 0.0
  %5858 = vmatpush2.msra.mxu0 0.0
  %5859 = vmatprep.subr.mxu0 0.0
  %5860 = vmatpush2.msra.mxu0 0.0
  %5861 = vmatprep.subr.mxu0 0.0
  %5862 = vmatpush2.msra.mxu0 0.0
  %5863 = vmatprep.subr.mxu0 0.0
  %5864 = vmatpush2.msra.mxu0 0.0
  %5865 = vmatprep.subr.mxu0 0.0
  %5866 = vmatpush2.msra.mxu0 0.0
  %5867 = vmatprep.subr.mxu0 0.0
  %5868 = vmatpush2.msra.mxu0 0.0
  %5869 = vmatprep.subr.mxu0 0.0
  %5870 = vmatpush2.msra.mxu0 0.0
  %5871 = vmatprep.subr.mxu0 0.0
  %5872 = vmatpush2.msra.mxu0 0.0
  %5873 = vmatprep.subr.mxu0 0.0
  %5874 = vmatpush2.msra.mxu0 0.0
  %5875 = vmatprep.subr.mxu0 0.0
  %5876 = vmatpush2.msra.mxu0 0.0
  %5877 = vmatprep.subr.mxu0 0.0
  %5878 = vmatpush2.msra.mxu0 0.0
  %5879 = vmatprep.subr.mxu0 0.0
  %5880 = vmatpush2.msra.mxu0 0.0
  %5881 = vmatprep.subr.mxu0 0.0
  %5882 = vmatpush2.msra.mxu0 0.0
  %5883 = vmatprep.subr.mxu0 0.0
  %5884 = vmatpush2.msra.mxu0 0.0
  %5885 = vmatprep.mubr.f32.mxu0 0.0
  %5886 = vmatmul.mubr.f32.gmra.mxu0 %v5819
  %v5887 = vpop.f32.mrf.mxu0
  %v5888 = vadd.f32 %v5816, %v5887
  %v5889 = vpop.f32.mrf.mxu0
  %v5890 = vadd.f32 %v5816, %v5889
  %5891 = vdwg.mxu0
  %v5894 = vcombine.low %v5888, %v5890
  %v5896 = vunpack.c.l.s4 1983009808
  %v5897 = vunpack.c.0.s8 %v5896
  %v5898 = vlaneseq
  %v5899 = vshrl.u32 %v5898, 7
  %v5900 = vsub.s32 %v5897, %v5899
  %v5901 = vrot.slane %v5894, %v5900
  %5903 = vst [vmem:[%s17] sm:$0xf] %v5901
  // Predicated region
  $region70: #{_lambda_.1} parent=0 // pred_check
    _
  $region71: #{_lambda_.1} parent=0 // pred_check_branch
    %5905 = sbr.rel (0) target = $region73
  $region72: #{_lambda_.1} parent=0 // pred_region
    _
  $region73: #{_lambda_.1} parent=0 // pred_fallthru
    _
  // Predicated region
  $region74: #{_lambda_.1} parent=0 // pred_check
    _
  $region75: #{_lambda_.1} parent=0 // pred_check_branch
    %5907 = sbr.rel (0) target = $region77
  $region76: #{_lambda_.1} parent=0 // pred_region
    _
  $region77: #{_lambda_.1} parent=0 // pred_fallthru
    _

</llo_original>
